<compile_context>
chip_gen: v7x
topology: tpu7x:2x2x1
jax: 0.10.0
libtpu: 0.0.40
codegen_flags: <defaults>
</compile_context>

<pallas_src>
import functools

import jax
import jax.numpy as jnp
from jax.experimental import pallas as pl
from jax.experimental.pallas import tpu as pltpu


# -----------------------------------------------------------------------------
# Fused kernel: conv1(1x1x1)+BN+ReLU -> conv2(1,3,3)+BN+ReLU
#               -> conv3(1x1x1)+BN+residual+ReLU
# -----------------------------------------------------------------------------
def _fused_bottleneck_kernel(x_ref, w1_ref, s1_ref, b1_ref,
                             w2_ref, s2_ref, b2_ref,
                             w3_ref, s3_ref, b3_ref,
                             o_ref, pad_ref, *, FB, H, W):
    Cin = x_ref.shape[-1]
    P = w1_ref.shape[-1]
    M = FB * H * W

    # ---- input block: read once (bf16), reuse for conv1 operand AND residual
    x_bf = x_ref[...]                                   # (M, Cin) bf16
    x_f32 = x_bf.astype(jnp.float32)

    # ---- conv1 (1x1x1) + bn1 + relu  (bf16 MXU operands, f32 accumulate) ----
    h1 = jnp.dot(x_bf, w1_ref[...], preferred_element_type=jnp.float32)  # (M, P)
    h1 = jnp.maximum(h1 * s1_ref[...] + b1_ref[...], 0.0)

    # ---- zero ONLY the halo of the bf16 pad scratch, then write interior ----
    # (interior is fully overwritten every step; halo zeroing stays per-step
    #  because scratch is per-core under "parallel" semantics)
    pad_ref[:, 0:1, :, :] = jnp.zeros((FB, 1, W + 2, P), pad_ref.dtype)
    pad_ref[:, H + 1:H + 2, :, :] = jnp.zeros((FB, 1, W + 2, P), pad_ref.dtype)
    pad_ref[:, :, 0:1, :] = jnp.zeros((FB, H + 2, 1, P), pad_ref.dtype)
    pad_ref[:, :, W + 1:W + 2, :] = jnp.zeros((FB, H + 2, 1, P), pad_ref.dtype)
    pad_ref[:, 1:1 + H, 1:1 + W, :] = (
        h1.reshape(FB, H, W, P).astype(pad_ref.dtype))

    # ---- conv2 (1,3,3): 9 accumulated MXU dots over shifted padded views ----
    acc = jnp.zeros((M, P), jnp.float32)
    for kh in range(3):
        for kw in range(3):
            tap = pad_ref[:, kh:kh + H, kw:kw + W, :].reshape(M, P)   # bf16
            acc = acc + jnp.dot(tap, w2_ref[kh * 3 + kw],
                                preferred_element_type=jnp.float32)
    h2 = jnp.maximum(acc * s2_ref[...] + b2_ref[...], 0.0)

    # ---- conv3 (1x1x1) + bn3 + residual add + relu ----
    y = jnp.dot(h2.astype(jnp.bfloat16), w3_ref[...],
                preferred_element_type=jnp.float32)     # (M, Cout)
    y = jnp.maximum(y * s3_ref[...] + b3_ref[...] + x_f32, 0.0)

    # ---- lane-dense store: channel-major (Cout, M) with M on the lane axis ----
    o_ref[...] = y.T.astype(o_ref.dtype)


# -----------------------------------------------------------------------------
# VMEM-budget-aware frame-block selection
# -----------------------------------------------------------------------------
def _choose_frame_block(F, H, W, Cin, P, Cout,
                        vmem_budget_bytes=32 * 2**20, target_steps=8):
    """Largest frame block whose per-step working set fits the VMEM budget,
    while preferring a grid long enough for pipelining / per-core overlap."""
    def bytes_per_step(fb):
        M = fb * H * W
        x_blk = M * Cin * 2 * 2                       # bf16 input, double-buffered
        out_blk = M * Cout * 4 * 2                    # f32 output, double-buffered
        pad = fb * (H + 2) * (W + 2) * P * 2          # bf16 pad scratch
        tmps = M * (3 * P + 3 * Cout) * 4             # f32 h1/acc/h2/y/x/y.T temps
        weights = (Cin * P + 9 * P * P + P * Cout) * 2 * 2
        bn = 6 * max(P, Cout) * 4 * 2
        return x_blk + out_blk + pad + tmps + weights + bn

    def ok_shape(d):
        m = d * H * W
        # input block needs sublane-aligned rows; lane-dense output block needs
        # its lane dim to be a multiple of 128 (or the full extent).
        return d == F or (m % 128 == 0)

    divisors = [d for d in range(1, F + 1) if F % d == 0 and ok_shape(d)]
    fits = [d for d in divisors if bytes_per_step(d) <= vmem_budget_bytes]
    if not fits:
        fits = [min(divisors)]

    min_rows = min(1024, (F * H * W) // 2)
    for want_steps in (target_steps, 4, 2, 1):
        cand = [d for d in fits
                if (F // d) >= want_steps and d * H * W >= min_rows]
        if cand:
            return cand[-1], bytes_per_step(cand[-1])
    fb = fits[-1]
    return fb, bytes_per_step(fb)


# -----------------------------------------------------------------------------
# pallas_call wrapper
# -----------------------------------------------------------------------------
def fused_bottleneck(x2d, w1, s1, b1, w2t, s2, b2, w3, s3, b3,
                     *, FB, H, W, vmem_limit, cost):
    Mtot, Cin = x2d.shape
    P = w1.shape[1]
    Cout = w3.shape[1]
    F = Mtot // (H * W)
    assert Mtot == F * H * W and F % FB == 0
    assert Cin == Cout, "residual add requires inplanes == planes*expansion"
    MB = FB * H * W
    grid = (F // FB,)

    kernel = functools.partial(_fused_bottleneck_kernel, FB=FB, H=H, W=W)

    return pl.pallas_call(
        kernel,
        out_shape=jax.ShapeDtypeStruct((Cout, Mtot), jnp.float32),
        grid=grid,
        in_specs=[
            pl.BlockSpec((MB, Cin), lambda i: (i, 0)),      # x rows (bf16)
            pl.BlockSpec((Cin, P), lambda i: (0, 0)),       # w1
            pl.BlockSpec((1, P), lambda i: (0, 0)),         # bn1 scale
            pl.BlockSpec((1, P), lambda i: (0, 0)),         # bn1 shift
            pl.BlockSpec((9, P, P), lambda i: (0, 0, 0)),   # w2 (9 taps)
            pl.BlockSpec((1, P), lambda i: (0, 0)),         # bn2 scale
            pl.BlockSpec((1, P), lambda i: (0, 0)),         # bn2 shift
            pl.BlockSpec((P, Cout), lambda i: (0, 0)),      # w3
            pl.BlockSpec((1, Cout), lambda i: (0, 0)),      # bn3 scale
            pl.BlockSpec((1, Cout), lambda i: (0, 0)),      # bn3 shift
        ],
        out_specs=pl.BlockSpec((Cout, MB), lambda i: (0, i)),
        scratch_shapes=[pltpu.VMEM((FB, H + 2, W + 2, P), jnp.bfloat16)],
        compiler_params=pltpu.CompilerParams(
            dimension_semantics=("parallel",),
            vmem_limit_bytes=vmem_limit),
        cost_estimate=cost,
    )(x2d, w1, s1, b1, w2t, s2, b2, w3, s3, b3)


# -----------------------------------------------------------------------------
# Parameter construction (deterministic, synthetic; BN running stats folded)
# -----------------------------------------------------------------------------
def _bn_fold(key, c, eps=1e-5):
    k1, k2, k3, k4 = jax.random.split(key, 4)
    gamma = 1.0 + 0.1 * jax.random.normal(k1, (c,), jnp.float32)
    beta = 0.1 * jax.random.normal(k2, (c,), jnp.float32)
    mean = 0.1 * jax.random.normal(k3, (c,), jnp.float32)
    var = jnp.abs(jax.random.normal(k4, (c,), jnp.float32)) + 0.5
    scale = gamma / jnp.sqrt(var + eps)
    shift = beta - mean * scale
    return scale.reshape(1, c), shift.reshape(1, c)


def make_params(inplanes, planes, key):
    expansion = 4
    ks = jax.random.split(key, 6)
    params = {}
    params["w1"] = 0.1 * jax.random.normal(ks[0], (inplanes, planes), jnp.float32)
    params["bn1"] = _bn_fold(ks[1], planes)
    params["w2"] = 0.1 * jax.random.normal(ks[2], (3, 3, planes, planes), jnp.float32)
    params["bn2"] = _bn_fold(ks[3], planes)
    params["w3"] = 0.1 * jax.random.normal(ks[4], (planes, planes * expansion), jnp.float32)
    params["bn3"] = _bn_fold(ks[5], planes * expansion)
    return params


# -----------------------------------------------------------------------------
# Forward wrapper: Bottleneck.forward (resi=False, stride=1, downsample=None)
# -----------------------------------------------------------------------------
@jax.jit
def bottleneck_forward(x_ncdhw, params):
    # PyTorch (N, C, D, H, W) -> channels-last rows (N*D*H*W, C), bf16 stream.
    x = jnp.transpose(x_ncdhw, (0, 2, 3, 4, 1))
    N, D, H, W, Cin = x.shape
    F = N * D
    x2d = x.reshape(F * H * W, Cin).astype(jnp.bfloat16)

    P = params["w1"].shape[1]
    Cout = params["w3"].shape[1]

    w1 = params["w1"].astype(jnp.bfloat16)
    w2t = params["w2"].reshape(9, P, P).astype(jnp.bfloat16)   # 9 (P,P) taps
    w3 = params["w3"].astype(jnp.bfloat16)
    s1, b1 = params["bn1"]
    s2, b2 = params["bn2"]
    s3, b3 = params["bn3"]

    FB, est_bytes = _choose_frame_block(F, H, W, Cin, P, Cout)
    vmem_limit = int(min(max(1.5 * est_bytes, 32 * 2**20), 48 * 2**20))

    flops = 2 * F * H * W * (Cin * P + 9 * P * P + P * Cout)
    bytes_accessed = (F * H * W * (Cin * 2 + Cout * 4)
                      + (Cin * P + 9 * P * P + P * Cout) * 2
                      + 6 * max(P, Cout) * 4)
    cost = pl.CostEstimate(flops=flops, transcendentals=0,
                           bytes_accessed=bytes_accessed)

    y_t = fused_bottleneck(x2d, w1, s1, b1, w2t, s2, b2, w3, s3, b3,
                           FB=FB, H=H, W=W, vmem_limit=vmem_limit, cost=cost)

    # (Cout, N*D*H*W) -> (N, Cout, D, H, W): same single transpose as before.
    y = y_t.reshape(Cout, N, D, H, W)
    return jnp.transpose(y, (1, 0, 2, 3, 4))


# -----------------------------------------------------------------------------
# Pure-JAX reference (f32) for a correctness check
# -----------------------------------------------------------------------------
def _reference_forward(x_ncdhw, params):
    x = jnp.transpose(x_ncdhw, (0, 2, 3, 4, 1)).astype(jnp.float32)
    N, D, H, W, Cin = x.shape
    w1 = params["w1"]; s1, b1 = params["bn1"]
    w2 = params["w2"]; s2, b2 = params["bn2"]
    w3 = params["w3"]; s3, b3 = params["bn3"]

    h = jnp.maximum(jnp.einsum('ndhwc,cp->ndhwp', x, w1) * s1[0] + b1[0], 0.0)
    hp = jnp.pad(h, ((0, 0), (0, 0), (1, 1), (1, 1), (0, 0)))
    acc = jnp.zeros((N, D, H, W, w2.shape[-1]), jnp.float32)
    for kh in range(3):
        for kw in range(3):
            acc = acc + jnp.einsum('ndhwc,cp->ndhwp',
                                   hp[:, :, kh:kh + H, kw:kw + W, :], w2[kh, kw])
    h = jnp.maximum(acc * s2[0] + b2[0], 0.0)
    y = jnp.einsum('ndhwc,cp->ndhwp', h, w3) * s3[0] + b3[0] + x
    y = jnp.maximum(y, 0.0)
    return jnp.transpose(y, (0, 4, 1, 2, 3))


if __name__ == "__main__":
    # Small shapes consistent with the module: Bottleneck(inplanes=32, planes=8)
    # so that the residual addition (inplanes == planes*expansion) is valid.
    N, D, H, W = 2, 4, 8, 8
    planes = 8
    inplanes = planes * 4  # 32

    key = jax.random.PRNGKey(0)
    kx, kp = jax.random.split(key)
    x = jax.random.normal(kx, (N, inplanes, D, H, W), jnp.float32)
    params = make_params(inplanes, planes, kp)

    y = bottleneck_forward(x, params)
    jax.block_until_ready(y)

    assert y.shape == (N, planes * 4, D, H, W)
    assert bool(jnp.all(jnp.isfinite(y)))

    # Correctness vs. f32 reference (relative check; bf16 input + MXU operands).
    y_ref = _reference_forward(x, params)
    denom = jnp.maximum(jnp.abs(y_ref), 1.0)
    rel_err = float(jnp.max(jnp.abs(y - y_ref) / denom))
    assert rel_err < 5e-2, f"relative error {rel_err}"

    print("KERNEL_OK")
</pallas_src>

<mosaic_0001>
module attributes {stable_mosaic.version = 11 : i64} {
  func.func @_fused_bottleneck_kernel(%arg0: i32, %arg1: memref<256x32xbf16, #tpu.memory_space<vmem>>, %arg2: memref<32x8xbf16, #tpu.memory_space<vmem>>, %arg3: memref<1x8xf32, #tpu.memory_space<vmem>>, %arg4: memref<1x8xf32, #tpu.memory_space<vmem>>, %arg5: memref<9x8x8xbf16, #tpu.memory_space<vmem>>, %arg6: memref<1x8xf32, #tpu.memory_space<vmem>>, %arg7: memref<1x8xf32, #tpu.memory_space<vmem>>, %arg8: memref<8x32xbf16, #tpu.memory_space<vmem>>, %arg9: memref<1x32xf32, #tpu.memory_space<vmem>>, %arg10: memref<1x32xf32, #tpu.memory_space<vmem>>, %arg11: memref<32x256xf32, #tpu.memory_space<vmem>>, %arg12: memref<4x10x10x8xbf16, #tpu.memory_space<vmem>>) attributes {dimension_semantics = [#tpu.dimension_semantics<parallel>], iteration_bounds = array<i64: 2>, scalar_prefetch = 0 : i64, scratch_operands = 1 : i64, tpu.core_type = #tpu.core_type<tc>, window_params = [{transform_indices = @transform_0, window_bounds = array<i64: 256, 32>}, {pipeline_mode = #tpu.pipeline_mode<synchronous>, transform_indices = @transform_1, window_bounds = array<i64: 32, 8>}, {pipeline_mode = #tpu.pipeline_mode<synchronous>, transform_indices = @transform_2, window_bounds = array<i64: 1, 8>}, {pipeline_mode = #tpu.pipeline_mode<synchronous>, transform_indices = @transform_3, window_bounds = array<i64: 1, 8>}, {pipeline_mode = #tpu.pipeline_mode<synchronous>, transform_indices = @transform_4, window_bounds = array<i64: 9, 8, 8>}, {pipeline_mode = #tpu.pipeline_mode<synchronous>, transform_indices = @transform_5, window_bounds = array<i64: 1, 8>}, {pipeline_mode = #tpu.pipeline_mode<synchronous>, transform_indices = @transform_6, window_bounds = array<i64: 1, 8>}, {pipeline_mode = #tpu.pipeline_mode<synchronous>, transform_indices = @transform_7, window_bounds = array<i64: 8, 32>}, {pipeline_mode = #tpu.pipeline_mode<synchronous>, transform_indices = @transform_8, window_bounds = array<i64: 1, 32>}, {pipeline_mode = #tpu.pipeline_mode<synchronous>, transform_indices = @transform_9, window_bounds = array<i64: 1, 32>}, {transform_indices = @transform_10, window_bounds = array<i64: 32, 256>}]} {
    %c0 = arith.constant 0 : index
    %c0_0 = arith.constant 0 : index
    %0 = vector.load %arg1[%c0, %c0_0] : memref<256x32xbf16, #tpu.memory_space<vmem>>, vector<256x32xbf16>
    %1 = arith.extf %0 : vector<256x32xbf16> to vector<256x32xf32>
    %c0_1 = arith.constant 0 : index
    %c0_2 = arith.constant 0 : index
    %2 = vector.load %arg2[%c0_1, %c0_2] : memref<32x8xbf16, #tpu.memory_space<vmem>>, vector<32x8xbf16>
    %cst = arith.constant dense<0.000000e+00> : vector<256x8xf32>
    %3 = tpu.matmul %0, %2, %cst {dimension_numbers = #tpu.dot_dimension_numbers<[1], [0], [0], [1], [0, 0, 1, 1], [], []>} : vector<256x32xbf16>, vector<32x8xbf16>, vector<256x8xf32> -> vector<256x8xf32>
    %c0_3 = arith.constant 0 : index
    %c0_4 = arith.constant 0 : index
    %4 = vector.load %arg3[%c0_3, %c0_4] : memref<1x8xf32, #tpu.memory_space<vmem>>, vector<1x8xf32>
    %5 = vector.broadcast %4 : vector<1x8xf32> to vector<256x8xf32>
    %6 = arith.mulf %3, %5 : vector<256x8xf32>
    %c0_5 = arith.constant 0 : index
    %c0_6 = arith.constant 0 : index
    %7 = vector.load %arg4[%c0_5, %c0_6] : memref<1x8xf32, #tpu.memory_space<vmem>>, vector<1x8xf32>
    %8 = vector.broadcast %7 : vector<1x8xf32> to vector<256x8xf32>
    %9 = arith.addf %6, %8 : vector<256x8xf32>
    %cst_7 = arith.constant 0.000000e+00 : f32
    %10 = vector.broadcast %cst_7 : f32 to vector<256x8xf32>
    %11 = arith.maximumf %9, %10 : vector<256x8xf32>
    %cst_8 = arith.constant 0.000000e+00 : bf16
    %12 = vector.broadcast %cst_8 : bf16 to vector<4x1x10x8xbf16>
    %c0_9 = arith.constant 0 : index
    %c0_10 = arith.constant 0 : index
    %c0_11 = arith.constant 0 : index
    %c0_12 = arith.constant 0 : index
    %13 = vector.load %arg12[%c0_9, %c0_10, %c0_11, %c0_12] : memref<4x10x10x8xbf16, #tpu.memory_space<vmem>>, vector<4x1x10x8xbf16>
    tpu.vector_store %arg12[%c0_9, %c0_10, %c0_11, %c0_12], %12 {strides = array<i32>} : memref<4x10x10x8xbf16, #tpu.memory_space<vmem>>, vector<4x1x10x8xbf16>,
    %cst_13 = arith.constant 0.000000e+00 : bf16
    %14 = vector.broadcast %cst_13 : bf16 to vector<4x1x10x8xbf16>
    %c0_14 = arith.constant 0 : index
    %c9 = arith.constant 9 : index
    %c0_15 = arith.constant 0 : index
    %c0_16 = arith.constant 0 : index
    %15 = vector.load %arg12[%c0_14, %c9, %c0_15, %c0_16] : memref<4x10x10x8xbf16, #tpu.memory_space<vmem>>, vector<4x1x10x8xbf16>
    tpu.vector_store %arg12[%c0_14, %c9, %c0_15, %c0_16], %14 {strides = array<i32>} : memref<4x10x10x8xbf16, #tpu.memory_space<vmem>>, vector<4x1x10x8xbf16>,
    %cst_17 = arith.constant 0.000000e+00 : bf16
    %16 = vector.broadcast %cst_17 : bf16 to vector<4x10x1x8xbf16>
    %c0_18 = arith.constant 0 : index
    %c0_19 = arith.constant 0 : index
    %c0_20 = arith.constant 0 : index
    %c0_21 = arith.constant 0 : index
    %17 = vector.load %arg12[%c0_18, %c0_19, %c0_20, %c0_21] : memref<4x10x10x8xbf16, #tpu.memory_space<vmem>>, vector<4x10x1x8xbf16>
    tpu.vector_store %arg12[%c0_18, %c0_19, %c0_20, %c0_21], %16 {strides = array<i32>} : memref<4x10x10x8xbf16, #tpu.memory_space<vmem>>, vector<4x10x1x8xbf16>,
    %cst_22 = arith.constant 0.000000e+00 : bf16
    %18 = vector.broadcast %cst_22 : bf16 to vector<4x10x1x8xbf16>
    %c0_23 = arith.constant 0 : index
    %c0_24 = arith.constant 0 : index
    %c9_25 = arith.constant 9 : index
    %c0_26 = arith.constant 0 : index
    %19 = vector.load %arg12[%c0_23, %c0_24, %c9_25, %c0_26] : memref<4x10x10x8xbf16, #tpu.memory_space<vmem>>, vector<4x10x1x8xbf16>
    tpu.vector_store %arg12[%c0_23, %c0_24, %c9_25, %c0_26], %18 {strides = array<i32>} : memref<4x10x10x8xbf16, #tpu.memory_space<vmem>>, vector<4x10x1x8xbf16>,
    %20 = vector.shape_cast %11 : vector<256x8xf32> to vector<4x8x8x8xf32>
    %21 = arith.truncf %20 : vector<4x8x8x8xf32> to vector<4x8x8x8xbf16>
    %c0_27 = arith.constant 0 : index
    %c1 = arith.constant 1 : index
    %c1_28 = arith.constant 1 : index
    %c0_29 = arith.constant 0 : index
    %22 = vector.load %arg12[%c0_27, %c1, %c1_28, %c0_29] : memref<4x10x10x8xbf16, #tpu.memory_space<vmem>>, vector<4x8x8x8xbf16>
    tpu.vector_store %arg12[%c0_27, %c1, %c1_28, %c0_29], %21 {strides = array<i32>} : memref<4x10x10x8xbf16, #tpu.memory_space<vmem>>, vector<4x8x8x8xbf16>,
    %cst_30 = arith.constant 0.000000e+00 : f32
    %23 = vector.broadcast %cst_30 : f32 to vector<256x8xf32>
    %c0_31 = arith.constant 0 : index
    %c0_32 = arith.constant 0 : index
    %c0_33 = arith.constant 0 : index
    %c0_34 = arith.constant 0 : index
    %24 = vector.load %arg12[%c0_31, %c0_32, %c0_33, %c0_34] : memref<4x10x10x8xbf16, #tpu.memory_space<vmem>>, vector<4x8x8x8xbf16>
    %25 = vector.shape_cast %24 : vector<4x8x8x8xbf16> to vector<256x8xbf16>
    %c0_35 = arith.constant 0 : index
    %c0_36 = arith.constant 0 : index
    %c0_37 = arith.constant 0 : index
    %26 = vector.load %arg5[%c0_35, %c0_36, %c0_37] : memref<9x8x8xbf16, #tpu.memory_space<vmem>>, vector<1x8x8xbf16>
    %27 = vector.shape_cast %26 : vector<1x8x8xbf16> to vector<8x8xbf16>
    %cst_38 = arith.constant dense<0.000000e+00> : vector<256x8xf32>
    %28 = tpu.matmul %25, %27, %cst_38 {dimension_numbers = #tpu.dot_dimension_numbers<[1], [0], [0], [1], [0, 0, 1, 1], [], []>} : vector<256x8xbf16>, vector<8x8xbf16>, vector<256x8xf32> -> vector<256x8xf32>
    %29 = arith.addf %23, %28 : vector<256x8xf32>
    %c0_39 = arith.constant 0 : index
    %c0_40 = arith.constant 0 : index
    %c1_41 = arith.constant 1 : index
    %c0_42 = arith.constant 0 : index
    %30 = vector.load %arg12[%c0_39, %c0_40, %c1_41, %c0_42] : memref<4x10x10x8xbf16, #tpu.memory_space<vmem>>, vector<4x8x8x8xbf16>
    %31 = vector.shape_cast %30 : vector<4x8x8x8xbf16> to vector<256x8xbf16>
    %c1_43 = arith.constant 1 : index
    %c0_44 = arith.constant 0 : index
    %c0_45 = arith.constant 0 : index
    %32 = vector.load %arg5[%c1_43, %c0_44, %c0_45] : memref<9x8x8xbf16, #tpu.memory_space<vmem>>, vector<1x8x8xbf16>
    %33 = vector.shape_cast %32 : vector<1x8x8xbf16> to vector<8x8xbf16>
    %cst_46 = arith.constant dense<0.000000e+00> : vector<256x8xf32>
    %34 = tpu.matmul %31, %33, %cst_46 {dimension_numbers = #tpu.dot_dimension_numbers<[1], [0], [0], [1], [0, 0, 1, 1], [], []>} : vector<256x8xbf16>, vector<8x8xbf16>, vector<256x8xf32> -> vector<256x8xf32>
    %35 = arith.addf %29, %34 : vector<256x8xf32>
    %c0_47 = arith.constant 0 : index
    %c0_48 = arith.constant 0 : index
    %c2 = arith.constant 2 : index
    %c0_49 = arith.constant 0 : index
    %36 = vector.load %arg12[%c0_47, %c0_48, %c2, %c0_49] : memref<4x10x10x8xbf16, #tpu.memory_space<vmem>>, vector<4x8x8x8xbf16>
    %37 = vector.shape_cast %36 : vector<4x8x8x8xbf16> to vector<256x8xbf16>
    %c2_50 = arith.constant 2 : index
    %c0_51 = arith.constant 0 : index
    %c0_52 = arith.constant 0 : index
    %38 = vector.load %arg5[%c2_50, %c0_51, %c0_52] : memref<9x8x8xbf16, #tpu.memory_space<vmem>>, vector<1x8x8xbf16>
    %39 = vector.shape_cast %38 : vector<1x8x8xbf16> to vector<8x8xbf16>
    %cst_53 = arith.constant dense<0.000000e+00> : vector<256x8xf32>
    %40 = tpu.matmul %37, %39, %cst_53 {dimension_numbers = #tpu.dot_dimension_numbers<[1], [0], [0], [1], [0, 0, 1, 1], [], []>} : vector<256x8xbf16>, vector<8x8xbf16>, vector<256x8xf32> -> vector<256x8xf32>
    %41 = arith.addf %35, %40 : vector<256x8xf32>
    %c0_54 = arith.constant 0 : index
    %c1_55 = arith.constant 1 : index
    %c0_56 = arith.constant 0 : index
    %c0_57 = arith.constant 0 : index
    %42 = vector.load %arg12[%c0_54, %c1_55, %c0_56, %c0_57] : memref<4x10x10x8xbf16, #tpu.memory_space<vmem>>, vector<4x8x8x8xbf16>
    %43 = vector.shape_cast %42 : vector<4x8x8x8xbf16> to vector<256x8xbf16>
    %c3 = arith.constant 3 : index
    %c0_58 = arith.constant 0 : index
    %c0_59 = arith.constant 0 : index
    %44 = vector.load %arg5[%c3, %c0_58, %c0_59] : memref<9x8x8xbf16, #tpu.memory_space<vmem>>, vector<1x8x8xbf16>
    %45 = vector.shape_cast %44 : vector<1x8x8xbf16> to vector<8x8xbf16>
    %cst_60 = arith.constant dense<0.000000e+00> : vector<256x8xf32>
    %46 = tpu.matmul %43, %45, %cst_60 {dimension_numbers = #tpu.dot_dimension_numbers<[1], [0], [0], [1], [0, 0, 1, 1], [], []>} : vector<256x8xbf16>, vector<8x8xbf16>, vector<256x8xf32> -> vector<256x8xf32>
    %47 = arith.addf %41, %46 : vector<256x8xf32>
    %c0_61 = arith.constant 0 : index
    %c1_62 = arith.constant 1 : index
    %c1_63 = arith.constant 1 : index
    %c0_64 = arith.constant 0 : index
    %48 = vector.load %arg12[%c0_61, %c1_62, %c1_63, %c0_64] : memref<4x10x10x8xbf16, #tpu.memory_space<vmem>>, vector<4x8x8x8xbf16>
    %49 = vector.shape_cast %48 : vector<4x8x8x8xbf16> to vector<256x8xbf16>
    %c4 = arith.constant 4 : index
    %c0_65 = arith.constant 0 : index
    %c0_66 = arith.constant 0 : index
    %50 = vector.load %arg5[%c4, %c0_65, %c0_66] : memref<9x8x8xbf16, #tpu.memory_space<vmem>>, vector<1x8x8xbf16>
    %51 = vector.shape_cast %50 : vector<1x8x8xbf16> to vector<8x8xbf16>
    %cst_67 = arith.constant dense<0.000000e+00> : vector<256x8xf32>
    %52 = tpu.matmul %49, %51, %cst_67 {dimension_numbers = #tpu.dot_dimension_numbers<[1], [0], [0], [1], [0, 0, 1, 1], [], []>} : vector<256x8xbf16>, vector<8x8xbf16>, vector<256x8xf32> -> vector<256x8xf32>
    %53 = arith.addf %47, %52 : vector<256x8xf32>
    %c0_68 = arith.constant 0 : index
    %c1_69 = arith.constant 1 : index
    %c2_70 = arith.constant 2 : index
    %c0_71 = arith.constant 0 : index
    %54 = vector.load %arg12[%c0_68, %c1_69, %c2_70, %c0_71] : memref<4x10x10x8xbf16, #tpu.memory_space<vmem>>, vector<4x8x8x8xbf16>
    %55 = vector.shape_cast %54 : vector<4x8x8x8xbf16> to vector<256x8xbf16>
    %c5 = arith.constant 5 : index
    %c0_72 = arith.constant 0 : index
    %c0_73 = arith.constant 0 : index
    %56 = vector.load %arg5[%c5, %c0_72, %c0_73] : memref<9x8x8xbf16, #tpu.memory_space<vmem>>, vector<1x8x8xbf16>
    %57 = vector.shape_cast %56 : vector<1x8x8xbf16> to vector<8x8xbf16>
    %cst_74 = arith.constant dense<0.000000e+00> : vector<256x8xf32>
    %58 = tpu.matmul %55, %57, %cst_74 {dimension_numbers = #tpu.dot_dimension_numbers<[1], [0], [0], [1], [0, 0, 1, 1], [], []>} : vector<256x8xbf16>, vector<8x8xbf16>, vector<256x8xf32> -> vector<256x8xf32>
    %59 = arith.addf %53, %58 : vector<256x8xf32>
    %c0_75 = arith.constant 0 : index
    %c2_76 = arith.constant 2 : index
    %c0_77 = arith.constant 0 : index
    %c0_78 = arith.constant 0 : index
    %60 = vector.load %arg12[%c0_75, %c2_76, %c0_77, %c0_78] : memref<4x10x10x8xbf16, #tpu.memory_space<vmem>>, vector<4x8x8x8xbf16>
    %61 = vector.shape_cast %60 : vector<4x8x8x8xbf16> to vector<256x8xbf16>
    %c6 = arith.constant 6 : index
    %c0_79 = arith.constant 0 : index
    %c0_80 = arith.constant 0 : index
    %62 = vector.load %arg5[%c6, %c0_79, %c0_80] : memref<9x8x8xbf16, #tpu.memory_space<vmem>>, vector<1x8x8xbf16>
    %63 = vector.shape_cast %62 : vector<1x8x8xbf16> to vector<8x8xbf16>
    %cst_81 = arith.constant dense<0.000000e+00> : vector<256x8xf32>
    %64 = tpu.matmul %61, %63, %cst_81 {dimension_numbers = #tpu.dot_dimension_numbers<[1], [0], [0], [1], [0, 0, 1, 1], [], []>} : vector<256x8xbf16>, vector<8x8xbf16>, vector<256x8xf32> -> vector<256x8xf32>
    %65 = arith.addf %59, %64 : vector<256x8xf32>
    %c0_82 = arith.constant 0 : index
    %c2_83 = arith.constant 2 : index
    %c1_84 = arith.constant 1 : index
    %c0_85 = arith.constant 0 : index
    %66 = vector.load %arg12[%c0_82, %c2_83, %c1_84, %c0_85] : memref<4x10x10x8xbf16, #tpu.memory_space<vmem>>, vector<4x8x8x8xbf16>
    %67 = vector.shape_cast %66 : vector<4x8x8x8xbf16> to vector<256x8xbf16>
    %c7 = arith.constant 7 : index
    %c0_86 = arith.constant 0 : index
    %c0_87 = arith.constant 0 : index
    %68 = vector.load %arg5[%c7, %c0_86, %c0_87] : memref<9x8x8xbf16, #tpu.memory_space<vmem>>, vector<1x8x8xbf16>
    %69 = vector.shape_cast %68 : vector<1x8x8xbf16> to vector<8x8xbf16>
    %cst_88 = arith.constant dense<0.000000e+00> : vector<256x8xf32>
    %70 = tpu.matmul %67, %69, %cst_88 {dimension_numbers = #tpu.dot_dimension_numbers<[1], [0], [0], [1], [0, 0, 1, 1], [], []>} : vector<256x8xbf16>, vector<8x8xbf16>, vector<256x8xf32> -> vector<256x8xf32>
    %71 = arith.addf %65, %70 : vector<256x8xf32>
    %c0_89 = arith.constant 0 : index
    %c2_90 = arith.constant 2 : index
    %c2_91 = arith.constant 2 : index
    %c0_92 = arith.constant 0 : index
    %72 = vector.load %arg12[%c0_89, %c2_90, %c2_91, %c0_92] : memref<4x10x10x8xbf16, #tpu.memory_space<vmem>>, vector<4x8x8x8xbf16>
    %73 = vector.shape_cast %72 : vector<4x8x8x8xbf16> to vector<256x8xbf16>
    %c8 = arith.constant 8 : index
    %c0_93 = arith.constant 0 : index
    %c0_94 = arith.constant 0 : index
    %74 = vector.load %arg5[%c8, %c0_93, %c0_94] : memref<9x8x8xbf16, #tpu.memory_space<vmem>>, vector<1x8x8xbf16>
    %75 = vector.shape_cast %74 : vector<1x8x8xbf16> to vector<8x8xbf16>
    %cst_95 = arith.constant dense<0.000000e+00> : vector<256x8xf32>
    %76 = tpu.matmul %73, %75, %cst_95 {dimension_numbers = #tpu.dot_dimension_numbers<[1], [0], [0], [1], [0, 0, 1, 1], [], []>} : vector<256x8xbf16>, vector<8x8xbf16>, vector<256x8xf32> -> vector<256x8xf32>
    %77 = arith.addf %71, %76 : vector<256x8xf32>
    %c0_96 = arith.constant 0 : index
    %c0_97 = arith.constant 0 : index
    %78 = vector.load %arg6[%c0_96, %c0_97] : memref<1x8xf32, #tpu.memory_space<vmem>>, vector<1x8xf32>
    %79 = vector.broadcast %78 : vector<1x8xf32> to vector<256x8xf32>
    %80 = arith.mulf %77, %79 : vector<256x8xf32>
    %c0_98 = arith.constant 0 : index
    %c0_99 = arith.constant 0 : index
    %81 = vector.load %arg7[%c0_98, %c0_99] : memref<1x8xf32, #tpu.memory_space<vmem>>, vector<1x8xf32>
    %82 = vector.broadcast %81 : vector<1x8xf32> to vector<256x8xf32>
    %83 = arith.addf %80, %82 : vector<256x8xf32>
    %cst_100 = arith.constant 0.000000e+00 : f32
    %84 = vector.broadcast %cst_100 : f32 to vector<256x8xf32>
    %85 = arith.maximumf %83, %84 : vector<256x8xf32>
    %86 = arith.truncf %85 : vector<256x8xf32> to vector<256x8xbf16>
    %c0_101 = arith.constant 0 : index
    %c0_102 = arith.constant 0 : index
    %87 = vector.load %arg8[%c0_101, %c0_102] : memref<8x32xbf16, #tpu.memory_space<vmem>>, vector<8x32xbf16>
    %cst_103 = arith.constant dense<0.000000e+00> : vector<256x32xf32>
    %88 = tpu.matmul %86, %87, %cst_103 {dimension_numbers = #tpu.dot_dimension_numbers<[1], [0], [0], [1], [0, 0, 1, 1], [], []>} : vector<256x8xbf16>, vector<8x32xbf16>, vector<256x32xf32> -> vector<256x32xf32>
    %c0_104 = arith.constant 0 : index
    %c0_105 = arith.constant 0 : index
    %89 = vector.load %arg9[%c0_104, %c0_105] : memref<1x32xf32, #tpu.memory_space<vmem>>, vector<1x32xf32>
    %90 = vector.broadcast %89 : vector<1x32xf32> to vector<256x32xf32>
    %91 = arith.mulf %88, %90 : vector<256x32xf32>
    %c0_106 = arith.constant 0 : index
    %c0_107 = arith.constant 0 : index
    %92 = vector.load %arg10[%c0_106, %c0_107] : memref<1x32xf32, #tpu.memory_space<vmem>>, vector<1x32xf32>
    %93 = vector.broadcast %92 : vector<1x32xf32> to vector<256x32xf32>
    %94 = arith.addf %91, %93 : vector<256x32xf32>
    %95 = arith.addf %94, %1 : vector<256x32xf32>
    %cst_108 = arith.constant 0.000000e+00 : f32
    %96 = vector.broadcast %cst_108 : f32 to vector<256x32xf32>
    %97 = arith.maximumf %95, %96 : vector<256x32xf32>
    %98 = tpu.transpose %97, [1, 0] : vector<256x32xf32> -> vector<32x256xf32>
    %c0_109 = arith.constant 0 : index
    %c0_110 = arith.constant 0 : index
    %99 = vector.load %arg11[%c0_109, %c0_110] : memref<32x256xf32, #tpu.memory_space<vmem>>, vector<32x256xf32>
    tpu.vector_store %arg11[%c0_109, %c0_110], %98 {strides = array<i32>} : memref<32x256xf32, #tpu.memory_space<vmem>>, vector<32x256xf32>,
    return
  }
  func.func @transform_0(%arg0: i32) -> (i32, i32) {
    %c0_i32 = arith.constant 0 : i32
    %c0_i32_0 = arith.constant 0 : i32
    return %arg0, %c0_i32 : i32, i32
  }
  func.func @transform_1(%arg0: i32) -> (i32, i32) {
    %c0_i32 = arith.constant 0 : i32
    %c0_i32_0 = arith.constant 0 : i32
    %c0_i32_1 = arith.constant 0 : i32
    return %c0_i32, %c0_i32_0 : i32, i32
  }
  func.func @transform_2(%arg0: i32) -> (i32, i32) {
    %c0_i32 = arith.constant 0 : i32
    %c0_i32_0 = arith.constant 0 : i32
    %c0_i32_1 = arith.constant 0 : i32
    return %c0_i32, %c0_i32_0 : i32, i32
  }
  func.func @transform_3(%arg0: i32) -> (i32, i32) {
    %c0_i32 = arith.constant 0 : i32
    %c0_i32_0 = arith.constant 0 : i32
    %c0_i32_1 = arith.constant 0 : i32
    return %c0_i32, %c0_i32_0 : i32, i32
  }
  func.func @transform_4(%arg0: i32) -> (i32, i32, i32) {
    %c0_i32 = arith.constant 0 : i32
    %c0_i32_0 = arith.constant 0 : i32
    %c0_i32_1 = arith.constant 0 : i32
    %c0_i32_2 = arith.constant 0 : i32
    return %c0_i32, %c0_i32_0, %c0_i32_1 : i32, i32, i32
  }
  func.func @transform_5(%arg0: i32) -> (i32, i32) {
    %c0_i32 = arith.constant 0 : i32
    %c0_i32_0 = arith.constant 0 : i32
    %c0_i32_1 = arith.constant 0 : i32
    return %c0_i32, %c0_i32_0 : i32, i32
  }
  func.func @transform_6(%arg0: i32) -> (i32, i32) {
    %c0_i32 = arith.constant 0 : i32
    %c0_i32_0 = arith.constant 0 : i32
    %c0_i32_1 = arith.constant 0 : i32
    return %c0_i32, %c0_i32_0 : i32, i32
  }
  func.func @transform_7(%arg0: i32) -> (i32, i32) {
    %c0_i32 = arith.constant 0 : i32
    %c0_i32_0 = arith.constant 0 : i32
    %c0_i32_1 = arith.constant 0 : i32
    return %c0_i32, %c0_i32_0 : i32, i32
  }
  func.func @transform_8(%arg0: i32) -> (i32, i32) {
    %c0_i32 = arith.constant 0 : i32
    %c0_i32_0 = arith.constant 0 : i32
    %c0_i32_1 = arith.constant 0 : i32
    return %c0_i32, %c0_i32_0 : i32, i32
  }
  func.func @transform_9(%arg0: i32) -> (i32, i32) {
    %c0_i32 = arith.constant 0 : i32
    %c0_i32_0 = arith.constant 0 : i32
    %c0_i32_1 = arith.constant 0 : i32
    return %c0_i32, %c0_i32_0 : i32, i32
  }
  func.func @transform_10(%arg0: i32) -> (i32, i32) {
    %c0_i32 = arith.constant 0 : i32
    %c0_i32_0 = arith.constant 0 : i32
    return %c0_i32, %arg0 : i32, i32
  }
}

</mosaic_0001>

<llo_original>
// kernel: bottleneck_forward.1
$region0: #{bottleneck_forward.1}
  #allocation0 [shape = 'u32[]', space=smem, size = 0x4, offset = 0x4, fixed_abs, tag = 'smem constant byte address 0x4 - core index']
  #allocation1 [shape = 'u32[144,128]{1,0:T(1,128)}', space=vmem, size = 0x12000, scoped, tag = 'internal scratch']
  #allocation2 [shape = 'bf16[4,10,10,8]{3,2,1,0:T(8,128)(2,1)}', space=vmem, size = 0x28000, scoped, tag = 'scratch operand']
  %s0 = inlined_call_operand.vmem [shape: bf16[512,32], index: 0, kind: input, shape index: {}]
  %s1 = inlined_call_operand.vmem [shape: bf16[32,8], index: 1, kind: input, shape index: {}]
  %s2 = inlined_call_operand.vmem [shape: f32[1,8], index: 2, kind: input, shape index: {}]
  %s3 = inlined_call_operand.vmem [shape: f32[1,8], index: 3, kind: input, shape index: {}]
  %s4 = inlined_call_operand.vmem [shape: bf16[9,8,8], index: 4, kind: input, shape index: {}]
  %s5 = inlined_call_operand.vmem [shape: f32[1,8], index: 5, kind: input, shape index: {}]
  %s6 = inlined_call_operand.vmem [shape: f32[1,8], index: 6, kind: input, shape index: {}]
  %s7 = inlined_call_operand.vmem [shape: bf16[8,32], index: 7, kind: input, shape index: {}]
  %s8 = inlined_call_operand.vmem [shape: f32[1,32], index: 8, kind: input, shape index: {}]
  %s9 = inlined_call_operand.vmem [shape: f32[1,32], index: 9, kind: input, shape index: {}]
  %s10 = inlined_call_operand.vmem [shape: f32[32,512], index: 10, kind: output, shape index: {}]
  %s11 = sld [smem:[#allocation0]]
  $region92: #{bottleneck_forward.1} parent=0
    _
  %s13 = ssub.s32 1, %s11
  %s14 = scalar_select 0, %s13, %s11
  $region1: #{bottleneck_forward.1} parent=0
    #allocation3 [shape = 'u8[65536]{0}', space=vmem, size = 0x10000, scoped, tag = 'output window, operand 0']
    loop: start=0, step=1, limit=4
    $region2: #{bottleneck_forward.1} parent=1 // loop_pre_header
      _
    $region3: #{bottleneck_forward.1} parent=1 // loop_header
      %s16 = sphi 0, %s20
      %p17 = scmp.ge.s32.totalorder %s16, 4
      %s26 = sphi 0, %s28
      %s29 = sphi 0, %s26
      %s30 = sphi 0, %s29
      %s46 = sphi 0, %s30
      %s50 = sphi 0, %s50
      %s52 = sphi 0, %s50
      %s53 = sphi 0, %s52
      %s67 = sphi 0, %s53
      %s71 = sphi 0, %s71
      %s73 = sphi 0, %s71
      %s74 = sphi 0, %s73
      %s88 = sphi 0, %s74
      %s92 = sphi 0, %s92
      %s94 = sphi 0, %s92
      %s95 = sphi 0, %s94
      %s109 = sphi 0, %s95
      %s113 = sphi 0, %s113
      %s115 = sphi 0, %s113
      %s116 = sphi 0, %s115
      %s130 = sphi 0, %s116
      %s134 = sphi 0, %s134
      %s136 = sphi 0, %s134
      %s137 = sphi 0, %s136
      %s151 = sphi 0, %s137
      %s155 = sphi 0, %s155
      %s157 = sphi 0, %s155
      %s158 = sphi 0, %s157
      %s172 = sphi 0, %s158
      %s176 = sphi 0, %s176
      %s178 = sphi 0, %s176
      %s179 = sphi 0, %s178
      %s193 = sphi 0, %s179
      %s197 = sphi 0, %s197
      %s199 = sphi 0, %s197
      %s200 = sphi 0, %s199
      %s214 = sphi 0, %s200
      %s218 = sphi 0, %s218
      %s220 = sphi 0, %s218
      %s221 = sphi 0, %s220
      %s235 = sphi 0, %s221
      %s241 = sphi 0, %s243
      %s244 = sphi 0, %s241
      %s245 = sphi 0, %s244
      %s261 = sphi 0, %s245
    $region4: #{bottleneck_forward.1} parent=1 // loop_header_branch
      %19 = sbr.rel (%p17) target = $region8
    $region5: #{bottleneck_forward.1} parent=1 // loop_body
      %s21 = ssub.s32 %s16, 1
      %s22 = ssub.s32 %s16, 2
      %s23 = sadd.s32 %s16, 1
      %s24 = ssub.s32 %s16, %s23
      %p25 = scmp.eq.s32.totalorder %s24, 0
      %s27 = sadd.s32 %s26, 1
      %s28 = scalar_select %p25, %s26, %s27
      %p31 = pneg %p25
      %p32 = scmp.eq.s32.totalorder %s16, 1
      %p33 = por %p31, %p32
      %p34 = scmp.ne.s32.totalorder %s26, %s29
      %p35 = scmp.eq.s32.totalorder %s16, 0
      %p36 = por %p34, %p35
      %p37 = scmp.ne.s32.totalorder %s26, %s29
      %p38 = scmp.eq.s32.totalorder %s21, 1
      %p39 = por %p37, %p38
      %p40 = scmp.ne.s32.totalorder %s29, %s30
      %p41 = scmp.eq.s32.totalorder %s21, 0
      %p42 = por %p40, %p41
      %p43 = scmp.ne.s32.totalorder %s29, %s30
      %p44 = scmp.eq.s32.totalorder %s22, 1
      %p45 = por %p43, %p44
      %p47 = scmp.ne.s32.totalorder %s30, %s46
      %p48 = scmp.eq.s32.totalorder %s22, 0
      %p49 = por %p47, %p48
      %s51 = sadd.s32 %s50, 1
      %p54 = scmp.eq.s32.totalorder %s16, 1
      %p55 = scmp.ne.s32.totalorder %s50, %s52
      %p56 = scmp.eq.s32.totalorder %s16, 0
      %p57 = por %p55, %p56
      %p58 = scmp.ne.s32.totalorder %s50, %s52
      %p59 = scmp.eq.s32.totalorder %s21, 1
      %p60 = por %p58, %p59
      %p61 = scmp.ne.s32.totalorder %s52, %s53
      %p62 = scmp.eq.s32.totalorder %s21, 0
      %p63 = por %p61, %p62
      %p64 = scmp.ne.s32.totalorder %s52, %s53
      %p65 = scmp.eq.s32.totalorder %s22, 1
      %p66 = por %p64, %p65
      %p68 = scmp.ne.s32.totalorder %s53, %s67
      %p69 = scmp.eq.s32.totalorder %s22, 0
      %p70 = por %p68, %p69
      %s72 = sadd.s32 %s71, 1
      %p75 = scmp.eq.s32.totalorder %s16, 1
      %p76 = scmp.ne.s32.totalorder %s71, %s73
      %p77 = scmp.eq.s32.totalorder %s16, 0
      %p78 = por %p76, %p77
      %p79 = scmp.ne.s32.totalorder %s71, %s73
      %p80 = scmp.eq.s32.totalorder %s21, 1
      %p81 = por %p79, %p80
      %p82 = scmp.ne.s32.totalorder %s73, %s74
      %p83 = scmp.eq.s32.totalorder %s21, 0
      %p84 = por %p82, %p83
      %p85 = scmp.ne.s32.totalorder %s73, %s74
      %p86 = scmp.eq.s32.totalorder %s22, 1
      %p87 = por %p85, %p86
      %p89 = scmp.ne.s32.totalorder %s74, %s88
      %p90 = scmp.eq.s32.totalorder %s22, 0
      %p91 = por %p89, %p90
      %s93 = sadd.s32 %s92, 1
      %p96 = scmp.eq.s32.totalorder %s16, 1
      %p97 = scmp.ne.s32.totalorder %s92, %s94
      %p98 = scmp.eq.s32.totalorder %s16, 0
      %p99 = por %p97, %p98
      %p100 = scmp.ne.s32.totalorder %s92, %s94
      %p101 = scmp.eq.s32.totalorder %s21, 1
      %p102 = por %p100, %p101
      %p103 = scmp.ne.s32.totalorder %s94, %s95
      %p104 = scmp.eq.s32.totalorder %s21, 0
      %p105 = por %p103, %p104
      %p106 = scmp.ne.s32.totalorder %s94, %s95
      %p107 = scmp.eq.s32.totalorder %s22, 1
      %p108 = por %p106, %p107
      %p110 = scmp.ne.s32.totalorder %s95, %s109
      %p111 = scmp.eq.s32.totalorder %s22, 0
      %p112 = por %p110, %p111
      %s114 = sadd.s32 %s113, 1
      %p117 = scmp.eq.s32.totalorder %s16, 1
      %p118 = scmp.ne.s32.totalorder %s113, %s115
      %p119 = scmp.eq.s32.totalorder %s16, 0
      %p120 = por %p118, %p119
      %p121 = scmp.ne.s32.totalorder %s113, %s115
      %p122 = scmp.eq.s32.totalorder %s21, 1
      %p123 = por %p121, %p122
      %p124 = scmp.ne.s32.totalorder %s115, %s116
      %p125 = scmp.eq.s32.totalorder %s21, 0
      %p126 = por %p124, %p125
      %p127 = scmp.ne.s32.totalorder %s115, %s116
      %p128 = scmp.eq.s32.totalorder %s22, 1
      %p129 = por %p127, %p128
      %p131 = scmp.ne.s32.totalorder %s116, %s130
      %p132 = scmp.eq.s32.totalorder %s22, 0
      %p133 = por %p131, %p132
      %s135 = sadd.s32 %s134, 1
      %p138 = scmp.eq.s32.totalorder %s16, 1
      %p139 = scmp.ne.s32.totalorder %s134, %s136
      %p140 = scmp.eq.s32.totalorder %s16, 0
      %p141 = por %p139, %p140
      %p142 = scmp.ne.s32.totalorder %s134, %s136
      %p143 = scmp.eq.s32.totalorder %s21, 1
      %p144 = por %p142, %p143
      %p145 = scmp.ne.s32.totalorder %s136, %s137
      %p146 = scmp.eq.s32.totalorder %s21, 0
      %p147 = por %p145, %p146
      %p148 = scmp.ne.s32.totalorder %s136, %s137
      %p149 = scmp.eq.s32.totalorder %s22, 1
      %p150 = por %p148, %p149
      %p152 = scmp.ne.s32.totalorder %s137, %s151
      %p153 = scmp.eq.s32.totalorder %s22, 0
      %p154 = por %p152, %p153
      %s156 = sadd.s32 %s155, 1
      %p159 = scmp.eq.s32.totalorder %s16, 1
      %p160 = scmp.ne.s32.totalorder %s155, %s157
      %p161 = scmp.eq.s32.totalorder %s16, 0
      %p162 = por %p160, %p161
      %p163 = scmp.ne.s32.totalorder %s155, %s157
      %p164 = scmp.eq.s32.totalorder %s21, 1
      %p165 = por %p163, %p164
      %p166 = scmp.ne.s32.totalorder %s157, %s158
      %p167 = scmp.eq.s32.totalorder %s21, 0
      %p168 = por %p166, %p167
      %p169 = scmp.ne.s32.totalorder %s157, %s158
      %p170 = scmp.eq.s32.totalorder %s22, 1
      %p171 = por %p169, %p170
      %p173 = scmp.ne.s32.totalorder %s158, %s172
      %p174 = scmp.eq.s32.totalorder %s22, 0
      %p175 = por %p173, %p174
      %s177 = sadd.s32 %s176, 1
      %p180 = scmp.eq.s32.totalorder %s16, 1
      %p181 = scmp.ne.s32.totalorder %s176, %s178
      %p182 = scmp.eq.s32.totalorder %s16, 0
      %p183 = por %p181, %p182
      %p184 = scmp.ne.s32.totalorder %s176, %s178
      %p185 = scmp.eq.s32.totalorder %s21, 1
      %p186 = por %p184, %p185
      %p187 = scmp.ne.s32.totalorder %s178, %s179
      %p188 = scmp.eq.s32.totalorder %s21, 0
      %p189 = por %p187, %p188
      %p190 = scmp.ne.s32.totalorder %s178, %s179
      %p191 = scmp.eq.s32.totalorder %s22, 1
      %p192 = por %p190, %p191
      %p194 = scmp.ne.s32.totalorder %s179, %s193
      %p195 = scmp.eq.s32.totalorder %s22, 0
      %p196 = por %p194, %p195
      %s198 = sadd.s32 %s197, 1
      %p201 = scmp.eq.s32.totalorder %s16, 1
      %p202 = scmp.ne.s32.totalorder %s197, %s199
      %p203 = scmp.eq.s32.totalorder %s16, 0
      %p204 = por %p202, %p203
      %p205 = scmp.ne.s32.totalorder %s197, %s199
      %p206 = scmp.eq.s32.totalorder %s21, 1
      %p207 = por %p205, %p206
      %p208 = scmp.ne.s32.totalorder %s199, %s200
      %p209 = scmp.eq.s32.totalorder %s21, 0
      %p210 = por %p208, %p209
      %p211 = scmp.ne.s32.totalorder %s199, %s200
      %p212 = scmp.eq.s32.totalorder %s22, 1
      %p213 = por %p211, %p212
      %p215 = scmp.ne.s32.totalorder %s200, %s214
      %p216 = scmp.eq.s32.totalorder %s22, 0
      %p217 = por %p215, %p216
      %s219 = sadd.s32 %s218, 1
      %p222 = scmp.eq.s32.totalorder %s16, 1
      %p223 = scmp.ne.s32.totalorder %s218, %s220
      %p224 = scmp.eq.s32.totalorder %s16, 0
      %p225 = por %p223, %p224
      %p226 = scmp.ne.s32.totalorder %s218, %s220
      %p227 = scmp.eq.s32.totalorder %s21, 1
      %p228 = por %p226, %p227
      %p229 = scmp.ne.s32.totalorder %s220, %s221
      %p230 = scmp.eq.s32.totalorder %s21, 0
      %p231 = por %p229, %p230
      %p232 = scmp.ne.s32.totalorder %s220, %s221
      %p233 = scmp.eq.s32.totalorder %s22, 1
      %p234 = por %p232, %p233
      %p236 = scmp.ne.s32.totalorder %s221, %s235
      %p237 = scmp.eq.s32.totalorder %s22, 0
      %p238 = por %p236, %p237
      %s239 = ssub.s32 %s16, %s23
      %p240 = scmp.eq.s32.totalorder %s239, 0
      %s242 = sadd.s32 %s241, 1
      %s243 = scalar_select %p240, %s241, %s242
      %p246 = pneg %p240
      %p247 = scmp.eq.s32.totalorder %s16, 1
      %p248 = por %p246, %p247
      %p249 = scmp.ne.s32.totalorder %s241, %s244
      %p250 = scmp.eq.s32.totalorder %s16, 0
      %p251 = por %p249, %p250
      %p252 = scmp.ne.s32.totalorder %s241, %s244
      %p253 = scmp.eq.s32.totalorder %s21, 1
      %p254 = por %p252, %p253
      %p255 = scmp.ne.s32.totalorder %s244, %s245
      %p256 = scmp.eq.s32.totalorder %s21, 0
      %p257 = por %p255, %p256
      %p258 = scmp.ne.s32.totalorder %s244, %s245
      %p259 = scmp.eq.s32.totalorder %s22, 1
      %p260 = por %p258, %p259
      %p262 = scmp.ne.s32.totalorder %s245, %s261
      %p263 = scmp.eq.s32.totalorder %s22, 0
      %p264 = por %p262, %p263
      %p265 = scmp.le.s32.totalorder 1, %s16
      %p266 = scmp.lt.s32.totalorder %s16, 3
      %p267 = pnand %p265, %p266
      %p268 = pneg %p267
      // Predicated region
      $region9: #{bottleneck_forward.1} parent=5 // pred_check
        _
      $region10: #{bottleneck_forward.1} parent=5 // pred_check_branch
        %270 = sbr.rel (%p267) target = $region12
      $region11: #{bottleneck_forward.1} parent=5 // pred_region
        %s271 = ssub.s32 %s16, 1
        // Predicated region
        $region13: #{bottleneck_forward.1} parent=11 // pred_check
          %p272 = pneg %p63
        $region14: #{bottleneck_forward.1} parent=11 // pred_check_branch
          %274 = sbr.rel (%p272) target = $region16
        $region15: #{bottleneck_forward.1} parent=11 // pred_region
          _
        $region16: #{bottleneck_forward.1} parent=11 // pred_fallthru
          _
        // Predicated region
        $region17: #{bottleneck_forward.1} parent=11 // pred_check
          %p275 = pneg %p84
        $region18: #{bottleneck_forward.1} parent=11 // pred_check_branch
          %277 = sbr.rel (%p275) target = $region20
        $region19: #{bottleneck_forward.1} parent=11 // pred_region
          _
        $region20: #{bottleneck_forward.1} parent=11 // pred_fallthru
          _
        // Predicated region
        $region21: #{bottleneck_forward.1} parent=11 // pred_check
          %p278 = pneg %p105
        $region22: #{bottleneck_forward.1} parent=11 // pred_check_branch
          %280 = sbr.rel (%p278) target = $region24
        $region23: #{bottleneck_forward.1} parent=11 // pred_region
          _
        $region24: #{bottleneck_forward.1} parent=11 // pred_fallthru
          _
        // Predicated region
        $region25: #{bottleneck_forward.1} parent=11 // pred_check
          %p281 = pneg %p126
        $region26: #{bottleneck_forward.1} parent=11 // pred_check_branch
          %283 = sbr.rel (%p281) target = $region28
        $region27: #{bottleneck_forward.1} parent=11 // pred_region
          _
        $region28: #{bottleneck_forward.1} parent=11 // pred_fallthru
          _
        // Predicated region
        $region29: #{bottleneck_forward.1} parent=11 // pred_check
          %p284 = pneg %p147
        $region30: #{bottleneck_forward.1} parent=11 // pred_check_branch
          %286 = sbr.rel (%p284) target = $region32
        $region31: #{bottleneck_forward.1} parent=11 // pred_region
          _
        $region32: #{bottleneck_forward.1} parent=11 // pred_fallthru
          _
        // Predicated region
        $region33: #{bottleneck_forward.1} parent=11 // pred_check
          %p287 = pneg %p168
        $region34: #{bottleneck_forward.1} parent=11 // pred_check_branch
          %289 = sbr.rel (%p287) target = $region36
        $region35: #{bottleneck_forward.1} parent=11 // pred_region
          _
        $region36: #{bottleneck_forward.1} parent=11 // pred_fallthru
          _
        // Predicated region
        $region37: #{bottleneck_forward.1} parent=11 // pred_check
          %p290 = pneg %p189
        $region38: #{bottleneck_forward.1} parent=11 // pred_check_branch
          %292 = sbr.rel (%p290) target = $region40
        $region39: #{bottleneck_forward.1} parent=11 // pred_region
          _
        $region40: #{bottleneck_forward.1} parent=11 // pred_fallthru
          _
        // Predicated region
        $region41: #{bottleneck_forward.1} parent=11 // pred_check
          %p293 = pneg %p210
        $region42: #{bottleneck_forward.1} parent=11 // pred_check_branch
          %295 = sbr.rel (%p293) target = $region44
        $region43: #{bottleneck_forward.1} parent=11 // pred_region
          _
        $region44: #{bottleneck_forward.1} parent=11 // pred_fallthru
          _
        // Predicated region
        $region45: #{bottleneck_forward.1} parent=11 // pred_check
          %p296 = pneg %p231
        $region46: #{bottleneck_forward.1} parent=11 // pred_check_branch
          %298 = sbr.rel (%p296) target = $region48
        $region47: #{bottleneck_forward.1} parent=11 // pred_region
          _
        $region48: #{bottleneck_forward.1} parent=11 // pred_fallthru
          _
      $region12: #{bottleneck_forward.1} parent=5 // pred_fallthru
        _
      %p299 = scmp.lt.s32.totalorder %s16, 2
      // Predicated region
      $region49: #{bottleneck_forward.1} parent=5 // pred_check
        %p300 = pneg %p299
      $region50: #{bottleneck_forward.1} parent=5 // pred_check_branch
        %302 = sbr.rel (%p300) target = $region52
      $region51: #{bottleneck_forward.1} parent=5 // pred_region
        // Predicated region
        $region53: #{bottleneck_forward.1} parent=51 // pred_check
          %p303 = pneg %p36
        $region54: #{bottleneck_forward.1} parent=51 // pred_check_branch
          %305 = sbr.rel (%p303) target = $region56
        $region55: #{bottleneck_forward.1} parent=51 // pred_region
          %s306 = smul.u32 32, %s16
          %p307 = scmp.lt.s32.totalorder %s306, 63
          %s308 = scalar_select %p307, %s306, 63
          %s309 = smul.addr %s308, 4
          %s310 = scalar_lea.vmem %s0, %s309
          %s311 = smul.u32 32, %s16
        $region56: #{bottleneck_forward.1} parent=51 // pred_fallthru
          _
      $region52: #{bottleneck_forward.1} parent=5 // pred_fallthru
        _
      %p312 = scmp.le.s32.totalorder 1, %s16
      %p313 = scmp.lt.s32.totalorder %s16, 3
      %p314 = pnand %p312, %p313
      %p315 = pneg %p314
      // Predicated region
      $region57: #{bottleneck_forward.1} parent=5 // pred_check
        _
      $region58: #{bottleneck_forward.1} parent=5 // pred_check_branch
        %317 = sbr.rel (%p314) target = $region60
      $region59: #{bottleneck_forward.1} parent=5 // pred_region
        %s318 = ssub.s32 %s16, 1
        %s319 = smul.u32 32, %s21
        %p320 = scmp.lt.s32.totalorder %s319, 63
        %s321 = scalar_select %p320, %s319, 63
        %s322 = smul.addr %s321, 4
        %s323 = scalar_lea.vmem %s0, %s322
        %p324 = pneg %p42
        %p325 = pneg %p39
        %p326 = pneg %p63
        %p327 = pneg %p60
        %p328 = pneg %p84
        %p329 = pneg %p81
        %p330 = pneg %p105
        %p331 = pneg %p102
        %p332 = pneg %p126
        %p333 = pneg %p123
        %p334 = pneg %p147
        %p335 = pneg %p144
        %p336 = pneg %p168
        %p337 = pneg %p165
        %p338 = pneg %p189
        %p339 = pneg %p186
        %p340 = pneg %p210
        %p341 = pneg %p207
        %p342 = pneg %p231
        %p343 = pneg %p228
        %p344 = pneg %p257
        %p345 = pneg %p254
        %s346 = sand.u32 %s244, 1
        %s347 = sand.u32 %s244, 1
        %s348 = smul.addr %s347, 64
        %s349 = scalar_lea.vmem [#allocation3], %s348
        %s350 = smul.u32 32, %s21
        %p351 = scmp.lt.s32.totalorder %s350, 63
        %s352 = scalar_select %p351, %s350, 63
        %s353 = smul.addr %s352, 4
        %s354 = scalar_lea.vmem %s0, %s353
        %s355 = smul.u32 32, %s21
        %s356 = smul.u32 2, %s21
        %v358 = vld [vmem:[%s354] sm:$0xf]
        %v359 = vld [vmem:[%s354 + $0x4] sm:$0xf]
        %v360 = vld [vmem:[%s354 + $0x8] sm:$0xf]
        %v361 = vld [vmem:[%s354 + $0xc] sm:$0xf]
        %v362 = vld [vmem:[%s354 + $0x10] sm:$0xf]
        %v363 = vld [vmem:[%s354 + $0x14] sm:$0xf]
        %v364 = vld [vmem:[%s354 + $0x18] sm:$0xf]
        %v365 = vld [vmem:[%s354 + $0x1c] sm:$0xf]
        %v366 = vld [vmem:[%s354 + $0x20] sm:$0xf]
        %v367 = vld [vmem:[%s354 + $0x24] sm:$0xf]
        %v368 = vld [vmem:[%s354 + $0x28] sm:$0xf]
        %v369 = vld [vmem:[%s354 + $0x2c] sm:$0xf]
        %v370 = vld [vmem:[%s354 + $0x30] sm:$0xf]
        %v371 = vld [vmem:[%s354 + $0x34] sm:$0xf]
        %v372 = vld [vmem:[%s354 + $0x38] sm:$0xf]
        %v373 = vld [vmem:[%s354 + $0x3c] sm:$0xf]
        %v374 = vld [vmem:[%s354 + $0x40] sm:$0xf]
        %v375 = vld [vmem:[%s354 + $0x44] sm:$0xf]
        %v376 = vld [vmem:[%s354 + $0x48] sm:$0xf]
        %v377 = vld [vmem:[%s354 + $0x4c] sm:$0xf]
        %v378 = vld [vmem:[%s354 + $0x50] sm:$0xf]
        %v379 = vld [vmem:[%s354 + $0x54] sm:$0xf]
        %v380 = vld [vmem:[%s354 + $0x58] sm:$0xf]
        %v381 = vld [vmem:[%s354 + $0x5c] sm:$0xf]
        %v382 = vld [vmem:[%s354 + $0x60] sm:$0xf]
        %v383 = vld [vmem:[%s354 + $0x64] sm:$0xf]
        %v384 = vld [vmem:[%s354 + $0x68] sm:$0xf]
        %v385 = vld [vmem:[%s354 + $0x6c] sm:$0xf]
        %v386 = vld [vmem:[%s354 + $0x70] sm:$0xf]
        %v387 = vld [vmem:[%s354 + $0x74] sm:$0xf]
        %v388 = vld [vmem:[%s354 + $0x78] sm:$0xf]
        %v389 = vld [vmem:[%s354 + $0x7c] sm:$0xf]
        %v390 = vunpack.c.l.bf16 %v358
        %v391 = vunpack.c.l.bf16 %v359
        %v392 = vunpack.c.l.bf16 %v360
        %v393 = vunpack.c.l.bf16 %v361
        %v394 = vunpack.c.l.bf16 %v362
        %v395 = vunpack.c.l.bf16 %v363
        %v396 = vunpack.c.l.bf16 %v364
        %v397 = vunpack.c.l.bf16 %v365
        %v398 = vunpack.c.l.bf16 %v366
        %v399 = vunpack.c.l.bf16 %v367
        %v400 = vunpack.c.l.bf16 %v368
        %v401 = vunpack.c.l.bf16 %v369
        %v402 = vunpack.c.l.bf16 %v370
        %v403 = vunpack.c.l.bf16 %v371
        %v404 = vunpack.c.l.bf16 %v372
        %v405 = vunpack.c.l.bf16 %v373
        %v406 = vunpack.c.l.bf16 %v374
        %v407 = vunpack.c.l.bf16 %v375
        %v408 = vunpack.c.l.bf16 %v376
        %v409 = vunpack.c.l.bf16 %v377
        %v410 = vunpack.c.l.bf16 %v378
        %v411 = vunpack.c.l.bf16 %v379
        %v412 = vunpack.c.l.bf16 %v380
        %v413 = vunpack.c.l.bf16 %v381
        %v414 = vunpack.c.l.bf16 %v382
        %v415 = vunpack.c.l.bf16 %v383
        %v416 = vunpack.c.l.bf16 %v384
        %v417 = vunpack.c.l.bf16 %v385
        %v418 = vunpack.c.l.bf16 %v386
        %v419 = vunpack.c.l.bf16 %v387
        %v420 = vunpack.c.l.bf16 %v388
        %v421 = vunpack.c.l.bf16 %v389
        %v422 = vld [vmem:[%s1] sm:$0xf]
        %v423 = vld [vmem:[%s1 + $0x4] sm:$0xf]
        %v424 = vld [vmem:[%s1 + $0x8] sm:$0xf]
        %v425 = vld [vmem:[%s1 + $0xc] sm:$0xf]
        %v458 = vunpack.c.l.b16 %v358
        %v459 = vunpack.c.l.b16 %v359
        %v460 = vunpack.c.l.b16 %v360
        %v461 = vunpack.c.l.b16 %v361
        %v462 = vunpack.c.l.b16 %v362
        %v463 = vunpack.c.l.b16 %v363
        %v464 = vunpack.c.l.b16 %v364
        %v465 = vunpack.c.l.b16 %v365
        %v466 = vunpack.c.l.b16 %v366
        %v467 = vunpack.c.l.b16 %v367
        %v468 = vunpack.c.l.b16 %v368
        %v469 = vunpack.c.l.b16 %v369
        %v470 = vunpack.c.l.b16 %v370
        %v471 = vunpack.c.l.b16 %v371
        %v472 = vunpack.c.l.b16 %v372
        %v473 = vunpack.c.l.b16 %v373
        %v474 = vunpack.c.l.b16 %v374
        %v475 = vunpack.c.l.b16 %v375
        %v476 = vunpack.c.l.b16 %v376
        %v477 = vunpack.c.l.b16 %v377
        %v478 = vunpack.c.l.b16 %v378
        %v479 = vunpack.c.l.b16 %v379
        %v480 = vunpack.c.l.b16 %v380
        %v481 = vunpack.c.l.b16 %v381
        %v482 = vunpack.c.l.b16 %v382
        %v483 = vunpack.c.l.b16 %v383
        %v484 = vunpack.c.l.b16 %v384
        %v485 = vunpack.c.l.b16 %v385
        %v486 = vunpack.c.l.b16 %v386
        %v487 = vunpack.c.l.b16 %v387
        %v488 = vunpack.c.l.b16 %v388
        %v489 = vunpack.c.l.b16 %v389
        %v490 = vpack.c.b16 %v459, %v458
        %v491 = vpack.c.b16 %v461, %v460
        %v492 = vpack.c.b16 %v463, %v462
        %v493 = vpack.c.b16 %v465, %v464
        %v494 = vpack.c.b16 %v467, %v466
        %v495 = vpack.c.b16 %v469, %v468
        %v496 = vpack.c.b16 %v471, %v470
        %v497 = vpack.c.b16 %v473, %v472
        %v498 = vpack.c.b16 %v475, %v474
        %v499 = vpack.c.b16 %v477, %v476
        %v500 = vpack.c.b16 %v479, %v478
        %v501 = vpack.c.b16 %v481, %v480
        %v502 = vpack.c.b16 %v483, %v482
        %v503 = vpack.c.b16 %v485, %v484
        %v504 = vpack.c.b16 %v487, %v486
        %v505 = vpack.c.b16 %v489, %v488
        %v510 = vunpack.c.l.b16 %v422
        %v511 = vunpack.c.l.b16 %v423
        %v512 = vunpack.c.l.b16 %v424
        %v513 = vunpack.c.l.b16 %v425
        %v514 = vpack.c.b16 %v511, %v510
        %v515 = vpack.c.b16 %v513, %v512
        %vm518 = vcmask 261120
        %v520 = vsel %vm518, %v490, 0
        %v523 = vsel %vm518, %v491, 0
        %v526 = vsel %vm518, %v492, 0
        %v529 = vsel %vm518, %v493, 0
        %v532 = vsel %vm518, %v494, 0
        %v535 = vsel %vm518, %v495, 0
        %v538 = vsel %vm518, %v496, 0
        %v541 = vsel %vm518, %v497, 0
        %v544 = vsel %vm518, %v498, 0
        %v547 = vsel %vm518, %v499, 0
        %v550 = vsel %vm518, %v500, 0
        %v553 = vsel %vm518, %v501, 0
        %v556 = vsel %vm518, %v502, 0
        %v559 = vsel %vm518, %v503, 0
        %v562 = vsel %vm518, %v504, 0
        %v565 = vsel %vm518, %v505, 0
        %567 = vmatprep.subr.bf16.mxu0 0
        %568 = vmatpush1.bf16.msra.mxu0 %v514
        %569 = vmatprep.subr.bf16.mxu0 0
        %570 = vmatpush1.bf16.msra.mxu0 %v515
        %571 = vmatprep.subr.bf16.mxu0 0
        %572 = vmatpush1.bf16.msra.mxu0 0
        %573 = vmatprep.subr.bf16.mxu0 0
        %574 = vmatpush1.bf16.msra.mxu0 0
        %575 = vmatprep.subr.bf16.mxu0 0
        %576 = vmatpush1.bf16.msra.mxu0 0
        %577 = vmatprep.subr.bf16.mxu0 0
        %578 = vmatpush1.bf16.msra.mxu0 0
        %579 = vmatprep.subr.bf16.mxu0 0
        %580 = vmatpush1.bf16.msra.mxu0 0
        %581 = vmatprep.subr.bf16.mxu0 0
        %582 = vmatpush1.bf16.msra.mxu0 0
        %583 = vmatprep.subr.bf16.mxu0 0
        %584 = vmatpush1.bf16.msra.mxu0 0
        %585 = vmatprep.subr.bf16.mxu0 0
        %586 = vmatpush1.bf16.msra.mxu0 0
        %587 = vmatprep.subr.bf16.mxu0 0
        %588 = vmatpush1.bf16.msra.mxu0 0
        %589 = vmatprep.subr.bf16.mxu0 0
        %590 = vmatpush1.bf16.msra.mxu0 0
        %591 = vmatprep.subr.bf16.mxu0 0
        %592 = vmatpush1.bf16.msra.mxu0 0
        %593 = vmatprep.subr.bf16.mxu0 0
        %594 = vmatpush1.bf16.msra.mxu0 0
        %595 = vmatprep.subr.bf16.mxu0 0
        %596 = vmatpush1.bf16.msra.mxu0 0
        %597 = vmatprep.subr.bf16.mxu0 0
        %598 = vmatpush1.bf16.msra.mxu0 0
        %599 = vmatprep.mubr.bf16.mxu0 0
        %600 = vmatmul.mubr.bf16.gmra.mrb[0].mxu0 %v520
        %v601 = vpop.f32.mrb[0].mxu0
        %v602 = vadd.f32 0.0, %v601
        %v603 = vpop.f32.mrb[0].mxu0
        %v604 = vpop.f32.mrb[0].mxu0
        %v605 = vadd.f32 0.0, %v604
        %v606 = vpop.f32.mrb[0].mxu0
        %607 = vmatprep.mubr.bf16.mxu0 0
        %608 = vmatmul.mubr.bf16.gmra.mrb[0].mxu0 %v523
        %v609 = vpop.f32.mrb[0].mxu0
        %v610 = vadd.f32 0.0, %v609
        %v611 = vpop.f32.mrb[0].mxu0
        %v612 = vpop.f32.mrb[0].mxu0
        %v613 = vadd.f32 0.0, %v612
        %v614 = vpop.f32.mrb[0].mxu0
        %615 = vmatprep.mubr.bf16.mxu0 0
        %616 = vmatmul.mubr.bf16.gmra.mrb[0].mxu0 %v526
        %v617 = vpop.f32.mrb[0].mxu0
        %v618 = vadd.f32 0.0, %v617
        %v619 = vpop.f32.mrb[0].mxu0
        %v620 = vpop.f32.mrb[0].mxu0
        %v621 = vadd.f32 0.0, %v620
        %v622 = vpop.f32.mrb[0].mxu0
        %623 = vmatprep.mubr.bf16.mxu0 0
        %624 = vmatmul.mubr.bf16.gmra.mrb[0].mxu0 %v529
        %v625 = vpop.f32.mrb[0].mxu0
        %v626 = vadd.f32 0.0, %v625
        %v627 = vpop.f32.mrb[0].mxu0
        %v628 = vpop.f32.mrb[0].mxu0
        %v629 = vadd.f32 0.0, %v628
        %v630 = vpop.f32.mrb[0].mxu0
        %631 = vmatprep.mubr.bf16.mxu0 0
        %632 = vmatmul.mubr.bf16.gmra.mrb[0].mxu0 %v532
        %v633 = vpop.f32.mrb[0].mxu0
        %v634 = vadd.f32 0.0, %v633
        %v635 = vpop.f32.mrb[0].mxu0
        %v636 = vpop.f32.mrb[0].mxu0
        %v637 = vadd.f32 0.0, %v636
        %v638 = vpop.f32.mrb[0].mxu0
        %639 = vmatprep.mubr.bf16.mxu0 0
        %640 = vmatmul.mubr.bf16.gmra.mrb[0].mxu0 %v535
        %v641 = vpop.f32.mrb[0].mxu0
        %v642 = vadd.f32 0.0, %v641
        %v643 = vpop.f32.mrb[0].mxu0
        %v644 = vpop.f32.mrb[0].mxu0
        %v645 = vadd.f32 0.0, %v644
        %v646 = vpop.f32.mrb[0].mxu0
        %647 = vmatprep.mubr.bf16.mxu0 0
        %648 = vmatmul.mubr.bf16.gmra.mrb[0].mxu0 %v538
        %v649 = vpop.f32.mrb[0].mxu0
        %v650 = vadd.f32 0.0, %v649
        %v651 = vpop.f32.mrb[0].mxu0
        %v652 = vpop.f32.mrb[0].mxu0
        %v653 = vadd.f32 0.0, %v652
        %v654 = vpop.f32.mrb[0].mxu0
        %655 = vmatprep.mubr.bf16.mxu0 0
        %656 = vmatmul.mubr.bf16.gmra.mrb[0].mxu0 %v541
        %v657 = vpop.f32.mrb[0].mxu0
        %v658 = vadd.f32 0.0, %v657
        %v659 = vpop.f32.mrb[0].mxu0
        %v660 = vpop.f32.mrb[0].mxu0
        %v661 = vadd.f32 0.0, %v660
        %v662 = vpop.f32.mrb[0].mxu0
        %663 = vmatprep.mubr.bf16.mxu0 0
        %664 = vmatmul.mubr.bf16.gmra.mrb[0].mxu0 %v544
        %v665 = vpop.f32.mrb[0].mxu0
        %v666 = vadd.f32 0.0, %v665
        %v667 = vpop.f32.mrb[0].mxu0
        %v668 = vpop.f32.mrb[0].mxu0
        %v669 = vadd.f32 0.0, %v668
        %v670 = vpop.f32.mrb[0].mxu0
        %671 = vmatprep.mubr.bf16.mxu0 0
        %672 = vmatmul.mubr.bf16.gmra.mrb[0].mxu0 %v547
        %v673 = vpop.f32.mrb[0].mxu0
        %v674 = vadd.f32 0.0, %v673
        %v675 = vpop.f32.mrb[0].mxu0
        %v676 = vpop.f32.mrb[0].mxu0
        %v677 = vadd.f32 0.0, %v676
        %v678 = vpop.f32.mrb[0].mxu0
        %679 = vmatprep.mubr.bf16.mxu0 0
        %680 = vmatmul.mubr.bf16.gmra.mrb[0].mxu0 %v550
        %v681 = vpop.f32.mrb[0].mxu0
        %v682 = vadd.f32 0.0, %v681
        %v683 = vpop.f32.mrb[0].mxu0
        %v684 = vpop.f32.mrb[0].mxu0
        %v685 = vadd.f32 0.0, %v684
        %v686 = vpop.f32.mrb[0].mxu0
        %687 = vmatprep.mubr.bf16.mxu0 0
        %688 = vmatmul.mubr.bf16.gmra.mrb[0].mxu0 %v553
        %v689 = vpop.f32.mrb[0].mxu0
        %v690 = vadd.f32 0.0, %v689
        %v691 = vpop.f32.mrb[0].mxu0
        %v692 = vpop.f32.mrb[0].mxu0
        %v693 = vadd.f32 0.0, %v692
        %v694 = vpop.f32.mrb[0].mxu0
        %695 = vmatprep.mubr.bf16.mxu0 0
        %696 = vmatmul.mubr.bf16.gmra.mrb[0].mxu0 %v556
        %v697 = vpop.f32.mrb[0].mxu0
        %v698 = vadd.f32 0.0, %v697
        %v699 = vpop.f32.mrb[0].mxu0
        %v700 = vpop.f32.mrb[0].mxu0
        %v701 = vadd.f32 0.0, %v700
        %v702 = vpop.f32.mrb[0].mxu0
        %703 = vmatprep.mubr.bf16.mxu0 0
        %704 = vmatmul.mubr.bf16.gmra.mrb[0].mxu0 %v559
        %v705 = vpop.f32.mrb[0].mxu0
        %v706 = vadd.f32 0.0, %v705
        %v707 = vpop.f32.mrb[0].mxu0
        %v708 = vpop.f32.mrb[0].mxu0
        %v709 = vadd.f32 0.0, %v708
        %v710 = vpop.f32.mrb[0].mxu0
        %711 = vmatprep.mubr.bf16.mxu0 0
        %712 = vmatmul.mubr.bf16.gmra.mrb[0].mxu0 %v562
        %v713 = vpop.f32.mrb[0].mxu0
        %v714 = vadd.f32 0.0, %v713
        %v715 = vpop.f32.mrb[0].mxu0
        %v716 = vpop.f32.mrb[0].mxu0
        %v717 = vadd.f32 0.0, %v716
        %v718 = vpop.f32.mrb[0].mxu0
        %719 = vmatprep.mubr.bf16.mxu0 0
        %720 = vmatmul.mubr.bf16.gmra.mrb[0].mxu0 %v565
        %v721 = vpop.f32.mrb[0].mxu0
        %v722 = vadd.f32 0.0, %v721
        %v723 = vpop.f32.mrb[0].mxu0
        %v724 = vpop.f32.mrb[0].mxu0
        %v725 = vadd.f32 0.0, %v724
        %v726 = vpop.f32.mrb[0].mxu0
        %727 = vdwg.mxu0
        %v728 = vld [vmem:[%s2] sm:$0x1]
        %v730 = vlaneseq
        %v731 = vshrl.u32 %v730, 7
        %v732 = vsub.s32 0, %v731
        %v733 = vrot.slane %v728, %v732
        %v735 = vmul.f32 %v602, %v733
        %v736 = vmul.f32 %v605, %v733
        %v737 = vmul.f32 %v610, %v733
        %v738 = vmul.f32 %v613, %v733
        %v739 = vmul.f32 %v618, %v733
        %v740 = vmul.f32 %v621, %v733
        %v741 = vmul.f32 %v626, %v733
        %v742 = vmul.f32 %v629, %v733
        %v743 = vmul.f32 %v634, %v733
        %v744 = vmul.f32 %v637, %v733
        %v745 = vmul.f32 %v642, %v733
        %v746 = vmul.f32 %v645, %v733
        %v747 = vmul.f32 %v650, %v733
        %v748 = vmul.f32 %v653, %v733
        %v749 = vmul.f32 %v658, %v733
        %v750 = vmul.f32 %v661, %v733
        %v751 = vmul.f32 %v666, %v733
        %v752 = vmul.f32 %v669, %v733
        %v753 = vmul.f32 %v674, %v733
        %v754 = vmul.f32 %v677, %v733
        %v755 = vmul.f32 %v682, %v733
        %v756 = vmul.f32 %v685, %v733
        %v757 = vmul.f32 %v690, %v733
        %v758 = vmul.f32 %v693, %v733
        %v759 = vmul.f32 %v698, %v733
        %v760 = vmul.f32 %v701, %v733
        %v761 = vmul.f32 %v706, %v733
        %v762 = vmul.f32 %v709, %v733
        %v763 = vmul.f32 %v714, %v733
        %v764 = vmul.f32 %v717, %v733
        %v765 = vmul.f32 %v722, %v733
        %v766 = vmul.f32 %v725, %v733
        %v767 = vld [vmem:[%s3] sm:$0x1]
        %v769 = vlaneseq
        %v770 = vshrl.u32 %v769, 7
        %v771 = vsub.s32 0, %v770
        %v772 = vrot.slane %v767, %v771
        %v774 = vadd.f32 %v735, %v772
        %v775 = vadd.f32 %v736, %v772
        %v776 = vadd.f32 %v737, %v772
        %v777 = vadd.f32 %v738, %v772
        %v778 = vadd.f32 %v739, %v772
        %v779 = vadd.f32 %v740, %v772
        %v780 = vadd.f32 %v741, %v772
        %v781 = vadd.f32 %v742, %v772
        %v782 = vadd.f32 %v743, %v772
        %v783 = vadd.f32 %v744, %v772
        %v784 = vadd.f32 %v745, %v772
        %v785 = vadd.f32 %v746, %v772
        %v786 = vadd.f32 %v747, %v772
        %v787 = vadd.f32 %v748, %v772
        %v788 = vadd.f32 %v749, %v772
        %v789 = vadd.f32 %v750, %v772
        %v790 = vadd.f32 %v751, %v772
        %v791 = vadd.f32 %v752, %v772
        %v792 = vadd.f32 %v753, %v772
        %v793 = vadd.f32 %v754, %v772
        %v794 = vadd.f32 %v755, %v772
        %v795 = vadd.f32 %v756, %v772
        %v796 = vadd.f32 %v757, %v772
        %v797 = vadd.f32 %v758, %v772
        %v798 = vadd.f32 %v759, %v772
        %v799 = vadd.f32 %v760, %v772
        %v800 = vadd.f32 %v761, %v772
        %v801 = vadd.f32 %v762, %v772
        %v802 = vadd.f32 %v763, %v772
        %v803 = vadd.f32 %v764, %v772
        %v804 = vadd.f32 %v765, %v772
        %v805 = vadd.f32 %v766, %v772
        %v806 = vmax.f32 %v774, 0.0
        %v807 = vmax.f32 %v775, 0.0
        %v808 = vmax.f32 %v776, 0.0
        %v809 = vmax.f32 %v777, 0.0
        %v810 = vmax.f32 %v778, 0.0
        %v811 = vmax.f32 %v779, 0.0
        %v812 = vmax.f32 %v780, 0.0
        %v813 = vmax.f32 %v781, 0.0
        %v814 = vmax.f32 %v782, 0.0
        %v815 = vmax.f32 %v783, 0.0
        %v816 = vmax.f32 %v784, 0.0
        %v817 = vmax.f32 %v785, 0.0
        %v818 = vmax.f32 %v786, 0.0
        %v819 = vmax.f32 %v787, 0.0
        %v820 = vmax.f32 %v788, 0.0
        %v821 = vmax.f32 %v789, 0.0
        %v822 = vmax.f32 %v790, 0.0
        %v823 = vmax.f32 %v791, 0.0
        %v824 = vmax.f32 %v792, 0.0
        %v825 = vmax.f32 %v793, 0.0
        %v826 = vmax.f32 %v794, 0.0
        %v827 = vmax.f32 %v795, 0.0
        %v828 = vmax.f32 %v796, 0.0
        %v829 = vmax.f32 %v797, 0.0
        %v830 = vmax.f32 %v798, 0.0
        %v831 = vmax.f32 %v799, 0.0
        %v832 = vmax.f32 %v800, 0.0
        %v833 = vmax.f32 %v801, 0.0
        %v834 = vmax.f32 %v802, 0.0
        %v835 = vmax.f32 %v803, 0.0
        %v836 = vmax.f32 %v804, 0.0
        %v837 = vmax.f32 %v805, 0.0
        %vm838 = vcmask 60416
        %839 = vst.msk [vmem:[#allocation2] sm:$0xf] %vm838, 0
        %vm840 = vcmask 57344
        %841 = vst.msk [vmem:[#allocation2 + $0x4] sm:$0x1] %vm840, 0
        %842 = vst.msk [vmem:[#allocation2 + $0x50] sm:$0xf] %vm838, 0
        %843 = vst.msk [vmem:[#allocation2 + $0x54] sm:$0x1] %vm840, 0
        %844 = vst.msk [vmem:[#allocation2 + $0xa0] sm:$0xf] %vm838, 0
        %845 = vst.msk [vmem:[#allocation2 + $0xa4] sm:$0x1] %vm840, 0
        %846 = vst.msk [vmem:[#allocation2 + $0xf0] sm:$0xf] %vm838, 0
        %847 = vst.msk [vmem:[#allocation2 + $0xf4] sm:$0x1] %vm840, 0
        %s848 = scalar_lea.vmem [#allocation2], 72
        %849 = vst.msk [vmem:[%s848] sm:$0xf] %vm838, 0
        %850 = vst.msk [vmem:[%s848 + $0x4] sm:$0x1] %vm840, 0
        %851 = vst.msk [vmem:[%s848 + $0x50] sm:$0xf] %vm838, 0
        %852 = vst.msk [vmem:[%s848 + $0x54] sm:$0x1] %vm840, 0
        %853 = vst.msk [vmem:[%s848 + $0xa0] sm:$0xf] %vm838, 0
        %854 = vst.msk [vmem:[%s848 + $0xa4] sm:$0x1] %vm840, 0
        %855 = vst.msk [vmem:[%s848 + $0xf0] sm:$0xf] %vm838, 0
        %856 = vst.msk [vmem:[%s848 + $0xf4] sm:$0x1] %vm840, 0
        %vm857 = vcmask 57344
        %vm858 = vsmask.f32 256
        %vm859 = vmand %vm857, %vm858
        %v860 = vld [vmem:[#allocation2] sm:$0x1]
        %v861 = vsel %vm859, 0, %v860
        %862 = vst [vmem:[#allocation2] sm:$0x1] %v861
        %v863 = vld [vmem:[#allocation2 + $0x8] sm:$0x1]
        %v864 = vsel %vm859, 0, %v863
        %865 = vst [vmem:[#allocation2 + $0x8] sm:$0x1] %v864
        %v866 = vld [vmem:[#allocation2 + $0x10] sm:$0x1]
        %v867 = vsel %vm859, 0, %v866
        %868 = vst [vmem:[#allocation2 + $0x10] sm:$0x1] %v867
        %v869 = vld [vmem:[#allocation2 + $0x18] sm:$0x1]
        %v870 = vsel %vm859, 0, %v869
        %871 = vst [vmem:[#allocation2 + $0x18] sm:$0x1] %v870
        %v872 = vld [vmem:[#allocation2 + $0x20] sm:$0x1]
        %v873 = vsel %vm859, 0, %v872
        %874 = vst [vmem:[#allocation2 + $0x20] sm:$0x1] %v873
        %v875 = vld [vmem:[#allocation2 + $0x28] sm:$0x1]
        %v876 = vsel %vm859, 0, %v875
        %877 = vst [vmem:[#allocation2 + $0x28] sm:$0x1] %v876
        %v878 = vld [vmem:[#allocation2 + $0x30] sm:$0x1]
        %v879 = vsel %vm859, 0, %v878
        %880 = vst [vmem:[#allocation2 + $0x30] sm:$0x1] %v879
        %v881 = vld [vmem:[#allocation2 + $0x38] sm:$0x1]
        %v882 = vsel %vm859, 0, %v881
        %883 = vst [vmem:[#allocation2 + $0x38] sm:$0x1] %v882
        %v884 = vld [vmem:[#allocation2 + $0x40] sm:$0x1]
        %v885 = vsel %vm859, 0, %v884
        %886 = vst [vmem:[#allocation2 + $0x40] sm:$0x1] %v885
        %v887 = vld [vmem:[#allocation2 + $0x48] sm:$0x1]
        %v888 = vsel %vm859, 0, %v887
        %889 = vst [vmem:[#allocation2 + $0x48] sm:$0x1] %v888
        %v890 = vld [vmem:[#allocation2 + $0x50] sm:$0x1]
        %v891 = vsel %vm859, 0, %v890
        %892 = vst [vmem:[#allocation2 + $0x50] sm:$0x1] %v891
        %v893 = vld [vmem:[#allocation2 + $0x58] sm:$0x1]
        %v894 = vsel %vm859, 0, %v893
        %895 = vst [vmem:[#allocation2 + $0x58] sm:$0x1] %v894
        %v896 = vld [vmem:[#allocation2 + $0x60] sm:$0x1]
        %v897 = vsel %vm859, 0, %v896
        %898 = vst [vmem:[#allocation2 + $0x60] sm:$0x1] %v897
        %v899 = vld [vmem:[#allocation2 + $0x68] sm:$0x1]
        %v900 = vsel %vm859, 0, %v899
        %901 = vst [vmem:[#allocation2 + $0x68] sm:$0x1] %v900
        %v902 = vld [vmem:[#allocation2 + $0x70] sm:$0x1]
        %v903 = vsel %vm859, 0, %v902
        %904 = vst [vmem:[#allocation2 + $0x70] sm:$0x1] %v903
        %v905 = vld [vmem:[#allocation2 + $0x78] sm:$0x1]
        %v906 = vsel %vm859, 0, %v905
        %907 = vst [vmem:[#allocation2 + $0x78] sm:$0x1] %v906
        %v908 = vld [vmem:[#allocation2 + $0x80] sm:$0x1]
        %v909 = vsel %vm859, 0, %v908
        %910 = vst [vmem:[#allocation2 + $0x80] sm:$0x1] %v909
        %v911 = vld [vmem:[#allocation2 + $0x88] sm:$0x1]
        %v912 = vsel %vm859, 0, %v911
        %913 = vst [vmem:[#allocation2 + $0x88] sm:$0x1] %v912
        %v914 = vld [vmem:[#allocation2 + $0x90] sm:$0x1]
        %v915 = vsel %vm859, 0, %v914
        %916 = vst [vmem:[#allocation2 + $0x90] sm:$0x1] %v915
        %v917 = vld [vmem:[#allocation2 + $0x98] sm:$0x1]
        %v918 = vsel %vm859, 0, %v917
        %919 = vst [vmem:[#allocation2 + $0x98] sm:$0x1] %v918
        %v920 = vld [vmem:[#allocation2 + $0xa0] sm:$0x1]
        %v921 = vsel %vm859, 0, %v920
        %922 = vst [vmem:[#allocation2 + $0xa0] sm:$0x1] %v921
        %v923 = vld [vmem:[#allocation2 + $0xa8] sm:$0x1]
        %v924 = vsel %vm859, 0, %v923
        %925 = vst [vmem:[#allocation2 + $0xa8] sm:$0x1] %v924
        %v926 = vld [vmem:[#allocation2 + $0xb0] sm:$0x1]
        %v927 = vsel %vm859, 0, %v926
        %928 = vst [vmem:[#allocation2 + $0xb0] sm:$0x1] %v927
        %v929 = vld [vmem:[#allocation2 + $0xb8] sm:$0x1]
        %v930 = vsel %vm859, 0, %v929
        %931 = vst [vmem:[#allocation2 + $0xb8] sm:$0x1] %v930
        %v932 = vld [vmem:[#allocation2 + $0xc0] sm:$0x1]
        %v933 = vsel %vm859, 0, %v932
        %934 = vst [vmem:[#allocation2 + $0xc0] sm:$0x1] %v933
        %v935 = vld [vmem:[#allocation2 + $0xc8] sm:$0x1]
        %v936 = vsel %vm859, 0, %v935
        %937 = vst [vmem:[#allocation2 + $0xc8] sm:$0x1] %v936
        %v938 = vld [vmem:[#allocation2 + $0xd0] sm:$0x1]
        %v939 = vsel %vm859, 0, %v938
        %940 = vst [vmem:[#allocation2 + $0xd0] sm:$0x1] %v939
        %v941 = vld [vmem:[#allocation2 + $0xd8] sm:$0x1]
        %v942 = vsel %vm859, 0, %v941
        %943 = vst [vmem:[#allocation2 + $0xd8] sm:$0x1] %v942
        %v944 = vld [vmem:[#allocation2 + $0xe0] sm:$0x1]
        %v945 = vsel %vm859, 0, %v944
        %946 = vst [vmem:[#allocation2 + $0xe0] sm:$0x1] %v945
        %v947 = vld [vmem:[#allocation2 + $0xe8] sm:$0x1]
        %v948 = vsel %vm859, 0, %v947
        %949 = vst [vmem:[#allocation2 + $0xe8] sm:$0x1] %v948
        %v950 = vld [vmem:[#allocation2 + $0xf0] sm:$0x1]
        %v951 = vsel %vm859, 0, %v950
        %952 = vst [vmem:[#allocation2 + $0xf0] sm:$0x1] %v951
        %v953 = vld [vmem:[#allocation2 + $0xf8] sm:$0x1]
        %v954 = vsel %vm859, 0, %v953
        %955 = vst [vmem:[#allocation2 + $0xf8] sm:$0x1] %v954
        %v956 = vld [vmem:[#allocation2 + $0x100] sm:$0x1]
        %v957 = vsel %vm859, 0, %v956
        %958 = vst [vmem:[#allocation2 + $0x100] sm:$0x1] %v957
        %v959 = vld [vmem:[#allocation2 + $0x108] sm:$0x1]
        %v960 = vsel %vm859, 0, %v959
        %961 = vst [vmem:[#allocation2 + $0x108] sm:$0x1] %v960
        %v962 = vld [vmem:[#allocation2 + $0x110] sm:$0x1]
        %v963 = vsel %vm859, 0, %v962
        %964 = vst [vmem:[#allocation2 + $0x110] sm:$0x1] %v963
        %v965 = vld [vmem:[#allocation2 + $0x118] sm:$0x1]
        %v966 = vsel %vm859, 0, %v965
        %967 = vst [vmem:[#allocation2 + $0x118] sm:$0x1] %v966
        %v968 = vld [vmem:[#allocation2 + $0x120] sm:$0x1]
        %v969 = vsel %vm859, 0, %v968
        %970 = vst [vmem:[#allocation2 + $0x120] sm:$0x1] %v969
        %v971 = vld [vmem:[#allocation2 + $0x128] sm:$0x1]
        %v972 = vsel %vm859, 0, %v971
        %973 = vst [vmem:[#allocation2 + $0x128] sm:$0x1] %v972
        %v974 = vld [vmem:[#allocation2 + $0x130] sm:$0x1]
        %v975 = vsel %vm859, 0, %v974
        %976 = vst [vmem:[#allocation2 + $0x130] sm:$0x1] %v975
        %v977 = vld [vmem:[#allocation2 + $0x138] sm:$0x1]
        %v978 = vsel %vm859, 0, %v977
        %979 = vst [vmem:[#allocation2 + $0x138] sm:$0x1] %v978
        %vm980 = vsmask.f32 7938
        %vm981 = vmand %vm857, %vm980
        %v982 = vld [vmem:[#allocation2 + $0x4] sm:$0x1]
        %v983 = vsel %vm981, 0, %v982
        %984 = vst [vmem:[#allocation2 + $0x4] sm:$0x1] %v983
        %v985 = vld [vmem:[#allocation2 + $0xc] sm:$0x1]
        %v986 = vsel %vm981, 0, %v985
        %987 = vst [vmem:[#allocation2 + $0xc] sm:$0x1] %v986
        %v988 = vld [vmem:[#allocation2 + $0x14] sm:$0x1]
        %v989 = vsel %vm981, 0, %v988
        %990 = vst [vmem:[#allocation2 + $0x14] sm:$0x1] %v989
        %v991 = vld [vmem:[#allocation2 + $0x1c] sm:$0x1]
        %v992 = vsel %vm981, 0, %v991
        %993 = vst [vmem:[#allocation2 + $0x1c] sm:$0x1] %v992
        %v994 = vld [vmem:[#allocation2 + $0x24] sm:$0x1]
        %v995 = vsel %vm981, 0, %v994
        %996 = vst [vmem:[#allocation2 + $0x24] sm:$0x1] %v995
        %v997 = vld [vmem:[#allocation2 + $0x2c] sm:$0x1]
        %v998 = vsel %vm981, 0, %v997
        %999 = vst [vmem:[#allocation2 + $0x2c] sm:$0x1] %v998
        %v1000 = vld [vmem:[#allocation2 + $0x34] sm:$0x1]
        %v1001 = vsel %vm981, 0, %v1000
        %1002 = vst [vmem:[#allocation2 + $0x34] sm:$0x1] %v1001
        %v1003 = vld [vmem:[#allocation2 + $0x3c] sm:$0x1]
        %v1004 = vsel %vm981, 0, %v1003
        %1005 = vst [vmem:[#allocation2 + $0x3c] sm:$0x1] %v1004
        %v1006 = vld [vmem:[#allocation2 + $0x44] sm:$0x1]
        %v1007 = vsel %vm981, 0, %v1006
        %1008 = vst [vmem:[#allocation2 + $0x44] sm:$0x1] %v1007
        %v1009 = vld [vmem:[#allocation2 + $0x4c] sm:$0x1]
        %v1010 = vsel %vm981, 0, %v1009
        %1011 = vst [vmem:[#allocation2 + $0x4c] sm:$0x1] %v1010
        %v1012 = vld [vmem:[#allocation2 + $0x54] sm:$0x1]
        %v1013 = vsel %vm981, 0, %v1012
        %1014 = vst [vmem:[#allocation2 + $0x54] sm:$0x1] %v1013
        %v1015 = vld [vmem:[#allocation2 + $0x5c] sm:$0x1]
        %v1016 = vsel %vm981, 0, %v1015
        %1017 = vst [vmem:[#allocation2 + $0x5c] sm:$0x1] %v1016
        %v1018 = vld [vmem:[#allocation2 + $0x64] sm:$0x1]
        %v1019 = vsel %vm981, 0, %v1018
        %1020 = vst [vmem:[#allocation2 + $0x64] sm:$0x1] %v1019
        %v1021 = vld [vmem:[#allocation2 + $0x6c] sm:$0x1]
        %v1022 = vsel %vm981, 0, %v1021
        %1023 = vst [vmem:[#allocation2 + $0x6c] sm:$0x1] %v1022
        %v1024 = vld [vmem:[#allocation2 + $0x74] sm:$0x1]
        %v1025 = vsel %vm981, 0, %v1024
        %1026 = vst [vmem:[#allocation2 + $0x74] sm:$0x1] %v1025
        %v1027 = vld [vmem:[#allocation2 + $0x7c] sm:$0x1]
        %v1028 = vsel %vm981, 0, %v1027
        %1029 = vst [vmem:[#allocation2 + $0x7c] sm:$0x1] %v1028
        %v1030 = vld [vmem:[#allocation2 + $0x84] sm:$0x1]
        %v1031 = vsel %vm981, 0, %v1030
        %1032 = vst [vmem:[#allocation2 + $0x84] sm:$0x1] %v1031
        %v1033 = vld [vmem:[#allocation2 + $0x8c] sm:$0x1]
        %v1034 = vsel %vm981, 0, %v1033
        %1035 = vst [vmem:[#allocation2 + $0x8c] sm:$0x1] %v1034
        %v1036 = vld [vmem:[#allocation2 + $0x94] sm:$0x1]
        %v1037 = vsel %vm981, 0, %v1036
        %1038 = vst [vmem:[#allocation2 + $0x94] sm:$0x1] %v1037
        %v1039 = vld [vmem:[#allocation2 + $0x9c] sm:$0x1]
        %v1040 = vsel %vm981, 0, %v1039
        %1041 = vst [vmem:[#allocation2 + $0x9c] sm:$0x1] %v1040
        %v1042 = vld [vmem:[#allocation2 + $0xa4] sm:$0x1]
        %v1043 = vsel %vm981, 0, %v1042
        %1044 = vst [vmem:[#allocation2 + $0xa4] sm:$0x1] %v1043
        %v1045 = vld [vmem:[#allocation2 + $0xac] sm:$0x1]
        %v1046 = vsel %vm981, 0, %v1045
        %1047 = vst [vmem:[#allocation2 + $0xac] sm:$0x1] %v1046
        %v1048 = vld [vmem:[#allocation2 + $0xb4] sm:$0x1]
        %v1049 = vsel %vm981, 0, %v1048
        %1050 = vst [vmem:[#allocation2 + $0xb4] sm:$0x1] %v1049
        %v1051 = vld [vmem:[#allocation2 + $0xbc] sm:$0x1]
        %v1052 = vsel %vm981, 0, %v1051
        %1053 = vst [vmem:[#allocation2 + $0xbc] sm:$0x1] %v1052
        %v1054 = vld [vmem:[#allocation2 + $0xc4] sm:$0x1]
        %v1055 = vsel %vm981, 0, %v1054
        %1056 = vst [vmem:[#allocation2 + $0xc4] sm:$0x1] %v1055
        %v1057 = vld [vmem:[#allocation2 + $0xcc] sm:$0x1]
        %v1058 = vsel %vm981, 0, %v1057
        %1059 = vst [vmem:[#allocation2 + $0xcc] sm:$0x1] %v1058
        %v1060 = vld [vmem:[#allocation2 + $0xd4] sm:$0x1]
        %v1061 = vsel %vm981, 0, %v1060
        %1062 = vst [vmem:[#allocation2 + $0xd4] sm:$0x1] %v1061
        %v1063 = vld [vmem:[#allocation2 + $0xdc] sm:$0x1]
        %v1064 = vsel %vm981, 0, %v1063
        %1065 = vst [vmem:[#allocation2 + $0xdc] sm:$0x1] %v1064
        %v1066 = vld [vmem:[#allocation2 + $0xe4] sm:$0x1]
        %v1067 = vsel %vm981, 0, %v1066
        %1068 = vst [vmem:[#allocation2 + $0xe4] sm:$0x1] %v1067
        %v1069 = vld [vmem:[#allocation2 + $0xec] sm:$0x1]
        %v1070 = vsel %vm981, 0, %v1069
        %1071 = vst [vmem:[#allocation2 + $0xec] sm:$0x1] %v1070
        %v1072 = vld [vmem:[#allocation2 + $0xf4] sm:$0x1]
        %v1073 = vsel %vm981, 0, %v1072
        %1074 = vst [vmem:[#allocation2 + $0xf4] sm:$0x1] %v1073
        %v1075 = vld [vmem:[#allocation2 + $0xfc] sm:$0x1]
        %v1076 = vsel %vm981, 0, %v1075
        %1077 = vst [vmem:[#allocation2 + $0xfc] sm:$0x1] %v1076
        %v1078 = vld [vmem:[#allocation2 + $0x104] sm:$0x1]
        %v1079 = vsel %vm981, 0, %v1078
        %1080 = vst [vmem:[#allocation2 + $0x104] sm:$0x1] %v1079
        %v1081 = vld [vmem:[#allocation2 + $0x10c] sm:$0x1]
        %v1082 = vsel %vm981, 0, %v1081
        %1083 = vst [vmem:[#allocation2 + $0x10c] sm:$0x1] %v1082
        %v1084 = vld [vmem:[#allocation2 + $0x114] sm:$0x1]
        %v1085 = vsel %vm981, 0, %v1084
        %1086 = vst [vmem:[#allocation2 + $0x114] sm:$0x1] %v1085
        %v1087 = vld [vmem:[#allocation2 + $0x11c] sm:$0x1]
        %v1088 = vsel %vm981, 0, %v1087
        %1089 = vst [vmem:[#allocation2 + $0x11c] sm:$0x1] %v1088
        %v1090 = vld [vmem:[#allocation2 + $0x124] sm:$0x1]
        %v1091 = vsel %vm981, 0, %v1090
        %1092 = vst [vmem:[#allocation2 + $0x124] sm:$0x1] %v1091
        %v1093 = vld [vmem:[#allocation2 + $0x12c] sm:$0x1]
        %v1094 = vsel %vm981, 0, %v1093
        %1095 = vst [vmem:[#allocation2 + $0x12c] sm:$0x1] %v1094
        %v1096 = vld [vmem:[#allocation2 + $0x134] sm:$0x1]
        %v1097 = vsel %vm981, 0, %v1096
        %1098 = vst [vmem:[#allocation2 + $0x134] sm:$0x1] %v1097
        %v1099 = vld [vmem:[#allocation2 + $0x13c] sm:$0x1]
        %v1100 = vsel %vm981, 0, %v1099
        %1101 = vst [vmem:[#allocation2 + $0x13c] sm:$0x1] %v1100
        %v1102 = vpack.c.bf16 %v806, %v806
        %v1103 = vpack.c.bf16 %v807, %v807
        %v1104 = vpack.c.bf16 %v808, %v808
        %v1105 = vpack.c.bf16 %v809, %v809
        %v1106 = vpack.c.bf16 %v810, %v810
        %v1107 = vpack.c.bf16 %v811, %v811
        %v1108 = vpack.c.bf16 %v812, %v812
        %v1109 = vpack.c.bf16 %v813, %v813
        %v1110 = vpack.c.bf16 %v814, %v814
        %v1111 = vpack.c.bf16 %v815, %v815
        %v1112 = vpack.c.bf16 %v816, %v816
        %v1113 = vpack.c.bf16 %v817, %v817
        %v1114 = vpack.c.bf16 %v818, %v818
        %v1115 = vpack.c.bf16 %v819, %v819
        %v1116 = vpack.c.bf16 %v820, %v820
        %v1117 = vpack.c.bf16 %v821, %v821
        %v1118 = vpack.c.bf16 %v822, %v822
        %v1119 = vpack.c.bf16 %v823, %v823
        %v1120 = vpack.c.bf16 %v824, %v824
        %v1121 = vpack.c.bf16 %v825, %v825
        %v1122 = vpack.c.bf16 %v826, %v826
        %v1123 = vpack.c.bf16 %v827, %v827
        %v1124 = vpack.c.bf16 %v828, %v828
        %v1125 = vpack.c.bf16 %v829, %v829
        %v1126 = vpack.c.bf16 %v830, %v830
        %v1127 = vpack.c.bf16 %v831, %v831
        %v1128 = vpack.c.bf16 %v832, %v832
        %v1129 = vpack.c.bf16 %v833, %v833
        %v1130 = vpack.c.bf16 %v834, %v834
        %v1131 = vpack.c.bf16 %v835, %v835
        %v1132 = vpack.c.bf16 %v836, %v836
        %v1133 = vpack.c.bf16 %v837, %v837
        %v1166 = vunpack.c.l.b16 %v1102
        %v1167 = vunpack.c.l.b16 %v1103
        %v1168 = vunpack.c.l.b16 %v1104
        %v1169 = vunpack.c.l.b16 %v1105
        %v1170 = vunpack.c.l.b16 %v1106
        %v1171 = vunpack.c.l.b16 %v1107
        %v1172 = vunpack.c.l.b16 %v1108
        %v1173 = vunpack.c.l.b16 %v1109
        %v1174 = vunpack.c.l.b16 %v1110
        %v1175 = vunpack.c.l.b16 %v1111
        %v1176 = vunpack.c.l.b16 %v1112
        %v1177 = vunpack.c.l.b16 %v1113
        %v1178 = vunpack.c.l.b16 %v1114
        %v1179 = vunpack.c.l.b16 %v1115
        %v1180 = vunpack.c.l.b16 %v1116
        %v1181 = vunpack.c.l.b16 %v1117
        %v1182 = vunpack.c.l.b16 %v1118
        %v1183 = vunpack.c.l.b16 %v1119
        %v1184 = vunpack.c.l.b16 %v1120
        %v1185 = vunpack.c.l.b16 %v1121
        %v1186 = vunpack.c.l.b16 %v1122
        %v1187 = vunpack.c.l.b16 %v1123
        %v1188 = vunpack.c.l.b16 %v1124
        %v1189 = vunpack.c.l.b16 %v1125
        %v1190 = vunpack.c.l.b16 %v1126
        %v1191 = vunpack.c.l.b16 %v1127
        %v1192 = vunpack.c.l.b16 %v1128
        %v1193 = vunpack.c.l.b16 %v1129
        %v1194 = vunpack.c.l.b16 %v1130
        %v1195 = vunpack.c.l.b16 %v1131
        %v1196 = vunpack.c.l.b16 %v1132
        %v1197 = vunpack.c.l.b16 %v1133
        %v1198 = vpack.c.b16 %v1166, %v1166
        %v1199 = vpack.c.b16 %v1167, %v1167
        %v1200 = vpack.c.b16 %v1168, %v1168
        %v1201 = vpack.c.b16 %v1169, %v1169
        %v1202 = vpack.c.b16 %v1170, %v1170
        %v1203 = vpack.c.b16 %v1171, %v1171
        %v1204 = vpack.c.b16 %v1172, %v1172
        %v1205 = vpack.c.b16 %v1173, %v1173
        %v1206 = vpack.c.b16 %v1174, %v1174
        %v1207 = vpack.c.b16 %v1175, %v1175
        %v1208 = vpack.c.b16 %v1176, %v1176
        %v1209 = vpack.c.b16 %v1177, %v1177
        %v1210 = vpack.c.b16 %v1178, %v1178
        %v1211 = vpack.c.b16 %v1179, %v1179
        %v1212 = vpack.c.b16 %v1180, %v1180
        %v1213 = vpack.c.b16 %v1181, %v1181
        %v1214 = vpack.c.b16 %v1182, %v1182
        %v1215 = vpack.c.b16 %v1183, %v1183
        %v1216 = vpack.c.b16 %v1184, %v1184
        %v1217 = vpack.c.b16 %v1185, %v1185
        %v1218 = vpack.c.b16 %v1186, %v1186
        %v1219 = vpack.c.b16 %v1187, %v1187
        %v1220 = vpack.c.b16 %v1188, %v1188
        %v1221 = vpack.c.b16 %v1189, %v1189
        %v1222 = vpack.c.b16 %v1190, %v1190
        %v1223 = vpack.c.b16 %v1191, %v1191
        %v1224 = vpack.c.b16 %v1192, %v1192
        %v1225 = vpack.c.b16 %v1193, %v1193
        %v1226 = vpack.c.b16 %v1194, %v1194
        %v1227 = vpack.c.b16 %v1195, %v1195
        %v1228 = vpack.c.b16 %v1196, %v1196
        %v1229 = vpack.c.b16 %v1197, %v1197
        %v1231 = vshrl.u32 %v1198, 16
        %v1233 = vrot.slane %v1231, 7
        %v1234 = vshll.u32 %v1198, 16
        %v1236 = vor.u32 %v1233, %v1234
        %v1237 = vrot.slane %v1233, 4
        %v1239 = vshrl.u32 %v1199, 16
        %v1241 = vrot.slane %v1239, 7
        %v1242 = vshll.u32 %v1199, 16
        %v1244 = vor.u32 %v1241, %v1242
        %v1245 = vrot.slane %v1241, 4
        %v1247 = vshrl.u32 %v1200, 16
        %v1249 = vrot.slane %v1247, 7
        %v1250 = vshll.u32 %v1200, 16
        %v1252 = vor.u32 %v1249, %v1250
        %v1253 = vrot.slane %v1249, 4
        %v1255 = vshrl.u32 %v1201, 16
        %v1257 = vrot.slane %v1255, 7
        %v1258 = vshll.u32 %v1201, 16
        %v1260 = vor.u32 %v1257, %v1258
        %v1261 = vrot.slane %v1257, 4
        %v1263 = vshrl.u32 %v1202, 16
        %v1265 = vrot.slane %v1263, 7
        %v1266 = vshll.u32 %v1202, 16
        %v1268 = vor.u32 %v1265, %v1266
        %v1269 = vrot.slane %v1265, 4
        %v1271 = vshrl.u32 %v1203, 16
        %v1273 = vrot.slane %v1271, 7
        %v1274 = vshll.u32 %v1203, 16
        %v1276 = vor.u32 %v1273, %v1274
        %v1277 = vrot.slane %v1273, 4
        %v1279 = vshrl.u32 %v1204, 16
        %v1281 = vrot.slane %v1279, 7
        %v1282 = vshll.u32 %v1204, 16
        %v1284 = vor.u32 %v1281, %v1282
        %v1285 = vrot.slane %v1281, 4
        %v1287 = vshrl.u32 %v1205, 16
        %v1289 = vrot.slane %v1287, 7
        %v1290 = vshll.u32 %v1205, 16
        %v1292 = vor.u32 %v1289, %v1290
        %v1293 = vrot.slane %v1289, 4
        %v1295 = vshrl.u32 %v1206, 16
        %v1297 = vrot.slane %v1295, 7
        %v1298 = vshll.u32 %v1206, 16
        %v1300 = vor.u32 %v1297, %v1298
        %v1301 = vrot.slane %v1297, 4
        %v1303 = vshrl.u32 %v1207, 16
        %v1305 = vrot.slane %v1303, 7
        %v1306 = vshll.u32 %v1207, 16
        %v1308 = vor.u32 %v1305, %v1306
        %v1309 = vrot.slane %v1305, 4
        %v1311 = vshrl.u32 %v1208, 16
        %v1313 = vrot.slane %v1311, 7
        %v1314 = vshll.u32 %v1208, 16
        %v1316 = vor.u32 %v1313, %v1314
        %v1317 = vrot.slane %v1313, 4
        %v1319 = vshrl.u32 %v1209, 16
        %v1321 = vrot.slane %v1319, 7
        %v1322 = vshll.u32 %v1209, 16
        %v1324 = vor.u32 %v1321, %v1322
        %v1325 = vrot.slane %v1321, 4
        %v1327 = vshrl.u32 %v1210, 16
        %v1329 = vrot.slane %v1327, 7
        %v1330 = vshll.u32 %v1210, 16
        %v1332 = vor.u32 %v1329, %v1330
        %v1333 = vrot.slane %v1329, 4
        %v1335 = vshrl.u32 %v1211, 16
        %v1337 = vrot.slane %v1335, 7
        %v1338 = vshll.u32 %v1211, 16
        %v1340 = vor.u32 %v1337, %v1338
        %v1341 = vrot.slane %v1337, 4
        %v1343 = vshrl.u32 %v1212, 16
        %v1345 = vrot.slane %v1343, 7
        %v1346 = vshll.u32 %v1212, 16
        %v1348 = vor.u32 %v1345, %v1346
        %v1349 = vrot.slane %v1345, 4
        %v1351 = vshrl.u32 %v1213, 16
        %v1353 = vrot.slane %v1351, 7
        %v1354 = vshll.u32 %v1213, 16
        %v1356 = vor.u32 %v1353, %v1354
        %v1357 = vrot.slane %v1353, 4
        %v1359 = vshrl.u32 %v1214, 16
        %v1361 = vrot.slane %v1359, 7
        %v1362 = vshll.u32 %v1214, 16
        %v1364 = vor.u32 %v1361, %v1362
        %v1365 = vrot.slane %v1361, 4
        %v1367 = vshrl.u32 %v1215, 16
        %v1369 = vrot.slane %v1367, 7
        %v1370 = vshll.u32 %v1215, 16
        %v1372 = vor.u32 %v1369, %v1370
        %v1373 = vrot.slane %v1369, 4
        %v1375 = vshrl.u32 %v1216, 16
        %v1377 = vrot.slane %v1375, 7
        %v1378 = vshll.u32 %v1216, 16
        %v1380 = vor.u32 %v1377, %v1378
        %v1381 = vrot.slane %v1377, 4
        %v1383 = vshrl.u32 %v1217, 16
        %v1385 = vrot.slane %v1383, 7
        %v1386 = vshll.u32 %v1217, 16
        %v1388 = vor.u32 %v1385, %v1386
        %v1389 = vrot.slane %v1385, 4
        %v1391 = vshrl.u32 %v1218, 16
        %v1393 = vrot.slane %v1391, 7
        %v1394 = vshll.u32 %v1218, 16
        %v1396 = vor.u32 %v1393, %v1394
        %v1397 = vrot.slane %v1393, 4
        %v1399 = vshrl.u32 %v1219, 16
        %v1401 = vrot.slane %v1399, 7
        %v1402 = vshll.u32 %v1219, 16
        %v1404 = vor.u32 %v1401, %v1402
        %v1405 = vrot.slane %v1401, 4
        %v1407 = vshrl.u32 %v1220, 16
        %v1409 = vrot.slane %v1407, 7
        %v1410 = vshll.u32 %v1220, 16
        %v1412 = vor.u32 %v1409, %v1410
        %v1413 = vrot.slane %v1409, 4
        %v1415 = vshrl.u32 %v1221, 16
        %v1417 = vrot.slane %v1415, 7
        %v1418 = vshll.u32 %v1221, 16
        %v1420 = vor.u32 %v1417, %v1418
        %v1421 = vrot.slane %v1417, 4
        %v1423 = vshrl.u32 %v1222, 16
        %v1425 = vrot.slane %v1423, 7
        %v1426 = vshll.u32 %v1222, 16
        %v1428 = vor.u32 %v1425, %v1426
        %v1429 = vrot.slane %v1425, 4
        %v1431 = vshrl.u32 %v1223, 16
        %v1433 = vrot.slane %v1431, 7
        %v1434 = vshll.u32 %v1223, 16
        %v1436 = vor.u32 %v1433, %v1434
        %v1437 = vrot.slane %v1433, 4
        %v1439 = vshrl.u32 %v1224, 16
        %v1441 = vrot.slane %v1439, 7
        %v1442 = vshll.u32 %v1224, 16
        %v1444 = vor.u32 %v1441, %v1442
        %v1445 = vrot.slane %v1441, 4
        %v1447 = vshrl.u32 %v1225, 16
        %v1449 = vrot.slane %v1447, 7
        %v1450 = vshll.u32 %v1225, 16
        %v1452 = vor.u32 %v1449, %v1450
        %v1453 = vrot.slane %v1449, 4
        %v1455 = vshrl.u32 %v1226, 16
        %v1457 = vrot.slane %v1455, 7
        %v1458 = vshll.u32 %v1226, 16
        %v1460 = vor.u32 %v1457, %v1458
        %v1461 = vrot.slane %v1457, 4
        %v1463 = vshrl.u32 %v1227, 16
        %v1465 = vrot.slane %v1463, 7
        %v1466 = vshll.u32 %v1227, 16
        %v1468 = vor.u32 %v1465, %v1466
        %v1469 = vrot.slane %v1465, 4
        %v1471 = vshrl.u32 %v1228, 16
        %v1473 = vrot.slane %v1471, 7
        %v1474 = vshll.u32 %v1228, 16
        %v1476 = vor.u32 %v1473, %v1474
        %v1477 = vrot.slane %v1473, 4
        %v1479 = vshrl.u32 %v1229, 16
        %v1481 = vrot.slane %v1479, 7
        %v1482 = vshll.u32 %v1229, 16
        %v1484 = vor.u32 %v1481, %v1482
        %v1485 = vrot.slane %v1481, 4
        %s1550 = scalar_lea.vmem [#allocation2], 8
        %vm1551 = vcmask 60416
        %vm1552 = vmand %vm1551, %vm980
        %v1553 = vld [vmem:[%s1550] sm:$0xf]
        %v1554 = vsel %vm1552, %v1236, %v1553
        %1555 = vst [vmem:[%s1550] sm:$0xf] %v1554
        %v1556 = vld [vmem:[%s1550 + $0x4] sm:$0x1]
        %v1557 = vsel %vm859, %v1237, %v1556
        %1558 = vst [vmem:[%s1550 + $0x4] sm:$0x1] %v1557
        %v1559 = vld [vmem:[%s1550 + $0x8] sm:$0xf]
        %v1560 = vsel %vm1552, %v1244, %v1559
        %1561 = vst [vmem:[%s1550 + $0x8] sm:$0xf] %v1560
        %v1562 = vld [vmem:[%s1550 + $0xc] sm:$0x1]
        %v1563 = vsel %vm859, %v1245, %v1562
        %1564 = vst [vmem:[%s1550 + $0xc] sm:$0x1] %v1563
        %v1565 = vld [vmem:[%s1550 + $0x10] sm:$0xf]
        %v1566 = vsel %vm1552, %v1252, %v1565
        %1567 = vst [vmem:[%s1550 + $0x10] sm:$0xf] %v1566
        %v1568 = vld [vmem:[%s1550 + $0x14] sm:$0x1]
        %v1569 = vsel %vm859, %v1253, %v1568
        %1570 = vst [vmem:[%s1550 + $0x14] sm:$0x1] %v1569
        %v1571 = vld [vmem:[%s1550 + $0x18] sm:$0xf]
        %v1572 = vsel %vm1552, %v1260, %v1571
        %1573 = vst [vmem:[%s1550 + $0x18] sm:$0xf] %v1572
        %v1574 = vld [vmem:[%s1550 + $0x1c] sm:$0x1]
        %v1575 = vsel %vm859, %v1261, %v1574
        %1576 = vst [vmem:[%s1550 + $0x1c] sm:$0x1] %v1575
        %v1577 = vld [vmem:[%s1550 + $0x20] sm:$0xf]
        %v1578 = vsel %vm1552, %v1268, %v1577
        %1579 = vst [vmem:[%s1550 + $0x20] sm:$0xf] %v1578
        %v1580 = vld [vmem:[%s1550 + $0x24] sm:$0x1]
        %v1581 = vsel %vm859, %v1269, %v1580
        %1582 = vst [vmem:[%s1550 + $0x24] sm:$0x1] %v1581
        %v1583 = vld [vmem:[%s1550 + $0x28] sm:$0xf]
        %v1584 = vsel %vm1552, %v1276, %v1583
        %1585 = vst [vmem:[%s1550 + $0x28] sm:$0xf] %v1584
        %v1586 = vld [vmem:[%s1550 + $0x2c] sm:$0x1]
        %v1587 = vsel %vm859, %v1277, %v1586
        %1588 = vst [vmem:[%s1550 + $0x2c] sm:$0x1] %v1587
        %v1589 = vld [vmem:[%s1550 + $0x30] sm:$0xf]
        %v1590 = vsel %vm1552, %v1284, %v1589
        %1591 = vst [vmem:[%s1550 + $0x30] sm:$0xf] %v1590
        %v1592 = vld [vmem:[%s1550 + $0x34] sm:$0x1]
        %v1593 = vsel %vm859, %v1285, %v1592
        %1594 = vst [vmem:[%s1550 + $0x34] sm:$0x1] %v1593
        %v1595 = vld [vmem:[%s1550 + $0x38] sm:$0xf]
        %v1596 = vsel %vm1552, %v1292, %v1595
        %1597 = vst [vmem:[%s1550 + $0x38] sm:$0xf] %v1596
        %v1598 = vld [vmem:[%s1550 + $0x3c] sm:$0x1]
        %v1599 = vsel %vm859, %v1293, %v1598
        %1600 = vst [vmem:[%s1550 + $0x3c] sm:$0x1] %v1599
        %v1601 = vld [vmem:[%s1550 + $0x50] sm:$0xf]
        %v1602 = vsel %vm1552, %v1300, %v1601
        %1603 = vst [vmem:[%s1550 + $0x50] sm:$0xf] %v1602
        %v1604 = vld [vmem:[%s1550 + $0x54] sm:$0x1]
        %v1605 = vsel %vm859, %v1301, %v1604
        %1606 = vst [vmem:[%s1550 + $0x54] sm:$0x1] %v1605
        %v1607 = vld [vmem:[%s1550 + $0x58] sm:$0xf]
        %v1608 = vsel %vm1552, %v1308, %v1607
        %1609 = vst [vmem:[%s1550 + $0x58] sm:$0xf] %v1608
        %v1610 = vld [vmem:[%s1550 + $0x5c] sm:$0x1]
        %v1611 = vsel %vm859, %v1309, %v1610
        %1612 = vst [vmem:[%s1550 + $0x5c] sm:$0x1] %v1611
        %v1613 = vld [vmem:[%s1550 + $0x60] sm:$0xf]
        %v1614 = vsel %vm1552, %v1316, %v1613
        %1615 = vst [vmem:[%s1550 + $0x60] sm:$0xf] %v1614
        %v1616 = vld [vmem:[%s1550 + $0x64] sm:$0x1]
        %v1617 = vsel %vm859, %v1317, %v1616
        %1618 = vst [vmem:[%s1550 + $0x64] sm:$0x1] %v1617
        %v1619 = vld [vmem:[%s1550 + $0x68] sm:$0xf]
        %v1620 = vsel %vm1552, %v1324, %v1619
        %1621 = vst [vmem:[%s1550 + $0x68] sm:$0xf] %v1620
        %v1622 = vld [vmem:[%s1550 + $0x6c] sm:$0x1]
        %v1623 = vsel %vm859, %v1325, %v1622
        %1624 = vst [vmem:[%s1550 + $0x6c] sm:$0x1] %v1623
        %v1625 = vld [vmem:[%s1550 + $0x70] sm:$0xf]
        %v1626 = vsel %vm1552, %v1332, %v1625
        %1627 = vst [vmem:[%s1550 + $0x70] sm:$0xf] %v1626
        %v1628 = vld [vmem:[%s1550 + $0x74] sm:$0x1]
        %v1629 = vsel %vm859, %v1333, %v1628
        %1630 = vst [vmem:[%s1550 + $0x74] sm:$0x1] %v1629
        %v1631 = vld [vmem:[%s1550 + $0x78] sm:$0xf]
        %v1632 = vsel %vm1552, %v1340, %v1631
        %1633 = vst [vmem:[%s1550 + $0x78] sm:$0xf] %v1632
        %v1634 = vld [vmem:[%s1550 + $0x7c] sm:$0x1]
        %v1635 = vsel %vm859, %v1341, %v1634
        %1636 = vst [vmem:[%s1550 + $0x7c] sm:$0x1] %v1635
        %v1637 = vld [vmem:[%s1550 + $0x80] sm:$0xf]
        %v1638 = vsel %vm1552, %v1348, %v1637
        %1639 = vst [vmem:[%s1550 + $0x80] sm:$0xf] %v1638
        %v1640 = vld [vmem:[%s1550 + $0x84] sm:$0x1]
        %v1641 = vsel %vm859, %v1349, %v1640
        %1642 = vst [vmem:[%s1550 + $0x84] sm:$0x1] %v1641
        %v1643 = vld [vmem:[%s1550 + $0x88] sm:$0xf]
        %v1644 = vsel %vm1552, %v1356, %v1643
        %1645 = vst [vmem:[%s1550 + $0x88] sm:$0xf] %v1644
        %v1646 = vld [vmem:[%s1550 + $0x8c] sm:$0x1]
        %v1647 = vsel %vm859, %v1357, %v1646
        %1648 = vst [vmem:[%s1550 + $0x8c] sm:$0x1] %v1647
        %v1649 = vld [vmem:[%s1550 + $0xa0] sm:$0xf]
        %v1650 = vsel %vm1552, %v1364, %v1649
        %1651 = vst [vmem:[%s1550 + $0xa0] sm:$0xf] %v1650
        %v1652 = vld [vmem:[%s1550 + $0xa4] sm:$0x1]
        %v1653 = vsel %vm859, %v1365, %v1652
        %1654 = vst [vmem:[%s1550 + $0xa4] sm:$0x1] %v1653
        %v1655 = vld [vmem:[%s1550 + $0xa8] sm:$0xf]
        %v1656 = vsel %vm1552, %v1372, %v1655
        %1657 = vst [vmem:[%s1550 + $0xa8] sm:$0xf] %v1656
        %v1658 = vld [vmem:[%s1550 + $0xac] sm:$0x1]
        %v1659 = vsel %vm859, %v1373, %v1658
        %1660 = vst [vmem:[%s1550 + $0xac] sm:$0x1] %v1659
        %v1661 = vld [vmem:[%s1550 + $0xb0] sm:$0xf]
        %v1662 = vsel %vm1552, %v1380, %v1661
        %1663 = vst [vmem:[%s1550 + $0xb0] sm:$0xf] %v1662
        %v1664 = vld [vmem:[%s1550 + $0xb4] sm:$0x1]
        %v1665 = vsel %vm859, %v1381, %v1664
        %1666 = vst [vmem:[%s1550 + $0xb4] sm:$0x1] %v1665
        %v1667 = vld [vmem:[%s1550 + $0xb8] sm:$0xf]
        %v1668 = vsel %vm1552, %v1388, %v1667
        %1669 = vst [vmem:[%s1550 + $0xb8] sm:$0xf] %v1668
        %v1670 = vld [vmem:[%s1550 + $0xbc] sm:$0x1]
        %v1671 = vsel %vm859, %v1389, %v1670
        %1672 = vst [vmem:[%s1550 + $0xbc] sm:$0x1] %v1671
        %v1673 = vld [vmem:[%s1550 + $0xc0] sm:$0xf]
        %v1674 = vsel %vm1552, %v1396, %v1673
        %1675 = vst [vmem:[%s1550 + $0xc0] sm:$0xf] %v1674
        %v1676 = vld [vmem:[%s1550 + $0xc4] sm:$0x1]
        %v1677 = vsel %vm859, %v1397, %v1676
        %1678 = vst [vmem:[%s1550 + $0xc4] sm:$0x1] %v1677
        %v1679 = vld [vmem:[%s1550 + $0xc8] sm:$0xf]
        %v1680 = vsel %vm1552, %v1404, %v1679
        %1681 = vst [vmem:[%s1550 + $0xc8] sm:$0xf] %v1680
        %v1682 = vld [vmem:[%s1550 + $0xcc] sm:$0x1]
        %v1683 = vsel %vm859, %v1405, %v1682
        %1684 = vst [vmem:[%s1550 + $0xcc] sm:$0x1] %v1683
        %v1685 = vld [vmem:[%s1550 + $0xd0] sm:$0xf]
        %v1686 = vsel %vm1552, %v1412, %v1685
        %1687 = vst [vmem:[%s1550 + $0xd0] sm:$0xf] %v1686
        %v1688 = vld [vmem:[%s1550 + $0xd4] sm:$0x1]
        %v1689 = vsel %vm859, %v1413, %v1688
        %1690 = vst [vmem:[%s1550 + $0xd4] sm:$0x1] %v1689
        %v1691 = vld [vmem:[%s1550 + $0xd8] sm:$0xf]
        %v1692 = vsel %vm1552, %v1420, %v1691
        %1693 = vst [vmem:[%s1550 + $0xd8] sm:$0xf] %v1692
        %v1694 = vld [vmem:[%s1550 + $0xdc] sm:$0x1]
        %v1695 = vsel %vm859, %v1421, %v1694
        %1696 = vst [vmem:[%s1550 + $0xdc] sm:$0x1] %v1695
        %v1697 = vld [vmem:[%s1550 + $0xf0] sm:$0xf]
        %v1698 = vsel %vm1552, %v1428, %v1697
        %1699 = vst [vmem:[%s1550 + $0xf0] sm:$0xf] %v1698
        %v1700 = vld [vmem:[%s1550 + $0xf4] sm:$0x1]
        %v1701 = vsel %vm859, %v1429, %v1700
        %1702 = vst [vmem:[%s1550 + $0xf4] sm:$0x1] %v1701
        %v1703 = vld [vmem:[%s1550 + $0xf8] sm:$0xf]
        %v1704 = vsel %vm1552, %v1436, %v1703
        %1705 = vst [vmem:[%s1550 + $0xf8] sm:$0xf] %v1704
        %v1706 = vld [vmem:[%s1550 + $0xfc] sm:$0x1]
        %v1707 = vsel %vm859, %v1437, %v1706
        %1708 = vst [vmem:[%s1550 + $0xfc] sm:$0x1] %v1707
        %v1709 = vld [vmem:[%s1550 + $0x100] sm:$0xf]
        %v1710 = vsel %vm1552, %v1444, %v1709
        %1711 = vst [vmem:[%s1550 + $0x100] sm:$0xf] %v1710
        %v1712 = vld [vmem:[%s1550 + $0x104] sm:$0x1]
        %v1713 = vsel %vm859, %v1445, %v1712
        %1714 = vst [vmem:[%s1550 + $0x104] sm:$0x1] %v1713
        %v1715 = vld [vmem:[%s1550 + $0x108] sm:$0xf]
        %v1716 = vsel %vm1552, %v1452, %v1715
        %1717 = vst [vmem:[%s1550 + $0x108] sm:$0xf] %v1716
        %v1718 = vld [vmem:[%s1550 + $0x10c] sm:$0x1]
        %v1719 = vsel %vm859, %v1453, %v1718
        %1720 = vst [vmem:[%s1550 + $0x10c] sm:$0x1] %v1719
        %v1721 = vld [vmem:[%s1550 + $0x110] sm:$0xf]
        %v1722 = vsel %vm1552, %v1460, %v1721
        %1723 = vst [vmem:[%s1550 + $0x110] sm:$0xf] %v1722
        %v1724 = vld [vmem:[%s1550 + $0x114] sm:$0x1]
        %v1725 = vsel %vm859, %v1461, %v1724
        %1726 = vst [vmem:[%s1550 + $0x114] sm:$0x1] %v1725
        %v1727 = vld [vmem:[%s1550 + $0x118] sm:$0xf]
        %v1728 = vsel %vm1552, %v1468, %v1727
        %1729 = vst [vmem:[%s1550 + $0x118] sm:$0xf] %v1728
        %v1730 = vld [vmem:[%s1550 + $0x11c] sm:$0x1]
        %v1731 = vsel %vm859, %v1469, %v1730
        %1732 = vst [vmem:[%s1550 + $0x11c] sm:$0x1] %v1731
        %v1733 = vld [vmem:[%s1550 + $0x120] sm:$0xf]
        %v1734 = vsel %vm1552, %v1476, %v1733
        %1735 = vst [vmem:[%s1550 + $0x120] sm:$0xf] %v1734
        %v1736 = vld [vmem:[%s1550 + $0x124] sm:$0x1]
        %v1737 = vsel %vm859, %v1477, %v1736
        %1738 = vst [vmem:[%s1550 + $0x124] sm:$0x1] %v1737
        %v1739 = vld [vmem:[%s1550 + $0x128] sm:$0xf]
        %v1740 = vsel %vm1552, %v1484, %v1739
        %1741 = vst [vmem:[%s1550 + $0x128] sm:$0xf] %v1740
        %v1742 = vld [vmem:[%s1550 + $0x12c] sm:$0x1]
        %v1743 = vsel %vm859, %v1485, %v1742
        %1744 = vst [vmem:[%s1550 + $0x12c] sm:$0x1] %v1743
        %v1745 = vld [vmem:[#allocation2] sm:$0xf]
        %v1746 = vld [vmem:[#allocation2 + $0x8] sm:$0xf]
        %v1747 = vld [vmem:[#allocation2 + $0x10] sm:$0xf]
        %v1748 = vld [vmem:[#allocation2 + $0x18] sm:$0xf]
        %v1749 = vld [vmem:[#allocation2 + $0x20] sm:$0xf]
        %v1750 = vld [vmem:[#allocation2 + $0x28] sm:$0xf]
        %v1751 = vld [vmem:[#allocation2 + $0x30] sm:$0xf]
        %v1752 = vld [vmem:[#allocation2 + $0x38] sm:$0xf]
        %v1753 = vld [vmem:[#allocation2 + $0x50] sm:$0xf]
        %v1754 = vld [vmem:[#allocation2 + $0x58] sm:$0xf]
        %v1755 = vld [vmem:[#allocation2 + $0x60] sm:$0xf]
        %v1756 = vld [vmem:[#allocation2 + $0x68] sm:$0xf]
        %v1757 = vld [vmem:[#allocation2 + $0x70] sm:$0xf]
        %v1758 = vld [vmem:[#allocation2 + $0x78] sm:$0xf]
        %v1759 = vld [vmem:[#allocation2 + $0x80] sm:$0xf]
        %v1760 = vld [vmem:[#allocation2 + $0x88] sm:$0xf]
        %v1761 = vld [vmem:[#allocation2 + $0xa0] sm:$0xf]
        %v1762 = vld [vmem:[#allocation2 + $0xa8] sm:$0xf]
        %v1763 = vld [vmem:[#allocation2 + $0xb0] sm:$0xf]
        %v1764 = vld [vmem:[#allocation2 + $0xb8] sm:$0xf]
        %v1765 = vld [vmem:[#allocation2 + $0xc0] sm:$0xf]
        %v1766 = vld [vmem:[#allocation2 + $0xc8] sm:$0xf]
        %v1767 = vld [vmem:[#allocation2 + $0xd0] sm:$0xf]
        %v1768 = vld [vmem:[#allocation2 + $0xd8] sm:$0xf]
        %v1769 = vld [vmem:[#allocation2 + $0xf0] sm:$0xf]
        %v1770 = vld [vmem:[#allocation2 + $0xf8] sm:$0xf]
        %v1771 = vld [vmem:[#allocation2 + $0x100] sm:$0xf]
        %v1772 = vld [vmem:[#allocation2 + $0x108] sm:$0xf]
        %v1773 = vld [vmem:[#allocation2 + $0x110] sm:$0xf]
        %v1774 = vld [vmem:[#allocation2 + $0x118] sm:$0xf]
        %v1775 = vld [vmem:[#allocation2 + $0x120] sm:$0xf]
        %v1776 = vld [vmem:[#allocation2 + $0x128] sm:$0xf]
        %v1777 = vld [vmem:[%s4] sm:$0xf]
        %v1778 = vld [vmem:[#allocation2 + $0x4] sm:$0x1]
        %v1779 = vld [vmem:[#allocation2 + $0xc] sm:$0x1]
        %v1780 = vld [vmem:[#allocation2 + $0x14] sm:$0x1]
        %v1781 = vld [vmem:[#allocation2 + $0x1c] sm:$0x1]
        %v1782 = vld [vmem:[#allocation2 + $0x24] sm:$0x1]
        %v1783 = vld [vmem:[#allocation2 + $0x2c] sm:$0x1]
        %v1784 = vld [vmem:[#allocation2 + $0x34] sm:$0x1]
        %v1785 = vld [vmem:[#allocation2 + $0x3c] sm:$0x1]
        %v1786 = vld [vmem:[#allocation2 + $0x54] sm:$0x1]
        %v1787 = vld [vmem:[#allocation2 + $0x5c] sm:$0x1]
        %v1788 = vld [vmem:[#allocation2 + $0x64] sm:$0x1]
        %v1789 = vld [vmem:[#allocation2 + $0x6c] sm:$0x1]
        %v1790 = vld [vmem:[#allocation2 + $0x74] sm:$0x1]
        %v1791 = vld [vmem:[#allocation2 + $0x7c] sm:$0x1]
        %v1792 = vld [vmem:[#allocation2 + $0x84] sm:$0x1]
        %v1793 = vld [vmem:[#allocation2 + $0x8c] sm:$0x1]
        %v1794 = vld [vmem:[#allocation2 + $0xa4] sm:$0x1]
        %v1795 = vld [vmem:[#allocation2 + $0xac] sm:$0x1]
        %v1796 = vld [vmem:[#allocation2 + $0xb4] sm:$0x1]
        %v1797 = vld [vmem:[#allocation2 + $0xbc] sm:$0x1]
        %v1798 = vld [vmem:[#allocation2 + $0xc4] sm:$0x1]
        %v1799 = vld [vmem:[#allocation2 + $0xcc] sm:$0x1]
        %v1800 = vld [vmem:[#allocation2 + $0xd4] sm:$0x1]
        %v1801 = vld [vmem:[#allocation2 + $0xdc] sm:$0x1]
        %v1802 = vld [vmem:[#allocation2 + $0xf4] sm:$0x1]
        %v1803 = vld [vmem:[#allocation2 + $0xfc] sm:$0x1]
        %v1804 = vld [vmem:[#allocation2 + $0x104] sm:$0x1]
        %v1805 = vld [vmem:[#allocation2 + $0x10c] sm:$0x1]
        %v1806 = vld [vmem:[#allocation2 + $0x114] sm:$0x1]
        %v1807 = vld [vmem:[#allocation2 + $0x11c] sm:$0x1]
        %v1808 = vld [vmem:[#allocation2 + $0x124] sm:$0x1]
        %v1809 = vld [vmem:[#allocation2 + $0x12c] sm:$0x1]
        %vm1810 = vsmask.f32 3328
        %vm1811 = vsmask.f32 7440
        %vm1812 = vmor %vm1810, %vm1811
        %v1814 = vshrl.u32 %v1745, 16
        %v1816 = vrot.slane %v1814, 4
        %v1817 = vshll.u32 %v1745, 16
        %v1819 = vrot.slane %v1817, 5
        %v1820 = vor.u32 %v1816, %v1819
        %v1821 = vrot.slane %v1820, 4
        %v1823 = vshll.u32 %v1778, 16
        %v1825 = vrot.slane %v1823, 5
        %v1826 = vsel %vm1812, %v1821, %v1825
        %v1828 = vshrl.u32 %v1746, 16
        %v1830 = vrot.slane %v1828, 4
        %v1831 = vshll.u32 %v1746, 16
        %v1833 = vrot.slane %v1831, 5
        %v1834 = vor.u32 %v1830, %v1833
        %v1835 = vrot.slane %v1834, 4
        %v1837 = vshll.u32 %v1779, 16
        %v1839 = vrot.slane %v1837, 5
        %v1840 = vsel %vm1812, %v1835, %v1839
        %v1842 = vshrl.u32 %v1747, 16
        %v1844 = vrot.slane %v1842, 4
        %v1845 = vshll.u32 %v1747, 16
        %v1847 = vrot.slane %v1845, 5
        %v1848 = vor.u32 %v1844, %v1847
        %v1849 = vrot.slane %v1848, 4
        %v1851 = vshll.u32 %v1780, 16
        %v1853 = vrot.slane %v1851, 5
        %v1854 = vsel %vm1812, %v1849, %v1853
        %v1856 = vshrl.u32 %v1748, 16
        %v1858 = vrot.slane %v1856, 4
        %v1859 = vshll.u32 %v1748, 16
        %v1861 = vrot.slane %v1859, 5
        %v1862 = vor.u32 %v1858, %v1861
        %v1863 = vrot.slane %v1862, 4
        %v1865 = vshll.u32 %v1781, 16
        %v1867 = vrot.slane %v1865, 5
        %v1868 = vsel %vm1812, %v1863, %v1867
        %v1870 = vshrl.u32 %v1749, 16
        %v1872 = vrot.slane %v1870, 4
        %v1873 = vshll.u32 %v1749, 16
        %v1875 = vrot.slane %v1873, 5
        %v1876 = vor.u32 %v1872, %v1875
        %v1877 = vrot.slane %v1876, 4
        %v1879 = vshll.u32 %v1782, 16
        %v1881 = vrot.slane %v1879, 5
        %v1882 = vsel %vm1812, %v1877, %v1881
        %v1884 = vshrl.u32 %v1750, 16
        %v1886 = vrot.slane %v1884, 4
        %v1887 = vshll.u32 %v1750, 16
        %v1889 = vrot.slane %v1887, 5
        %v1890 = vor.u32 %v1886, %v1889
        %v1891 = vrot.slane %v1890, 4
        %v1893 = vshll.u32 %v1783, 16
        %v1895 = vrot.slane %v1893, 5
        %v1896 = vsel %vm1812, %v1891, %v1895
        %v1898 = vshrl.u32 %v1751, 16
        %v1900 = vrot.slane %v1898, 4
        %v1901 = vshll.u32 %v1751, 16
        %v1903 = vrot.slane %v1901, 5
        %v1904 = vor.u32 %v1900, %v1903
        %v1905 = vrot.slane %v1904, 4
        %v1907 = vshll.u32 %v1784, 16
        %v1909 = vrot.slane %v1907, 5
        %v1910 = vsel %vm1812, %v1905, %v1909
        %v1912 = vshrl.u32 %v1752, 16
        %v1914 = vrot.slane %v1912, 4
        %v1915 = vshll.u32 %v1752, 16
        %v1917 = vrot.slane %v1915, 5
        %v1918 = vor.u32 %v1914, %v1917
        %v1919 = vrot.slane %v1918, 4
        %v1921 = vshll.u32 %v1785, 16
        %v1923 = vrot.slane %v1921, 5
        %v1924 = vsel %vm1812, %v1919, %v1923
        %v1926 = vshrl.u32 %v1753, 16
        %v1928 = vrot.slane %v1926, 4
        %v1929 = vshll.u32 %v1753, 16
        %v1931 = vrot.slane %v1929, 5
        %v1932 = vor.u32 %v1928, %v1931
        %v1933 = vrot.slane %v1932, 4
        %v1935 = vshll.u32 %v1786, 16
        %v1937 = vrot.slane %v1935, 5
        %v1938 = vsel %vm1812, %v1933, %v1937
        %v1940 = vshrl.u32 %v1754, 16
        %v1942 = vrot.slane %v1940, 4
        %v1943 = vshll.u32 %v1754, 16
        %v1945 = vrot.slane %v1943, 5
        %v1946 = vor.u32 %v1942, %v1945
        %v1947 = vrot.slane %v1946, 4
        %v1949 = vshll.u32 %v1787, 16
        %v1951 = vrot.slane %v1949, 5
        %v1952 = vsel %vm1812, %v1947, %v1951
        %v1954 = vshrl.u32 %v1755, 16
        %v1956 = vrot.slane %v1954, 4
        %v1957 = vshll.u32 %v1755, 16
        %v1959 = vrot.slane %v1957, 5
        %v1960 = vor.u32 %v1956, %v1959
        %v1961 = vrot.slane %v1960, 4
        %v1963 = vshll.u32 %v1788, 16
        %v1965 = vrot.slane %v1963, 5
        %v1966 = vsel %vm1812, %v1961, %v1965
        %v1968 = vshrl.u32 %v1756, 16
        %v1970 = vrot.slane %v1968, 4
        %v1971 = vshll.u32 %v1756, 16
        %v1973 = vrot.slane %v1971, 5
        %v1974 = vor.u32 %v1970, %v1973
        %v1975 = vrot.slane %v1974, 4
        %v1977 = vshll.u32 %v1789, 16
        %v1979 = vrot.slane %v1977, 5
        %v1980 = vsel %vm1812, %v1975, %v1979
        %v1982 = vshrl.u32 %v1757, 16
        %v1984 = vrot.slane %v1982, 4
        %v1985 = vshll.u32 %v1757, 16
        %v1987 = vrot.slane %v1985, 5
        %v1988 = vor.u32 %v1984, %v1987
        %v1989 = vrot.slane %v1988, 4
        %v1991 = vshll.u32 %v1790, 16
        %v1993 = vrot.slane %v1991, 5
        %v1994 = vsel %vm1812, %v1989, %v1993
        %v1996 = vshrl.u32 %v1758, 16
        %v1998 = vrot.slane %v1996, 4
        %v1999 = vshll.u32 %v1758, 16
        %v2001 = vrot.slane %v1999, 5
        %v2002 = vor.u32 %v1998, %v2001
        %v2003 = vrot.slane %v2002, 4
        %v2005 = vshll.u32 %v1791, 16
        %v2007 = vrot.slane %v2005, 5
        %v2008 = vsel %vm1812, %v2003, %v2007
        %v2010 = vshrl.u32 %v1759, 16
        %v2012 = vrot.slane %v2010, 4
        %v2013 = vshll.u32 %v1759, 16
        %v2015 = vrot.slane %v2013, 5
        %v2016 = vor.u32 %v2012, %v2015
        %v2017 = vrot.slane %v2016, 4
        %v2019 = vshll.u32 %v1792, 16
        %v2021 = vrot.slane %v2019, 5
        %v2022 = vsel %vm1812, %v2017, %v2021
        %v2024 = vshrl.u32 %v1760, 16
        %v2026 = vrot.slane %v2024, 4
        %v2027 = vshll.u32 %v1760, 16
        %v2029 = vrot.slane %v2027, 5
        %v2030 = vor.u32 %v2026, %v2029
        %v2031 = vrot.slane %v2030, 4
        %v2033 = vshll.u32 %v1793, 16
        %v2035 = vrot.slane %v2033, 5
        %v2036 = vsel %vm1812, %v2031, %v2035
        %v2038 = vshrl.u32 %v1761, 16
        %v2040 = vrot.slane %v2038, 4
        %v2041 = vshll.u32 %v1761, 16
        %v2043 = vrot.slane %v2041, 5
        %v2044 = vor.u32 %v2040, %v2043
        %v2045 = vrot.slane %v2044, 4
        %v2047 = vshll.u32 %v1794, 16
        %v2049 = vrot.slane %v2047, 5
        %v2050 = vsel %vm1812, %v2045, %v2049
        %v2052 = vshrl.u32 %v1762, 16
        %v2054 = vrot.slane %v2052, 4
        %v2055 = vshll.u32 %v1762, 16
        %v2057 = vrot.slane %v2055, 5
        %v2058 = vor.u32 %v2054, %v2057
        %v2059 = vrot.slane %v2058, 4
        %v2061 = vshll.u32 %v1795, 16
        %v2063 = vrot.slane %v2061, 5
        %v2064 = vsel %vm1812, %v2059, %v2063
        %v2066 = vshrl.u32 %v1763, 16
        %v2068 = vrot.slane %v2066, 4
        %v2069 = vshll.u32 %v1763, 16
        %v2071 = vrot.slane %v2069, 5
        %v2072 = vor.u32 %v2068, %v2071
        %v2073 = vrot.slane %v2072, 4
        %v2075 = vshll.u32 %v1796, 16
        %v2077 = vrot.slane %v2075, 5
        %v2078 = vsel %vm1812, %v2073, %v2077
        %v2080 = vshrl.u32 %v1764, 16
        %v2082 = vrot.slane %v2080, 4
        %v2083 = vshll.u32 %v1764, 16
        %v2085 = vrot.slane %v2083, 5
        %v2086 = vor.u32 %v2082, %v2085
        %v2087 = vrot.slane %v2086, 4
        %v2089 = vshll.u32 %v1797, 16
        %v2091 = vrot.slane %v2089, 5
        %v2092 = vsel %vm1812, %v2087, %v2091
        %v2094 = vshrl.u32 %v1765, 16
        %v2096 = vrot.slane %v2094, 4
        %v2097 = vshll.u32 %v1765, 16
        %v2099 = vrot.slane %v2097, 5
        %v2100 = vor.u32 %v2096, %v2099
        %v2101 = vrot.slane %v2100, 4
        %v2103 = vshll.u32 %v1798, 16
        %v2105 = vrot.slane %v2103, 5
        %v2106 = vsel %vm1812, %v2101, %v2105
        %v2108 = vshrl.u32 %v1766, 16
        %v2110 = vrot.slane %v2108, 4
        %v2111 = vshll.u32 %v1766, 16
        %v2113 = vrot.slane %v2111, 5
        %v2114 = vor.u32 %v2110, %v2113
        %v2115 = vrot.slane %v2114, 4
        %v2117 = vshll.u32 %v1799, 16
        %v2119 = vrot.slane %v2117, 5
        %v2120 = vsel %vm1812, %v2115, %v2119
        %v2122 = vshrl.u32 %v1767, 16
        %v2124 = vrot.slane %v2122, 4
        %v2125 = vshll.u32 %v1767, 16
        %v2127 = vrot.slane %v2125, 5
        %v2128 = vor.u32 %v2124, %v2127
        %v2129 = vrot.slane %v2128, 4
        %v2131 = vshll.u32 %v1800, 16
        %v2133 = vrot.slane %v2131, 5
        %v2134 = vsel %vm1812, %v2129, %v2133
        %v2136 = vshrl.u32 %v1768, 16
        %v2138 = vrot.slane %v2136, 4
        %v2139 = vshll.u32 %v1768, 16
        %v2141 = vrot.slane %v2139, 5
        %v2142 = vor.u32 %v2138, %v2141
        %v2143 = vrot.slane %v2142, 4
        %v2145 = vshll.u32 %v1801, 16
        %v2147 = vrot.slane %v2145, 5
        %v2148 = vsel %vm1812, %v2143, %v2147
        %v2150 = vshrl.u32 %v1769, 16
        %v2152 = vrot.slane %v2150, 4
        %v2153 = vshll.u32 %v1769, 16
        %v2155 = vrot.slane %v2153, 5
        %v2156 = vor.u32 %v2152, %v2155
        %v2157 = vrot.slane %v2156, 4
        %v2159 = vshll.u32 %v1802, 16
        %v2161 = vrot.slane %v2159, 5
        %v2162 = vsel %vm1812, %v2157, %v2161
        %v2164 = vshrl.u32 %v1770, 16
        %v2166 = vrot.slane %v2164, 4
        %v2167 = vshll.u32 %v1770, 16
        %v2169 = vrot.slane %v2167, 5
        %v2170 = vor.u32 %v2166, %v2169
        %v2171 = vrot.slane %v2170, 4
        %v2173 = vshll.u32 %v1803, 16
        %v2175 = vrot.slane %v2173, 5
        %v2176 = vsel %vm1812, %v2171, %v2175
        %v2178 = vshrl.u32 %v1771, 16
        %v2180 = vrot.slane %v2178, 4
        %v2181 = vshll.u32 %v1771, 16
        %v2183 = vrot.slane %v2181, 5
        %v2184 = vor.u32 %v2180, %v2183
        %v2185 = vrot.slane %v2184, 4
        %v2187 = vshll.u32 %v1804, 16
        %v2189 = vrot.slane %v2187, 5
        %v2190 = vsel %vm1812, %v2185, %v2189
        %v2192 = vshrl.u32 %v1772, 16
        %v2194 = vrot.slane %v2192, 4
        %v2195 = vshll.u32 %v1772, 16
        %v2197 = vrot.slane %v2195, 5
        %v2198 = vor.u32 %v2194, %v2197
        %v2199 = vrot.slane %v2198, 4
        %v2201 = vshll.u32 %v1805, 16
        %v2203 = vrot.slane %v2201, 5
        %v2204 = vsel %vm1812, %v2199, %v2203
        %v2206 = vshrl.u32 %v1773, 16
        %v2208 = vrot.slane %v2206, 4
        %v2209 = vshll.u32 %v1773, 16
        %v2211 = vrot.slane %v2209, 5
        %v2212 = vor.u32 %v2208, %v2211
        %v2213 = vrot.slane %v2212, 4
        %v2215 = vshll.u32 %v1806, 16
        %v2217 = vrot.slane %v2215, 5
        %v2218 = vsel %vm1812, %v2213, %v2217
        %v2220 = vshrl.u32 %v1774, 16
        %v2222 = vrot.slane %v2220, 4
        %v2223 = vshll.u32 %v1774, 16
        %v2225 = vrot.slane %v2223, 5
        %v2226 = vor.u32 %v2222, %v2225
        %v2227 = vrot.slane %v2226, 4
        %v2229 = vshll.u32 %v1807, 16
        %v2231 = vrot.slane %v2229, 5
        %v2232 = vsel %vm1812, %v2227, %v2231
        %v2234 = vshrl.u32 %v1775, 16
        %v2236 = vrot.slane %v2234, 4
        %v2237 = vshll.u32 %v1775, 16
        %v2239 = vrot.slane %v2237, 5
        %v2240 = vor.u32 %v2236, %v2239
        %v2241 = vrot.slane %v2240, 4
        %v2243 = vshll.u32 %v1808, 16
        %v2245 = vrot.slane %v2243, 5
        %v2246 = vsel %vm1812, %v2241, %v2245
        %v2248 = vshrl.u32 %v1776, 16
        %v2250 = vrot.slane %v2248, 4
        %v2251 = vshll.u32 %v1776, 16
        %v2253 = vrot.slane %v2251, 5
        %v2254 = vor.u32 %v2250, %v2253
        %v2255 = vrot.slane %v2254, 4
        %v2257 = vshll.u32 %v1809, 16
        %v2259 = vrot.slane %v2257, 5
        %v2260 = vsel %vm1812, %v2255, %v2259
        %s2261 = scalar_lea.vmem %s4, 4
        %v2262 = vld [vmem:[%s2261] sm:$0xf]
        %v2263 = vunpack.c.l.b16 %v1826
        %v2264 = vunpack.c.l.b16 %v1840
        %v2265 = vunpack.c.l.b16 %v1854
        %v2266 = vunpack.c.l.b16 %v1868
        %v2267 = vunpack.c.l.b16 %v1882
        %v2268 = vunpack.c.l.b16 %v1896
        %v2269 = vunpack.c.l.b16 %v1910
        %v2270 = vunpack.c.l.b16 %v1924
        %v2271 = vunpack.c.l.b16 %v1938
        %v2272 = vunpack.c.l.b16 %v1952
        %v2273 = vunpack.c.l.b16 %v1966
        %v2274 = vunpack.c.l.b16 %v1980
        %v2275 = vunpack.c.l.b16 %v1994
        %v2276 = vunpack.c.l.b16 %v2008
        %v2277 = vunpack.c.l.b16 %v2022
        %v2278 = vunpack.c.l.b16 %v2036
        %v2279 = vunpack.c.l.b16 %v2050
        %v2280 = vunpack.c.l.b16 %v2064
        %v2281 = vunpack.c.l.b16 %v2078
        %v2282 = vunpack.c.l.b16 %v2092
        %v2283 = vunpack.c.l.b16 %v2106
        %v2284 = vunpack.c.l.b16 %v2120
        %v2285 = vunpack.c.l.b16 %v2134
        %v2286 = vunpack.c.l.b16 %v2148
        %v2287 = vunpack.c.l.b16 %v2162
        %v2288 = vunpack.c.l.b16 %v2176
        %v2289 = vunpack.c.l.b16 %v2190
        %v2290 = vunpack.c.l.b16 %v2204
        %v2291 = vunpack.c.l.b16 %v2218
        %v2292 = vunpack.c.l.b16 %v2232
        %v2293 = vunpack.c.l.b16 %v2246
        %v2294 = vunpack.c.l.b16 %v2260
        %v2295 = vpack.c.b16 %v2264, %v2263
        %v2296 = vpack.c.b16 %v2266, %v2265
        %v2297 = vpack.c.b16 %v2268, %v2267
        %v2298 = vpack.c.b16 %v2270, %v2269
        %v2299 = vpack.c.b16 %v2272, %v2271
        %v2300 = vpack.c.b16 %v2274, %v2273
        %v2301 = vpack.c.b16 %v2276, %v2275
        %v2302 = vpack.c.b16 %v2278, %v2277
        %v2303 = vpack.c.b16 %v2280, %v2279
        %v2304 = vpack.c.b16 %v2282, %v2281
        %v2305 = vpack.c.b16 %v2284, %v2283
        %v2306 = vpack.c.b16 %v2286, %v2285
        %v2307 = vpack.c.b16 %v2288, %v2287
        %v2308 = vpack.c.b16 %v2290, %v2289
        %v2309 = vpack.c.b16 %v2292, %v2291
        %v2310 = vpack.c.b16 %v2294, %v2293
        %vm2311 = vcmask 64512
        %v2313 = vsel %vm2311, %v2295, 0
        %v2316 = vsel %vm2311, %v2296, 0
        %v2319 = vsel %vm2311, %v2297, 0
        %v2322 = vsel %vm2311, %v2298, 0
        %v2325 = vsel %vm2311, %v2299, 0
        %v2328 = vsel %vm2311, %v2300, 0
        %v2331 = vsel %vm2311, %v2301, 0
        %v2334 = vsel %vm2311, %v2302, 0
        %v2337 = vsel %vm2311, %v2303, 0
        %v2340 = vsel %vm2311, %v2304, 0
        %v2343 = vsel %vm2311, %v2305, 0
        %v2346 = vsel %vm2311, %v2306, 0
        %v2349 = vsel %vm2311, %v2307, 0
        %v2352 = vsel %vm2311, %v2308, 0
        %v2355 = vsel %vm2311, %v2309, 0
        %v2358 = vsel %vm2311, %v2310, 0
        %vm2360 = vcmask 1043456
        %v2362 = vsel %vm2360, %v2262, 0
        %2364 = vmatprep.subr.bf16.mxu0 0
        %2365 = vmatpush1.bf16.msra.mxu0 %v2362
        %2366 = vmatprep.subr.bf16.mxu0 0
        %2367 = vmatpush1.bf16.msra.mxu0 0
        %2368 = vmatprep.subr.bf16.mxu0 0
        %2369 = vmatpush1.bf16.msra.mxu0 0
        %2370 = vmatprep.subr.bf16.mxu0 0
        %2371 = vmatpush1.bf16.msra.mxu0 0
        %2372 = vmatprep.subr.bf16.mxu0 0
        %2373 = vmatpush1.bf16.msra.mxu0 0
        %2374 = vmatprep.subr.bf16.mxu0 0
        %2375 = vmatpush1.bf16.msra.mxu0 0
        %2376 = vmatprep.subr.bf16.mxu0 0
        %2377 = vmatpush1.bf16.msra.mxu0 0
        %2378 = vmatprep.subr.bf16.mxu0 0
        %2379 = vmatpush1.bf16.msra.mxu0 0
        %2380 = vmatprep.subr.bf16.mxu0 0
        %2381 = vmatpush1.bf16.msra.mxu0 0
        %2382 = vmatprep.subr.bf16.mxu0 0
        %2383 = vmatpush1.bf16.msra.mxu0 0
        %2384 = vmatprep.subr.bf16.mxu0 0
        %2385 = vmatpush1.bf16.msra.mxu0 0
        %2386 = vmatprep.subr.bf16.mxu0 0
        %2387 = vmatpush1.bf16.msra.mxu0 0
        %2388 = vmatprep.subr.bf16.mxu0 0
        %2389 = vmatpush1.bf16.msra.mxu0 0
        %2390 = vmatprep.subr.bf16.mxu0 0
        %2391 = vmatpush1.bf16.msra.mxu0 0
        %2392 = vmatprep.subr.bf16.mxu0 0
        %2393 = vmatpush1.bf16.msra.mxu0 0
        %2394 = vmatprep.subr.bf16.mxu0 0
        %2395 = vmatpush1.bf16.msra.mxu0 0
        %2396 = vmatprep.mubr.bf16.mxu0 0
        %2397 = vmatmul.mubr.bf16.gmra.mrb[0].mxu0 %v2313
        %v2398 = vpop.f32.mrb[0].mxu0
        %v2399 = vadd.f32 0.0, %v2398
        %v2400 = vpop.f32.mrb[0].mxu0
        %v2401 = vpop.f32.mrb[0].mxu0
        %v2402 = vadd.f32 0.0, %v2401
        %v2403 = vpop.f32.mrb[0].mxu0
        %2404 = vmatprep.mubr.bf16.mxu0 0
        %2405 = vmatmul.mubr.bf16.gmra.mrb[0].mxu0 %v2316
        %v2406 = vpop.f32.mrb[0].mxu0
        %v2407 = vadd.f32 0.0, %v2406
        %v2408 = vpop.f32.mrb[0].mxu0
        %v2409 = vpop.f32.mrb[0].mxu0
        %v2410 = vadd.f32 0.0, %v2409
        %v2411 = vpop.f32.mrb[0].mxu0
        %2412 = vmatprep.mubr.bf16.mxu0 0
        %2413 = vmatmul.mubr.bf16.gmra.mrb[0].mxu0 %v2319
        %v2414 = vpop.f32.mrb[0].mxu0
        %v2415 = vadd.f32 0.0, %v2414
        %v2416 = vpop.f32.mrb[0].mxu0
        %v2417 = vpop.f32.mrb[0].mxu0
        %v2418 = vadd.f32 0.0, %v2417
        %v2419 = vpop.f32.mrb[0].mxu0
        %2420 = vmatprep.mubr.bf16.mxu0 0
        %2421 = vmatmul.mubr.bf16.gmra.mrb[0].mxu0 %v2322
        %v2422 = vpop.f32.mrb[0].mxu0
        %v2423 = vadd.f32 0.0, %v2422
        %v2424 = vpop.f32.mrb[0].mxu0
        %v2425 = vpop.f32.mrb[0].mxu0
        %v2426 = vadd.f32 0.0, %v2425
        %v2427 = vpop.f32.mrb[0].mxu0
        %2428 = vmatprep.mubr.bf16.mxu0 0
        %2429 = vmatmul.mubr.bf16.gmra.mrb[0].mxu0 %v2325
        %v2430 = vpop.f32.mrb[0].mxu0
        %v2431 = vadd.f32 0.0, %v2430
        %v2432 = vpop.f32.mrb[0].mxu0
        %v2433 = vpop.f32.mrb[0].mxu0
        %v2434 = vadd.f32 0.0, %v2433
        %v2435 = vpop.f32.mrb[0].mxu0
        %2436 = vmatprep.mubr.bf16.mxu0 0
        %2437 = vmatmul.mubr.bf16.gmra.mrb[0].mxu0 %v2328
        %v2438 = vpop.f32.mrb[0].mxu0
        %v2439 = vadd.f32 0.0, %v2438
        %v2440 = vpop.f32.mrb[0].mxu0
        %v2441 = vpop.f32.mrb[0].mxu0
        %v2442 = vadd.f32 0.0, %v2441
        %v2443 = vpop.f32.mrb[0].mxu0
        %2444 = vmatprep.mubr.bf16.mxu0 0
        %2445 = vmatmul.mubr.bf16.gmra.mrb[0].mxu0 %v2331
        %v2446 = vpop.f32.mrb[0].mxu0
        %v2447 = vadd.f32 0.0, %v2446
        %v2448 = vpop.f32.mrb[0].mxu0
        %v2449 = vpop.f32.mrb[0].mxu0
        %v2450 = vadd.f32 0.0, %v2449
        %v2451 = vpop.f32.mrb[0].mxu0
        %2452 = vmatprep.mubr.bf16.mxu0 0
        %2453 = vmatmul.mubr.bf16.gmra.mrb[0].mxu0 %v2334
        %v2454 = vpop.f32.mrb[0].mxu0
        %v2455 = vadd.f32 0.0, %v2454
        %v2456 = vpop.f32.mrb[0].mxu0
        %v2457 = vpop.f32.mrb[0].mxu0
        %v2458 = vadd.f32 0.0, %v2457
        %v2459 = vpop.f32.mrb[0].mxu0
        %2460 = vmatprep.mubr.bf16.mxu0 0
        %2461 = vmatmul.mubr.bf16.gmra.mrb[0].mxu0 %v2337
        %v2462 = vpop.f32.mrb[0].mxu0
        %v2463 = vadd.f32 0.0, %v2462
        %v2464 = vpop.f32.mrb[0].mxu0
        %v2465 = vpop.f32.mrb[0].mxu0
        %v2466 = vadd.f32 0.0, %v2465
        %v2467 = vpop.f32.mrb[0].mxu0
        %2468 = vmatprep.mubr.bf16.mxu0 0
        %2469 = vmatmul.mubr.bf16.gmra.mrb[0].mxu0 %v2340
        %v2470 = vpop.f32.mrb[0].mxu0
        %v2471 = vadd.f32 0.0, %v2470
        %v2472 = vpop.f32.mrb[0].mxu0
        %v2473 = vpop.f32.mrb[0].mxu0
        %v2474 = vadd.f32 0.0, %v2473
        %v2475 = vpop.f32.mrb[0].mxu0
        %2476 = vmatprep.mubr.bf16.mxu0 0
        %2477 = vmatmul.mubr.bf16.gmra.mrb[0].mxu0 %v2343
        %v2478 = vpop.f32.mrb[0].mxu0
        %v2479 = vadd.f32 0.0, %v2478
        %v2480 = vpop.f32.mrb[0].mxu0
        %v2481 = vpop.f32.mrb[0].mxu0
        %v2482 = vadd.f32 0.0, %v2481
        %v2483 = vpop.f32.mrb[0].mxu0
        %2484 = vmatprep.mubr.bf16.mxu0 0
        %2485 = vmatmul.mubr.bf16.gmra.mrb[0].mxu0 %v2346
        %v2486 = vpop.f32.mrb[0].mxu0
        %v2487 = vadd.f32 0.0, %v2486
        %v2488 = vpop.f32.mrb[0].mxu0
        %v2489 = vpop.f32.mrb[0].mxu0
        %v2490 = vadd.f32 0.0, %v2489
        %v2491 = vpop.f32.mrb[0].mxu0
        %2492 = vmatprep.mubr.bf16.mxu0 0
        %2493 = vmatmul.mubr.bf16.gmra.mrb[0].mxu0 %v2349
        %v2494 = vpop.f32.mrb[0].mxu0
        %v2495 = vadd.f32 0.0, %v2494
        %v2496 = vpop.f32.mrb[0].mxu0
        %v2497 = vpop.f32.mrb[0].mxu0
        %v2498 = vadd.f32 0.0, %v2497
        %v2499 = vpop.f32.mrb[0].mxu0
        %2500 = vmatprep.mubr.bf16.mxu0 0
        %2501 = vmatmul.mubr.bf16.gmra.mrb[0].mxu0 %v2352
        %v2502 = vpop.f32.mrb[0].mxu0
        %v2503 = vadd.f32 0.0, %v2502
        %v2504 = vpop.f32.mrb[0].mxu0
        %v2505 = vpop.f32.mrb[0].mxu0
        %v2506 = vadd.f32 0.0, %v2505
        %v2507 = vpop.f32.mrb[0].mxu0
        %2508 = vmatprep.mubr.bf16.mxu0 0
        %2509 = vmatmul.mubr.bf16.gmra.mrb[0].mxu0 %v2355
        %v2510 = vpop.f32.mrb[0].mxu0
        %v2511 = vadd.f32 0.0, %v2510
        %v2512 = vpop.f32.mrb[0].mxu0
        %v2513 = vpop.f32.mrb[0].mxu0
        %v2514 = vadd.f32 0.0, %v2513
        %v2515 = vpop.f32.mrb[0].mxu0
        %2516 = vmatprep.mubr.bf16.mxu0 0
        %2517 = vmatmul.mubr.bf16.gmra.mrb[0].mxu0 %v2358
        %v2518 = vpop.f32.mrb[0].mxu0
        %v2519 = vadd.f32 0.0, %v2518
        %v2520 = vpop.f32.mrb[0].mxu0
        %v2521 = vpop.f32.mrb[0].mxu0
        %v2522 = vadd.f32 0.0, %v2521
        %v2523 = vpop.f32.mrb[0].mxu0
        %2524 = vdwg.mxu0
        %v2557 = vunpack.c.l.b16 %v1745
        %v2558 = vunpack.c.l.b16 %v1746
        %v2559 = vunpack.c.l.b16 %v1747
        %v2560 = vunpack.c.l.b16 %v1748
        %v2561 = vunpack.c.l.b16 %v1749
        %v2562 = vunpack.c.l.b16 %v1750
        %v2563 = vunpack.c.l.b16 %v1751
        %v2564 = vunpack.c.l.b16 %v1752
        %v2565 = vunpack.c.l.b16 %v1753
        %v2566 = vunpack.c.l.b16 %v1754
        %v2567 = vunpack.c.l.b16 %v1755
        %v2568 = vunpack.c.l.b16 %v1756
        %v2569 = vunpack.c.l.b16 %v1757
        %v2570 = vunpack.c.l.b16 %v1758
        %v2571 = vunpack.c.l.b16 %v1759
        %v2572 = vunpack.c.l.b16 %v1760
        %v2573 = vunpack.c.l.b16 %v1761
        %v2574 = vunpack.c.l.b16 %v1762
        %v2575 = vunpack.c.l.b16 %v1763
        %v2576 = vunpack.c.l.b16 %v1764
        %v2577 = vunpack.c.l.b16 %v1765
        %v2578 = vunpack.c.l.b16 %v1766
        %v2579 = vunpack.c.l.b16 %v1767
        %v2580 = vunpack.c.l.b16 %v1768
        %v2581 = vunpack.c.l.b16 %v1769
        %v2582 = vunpack.c.l.b16 %v1770
        %v2583 = vunpack.c.l.b16 %v1771
        %v2584 = vunpack.c.l.b16 %v1772
        %v2585 = vunpack.c.l.b16 %v1773
        %v2586 = vunpack.c.l.b16 %v1774
        %v2587 = vunpack.c.l.b16 %v1775
        %v2588 = vunpack.c.l.b16 %v1776
        %v2589 = vpack.c.b16 %v2558, %v2557
        %v2590 = vpack.c.b16 %v2560, %v2559
        %v2591 = vpack.c.b16 %v2562, %v2561
        %v2592 = vpack.c.b16 %v2564, %v2563
        %v2593 = vpack.c.b16 %v2566, %v2565
        %v2594 = vpack.c.b16 %v2568, %v2567
        %v2595 = vpack.c.b16 %v2570, %v2569
        %v2596 = vpack.c.b16 %v2572, %v2571
        %v2597 = vpack.c.b16 %v2574, %v2573
        %v2598 = vpack.c.b16 %v2576, %v2575
        %v2599 = vpack.c.b16 %v2578, %v2577
        %v2600 = vpack.c.b16 %v2580, %v2579
        %v2601 = vpack.c.b16 %v2582, %v2581
        %v2602 = vpack.c.b16 %v2584, %v2583
        %v2603 = vpack.c.b16 %v2586, %v2585
        %v2604 = vpack.c.b16 %v2588, %v2587
        %v2606 = vsel %vm2311, %v2589, 0
        %v2609 = vsel %vm2311, %v2590, 0
        %v2612 = vsel %vm2311, %v2591, 0
        %v2615 = vsel %vm2311, %v2592, 0
        %v2618 = vsel %vm2311, %v2593, 0
        %v2621 = vsel %vm2311, %v2594, 0
        %v2624 = vsel %vm2311, %v2595, 0
        %v2627 = vsel %vm2311, %v2596, 0
        %v2630 = vsel %vm2311, %v2597, 0
        %v2633 = vsel %vm2311, %v2598, 0
        %v2636 = vsel %vm2311, %v2599, 0
        %v2639 = vsel %vm2311, %v2600, 0
        %v2642 = vsel %vm2311, %v2601, 0
        %v2645 = vsel %vm2311, %v2602, 0
        %v2648 = vsel %vm2311, %v2603, 0
        %v2651 = vsel %vm2311, %v2604, 0
        %v2654 = vsel %vm2360, %v1777, 0
        %2656 = vmatprep.subr.bf16.mxu0 0
        %2657 = vmatpush1.bf16.msra.mxu0 %v2654
        %2658 = vmatprep.subr.bf16.mxu0 0
        %2659 = vmatpush1.bf16.msra.mxu0 0
        %2660 = vmatprep.subr.bf16.mxu0 0
        %2661 = vmatpush1.bf16.msra.mxu0 0
        %2662 = vmatprep.subr.bf16.mxu0 0
        %2663 = vmatpush1.bf16.msra.mxu0 0
        %2664 = vmatprep.subr.bf16.mxu0 0
        %2665 = vmatpush1.bf16.msra.mxu0 0
        %2666 = vmatprep.subr.bf16.mxu0 0
        %2667 = vmatpush1.bf16.msra.mxu0 0
        %2668 = vmatprep.subr.bf16.mxu0 0
        %2669 = vmatpush1.bf16.msra.mxu0 0
        %2670 = vmatprep.subr.bf16.mxu0 0
        %2671 = vmatpush1.bf16.msra.mxu0 0
        %2672 = vmatprep.subr.bf16.mxu0 0
        %2673 = vmatpush1.bf16.msra.mxu0 0
        %2674 = vmatprep.subr.bf16.mxu0 0
        %2675 = vmatpush1.bf16.msra.mxu0 0
        %2676 = vmatprep.subr.bf16.mxu0 0
        %2677 = vmatpush1.bf16.msra.mxu0 0
        %2678 = vmatprep.subr.bf16.mxu0 0
        %2679 = vmatpush1.bf16.msra.mxu0 0
        %2680 = vmatprep.subr.bf16.mxu0 0
        %2681 = vmatpush1.bf16.msra.mxu0 0
        %2682 = vmatprep.subr.bf16.mxu0 0
        %2683 = vmatpush1.bf16.msra.mxu0 0
        %2684 = vmatprep.subr.bf16.mxu0 0
        %2685 = vmatpush1.bf16.msra.mxu0 0
        %2686 = vmatprep.subr.bf16.mxu0 0
        %2687 = vmatpush1.bf16.msra.mxu0 0
        %2688 = vmatprep.mubr.bf16.mxu0 0
        %2689 = vmatmul.mubr.bf16.gmra.mrb[0].mxu0 %v2606
        %v2690 = vpop.f32.mrb[0].mxu0
        %v2691 = vadd.f32 %v2399, %v2690
        %v2692 = vpop.f32.mrb[0].mxu0
        %v2693 = vpop.f32.mrb[0].mxu0
        %v2694 = vadd.f32 %v2402, %v2693
        %v2695 = vpop.f32.mrb[0].mxu0
        %2696 = vmatprep.mubr.bf16.mxu0 0
        %2697 = vmatmul.mubr.bf16.gmra.mrb[0].mxu0 %v2609
        %v2698 = vpop.f32.mrb[0].mxu0
        %v2699 = vadd.f32 %v2407, %v2698
        %v2700 = vpop.f32.mrb[0].mxu0
        %v2701 = vpop.f32.mrb[0].mxu0
        %v2702 = vadd.f32 %v2410, %v2701
        %v2703 = vpop.f32.mrb[0].mxu0
        %2704 = vmatprep.mubr.bf16.mxu0 0
        %2705 = vmatmul.mubr.bf16.gmra.mrb[0].mxu0 %v2612
        %v2706 = vpop.f32.mrb[0].mxu0
        %v2707 = vadd.f32 %v2415, %v2706
        %v2708 = vpop.f32.mrb[0].mxu0
        %v2709 = vpop.f32.mrb[0].mxu0
        %v2710 = vadd.f32 %v2418, %v2709
        %v2711 = vpop.f32.mrb[0].mxu0
        %2712 = vmatprep.mubr.bf16.mxu0 0
        %2713 = vmatmul.mubr.bf16.gmra.mrb[0].mxu0 %v2615
        %v2714 = vpop.f32.mrb[0].mxu0
        %v2715 = vadd.f32 %v2423, %v2714
        %v2716 = vpop.f32.mrb[0].mxu0
        %v2717 = vpop.f32.mrb[0].mxu0
        %v2718 = vadd.f32 %v2426, %v2717
        %v2719 = vpop.f32.mrb[0].mxu0
        %2720 = vmatprep.mubr.bf16.mxu0 0
        %2721 = vmatmul.mubr.bf16.gmra.mrb[0].mxu0 %v2618
        %v2722 = vpop.f32.mrb[0].mxu0
        %v2723 = vadd.f32 %v2431, %v2722
        %v2724 = vpop.f32.mrb[0].mxu0
        %v2725 = vpop.f32.mrb[0].mxu0
        %v2726 = vadd.f32 %v2434, %v2725
        %v2727 = vpop.f32.mrb[0].mxu0
        %2728 = vmatprep.mubr.bf16.mxu0 0
        %2729 = vmatmul.mubr.bf16.gmra.mrb[0].mxu0 %v2621
        %v2730 = vpop.f32.mrb[0].mxu0
        %v2731 = vadd.f32 %v2439, %v2730
        %v2732 = vpop.f32.mrb[0].mxu0
        %v2733 = vpop.f32.mrb[0].mxu0
        %v2734 = vadd.f32 %v2442, %v2733
        %v2735 = vpop.f32.mrb[0].mxu0
        %2736 = vmatprep.mubr.bf16.mxu0 0
        %2737 = vmatmul.mubr.bf16.gmra.mrb[0].mxu0 %v2624
        %v2738 = vpop.f32.mrb[0].mxu0
        %v2739 = vadd.f32 %v2447, %v2738
        %v2740 = vpop.f32.mrb[0].mxu0
        %v2741 = vpop.f32.mrb[0].mxu0
        %v2742 = vadd.f32 %v2450, %v2741
        %v2743 = vpop.f32.mrb[0].mxu0
        %2744 = vmatprep.mubr.bf16.mxu0 0
        %2745 = vmatmul.mubr.bf16.gmra.mrb[0].mxu0 %v2627
        %v2746 = vpop.f32.mrb[0].mxu0
        %v2747 = vadd.f32 %v2455, %v2746
        %v2748 = vpop.f32.mrb[0].mxu0
        %v2749 = vpop.f32.mrb[0].mxu0
        %v2750 = vadd.f32 %v2458, %v2749
        %v2751 = vpop.f32.mrb[0].mxu0
        %2752 = vmatprep.mubr.bf16.mxu0 0
        %2753 = vmatmul.mubr.bf16.gmra.mrb[0].mxu0 %v2630
        %v2754 = vpop.f32.mrb[0].mxu0
        %v2755 = vadd.f32 %v2463, %v2754
        %v2756 = vpop.f32.mrb[0].mxu0
        %v2757 = vpop.f32.mrb[0].mxu0
        %v2758 = vadd.f32 %v2466, %v2757
        %v2759 = vpop.f32.mrb[0].mxu0
        %2760 = vmatprep.mubr.bf16.mxu0 0
        %2761 = vmatmul.mubr.bf16.gmra.mrb[0].mxu0 %v2633
        %v2762 = vpop.f32.mrb[0].mxu0
        %v2763 = vadd.f32 %v2471, %v2762
        %v2764 = vpop.f32.mrb[0].mxu0
        %v2765 = vpop.f32.mrb[0].mxu0
        %v2766 = vadd.f32 %v2474, %v2765
        %v2767 = vpop.f32.mrb[0].mxu0
        %2768 = vmatprep.mubr.bf16.mxu0 0
        %2769 = vmatmul.mubr.bf16.gmra.mrb[0].mxu0 %v2636
        %v2770 = vpop.f32.mrb[0].mxu0
        %v2771 = vadd.f32 %v2479, %v2770
        %v2772 = vpop.f32.mrb[0].mxu0
        %v2773 = vpop.f32.mrb[0].mxu0
        %v2774 = vadd.f32 %v2482, %v2773
        %v2775 = vpop.f32.mrb[0].mxu0
        %2776 = vmatprep.mubr.bf16.mxu0 0
        %2777 = vmatmul.mubr.bf16.gmra.mrb[0].mxu0 %v2639
        %v2778 = vpop.f32.mrb[0].mxu0
        %v2779 = vadd.f32 %v2487, %v2778
        %v2780 = vpop.f32.mrb[0].mxu0
        %v2781 = vpop.f32.mrb[0].mxu0
        %v2782 = vadd.f32 %v2490, %v2781
        %v2783 = vpop.f32.mrb[0].mxu0
        %2784 = vmatprep.mubr.bf16.mxu0 0
        %2785 = vmatmul.mubr.bf16.gmra.mrb[0].mxu0 %v2642
        %v2786 = vpop.f32.mrb[0].mxu0
        %v2787 = vadd.f32 %v2495, %v2786
        %v2788 = vpop.f32.mrb[0].mxu0
        %v2789 = vpop.f32.mrb[0].mxu0
        %v2790 = vadd.f32 %v2498, %v2789
        %v2791 = vpop.f32.mrb[0].mxu0
        %2792 = vmatprep.mubr.bf16.mxu0 0
        %2793 = vmatmul.mubr.bf16.gmra.mrb[0].mxu0 %v2645
        %v2794 = vpop.f32.mrb[0].mxu0
        %v2795 = vadd.f32 %v2503, %v2794
        %v2796 = vpop.f32.mrb[0].mxu0
        %v2797 = vpop.f32.mrb[0].mxu0
        %v2798 = vadd.f32 %v2506, %v2797
        %v2799 = vpop.f32.mrb[0].mxu0
        %2800 = vmatprep.mubr.bf16.mxu0 0
        %2801 = vmatmul.mubr.bf16.gmra.mrb[0].mxu0 %v2648
        %v2802 = vpop.f32.mrb[0].mxu0
        %v2803 = vadd.f32 %v2511, %v2802
        %v2804 = vpop.f32.mrb[0].mxu0
        %v2805 = vpop.f32.mrb[0].mxu0
        %v2806 = vadd.f32 %v2514, %v2805
        %v2807 = vpop.f32.mrb[0].mxu0
        %2808 = vmatprep.mubr.bf16.mxu0 0
        %2809 = vmatmul.mubr.bf16.gmra.mrb[0].mxu0 %v2651
        %v2810 = vpop.f32.mrb[0].mxu0
        %v2811 = vadd.f32 %v2519, %v2810
        %v2812 = vpop.f32.mrb[0].mxu0
        %v2813 = vpop.f32.mrb[0].mxu0
        %v2814 = vadd.f32 %v2522, %v2813
        %v2815 = vpop.f32.mrb[0].mxu0
        %2816 = vdwg.mxu0
        %v2817 = vld [vmem:[#allocation2] sm:$0xe]
        %v2818 = vld [vmem:[#allocation2 + $0x8] sm:$0xe]
        %v2819 = vld [vmem:[#allocation2 + $0x10] sm:$0xe]
        %v2820 = vld [vmem:[#allocation2 + $0x18] sm:$0xe]
        %v2821 = vld [vmem:[#allocation2 + $0x20] sm:$0xe]
        %v2822 = vld [vmem:[#allocation2 + $0x28] sm:$0xe]
        %v2823 = vld [vmem:[#allocation2 + $0x30] sm:$0xe]
        %v2824 = vld [vmem:[#allocation2 + $0x38] sm:$0xe]
        %v2825 = vld [vmem:[#allocation2 + $0x50] sm:$0xe]
        %v2826 = vld [vmem:[#allocation2 + $0x58] sm:$0xe]
        %v2827 = vld [vmem:[#allocation2 + $0x60] sm:$0xe]
        %v2828 = vld [vmem:[#allocation2 + $0x68] sm:$0xe]
        %v2829 = vld [vmem:[#allocation2 + $0x70] sm:$0xe]
        %v2830 = vld [vmem:[#allocation2 + $0x78] sm:$0xe]
        %v2831 = vld [vmem:[#allocation2 + $0x80] sm:$0xe]
        %v2832 = vld [vmem:[#allocation2 + $0x88] sm:$0xe]
        %v2833 = vld [vmem:[#allocation2 + $0xa0] sm:$0xe]
        %v2834 = vld [vmem:[#allocation2 + $0xa8] sm:$0xe]
        %v2835 = vld [vmem:[#allocation2 + $0xb0] sm:$0xe]
        %v2836 = vld [vmem:[#allocation2 + $0xb8] sm:$0xe]
        %v2837 = vld [vmem:[#allocation2 + $0xc0] sm:$0xe]
        %v2838 = vld [vmem:[#allocation2 + $0xc8] sm:$0xe]
        %v2839 = vld [vmem:[#allocation2 + $0xd0] sm:$0xe]
        %v2840 = vld [vmem:[#allocation2 + $0xd8] sm:$0xe]
        %v2841 = vld [vmem:[#allocation2 + $0xf0] sm:$0xe]
        %v2842 = vld [vmem:[#allocation2 + $0xf8] sm:$0xe]
        %v2843 = vld [vmem:[#allocation2 + $0x100] sm:$0xe]
        %v2844 = vld [vmem:[#allocation2 + $0x108] sm:$0xe]
        %v2845 = vld [vmem:[#allocation2 + $0x110] sm:$0xe]
        %v2846 = vld [vmem:[#allocation2 + $0x118] sm:$0xe]
        %v2847 = vld [vmem:[#allocation2 + $0x120] sm:$0xe]
        %v2848 = vld [vmem:[#allocation2 + $0x128] sm:$0xe]
        %vm2913 = vcmask 1042432
        %vm2914 = vcmask 1046532
        %vm2915 = vmor %vm2913, %vm2914
        %v2916 = vrot.slane %v2817, 5
        %v2917 = vrot.slane %v2916, 4
        %v2918 = vrot.slane %v1778, 5
        %v2919 = vsel %vm2915, %v2917, %v2918
        %v2920 = vrot.slane %v2818, 5
        %v2921 = vrot.slane %v2920, 4
        %v2922 = vrot.slane %v1779, 5
        %v2923 = vsel %vm2915, %v2921, %v2922
        %v2924 = vrot.slane %v2819, 5
        %v2925 = vrot.slane %v2924, 4
        %v2926 = vrot.slane %v1780, 5
        %v2927 = vsel %vm2915, %v2925, %v2926
        %v2928 = vrot.slane %v2820, 5
        %v2929 = vrot.slane %v2928, 4
        %v2930 = vrot.slane %v1781, 5
        %v2931 = vsel %vm2915, %v2929, %v2930
        %v2932 = vrot.slane %v2821, 5
        %v2933 = vrot.slane %v2932, 4
        %v2934 = vrot.slane %v1782, 5
        %v2935 = vsel %vm2915, %v2933, %v2934
        %v2936 = vrot.slane %v2822, 5
        %v2937 = vrot.slane %v2936, 4
        %v2938 = vrot.slane %v1783, 5
        %v2939 = vsel %vm2915, %v2937, %v2938
        %v2940 = vrot.slane %v2823, 5
        %v2941 = vrot.slane %v2940, 4
        %v2942 = vrot.slane %v1784, 5
        %v2943 = vsel %vm2915, %v2941, %v2942
        %v2944 = vrot.slane %v2824, 5
        %v2945 = vrot.slane %v2944, 4
        %v2946 = vrot.slane %v1785, 5
        %v2947 = vsel %vm2915, %v2945, %v2946
        %v2948 = vrot.slane %v2825, 5
        %v2949 = vrot.slane %v2948, 4
        %v2950 = vrot.slane %v1786, 5
        %v2951 = vsel %vm2915, %v2949, %v2950
        %v2952 = vrot.slane %v2826, 5
        %v2953 = vrot.slane %v2952, 4
        %v2954 = vrot.slane %v1787, 5
        %v2955 = vsel %vm2915, %v2953, %v2954
        %v2956 = vrot.slane %v2827, 5
        %v2957 = vrot.slane %v2956, 4
        %v2958 = vrot.slane %v1788, 5
        %v2959 = vsel %vm2915, %v2957, %v2958
        %v2960 = vrot.slane %v2828, 5
        %v2961 = vrot.slane %v2960, 4
        %v2962 = vrot.slane %v1789, 5
        %v2963 = vsel %vm2915, %v2961, %v2962
        %v2964 = vrot.slane %v2829, 5
        %v2965 = vrot.slane %v2964, 4
        %v2966 = vrot.slane %v1790, 5
        %v2967 = vsel %vm2915, %v2965, %v2966
        %v2968 = vrot.slane %v2830, 5
        %v2969 = vrot.slane %v2968, 4
        %v2970 = vrot.slane %v1791, 5
        %v2971 = vsel %vm2915, %v2969, %v2970
        %v2972 = vrot.slane %v2831, 5
        %v2973 = vrot.slane %v2972, 4
        %v2974 = vrot.slane %v1792, 5
        %v2975 = vsel %vm2915, %v2973, %v2974
        %v2976 = vrot.slane %v2832, 5
        %v2977 = vrot.slane %v2976, 4
        %v2978 = vrot.slane %v1793, 5
        %v2979 = vsel %vm2915, %v2977, %v2978
        %v2980 = vrot.slane %v2833, 5
        %v2981 = vrot.slane %v2980, 4
        %v2982 = vrot.slane %v1794, 5
        %v2983 = vsel %vm2915, %v2981, %v2982
        %v2984 = vrot.slane %v2834, 5
        %v2985 = vrot.slane %v2984, 4
        %v2986 = vrot.slane %v1795, 5
        %v2987 = vsel %vm2915, %v2985, %v2986
        %v2988 = vrot.slane %v2835, 5
        %v2989 = vrot.slane %v2988, 4
        %v2990 = vrot.slane %v1796, 5
        %v2991 = vsel %vm2915, %v2989, %v2990
        %v2992 = vrot.slane %v2836, 5
        %v2993 = vrot.slane %v2992, 4
        %v2994 = vrot.slane %v1797, 5
        %v2995 = vsel %vm2915, %v2993, %v2994
        %v2996 = vrot.slane %v2837, 5
        %v2997 = vrot.slane %v2996, 4
        %v2998 = vrot.slane %v1798, 5
        %v2999 = vsel %vm2915, %v2997, %v2998
        %v3000 = vrot.slane %v2838, 5
        %v3001 = vrot.slane %v3000, 4
        %v3002 = vrot.slane %v1799, 5
        %v3003 = vsel %vm2915, %v3001, %v3002
        %v3004 = vrot.slane %v2839, 5
        %v3005 = vrot.slane %v3004, 4
        %v3006 = vrot.slane %v1800, 5
        %v3007 = vsel %vm2915, %v3005, %v3006
        %v3008 = vrot.slane %v2840, 5
        %v3009 = vrot.slane %v3008, 4
        %v3010 = vrot.slane %v1801, 5
        %v3011 = vsel %vm2915, %v3009, %v3010
        %v3012 = vrot.slane %v2841, 5
        %v3013 = vrot.slane %v3012, 4
        %v3014 = vrot.slane %v1802, 5
        %v3015 = vsel %vm2915, %v3013, %v3014
        %v3016 = vrot.slane %v2842, 5
        %v3017 = vrot.slane %v3016, 4
        %v3018 = vrot.slane %v1803, 5
        %v3019 = vsel %vm2915, %v3017, %v3018
        %v3020 = vrot.slane %v2843, 5
        %v3021 = vrot.slane %v3020, 4
        %v3022 = vrot.slane %v1804, 5
        %v3023 = vsel %vm2915, %v3021, %v3022
        %v3024 = vrot.slane %v2844, 5
        %v3025 = vrot.slane %v3024, 4
        %v3026 = vrot.slane %v1805, 5
        %v3027 = vsel %vm2915, %v3025, %v3026
        %v3028 = vrot.slane %v2845, 5
        %v3029 = vrot.slane %v3028, 4
        %v3030 = vrot.slane %v1806, 5
        %v3031 = vsel %vm2915, %v3029, %v3030
        %v3032 = vrot.slane %v2846, 5
        %v3033 = vrot.slane %v3032, 4
        %v3034 = vrot.slane %v1807, 5
        %v3035 = vsel %vm2915, %v3033, %v3034
        %v3036 = vrot.slane %v2847, 5
        %v3037 = vrot.slane %v3036, 4
        %v3038 = vrot.slane %v1808, 5
        %v3039 = vsel %vm2915, %v3037, %v3038
        %v3040 = vrot.slane %v2848, 5
        %v3041 = vrot.slane %v3040, 4
        %v3042 = vrot.slane %v1809, 5
        %v3043 = vsel %vm2915, %v3041, %v3042
        %s3044 = scalar_lea.vmem %s4, 8
        %v3045 = vld [vmem:[%s3044] sm:$0xf]
        %v3046 = vunpack.c.l.b16 %v2919
        %v3047 = vunpack.c.l.b16 %v2923
        %v3048 = vunpack.c.l.b16 %v2927
        %v3049 = vunpack.c.l.b16 %v2931
        %v3050 = vunpack.c.l.b16 %v2935
        %v3051 = vunpack.c.l.b16 %v2939
        %v3052 = vunpack.c.l.b16 %v2943
        %v3053 = vunpack.c.l.b16 %v2947
        %v3054 = vunpack.c.l.b16 %v2951
        %v3055 = vunpack.c.l.b16 %v2955
        %v3056 = vunpack.c.l.b16 %v2959
        %v3057 = vunpack.c.l.b16 %v2963
        %v3058 = vunpack.c.l.b16 %v2967
        %v3059 = vunpack.c.l.b16 %v2971
        %v3060 = vunpack.c.l.b16 %v2975
        %v3061 = vunpack.c.l.b16 %v2979
        %v3062 = vunpack.c.l.b16 %v2983
        %v3063 = vunpack.c.l.b16 %v2987
        %v3064 = vunpack.c.l.b16 %v2991
        %v3065 = vunpack.c.l.b16 %v2995
        %v3066 = vunpack.c.l.b16 %v2999
        %v3067 = vunpack.c.l.b16 %v3003
        %v3068 = vunpack.c.l.b16 %v3007
        %v3069 = vunpack.c.l.b16 %v3011
        %v3070 = vunpack.c.l.b16 %v3015
        %v3071 = vunpack.c.l.b16 %v3019
        %v3072 = vunpack.c.l.b16 %v3023
        %v3073 = vunpack.c.l.b16 %v3027
        %v3074 = vunpack.c.l.b16 %v3031
        %v3075 = vunpack.c.l.b16 %v3035
        %v3076 = vunpack.c.l.b16 %v3039
        %v3077 = vunpack.c.l.b16 %v3043
        %v3078 = vpack.c.b16 %v3047, %v3046
        %v3079 = vpack.c.b16 %v3049, %v3048
        %v3080 = vpack.c.b16 %v3051, %v3050
        %v3081 = vpack.c.b16 %v3053, %v3052
        %v3082 = vpack.c.b16 %v3055, %v3054
        %v3083 = vpack.c.b16 %v3057, %v3056
        %v3084 = vpack.c.b16 %v3059, %v3058
        %v3085 = vpack.c.b16 %v3061, %v3060
        %v3086 = vpack.c.b16 %v3063, %v3062
        %v3087 = vpack.c.b16 %v3065, %v3064
        %v3088 = vpack.c.b16 %v3067, %v3066
        %v3089 = vpack.c.b16 %v3069, %v3068
        %v3090 = vpack.c.b16 %v3071, %v3070
        %v3091 = vpack.c.b16 %v3073, %v3072
        %v3092 = vpack.c.b16 %v3075, %v3074
        %v3093 = vpack.c.b16 %v3077, %v3076
        %v3095 = vsel %vm2311, %v3078, 0
        %v3098 = vsel %vm2311, %v3079, 0
        %v3101 = vsel %vm2311, %v3080, 0
        %v3104 = vsel %vm2311, %v3081, 0
        %v3107 = vsel %vm2311, %v3082, 0
        %v3110 = vsel %vm2311, %v3083, 0
        %v3113 = vsel %vm2311, %v3084, 0
        %v3116 = vsel %vm2311, %v3085, 0
        %v3119 = vsel %vm2311, %v3086, 0
        %v3122 = vsel %vm2311, %v3087, 0
        %v3125 = vsel %vm2311, %v3088, 0
        %v3128 = vsel %vm2311, %v3089, 0
        %v3131 = vsel %vm2311, %v3090, 0
        %v3134 = vsel %vm2311, %v3091, 0
        %v3137 = vsel %vm2311, %v3092, 0
        %v3140 = vsel %vm2311, %v3093, 0
        %v3143 = vsel %vm2360, %v3045, 0
        %3145 = vmatprep.subr.bf16.mxu0 0
        %3146 = vmatpush1.bf16.msra.mxu0 %v3143
        %3147 = vmatprep.subr.bf16.mxu0 0
        %3148 = vmatpush1.bf16.msra.mxu0 0
        %3149 = vmatprep.subr.bf16.mxu0 0
        %3150 = vmatpush1.bf16.msra.mxu0 0
        %3151 = vmatprep.subr.bf16.mxu0 0
        %3152 = vmatpush1.bf16.msra.mxu0 0
        %3153 = vmatprep.subr.bf16.mxu0 0
        %3154 = vmatpush1.bf16.msra.mxu0 0
        %3155 = vmatprep.subr.bf16.mxu0 0
        %3156 = vmatpush1.bf16.msra.mxu0 0
        %3157 = vmatprep.subr.bf16.mxu0 0
        %3158 = vmatpush1.bf16.msra.mxu0 0
        %3159 = vmatprep.subr.bf16.mxu0 0
        %3160 = vmatpush1.bf16.msra.mxu0 0
        %3161 = vmatprep.subr.bf16.mxu0 0
        %3162 = vmatpush1.bf16.msra.mxu0 0
        %3163 = vmatprep.subr.bf16.mxu0 0
        %3164 = vmatpush1.bf16.msra.mxu0 0
        %3165 = vmatprep.subr.bf16.mxu0 0
        %3166 = vmatpush1.bf16.msra.mxu0 0
        %3167 = vmatprep.subr.bf16.mxu0 0
        %3168 = vmatpush1.bf16.msra.mxu0 0
        %3169 = vmatprep.subr.bf16.mxu0 0
        %3170 = vmatpush1.bf16.msra.mxu0 0
        %3171 = vmatprep.subr.bf16.mxu0 0
        %3172 = vmatpush1.bf16.msra.mxu0 0
        %3173 = vmatprep.subr.bf16.mxu0 0
        %3174 = vmatpush1.bf16.msra.mxu0 0
        %3175 = vmatprep.subr.bf16.mxu0 0
        %3176 = vmatpush1.bf16.msra.mxu0 0
        %3177 = vmatprep.mubr.bf16.mxu0 0
        %3178 = vmatmul.mubr.bf16.gmra.mrb[0].mxu0 %v3095
        %v3179 = vpop.f32.mrb[0].mxu0
        %v3180 = vadd.f32 0.0, %v3179
        %v3181 = vpop.f32.mrb[0].mxu0
        %v3182 = vpop.f32.mrb[0].mxu0
        %v3183 = vadd.f32 0.0, %v3182
        %v3184 = vpop.f32.mrb[0].mxu0
        %3185 = vmatprep.mubr.bf16.mxu0 0
        %3186 = vmatmul.mubr.bf16.gmra.mrb[0].mxu0 %v3098
        %v3187 = vpop.f32.mrb[0].mxu0
        %v3188 = vadd.f32 0.0, %v3187
        %v3189 = vpop.f32.mrb[0].mxu0
        %v3190 = vpop.f32.mrb[0].mxu0
        %v3191 = vadd.f32 0.0, %v3190
        %v3192 = vpop.f32.mrb[0].mxu0
        %3193 = vmatprep.mubr.bf16.mxu0 0
        %3194 = vmatmul.mubr.bf16.gmra.mrb[0].mxu0 %v3101
        %v3195 = vpop.f32.mrb[0].mxu0
        %v3196 = vadd.f32 0.0, %v3195
        %v3197 = vpop.f32.mrb[0].mxu0
        %v3198 = vpop.f32.mrb[0].mxu0
        %v3199 = vadd.f32 0.0, %v3198
        %v3200 = vpop.f32.mrb[0].mxu0
        %3201 = vmatprep.mubr.bf16.mxu0 0
        %3202 = vmatmul.mubr.bf16.gmra.mrb[0].mxu0 %v3104
        %v3203 = vpop.f32.mrb[0].mxu0
        %v3204 = vadd.f32 0.0, %v3203
        %v3205 = vpop.f32.mrb[0].mxu0
        %v3206 = vpop.f32.mrb[0].mxu0
        %v3207 = vadd.f32 0.0, %v3206
        %v3208 = vpop.f32.mrb[0].mxu0
        %3209 = vmatprep.mubr.bf16.mxu0 0
        %3210 = vmatmul.mubr.bf16.gmra.mrb[0].mxu0 %v3107
        %v3211 = vpop.f32.mrb[0].mxu0
        %v3212 = vadd.f32 0.0, %v3211
        %v3213 = vpop.f32.mrb[0].mxu0
        %v3214 = vpop.f32.mrb[0].mxu0
        %v3215 = vadd.f32 0.0, %v3214
        %v3216 = vpop.f32.mrb[0].mxu0
        %3217 = vmatprep.mubr.bf16.mxu0 0
        %3218 = vmatmul.mubr.bf16.gmra.mrb[0].mxu0 %v3110
        %v3219 = vpop.f32.mrb[0].mxu0
        %v3220 = vadd.f32 0.0, %v3219
        %v3221 = vpop.f32.mrb[0].mxu0
        %v3222 = vpop.f32.mrb[0].mxu0
        %v3223 = vadd.f32 0.0, %v3222
        %v3224 = vpop.f32.mrb[0].mxu0
        %3225 = vmatprep.mubr.bf16.mxu0 0
        %3226 = vmatmul.mubr.bf16.gmra.mrb[0].mxu0 %v3113
        %v3227 = vpop.f32.mrb[0].mxu0
        %v3228 = vadd.f32 0.0, %v3227
        %v3229 = vpop.f32.mrb[0].mxu0
        %v3230 = vpop.f32.mrb[0].mxu0
        %v3231 = vadd.f32 0.0, %v3230
        %v3232 = vpop.f32.mrb[0].mxu0
        %3233 = vmatprep.mubr.bf16.mxu0 0
        %3234 = vmatmul.mubr.bf16.gmra.mrb[0].mxu0 %v3116
        %v3235 = vpop.f32.mrb[0].mxu0
        %v3236 = vadd.f32 0.0, %v3235
        %v3237 = vpop.f32.mrb[0].mxu0
        %v3238 = vpop.f32.mrb[0].mxu0
        %v3239 = vadd.f32 0.0, %v3238
        %v3240 = vpop.f32.mrb[0].mxu0
        %3241 = vmatprep.mubr.bf16.mxu0 0
        %3242 = vmatmul.mubr.bf16.gmra.mrb[0].mxu0 %v3119
        %v3243 = vpop.f32.mrb[0].mxu0
        %v3244 = vadd.f32 0.0, %v3243
        %v3245 = vpop.f32.mrb[0].mxu0
        %v3246 = vpop.f32.mrb[0].mxu0
        %v3247 = vadd.f32 0.0, %v3246
        %v3248 = vpop.f32.mrb[0].mxu0
        %3249 = vmatprep.mubr.bf16.mxu0 0
        %3250 = vmatmul.mubr.bf16.gmra.mrb[0].mxu0 %v3122
        %v3251 = vpop.f32.mrb[0].mxu0
        %v3252 = vadd.f32 0.0, %v3251
        %v3253 = vpop.f32.mrb[0].mxu0
        %v3254 = vpop.f32.mrb[0].mxu0
        %v3255 = vadd.f32 0.0, %v3254
        %v3256 = vpop.f32.mrb[0].mxu0
        %3257 = vmatprep.mubr.bf16.mxu0 0
        %3258 = vmatmul.mubr.bf16.gmra.mrb[0].mxu0 %v3125
        %v3259 = vpop.f32.mrb[0].mxu0
        %v3260 = vadd.f32 0.0, %v3259
        %v3261 = vpop.f32.mrb[0].mxu0
        %v3262 = vpop.f32.mrb[0].mxu0
        %v3263 = vadd.f32 0.0, %v3262
        %v3264 = vpop.f32.mrb[0].mxu0
        %3265 = vmatprep.mubr.bf16.mxu0 0
        %3266 = vmatmul.mubr.bf16.gmra.mrb[0].mxu0 %v3128
        %v3267 = vpop.f32.mrb[0].mxu0
        %v3268 = vadd.f32 0.0, %v3267
        %v3269 = vpop.f32.mrb[0].mxu0
        %v3270 = vpop.f32.mrb[0].mxu0
        %v3271 = vadd.f32 0.0, %v3270
        %v3272 = vpop.f32.mrb[0].mxu0
        %3273 = vmatprep.mubr.bf16.mxu0 0
        %3274 = vmatmul.mubr.bf16.gmra.mrb[0].mxu0 %v3131
        %v3275 = vpop.f32.mrb[0].mxu0
        %v3276 = vadd.f32 0.0, %v3275
        %v3277 = vpop.f32.mrb[0].mxu0
        %v3278 = vpop.f32.mrb[0].mxu0
        %v3279 = vadd.f32 0.0, %v3278
        %v3280 = vpop.f32.mrb[0].mxu0
        %3281 = vmatprep.mubr.bf16.mxu0 0
        %3282 = vmatmul.mubr.bf16.gmra.mrb[0].mxu0 %v3134
        %v3283 = vpop.f32.mrb[0].mxu0
        %v3284 = vadd.f32 0.0, %v3283
        %v3285 = vpop.f32.mrb[0].mxu0
        %v3286 = vpop.f32.mrb[0].mxu0
        %v3287 = vadd.f32 0.0, %v3286
        %v3288 = vpop.f32.mrb[0].mxu0
        %3289 = vmatprep.mubr.bf16.mxu0 0
        %3290 = vmatmul.mubr.bf16.gmra.mrb[0].mxu0 %v3137
        %v3291 = vpop.f32.mrb[0].mxu0
        %v3292 = vadd.f32 0.0, %v3291
        %v3293 = vpop.f32.mrb[0].mxu0
        %v3294 = vpop.f32.mrb[0].mxu0
        %v3295 = vadd.f32 0.0, %v3294
        %v3296 = vpop.f32.mrb[0].mxu0
        %3297 = vmatprep.mubr.bf16.mxu0 0
        %3298 = vmatmul.mubr.bf16.gmra.mrb[0].mxu0 %v3140
        %v3299 = vpop.f32.mrb[0].mxu0
        %v3300 = vadd.f32 0.0, %v3299
        %v3301 = vpop.f32.mrb[0].mxu0
        %v3302 = vpop.f32.mrb[0].mxu0
        %v3303 = vadd.f32 0.0, %v3302
        %v3304 = vpop.f32.mrb[0].mxu0
        %3305 = vdwg.mxu0
        %v3306 = vadd.f32 %v2691, %v3180
        %v3307 = vadd.f32 %v2694, %v3183
        %v3308 = vadd.f32 %v2699, %v3188
        %v3309 = vadd.f32 %v2702, %v3191
        %v3310 = vadd.f32 %v2707, %v3196
        %v3311 = vadd.f32 %v2710, %v3199
        %v3312 = vadd.f32 %v2715, %v3204
        %v3313 = vadd.f32 %v2718, %v3207
        %v3314 = vadd.f32 %v2723, %v3212
        %v3315 = vadd.f32 %v2726, %v3215
        %v3316 = vadd.f32 %v2731, %v3220
        %v3317 = vadd.f32 %v2734, %v3223
        %v3318 = vadd.f32 %v2739, %v3228
        %v3319 = vadd.f32 %v2742, %v3231
        %v3320 = vadd.f32 %v2747, %v3236
        %v3321 = vadd.f32 %v2750, %v3239
        %v3322 = vadd.f32 %v2755, %v3244
        %v3323 = vadd.f32 %v2758, %v3247
        %v3324 = vadd.f32 %v2763, %v3252
        %v3325 = vadd.f32 %v2766, %v3255
        %v3326 = vadd.f32 %v2771, %v3260
        %v3327 = vadd.f32 %v2774, %v3263
        %v3328 = vadd.f32 %v2779, %v3268
        %v3329 = vadd.f32 %v2782, %v3271
        %v3330 = vadd.f32 %v2787, %v3276
        %v3331 = vadd.f32 %v2790, %v3279
        %v3332 = vadd.f32 %v2795, %v3284
        %v3333 = vadd.f32 %v2798, %v3287
        %v3334 = vadd.f32 %v2803, %v3292
        %v3335 = vadd.f32 %v2806, %v3295
        %v3336 = vadd.f32 %v2811, %v3300
        %v3337 = vadd.f32 %v2814, %v3303
        %v3338 = vld [vmem:[%s1550] sm:$0xf]
        %v3339 = vld [vmem:[%s1550 + $0x8] sm:$0xf]
        %v3340 = vld [vmem:[%s1550 + $0x10] sm:$0xf]
        %v3341 = vld [vmem:[%s1550 + $0x18] sm:$0xf]
        %v3342 = vld [vmem:[%s1550 + $0x20] sm:$0xf]
        %v3343 = vld [vmem:[%s1550 + $0x28] sm:$0xf]
        %v3344 = vld [vmem:[%s1550 + $0x30] sm:$0xf]
        %v3345 = vld [vmem:[%s1550 + $0x38] sm:$0xf]
        %v3346 = vld [vmem:[%s1550 + $0x50] sm:$0xf]
        %v3347 = vld [vmem:[%s1550 + $0x58] sm:$0xf]
        %v3348 = vld [vmem:[%s1550 + $0x60] sm:$0xf]
        %v3349 = vld [vmem:[%s1550 + $0x68] sm:$0xf]
        %v3350 = vld [vmem:[%s1550 + $0x70] sm:$0xf]
        %v3351 = vld [vmem:[%s1550 + $0x78] sm:$0xf]
        %v3352 = vld [vmem:[%s1550 + $0x80] sm:$0xf]
        %v3353 = vld [vmem:[%s1550 + $0x88] sm:$0xf]
        %v3354 = vld [vmem:[%s1550 + $0xa0] sm:$0xf]
        %v3355 = vld [vmem:[%s1550 + $0xa8] sm:$0xf]
        %v3356 = vld [vmem:[%s1550 + $0xb0] sm:$0xf]
        %v3357 = vld [vmem:[%s1550 + $0xb8] sm:$0xf]
        %v3358 = vld [vmem:[%s1550 + $0xc0] sm:$0xf]
        %v3359 = vld [vmem:[%s1550 + $0xc8] sm:$0xf]
        %v3360 = vld [vmem:[%s1550 + $0xd0] sm:$0xf]
        %v3361 = vld [vmem:[%s1550 + $0xd8] sm:$0xf]
        %v3362 = vld [vmem:[%s1550 + $0xf0] sm:$0xf]
        %v3363 = vld [vmem:[%s1550 + $0xf8] sm:$0xf]
        %v3364 = vld [vmem:[%s1550 + $0x100] sm:$0xf]
        %v3365 = vld [vmem:[%s1550 + $0x108] sm:$0xf]
        %v3366 = vld [vmem:[%s1550 + $0x110] sm:$0xf]
        %v3367 = vld [vmem:[%s1550 + $0x118] sm:$0xf]
        %v3368 = vld [vmem:[%s1550 + $0x120] sm:$0xf]
        %v3369 = vld [vmem:[%s1550 + $0x128] sm:$0xf]
        %s3370 = scalar_lea.vmem %s4, 12
        %v3371 = vld [vmem:[%s3370] sm:$0xf]
        %v3404 = vunpack.c.l.b16 %v3338
        %v3405 = vunpack.c.l.b16 %v3339
        %v3406 = vunpack.c.l.b16 %v3340
        %v3407 = vunpack.c.l.b16 %v3341
        %v3408 = vunpack.c.l.b16 %v3342
        %v3409 = vunpack.c.l.b16 %v3343
        %v3410 = vunpack.c.l.b16 %v3344
        %v3411 = vunpack.c.l.b16 %v3345
        %v3412 = vunpack.c.l.b16 %v3346
        %v3413 = vunpack.c.l.b16 %v3347
        %v3414 = vunpack.c.l.b16 %v3348
        %v3415 = vunpack.c.l.b16 %v3349
        %v3416 = vunpack.c.l.b16 %v3350
        %v3417 = vunpack.c.l.b16 %v3351
        %v3418 = vunpack.c.l.b16 %v3352
        %v3419 = vunpack.c.l.b16 %v3353
        %v3420 = vunpack.c.l.b16 %v3354
        %v3421 = vunpack.c.l.b16 %v3355
        %v3422 = vunpack.c.l.b16 %v3356
        %v3423 = vunpack.c.l.b16 %v3357
        %v3424 = vunpack.c.l.b16 %v3358
        %v3425 = vunpack.c.l.b16 %v3359
        %v3426 = vunpack.c.l.b16 %v3360
        %v3427 = vunpack.c.l.b16 %v3361
        %v3428 = vunpack.c.l.b16 %v3362
        %v3429 = vunpack.c.l.b16 %v3363
        %v3430 = vunpack.c.l.b16 %v3364
        %v3431 = vunpack.c.l.b16 %v3365
        %v3432 = vunpack.c.l.b16 %v3366
        %v3433 = vunpack.c.l.b16 %v3367
        %v3434 = vunpack.c.l.b16 %v3368
        %v3435 = vunpack.c.l.b16 %v3369
        %v3436 = vpack.c.b16 %v3405, %v3404
        %v3437 = vpack.c.b16 %v3407, %v3406
        %v3438 = vpack.c.b16 %v3409, %v3408
        %v3439 = vpack.c.b16 %v3411, %v3410
        %v3440 = vpack.c.b16 %v3413, %v3412
        %v3441 = vpack.c.b16 %v3415, %v3414
        %v3442 = vpack.c.b16 %v3417, %v3416
        %v3443 = vpack.c.b16 %v3419, %v3418
        %v3444 = vpack.c.b16 %v3421, %v3420
        %v3445 = vpack.c.b16 %v3423, %v3422
        %v3446 = vpack.c.b16 %v3425, %v3424
        %v3447 = vpack.c.b16 %v3427, %v3426
        %v3448 = vpack.c.b16 %v3429, %v3428
        %v3449 = vpack.c.b16 %v3431, %v3430
        %v3450 = vpack.c.b16 %v3433, %v3432
        %v3451 = vpack.c.b16 %v3435, %v3434
        %v3453 = vsel %vm2311, %v3436, 0
        %v3456 = vsel %vm2311, %v3437, 0
        %v3459 = vsel %vm2311, %v3438, 0
        %v3462 = vsel %vm2311, %v3439, 0
        %v3465 = vsel %vm2311, %v3440, 0
        %v3468 = vsel %vm2311, %v3441, 0
        %v3471 = vsel %vm2311, %v3442, 0
        %v3474 = vsel %vm2311, %v3443, 0
        %v3477 = vsel %vm2311, %v3444, 0
        %v3480 = vsel %vm2311, %v3445, 0
        %v3483 = vsel %vm2311, %v3446, 0
        %v3486 = vsel %vm2311, %v3447, 0
        %v3489 = vsel %vm2311, %v3448, 0
        %v3492 = vsel %vm2311, %v3449, 0
        %v3495 = vsel %vm2311, %v3450, 0
        %v3498 = vsel %vm2311, %v3451, 0
        %v3501 = vsel %vm2360, %v3371, 0
        %3503 = vmatprep.subr.bf16.mxu0 0
        %3504 = vmatpush1.bf16.msra.mxu0 %v3501
        %3505 = vmatprep.subr.bf16.mxu0 0
        %3506 = vmatpush1.bf16.msra.mxu0 0
        %3507 = vmatprep.subr.bf16.mxu0 0
        %3508 = vmatpush1.bf16.msra.mxu0 0
        %3509 = vmatprep.subr.bf16.mxu0 0
        %3510 = vmatpush1.bf16.msra.mxu0 0
        %3511 = vmatprep.subr.bf16.mxu0 0
        %3512 = vmatpush1.bf16.msra.mxu0 0
        %3513 = vmatprep.subr.bf16.mxu0 0
        %3514 = vmatpush1.bf16.msra.mxu0 0
        %3515 = vmatprep.subr.bf16.mxu0 0
        %3516 = vmatpush1.bf16.msra.mxu0 0
        %3517 = vmatprep.subr.bf16.mxu0 0
        %3518 = vmatpush1.bf16.msra.mxu0 0
        %3519 = vmatprep.subr.bf16.mxu0 0
        %3520 = vmatpush1.bf16.msra.mxu0 0
        %3521 = vmatprep.subr.bf16.mxu0 0
        %3522 = vmatpush1.bf16.msra.mxu0 0
        %3523 = vmatprep.subr.bf16.mxu0 0
        %3524 = vmatpush1.bf16.msra.mxu0 0
        %3525 = vmatprep.subr.bf16.mxu0 0
        %3526 = vmatpush1.bf16.msra.mxu0 0
        %3527 = vmatprep.subr.bf16.mxu0 0
        %3528 = vmatpush1.bf16.msra.mxu0 0
        %3529 = vmatprep.subr.bf16.mxu0 0
        %3530 = vmatpush1.bf16.msra.mxu0 0
        %3531 = vmatprep.subr.bf16.mxu0 0
        %3532 = vmatpush1.bf16.msra.mxu0 0
        %3533 = vmatprep.subr.bf16.mxu0 0
        %3534 = vmatpush1.bf16.msra.mxu0 0
        %3535 = vmatprep.mubr.bf16.mxu0 0
        %3536 = vmatmul.mubr.bf16.gmra.mrb[0].mxu0 %v3453
        %v3537 = vpop.f32.mrb[0].mxu0
        %v3538 = vadd.f32 0.0, %v3537
        %v3539 = vpop.f32.mrb[0].mxu0
        %v3540 = vpop.f32.mrb[0].mxu0
        %v3541 = vadd.f32 0.0, %v3540
        %v3542 = vpop.f32.mrb[0].mxu0
        %3543 = vmatprep.mubr.bf16.mxu0 0
        %3544 = vmatmul.mubr.bf16.gmra.mrb[0].mxu0 %v3456
        %v3545 = vpop.f32.mrb[0].mxu0
        %v3546 = vadd.f32 0.0, %v3545
        %v3547 = vpop.f32.mrb[0].mxu0
        %v3548 = vpop.f32.mrb[0].mxu0
        %v3549 = vadd.f32 0.0, %v3548
        %v3550 = vpop.f32.mrb[0].mxu0
        %3551 = vmatprep.mubr.bf16.mxu0 0
        %3552 = vmatmul.mubr.bf16.gmra.mrb[0].mxu0 %v3459
        %v3553 = vpop.f32.mrb[0].mxu0
        %v3554 = vadd.f32 0.0, %v3553
        %v3555 = vpop.f32.mrb[0].mxu0
        %v3556 = vpop.f32.mrb[0].mxu0
        %v3557 = vadd.f32 0.0, %v3556
        %v3558 = vpop.f32.mrb[0].mxu0
        %3559 = vmatprep.mubr.bf16.mxu0 0
        %3560 = vmatmul.mubr.bf16.gmra.mrb[0].mxu0 %v3462
        %v3561 = vpop.f32.mrb[0].mxu0
        %v3562 = vadd.f32 0.0, %v3561
        %v3563 = vpop.f32.mrb[0].mxu0
        %v3564 = vpop.f32.mrb[0].mxu0
        %v3565 = vadd.f32 0.0, %v3564
        %v3566 = vpop.f32.mrb[0].mxu0
        %3567 = vmatprep.mubr.bf16.mxu0 0
        %3568 = vmatmul.mubr.bf16.gmra.mrb[0].mxu0 %v3465
        %v3569 = vpop.f32.mrb[0].mxu0
        %v3570 = vadd.f32 0.0, %v3569
        %v3571 = vpop.f32.mrb[0].mxu0
        %v3572 = vpop.f32.mrb[0].mxu0
        %v3573 = vadd.f32 0.0, %v3572
        %v3574 = vpop.f32.mrb[0].mxu0
        %3575 = vmatprep.mubr.bf16.mxu0 0
        %3576 = vmatmul.mubr.bf16.gmra.mrb[0].mxu0 %v3468
        %v3577 = vpop.f32.mrb[0].mxu0
        %v3578 = vadd.f32 0.0, %v3577
        %v3579 = vpop.f32.mrb[0].mxu0
        %v3580 = vpop.f32.mrb[0].mxu0
        %v3581 = vadd.f32 0.0, %v3580
        %v3582 = vpop.f32.mrb[0].mxu0
        %3583 = vmatprep.mubr.bf16.mxu0 0
        %3584 = vmatmul.mubr.bf16.gmra.mrb[0].mxu0 %v3471
        %v3585 = vpop.f32.mrb[0].mxu0
        %v3586 = vadd.f32 0.0, %v3585
        %v3587 = vpop.f32.mrb[0].mxu0
        %v3588 = vpop.f32.mrb[0].mxu0
        %v3589 = vadd.f32 0.0, %v3588
        %v3590 = vpop.f32.mrb[0].mxu0
        %3591 = vmatprep.mubr.bf16.mxu0 0
        %3592 = vmatmul.mubr.bf16.gmra.mrb[0].mxu0 %v3474
        %v3593 = vpop.f32.mrb[0].mxu0
        %v3594 = vadd.f32 0.0, %v3593
        %v3595 = vpop.f32.mrb[0].mxu0
        %v3596 = vpop.f32.mrb[0].mxu0
        %v3597 = vadd.f32 0.0, %v3596
        %v3598 = vpop.f32.mrb[0].mxu0
        %3599 = vmatprep.mubr.bf16.mxu0 0
        %3600 = vmatmul.mubr.bf16.gmra.mrb[0].mxu0 %v3477
        %v3601 = vpop.f32.mrb[0].mxu0
        %v3602 = vadd.f32 0.0, %v3601
        %v3603 = vpop.f32.mrb[0].mxu0
        %v3604 = vpop.f32.mrb[0].mxu0
        %v3605 = vadd.f32 0.0, %v3604
        %v3606 = vpop.f32.mrb[0].mxu0
        %3607 = vmatprep.mubr.bf16.mxu0 0
        %3608 = vmatmul.mubr.bf16.gmra.mrb[0].mxu0 %v3480
        %v3609 = vpop.f32.mrb[0].mxu0
        %v3610 = vadd.f32 0.0, %v3609
        %v3611 = vpop.f32.mrb[0].mxu0
        %v3612 = vpop.f32.mrb[0].mxu0
        %v3613 = vadd.f32 0.0, %v3612
        %v3614 = vpop.f32.mrb[0].mxu0
        %3615 = vmatprep.mubr.bf16.mxu0 0
        %3616 = vmatmul.mubr.bf16.gmra.mrb[0].mxu0 %v3483
        %v3617 = vpop.f32.mrb[0].mxu0
        %v3618 = vadd.f32 0.0, %v3617
        %v3619 = vpop.f32.mrb[0].mxu0
        %v3620 = vpop.f32.mrb[0].mxu0
        %v3621 = vadd.f32 0.0, %v3620
        %v3622 = vpop.f32.mrb[0].mxu0
        %3623 = vmatprep.mubr.bf16.mxu0 0
        %3624 = vmatmul.mubr.bf16.gmra.mrb[0].mxu0 %v3486
        %v3625 = vpop.f32.mrb[0].mxu0
        %v3626 = vadd.f32 0.0, %v3625
        %v3627 = vpop.f32.mrb[0].mxu0
        %v3628 = vpop.f32.mrb[0].mxu0
        %v3629 = vadd.f32 0.0, %v3628
        %v3630 = vpop.f32.mrb[0].mxu0
        %3631 = vmatprep.mubr.bf16.mxu0 0
        %3632 = vmatmul.mubr.bf16.gmra.mrb[0].mxu0 %v3489
        %v3633 = vpop.f32.mrb[0].mxu0
        %v3634 = vadd.f32 0.0, %v3633
        %v3635 = vpop.f32.mrb[0].mxu0
        %v3636 = vpop.f32.mrb[0].mxu0
        %v3637 = vadd.f32 0.0, %v3636
        %v3638 = vpop.f32.mrb[0].mxu0
        %3639 = vmatprep.mubr.bf16.mxu0 0
        %3640 = vmatmul.mubr.bf16.gmra.mrb[0].mxu0 %v3492
        %v3641 = vpop.f32.mrb[0].mxu0
        %v3642 = vadd.f32 0.0, %v3641
        %v3643 = vpop.f32.mrb[0].mxu0
        %v3644 = vpop.f32.mrb[0].mxu0
        %v3645 = vadd.f32 0.0, %v3644
        %v3646 = vpop.f32.mrb[0].mxu0
        %3647 = vmatprep.mubr.bf16.mxu0 0
        %3648 = vmatmul.mubr.bf16.gmra.mrb[0].mxu0 %v3495
        %v3649 = vpop.f32.mrb[0].mxu0
        %v3650 = vadd.f32 0.0, %v3649
        %v3651 = vpop.f32.mrb[0].mxu0
        %v3652 = vpop.f32.mrb[0].mxu0
        %v3653 = vadd.f32 0.0, %v3652
        %v3654 = vpop.f32.mrb[0].mxu0
        %3655 = vmatprep.mubr.bf16.mxu0 0
        %3656 = vmatmul.mubr.bf16.gmra.mrb[0].mxu0 %v3498
        %v3657 = vpop.f32.mrb[0].mxu0
        %v3658 = vadd.f32 0.0, %v3657
        %v3659 = vpop.f32.mrb[0].mxu0
        %v3660 = vpop.f32.mrb[0].mxu0
        %v3661 = vadd.f32 0.0, %v3660
        %v3662 = vpop.f32.mrb[0].mxu0
        %3663 = vdwg.mxu0
        %v3664 = vadd.f32 %v3306, %v3538
        %v3665 = vadd.f32 %v3307, %v3541
        %v3666 = vadd.f32 %v3308, %v3546
        %v3667 = vadd.f32 %v3309, %v3549
        %v3668 = vadd.f32 %v3310, %v3554
        %v3669 = vadd.f32 %v3311, %v3557
        %v3670 = vadd.f32 %v3312, %v3562
        %v3671 = vadd.f32 %v3313, %v3565
        %v3672 = vadd.f32 %v3314, %v3570
        %v3673 = vadd.f32 %v3315, %v3573
        %v3674 = vadd.f32 %v3316, %v3578
        %v3675 = vadd.f32 %v3317, %v3581
        %v3676 = vadd.f32 %v3318, %v3586
        %v3677 = vadd.f32 %v3319, %v3589
        %v3678 = vadd.f32 %v3320, %v3594
        %v3679 = vadd.f32 %v3321, %v3597
        %v3680 = vadd.f32 %v3322, %v3602
        %v3681 = vadd.f32 %v3323, %v3605
        %v3682 = vadd.f32 %v3324, %v3610
        %v3683 = vadd.f32 %v3325, %v3613
        %v3684 = vadd.f32 %v3326, %v3618
        %v3685 = vadd.f32 %v3327, %v3621
        %v3686 = vadd.f32 %v3328, %v3626
        %v3687 = vadd.f32 %v3329, %v3629
        %v3688 = vadd.f32 %v3330, %v3634
        %v3689 = vadd.f32 %v3331, %v3637
        %v3690 = vadd.f32 %v3332, %v3642
        %v3691 = vadd.f32 %v3333, %v3645
        %v3692 = vadd.f32 %v3334, %v3650
        %v3693 = vadd.f32 %v3335, %v3653
        %v3694 = vadd.f32 %v3336, %v3658
        %v3695 = vadd.f32 %v3337, %v3661
        %v3696 = vld [vmem:[%s1550] sm:$0xf]
        %v3697 = vld [vmem:[%s1550 + $0x4] sm:$0x1]
        %v3698 = vld [vmem:[%s1550 + $0x8] sm:$0xf]
        %v3699 = vld [vmem:[%s1550 + $0xc] sm:$0x1]
        %v3700 = vld [vmem:[%s1550 + $0x10] sm:$0xf]
        %v3701 = vld [vmem:[%s1550 + $0x14] sm:$0x1]
        %v3702 = vld [vmem:[%s1550 + $0x18] sm:$0xf]
        %v3703 = vld [vmem:[%s1550 + $0x1c] sm:$0x1]
        %v3704 = vld [vmem:[%s1550 + $0x20] sm:$0xf]
        %v3705 = vld [vmem:[%s1550 + $0x24] sm:$0x1]
        %v3706 = vld [vmem:[%s1550 + $0x28] sm:$0xf]
        %v3707 = vld [vmem:[%s1550 + $0x2c] sm:$0x1]
        %v3708 = vld [vmem:[%s1550 + $0x30] sm:$0xf]
        %v3709 = vld [vmem:[%s1550 + $0x34] sm:$0x1]
        %v3710 = vld [vmem:[%s1550 + $0x38] sm:$0xf]
        %v3711 = vld [vmem:[%s1550 + $0x3c] sm:$0x1]
        %v3712 = vld [vmem:[%s1550 + $0x50] sm:$0xf]
        %v3713 = vld [vmem:[%s1550 + $0x54] sm:$0x1]
        %v3714 = vld [vmem:[%s1550 + $0x58] sm:$0xf]
        %v3715 = vld [vmem:[%s1550 + $0x5c] sm:$0x1]
        %v3716 = vld [vmem:[%s1550 + $0x60] sm:$0xf]
        %v3717 = vld [vmem:[%s1550 + $0x64] sm:$0x1]
        %v3718 = vld [vmem:[%s1550 + $0x68] sm:$0xf]
        %v3719 = vld [vmem:[%s1550 + $0x6c] sm:$0x1]
        %v3720 = vld [vmem:[%s1550 + $0x70] sm:$0xf]
        %v3721 = vld [vmem:[%s1550 + $0x74] sm:$0x1]
        %v3722 = vld [vmem:[%s1550 + $0x78] sm:$0xf]
        %v3723 = vld [vmem:[%s1550 + $0x7c] sm:$0x1]
        %v3724 = vld [vmem:[%s1550 + $0x80] sm:$0xf]
        %v3725 = vld [vmem:[%s1550 + $0x84] sm:$0x1]
        %v3726 = vld [vmem:[%s1550 + $0x88] sm:$0xf]
        %v3727 = vld [vmem:[%s1550 + $0x8c] sm:$0x1]
        %v3728 = vld [vmem:[%s1550 + $0xa0] sm:$0xf]
        %v3729 = vld [vmem:[%s1550 + $0xa4] sm:$0x1]
        %v3730 = vld [vmem:[%s1550 + $0xa8] sm:$0xf]
        %v3731 = vld [vmem:[%s1550 + $0xac] sm:$0x1]
        %v3732 = vld [vmem:[%s1550 + $0xb0] sm:$0xf]
        %v3733 = vld [vmem:[%s1550 + $0xb4] sm:$0x1]
        %v3734 = vld [vmem:[%s1550 + $0xb8] sm:$0xf]
        %v3735 = vld [vmem:[%s1550 + $0xbc] sm:$0x1]
        %v3736 = vld [vmem:[%s1550 + $0xc0] sm:$0xf]
        %v3737 = vld [vmem:[%s1550 + $0xc4] sm:$0x1]
        %v3738 = vld [vmem:[%s1550 + $0xc8] sm:$0xf]
        %v3739 = vld [vmem:[%s1550 + $0xcc] sm:$0x1]
        %v3740 = vld [vmem:[%s1550 + $0xd0] sm:$0xf]
        %v3741 = vld [vmem:[%s1550 + $0xd4] sm:$0x1]
        %v3742 = vld [vmem:[%s1550 + $0xd8] sm:$0xf]
        %v3743 = vld [vmem:[%s1550 + $0xdc] sm:$0x1]
        %v3744 = vld [vmem:[%s1550 + $0xf0] sm:$0xf]
        %v3745 = vld [vmem:[%s1550 + $0xf4] sm:$0x1]
        %v3746 = vld [vmem:[%s1550 + $0xf8] sm:$0xf]
        %v3747 = vld [vmem:[%s1550 + $0xfc] sm:$0x1]
        %v3748 = vld [vmem:[%s1550 + $0x100] sm:$0xf]
        %v3749 = vld [vmem:[%s1550 + $0x104] sm:$0x1]
        %v3750 = vld [vmem:[%s1550 + $0x108] sm:$0xf]
        %v3751 = vld [vmem:[%s1550 + $0x10c] sm:$0x1]
        %v3752 = vld [vmem:[%s1550 + $0x110] sm:$0xf]
        %v3753 = vld [vmem:[%s1550 + $0x114] sm:$0x1]
        %v3754 = vld [vmem:[%s1550 + $0x118] sm:$0xf]
        %v3755 = vld [vmem:[%s1550 + $0x11c] sm:$0x1]
        %v3756 = vld [vmem:[%s1550 + $0x120] sm:$0xf]
        %v3757 = vld [vmem:[%s1550 + $0x124] sm:$0x1]
        %v3758 = vld [vmem:[%s1550 + $0x128] sm:$0xf]
        %v3759 = vld [vmem:[%s1550 + $0x12c] sm:$0x1]
        %v3761 = vshrl.u32 %v3696, 16
        %v3763 = vrot.slane %v3761, 4
        %v3764 = vshll.u32 %v3696, 16
        %v3766 = vrot.slane %v3764, 5
        %v3767 = vor.u32 %v3763, %v3766
        %v3768 = vrot.slane %v3767, 4
        %v3770 = vshll.u32 %v3697, 16
        %v3772 = vrot.slane %v3770, 5
        %v3773 = vsel %vm1812, %v3768, %v3772
        %v3775 = vshrl.u32 %v3698, 16
        %v3777 = vrot.slane %v3775, 4
        %v3778 = vshll.u32 %v3698, 16
        %v3780 = vrot.slane %v3778, 5
        %v3781 = vor.u32 %v3777, %v3780
        %v3782 = vrot.slane %v3781, 4
        %v3784 = vshll.u32 %v3699, 16
        %v3786 = vrot.slane %v3784, 5
        %v3787 = vsel %vm1812, %v3782, %v3786
        %v3789 = vshrl.u32 %v3700, 16
        %v3791 = vrot.slane %v3789, 4
        %v3792 = vshll.u32 %v3700, 16
        %v3794 = vrot.slane %v3792, 5
        %v3795 = vor.u32 %v3791, %v3794
        %v3796 = vrot.slane %v3795, 4
        %v3798 = vshll.u32 %v3701, 16
        %v3800 = vrot.slane %v3798, 5
        %v3801 = vsel %vm1812, %v3796, %v3800
        %v3803 = vshrl.u32 %v3702, 16
        %v3805 = vrot.slane %v3803, 4
        %v3806 = vshll.u32 %v3702, 16
        %v3808 = vrot.slane %v3806, 5
        %v3809 = vor.u32 %v3805, %v3808
        %v3810 = vrot.slane %v3809, 4
        %v3812 = vshll.u32 %v3703, 16
        %v3814 = vrot.slane %v3812, 5
        %v3815 = vsel %vm1812, %v3810, %v3814
        %v3817 = vshrl.u32 %v3704, 16
        %v3819 = vrot.slane %v3817, 4
        %v3820 = vshll.u32 %v3704, 16
        %v3822 = vrot.slane %v3820, 5
        %v3823 = vor.u32 %v3819, %v3822
        %v3824 = vrot.slane %v3823, 4
        %v3826 = vshll.u32 %v3705, 16
        %v3828 = vrot.slane %v3826, 5
        %v3829 = vsel %vm1812, %v3824, %v3828
        %v3831 = vshrl.u32 %v3706, 16
        %v3833 = vrot.slane %v3831, 4
        %v3834 = vshll.u32 %v3706, 16
        %v3836 = vrot.slane %v3834, 5
        %v3837 = vor.u32 %v3833, %v3836
        %v3838 = vrot.slane %v3837, 4
        %v3840 = vshll.u32 %v3707, 16
        %v3842 = vrot.slane %v3840, 5
        %v3843 = vsel %vm1812, %v3838, %v3842
        %v3845 = vshrl.u32 %v3708, 16
        %v3847 = vrot.slane %v3845, 4
        %v3848 = vshll.u32 %v3708, 16
        %v3850 = vrot.slane %v3848, 5
        %v3851 = vor.u32 %v3847, %v3850
        %v3852 = vrot.slane %v3851, 4
        %v3854 = vshll.u32 %v3709, 16
        %v3856 = vrot.slane %v3854, 5
        %v3857 = vsel %vm1812, %v3852, %v3856
        %v3859 = vshrl.u32 %v3710, 16
        %v3861 = vrot.slane %v3859, 4
        %v3862 = vshll.u32 %v3710, 16
        %v3864 = vrot.slane %v3862, 5
        %v3865 = vor.u32 %v3861, %v3864
        %v3866 = vrot.slane %v3865, 4
        %v3868 = vshll.u32 %v3711, 16
        %v3870 = vrot.slane %v3868, 5
        %v3871 = vsel %vm1812, %v3866, %v3870
        %v3873 = vshrl.u32 %v3712, 16
        %v3875 = vrot.slane %v3873, 4
        %v3876 = vshll.u32 %v3712, 16
        %v3878 = vrot.slane %v3876, 5
        %v3879 = vor.u32 %v3875, %v3878
        %v3880 = vrot.slane %v3879, 4
        %v3882 = vshll.u32 %v3713, 16
        %v3884 = vrot.slane %v3882, 5
        %v3885 = vsel %vm1812, %v3880, %v3884
        %v3887 = vshrl.u32 %v3714, 16
        %v3889 = vrot.slane %v3887, 4
        %v3890 = vshll.u32 %v3714, 16
        %v3892 = vrot.slane %v3890, 5
        %v3893 = vor.u32 %v3889, %v3892
        %v3894 = vrot.slane %v3893, 4
        %v3896 = vshll.u32 %v3715, 16
        %v3898 = vrot.slane %v3896, 5
        %v3899 = vsel %vm1812, %v3894, %v3898
        %v3901 = vshrl.u32 %v3716, 16
        %v3903 = vrot.slane %v3901, 4
        %v3904 = vshll.u32 %v3716, 16
        %v3906 = vrot.slane %v3904, 5
        %v3907 = vor.u32 %v3903, %v3906
        %v3908 = vrot.slane %v3907, 4
        %v3910 = vshll.u32 %v3717, 16
        %v3912 = vrot.slane %v3910, 5
        %v3913 = vsel %vm1812, %v3908, %v3912
        %v3915 = vshrl.u32 %v3718, 16
        %v3917 = vrot.slane %v3915, 4
        %v3918 = vshll.u32 %v3718, 16
        %v3920 = vrot.slane %v3918, 5
        %v3921 = vor.u32 %v3917, %v3920
        %v3922 = vrot.slane %v3921, 4
        %v3924 = vshll.u32 %v3719, 16
        %v3926 = vrot.slane %v3924, 5
        %v3927 = vsel %vm1812, %v3922, %v3926
        %v3929 = vshrl.u32 %v3720, 16
        %v3931 = vrot.slane %v3929, 4
        %v3932 = vshll.u32 %v3720, 16
        %v3934 = vrot.slane %v3932, 5
        %v3935 = vor.u32 %v3931, %v3934
        %v3936 = vrot.slane %v3935, 4
        %v3938 = vshll.u32 %v3721, 16
        %v3940 = vrot.slane %v3938, 5
        %v3941 = vsel %vm1812, %v3936, %v3940
        %v3943 = vshrl.u32 %v3722, 16
        %v3945 = vrot.slane %v3943, 4
        %v3946 = vshll.u32 %v3722, 16
        %v3948 = vrot.slane %v3946, 5
        %v3949 = vor.u32 %v3945, %v3948
        %v3950 = vrot.slane %v3949, 4
        %v3952 = vshll.u32 %v3723, 16
        %v3954 = vrot.slane %v3952, 5
        %v3955 = vsel %vm1812, %v3950, %v3954
        %v3957 = vshrl.u32 %v3724, 16
        %v3959 = vrot.slane %v3957, 4
        %v3960 = vshll.u32 %v3724, 16
        %v3962 = vrot.slane %v3960, 5
        %v3963 = vor.u32 %v3959, %v3962
        %v3964 = vrot.slane %v3963, 4
        %v3966 = vshll.u32 %v3725, 16
        %v3968 = vrot.slane %v3966, 5
        %v3969 = vsel %vm1812, %v3964, %v3968
        %v3971 = vshrl.u32 %v3726, 16
        %v3973 = vrot.slane %v3971, 4
        %v3974 = vshll.u32 %v3726, 16
        %v3976 = vrot.slane %v3974, 5
        %v3977 = vor.u32 %v3973, %v3976
        %v3978 = vrot.slane %v3977, 4
        %v3980 = vshll.u32 %v3727, 16
        %v3982 = vrot.slane %v3980, 5
        %v3983 = vsel %vm1812, %v3978, %v3982
        %v3985 = vshrl.u32 %v3728, 16
        %v3987 = vrot.slane %v3985, 4
        %v3988 = vshll.u32 %v3728, 16
        %v3990 = vrot.slane %v3988, 5
        %v3991 = vor.u32 %v3987, %v3990
        %v3992 = vrot.slane %v3991, 4
        %v3994 = vshll.u32 %v3729, 16
        %v3996 = vrot.slane %v3994, 5
        %v3997 = vsel %vm1812, %v3992, %v3996
        %v3999 = vshrl.u32 %v3730, 16
        %v4001 = vrot.slane %v3999, 4
        %v4002 = vshll.u32 %v3730, 16
        %v4004 = vrot.slane %v4002, 5
        %v4005 = vor.u32 %v4001, %v4004
        %v4006 = vrot.slane %v4005, 4
        %v4008 = vshll.u32 %v3731, 16
        %v4010 = vrot.slane %v4008, 5
        %v4011 = vsel %vm1812, %v4006, %v4010
        %v4013 = vshrl.u32 %v3732, 16
        %v4015 = vrot.slane %v4013, 4
        %v4016 = vshll.u32 %v3732, 16
        %v4018 = vrot.slane %v4016, 5
        %v4019 = vor.u32 %v4015, %v4018
        %v4020 = vrot.slane %v4019, 4
        %v4022 = vshll.u32 %v3733, 16
        %v4024 = vrot.slane %v4022, 5
        %v4025 = vsel %vm1812, %v4020, %v4024
        %v4027 = vshrl.u32 %v3734, 16
        %v4029 = vrot.slane %v4027, 4
        %v4030 = vshll.u32 %v3734, 16
        %v4032 = vrot.slane %v4030, 5
        %v4033 = vor.u32 %v4029, %v4032
        %v4034 = vrot.slane %v4033, 4
        %v4036 = vshll.u32 %v3735, 16
        %v4038 = vrot.slane %v4036, 5
        %v4039 = vsel %vm1812, %v4034, %v4038
        %v4041 = vshrl.u32 %v3736, 16
        %v4043 = vrot.slane %v4041, 4
        %v4044 = vshll.u32 %v3736, 16
        %v4046 = vrot.slane %v4044, 5
        %v4047 = vor.u32 %v4043, %v4046
        %v4048 = vrot.slane %v4047, 4
        %v4050 = vshll.u32 %v3737, 16
        %v4052 = vrot.slane %v4050, 5
        %v4053 = vsel %vm1812, %v4048, %v4052
        %v4055 = vshrl.u32 %v3738, 16
        %v4057 = vrot.slane %v4055, 4
        %v4058 = vshll.u32 %v3738, 16
        %v4060 = vrot.slane %v4058, 5
        %v4061 = vor.u32 %v4057, %v4060
        %v4062 = vrot.slane %v4061, 4
        %v4064 = vshll.u32 %v3739, 16
        %v4066 = vrot.slane %v4064, 5
        %v4067 = vsel %vm1812, %v4062, %v4066
        %v4069 = vshrl.u32 %v3740, 16
        %v4071 = vrot.slane %v4069, 4
        %v4072 = vshll.u32 %v3740, 16
        %v4074 = vrot.slane %v4072, 5
        %v4075 = vor.u32 %v4071, %v4074
        %v4076 = vrot.slane %v4075, 4
        %v4078 = vshll.u32 %v3741, 16
        %v4080 = vrot.slane %v4078, 5
        %v4081 = vsel %vm1812, %v4076, %v4080
        %v4083 = vshrl.u32 %v3742, 16
        %v4085 = vrot.slane %v4083, 4
        %v4086 = vshll.u32 %v3742, 16
        %v4088 = vrot.slane %v4086, 5
        %v4089 = vor.u32 %v4085, %v4088
        %v4090 = vrot.slane %v4089, 4
        %v4092 = vshll.u32 %v3743, 16
        %v4094 = vrot.slane %v4092, 5
        %v4095 = vsel %vm1812, %v4090, %v4094
        %v4097 = vshrl.u32 %v3744, 16
        %v4099 = vrot.slane %v4097, 4
        %v4100 = vshll.u32 %v3744, 16
        %v4102 = vrot.slane %v4100, 5
        %v4103 = vor.u32 %v4099, %v4102
        %v4104 = vrot.slane %v4103, 4
        %v4106 = vshll.u32 %v3745, 16
        %v4108 = vrot.slane %v4106, 5
        %v4109 = vsel %vm1812, %v4104, %v4108
        %v4111 = vshrl.u32 %v3746, 16
        %v4113 = vrot.slane %v4111, 4
        %v4114 = vshll.u32 %v3746, 16
        %v4116 = vrot.slane %v4114, 5
        %v4117 = vor.u32 %v4113, %v4116
        %v4118 = vrot.slane %v4117, 4
        %v4120 = vshll.u32 %v3747, 16
        %v4122 = vrot.slane %v4120, 5
        %v4123 = vsel %vm1812, %v4118, %v4122
        %v4125 = vshrl.u32 %v3748, 16
        %v4127 = vrot.slane %v4125, 4
        %v4128 = vshll.u32 %v3748, 16
        %v4130 = vrot.slane %v4128, 5
        %v4131 = vor.u32 %v4127, %v4130
        %v4132 = vrot.slane %v4131, 4
        %v4134 = vshll.u32 %v3749, 16
        %v4136 = vrot.slane %v4134, 5
        %v4137 = vsel %vm1812, %v4132, %v4136
        %v4139 = vshrl.u32 %v3750, 16
        %v4141 = vrot.slane %v4139, 4
        %v4142 = vshll.u32 %v3750, 16
        %v4144 = vrot.slane %v4142, 5
        %v4145 = vor.u32 %v4141, %v4144
        %v4146 = vrot.slane %v4145, 4
        %v4148 = vshll.u32 %v3751, 16
        %v4150 = vrot.slane %v4148, 5
        %v4151 = vsel %vm1812, %v4146, %v4150
        %v4153 = vshrl.u32 %v3752, 16
        %v4155 = vrot.slane %v4153, 4
        %v4156 = vshll.u32 %v3752, 16
        %v4158 = vrot.slane %v4156, 5
        %v4159 = vor.u32 %v4155, %v4158
        %v4160 = vrot.slane %v4159, 4
        %v4162 = vshll.u32 %v3753, 16
        %v4164 = vrot.slane %v4162, 5
        %v4165 = vsel %vm1812, %v4160, %v4164
        %v4167 = vshrl.u32 %v3754, 16
        %v4169 = vrot.slane %v4167, 4
        %v4170 = vshll.u32 %v3754, 16
        %v4172 = vrot.slane %v4170, 5
        %v4173 = vor.u32 %v4169, %v4172
        %v4174 = vrot.slane %v4173, 4
        %v4176 = vshll.u32 %v3755, 16
        %v4178 = vrot.slane %v4176, 5
        %v4179 = vsel %vm1812, %v4174, %v4178
        %v4181 = vshrl.u32 %v3756, 16
        %v4183 = vrot.slane %v4181, 4
        %v4184 = vshll.u32 %v3756, 16
        %v4186 = vrot.slane %v4184, 5
        %v4187 = vor.u32 %v4183, %v4186
        %v4188 = vrot.slane %v4187, 4
        %v4190 = vshll.u32 %v3757, 16
        %v4192 = vrot.slane %v4190, 5
        %v4193 = vsel %vm1812, %v4188, %v4192
        %v4195 = vshrl.u32 %v3758, 16
        %v4197 = vrot.slane %v4195, 4
        %v4198 = vshll.u32 %v3758, 16
        %v4200 = vrot.slane %v4198, 5
        %v4201 = vor.u32 %v4197, %v4200
        %v4202 = vrot.slane %v4201, 4
        %v4204 = vshll.u32 %v3759, 16
        %v4206 = vrot.slane %v4204, 5
        %v4207 = vsel %vm1812, %v4202, %v4206
        %s4208 = scalar_lea.vmem %s4, 16
        %v4209 = vld [vmem:[%s4208] sm:$0xf]
        %v4210 = vunpack.c.l.b16 %v3773
        %v4211 = vunpack.c.l.b16 %v3787
        %v4212 = vunpack.c.l.b16 %v3801
        %v4213 = vunpack.c.l.b16 %v3815
        %v4214 = vunpack.c.l.b16 %v3829
        %v4215 = vunpack.c.l.b16 %v3843
        %v4216 = vunpack.c.l.b16 %v3857
        %v4217 = vunpack.c.l.b16 %v3871
        %v4218 = vunpack.c.l.b16 %v3885
        %v4219 = vunpack.c.l.b16 %v3899
        %v4220 = vunpack.c.l.b16 %v3913
        %v4221 = vunpack.c.l.b16 %v3927
        %v4222 = vunpack.c.l.b16 %v3941
        %v4223 = vunpack.c.l.b16 %v3955
        %v4224 = vunpack.c.l.b16 %v3969
        %v4225 = vunpack.c.l.b16 %v3983
        %v4226 = vunpack.c.l.b16 %v3997
        %v4227 = vunpack.c.l.b16 %v4011
        %v4228 = vunpack.c.l.b16 %v4025
        %v4229 = vunpack.c.l.b16 %v4039
        %v4230 = vunpack.c.l.b16 %v4053
        %v4231 = vunpack.c.l.b16 %v4067
        %v4232 = vunpack.c.l.b16 %v4081
        %v4233 = vunpack.c.l.b16 %v4095
        %v4234 = vunpack.c.l.b16 %v4109
        %v4235 = vunpack.c.l.b16 %v4123
        %v4236 = vunpack.c.l.b16 %v4137
        %v4237 = vunpack.c.l.b16 %v4151
        %v4238 = vunpack.c.l.b16 %v4165
        %v4239 = vunpack.c.l.b16 %v4179
        %v4240 = vunpack.c.l.b16 %v4193
        %v4241 = vunpack.c.l.b16 %v4207
        %v4242 = vpack.c.b16 %v4211, %v4210
        %v4243 = vpack.c.b16 %v4213, %v4212
        %v4244 = vpack.c.b16 %v4215, %v4214
        %v4245 = vpack.c.b16 %v4217, %v4216
        %v4246 = vpack.c.b16 %v4219, %v4218
        %v4247 = vpack.c.b16 %v4221, %v4220
        %v4248 = vpack.c.b16 %v4223, %v4222
        %v4249 = vpack.c.b16 %v4225, %v4224
        %v4250 = vpack.c.b16 %v4227, %v4226
        %v4251 = vpack.c.b16 %v4229, %v4228
        %v4252 = vpack.c.b16 %v4231, %v4230
        %v4253 = vpack.c.b16 %v4233, %v4232
        %v4254 = vpack.c.b16 %v4235, %v4234
        %v4255 = vpack.c.b16 %v4237, %v4236
        %v4256 = vpack.c.b16 %v4239, %v4238
        %v4257 = vpack.c.b16 %v4241, %v4240
        %v4259 = vsel %vm2311, %v4242, 0
        %v4262 = vsel %vm2311, %v4243, 0
        %v4265 = vsel %vm2311, %v4244, 0
        %v4268 = vsel %vm2311, %v4245, 0
        %v4271 = vsel %vm2311, %v4246, 0
        %v4274 = vsel %vm2311, %v4247, 0
        %v4277 = vsel %vm2311, %v4248, 0
        %v4280 = vsel %vm2311, %v4249, 0
        %v4283 = vsel %vm2311, %v4250, 0
        %v4286 = vsel %vm2311, %v4251, 0
        %v4289 = vsel %vm2311, %v4252, 0
        %v4292 = vsel %vm2311, %v4253, 0
        %v4295 = vsel %vm2311, %v4254, 0
        %v4298 = vsel %vm2311, %v4255, 0
        %v4301 = vsel %vm2311, %v4256, 0
        %v4304 = vsel %vm2311, %v4257, 0
        %v4307 = vsel %vm2360, %v4209, 0
        %4309 = vmatprep.subr.bf16.mxu0 0
        %4310 = vmatpush1.bf16.msra.mxu0 %v4307
        %4311 = vmatprep.subr.bf16.mxu0 0
        %4312 = vmatpush1.bf16.msra.mxu0 0
        %4313 = vmatprep.subr.bf16.mxu0 0
        %4314 = vmatpush1.bf16.msra.mxu0 0
        %4315 = vmatprep.subr.bf16.mxu0 0
        %4316 = vmatpush1.bf16.msra.mxu0 0
        %4317 = vmatprep.subr.bf16.mxu0 0
        %4318 = vmatpush1.bf16.msra.mxu0 0
        %4319 = vmatprep.subr.bf16.mxu0 0
        %4320 = vmatpush1.bf16.msra.mxu0 0
        %4321 = vmatprep.subr.bf16.mxu0 0
        %4322 = vmatpush1.bf16.msra.mxu0 0
        %4323 = vmatprep.subr.bf16.mxu0 0
        %4324 = vmatpush1.bf16.msra.mxu0 0
        %4325 = vmatprep.subr.bf16.mxu0 0
        %4326 = vmatpush1.bf16.msra.mxu0 0
        %4327 = vmatprep.subr.bf16.mxu0 0
        %4328 = vmatpush1.bf16.msra.mxu0 0
        %4329 = vmatprep.subr.bf16.mxu0 0
        %4330 = vmatpush1.bf16.msra.mxu0 0
        %4331 = vmatprep.subr.bf16.mxu0 0
        %4332 = vmatpush1.bf16.msra.mxu0 0
        %4333 = vmatprep.subr.bf16.mxu0 0
        %4334 = vmatpush1.bf16.msra.mxu0 0
        %4335 = vmatprep.subr.bf16.mxu0 0
        %4336 = vmatpush1.bf16.msra.mxu0 0
        %4337 = vmatprep.subr.bf16.mxu0 0
        %4338 = vmatpush1.bf16.msra.mxu0 0
        %4339 = vmatprep.subr.bf16.mxu0 0
        %4340 = vmatpush1.bf16.msra.mxu0 0
        %4341 = vmatprep.mubr.bf16.mxu0 0
        %4342 = vmatmul.mubr.bf16.gmra.mrb[0].mxu0 %v4259
        %v4343 = vpop.f32.mrb[0].mxu0
        %v4344 = vadd.f32 0.0, %v4343
        %v4345 = vpop.f32.mrb[0].mxu0
        %v4346 = vpop.f32.mrb[0].mxu0
        %v4347 = vadd.f32 0.0, %v4346
        %v4348 = vpop.f32.mrb[0].mxu0
        %4349 = vmatprep.mubr.bf16.mxu0 0
        %4350 = vmatmul.mubr.bf16.gmra.mrb[0].mxu0 %v4262
        %v4351 = vpop.f32.mrb[0].mxu0
        %v4352 = vadd.f32 0.0, %v4351
        %v4353 = vpop.f32.mrb[0].mxu0
        %v4354 = vpop.f32.mrb[0].mxu0
        %v4355 = vadd.f32 0.0, %v4354
        %v4356 = vpop.f32.mrb[0].mxu0
        %4357 = vmatprep.mubr.bf16.mxu0 0
        %4358 = vmatmul.mubr.bf16.gmra.mrb[0].mxu0 %v4265
        %v4359 = vpop.f32.mrb[0].mxu0
        %v4360 = vadd.f32 0.0, %v4359
        %v4361 = vpop.f32.mrb[0].mxu0
        %v4362 = vpop.f32.mrb[0].mxu0
        %v4363 = vadd.f32 0.0, %v4362
        %v4364 = vpop.f32.mrb[0].mxu0
        %4365 = vmatprep.mubr.bf16.mxu0 0
        %4366 = vmatmul.mubr.bf16.gmra.mrb[0].mxu0 %v4268
        %v4367 = vpop.f32.mrb[0].mxu0
        %v4368 = vadd.f32 0.0, %v4367
        %v4369 = vpop.f32.mrb[0].mxu0
        %v4370 = vpop.f32.mrb[0].mxu0
        %v4371 = vadd.f32 0.0, %v4370
        %v4372 = vpop.f32.mrb[0].mxu0
        %4373 = vmatprep.mubr.bf16.mxu0 0
        %4374 = vmatmul.mubr.bf16.gmra.mrb[0].mxu0 %v4271
        %v4375 = vpop.f32.mrb[0].mxu0
        %v4376 = vadd.f32 0.0, %v4375
        %v4377 = vpop.f32.mrb[0].mxu0
        %v4378 = vpop.f32.mrb[0].mxu0
        %v4379 = vadd.f32 0.0, %v4378
        %v4380 = vpop.f32.mrb[0].mxu0
        %4381 = vmatprep.mubr.bf16.mxu0 0
        %4382 = vmatmul.mubr.bf16.gmra.mrb[0].mxu0 %v4274
        %v4383 = vpop.f32.mrb[0].mxu0
        %v4384 = vadd.f32 0.0, %v4383
        %v4385 = vpop.f32.mrb[0].mxu0
        %v4386 = vpop.f32.mrb[0].mxu0
        %v4387 = vadd.f32 0.0, %v4386
        %v4388 = vpop.f32.mrb[0].mxu0
        %4389 = vmatprep.mubr.bf16.mxu0 0
        %4390 = vmatmul.mubr.bf16.gmra.mrb[0].mxu0 %v4277
        %v4391 = vpop.f32.mrb[0].mxu0
        %v4392 = vadd.f32 0.0, %v4391
        %v4393 = vpop.f32.mrb[0].mxu0
        %v4394 = vpop.f32.mrb[0].mxu0
        %v4395 = vadd.f32 0.0, %v4394
        %v4396 = vpop.f32.mrb[0].mxu0
        %4397 = vmatprep.mubr.bf16.mxu0 0
        %4398 = vmatmul.mubr.bf16.gmra.mrb[0].mxu0 %v4280
        %v4399 = vpop.f32.mrb[0].mxu0
        %v4400 = vadd.f32 0.0, %v4399
        %v4401 = vpop.f32.mrb[0].mxu0
        %v4402 = vpop.f32.mrb[0].mxu0
        %v4403 = vadd.f32 0.0, %v4402
        %v4404 = vpop.f32.mrb[0].mxu0
        %4405 = vmatprep.mubr.bf16.mxu0 0
        %4406 = vmatmul.mubr.bf16.gmra.mrb[0].mxu0 %v4283
        %v4407 = vpop.f32.mrb[0].mxu0
        %v4408 = vadd.f32 0.0, %v4407
        %v4409 = vpop.f32.mrb[0].mxu0
        %v4410 = vpop.f32.mrb[0].mxu0
        %v4411 = vadd.f32 0.0, %v4410
        %v4412 = vpop.f32.mrb[0].mxu0
        %4413 = vmatprep.mubr.bf16.mxu0 0
        %4414 = vmatmul.mubr.bf16.gmra.mrb[0].mxu0 %v4286
        %v4415 = vpop.f32.mrb[0].mxu0
        %v4416 = vadd.f32 0.0, %v4415
        %v4417 = vpop.f32.mrb[0].mxu0
        %v4418 = vpop.f32.mrb[0].mxu0
        %v4419 = vadd.f32 0.0, %v4418
        %v4420 = vpop.f32.mrb[0].mxu0
        %4421 = vmatprep.mubr.bf16.mxu0 0
        %4422 = vmatmul.mubr.bf16.gmra.mrb[0].mxu0 %v4289
        %v4423 = vpop.f32.mrb[0].mxu0
        %v4424 = vadd.f32 0.0, %v4423
        %v4425 = vpop.f32.mrb[0].mxu0
        %v4426 = vpop.f32.mrb[0].mxu0
        %v4427 = vadd.f32 0.0, %v4426
        %v4428 = vpop.f32.mrb[0].mxu0
        %4429 = vmatprep.mubr.bf16.mxu0 0
        %4430 = vmatmul.mubr.bf16.gmra.mrb[0].mxu0 %v4292
        %v4431 = vpop.f32.mrb[0].mxu0
        %v4432 = vadd.f32 0.0, %v4431
        %v4433 = vpop.f32.mrb[0].mxu0
        %v4434 = vpop.f32.mrb[0].mxu0
        %v4435 = vadd.f32 0.0, %v4434
        %v4436 = vpop.f32.mrb[0].mxu0
        %4437 = vmatprep.mubr.bf16.mxu0 0
        %4438 = vmatmul.mubr.bf16.gmra.mrb[0].mxu0 %v4295
        %v4439 = vpop.f32.mrb[0].mxu0
        %v4440 = vadd.f32 0.0, %v4439
        %v4441 = vpop.f32.mrb[0].mxu0
        %v4442 = vpop.f32.mrb[0].mxu0
        %v4443 = vadd.f32 0.0, %v4442
        %v4444 = vpop.f32.mrb[0].mxu0
        %4445 = vmatprep.mubr.bf16.mxu0 0
        %4446 = vmatmul.mubr.bf16.gmra.mrb[0].mxu0 %v4298
        %v4447 = vpop.f32.mrb[0].mxu0
        %v4448 = vadd.f32 0.0, %v4447
        %v4449 = vpop.f32.mrb[0].mxu0
        %v4450 = vpop.f32.mrb[0].mxu0
        %v4451 = vadd.f32 0.0, %v4450
        %v4452 = vpop.f32.mrb[0].mxu0
        %4453 = vmatprep.mubr.bf16.mxu0 0
        %4454 = vmatmul.mubr.bf16.gmra.mrb[0].mxu0 %v4301
        %v4455 = vpop.f32.mrb[0].mxu0
        %v4456 = vadd.f32 0.0, %v4455
        %v4457 = vpop.f32.mrb[0].mxu0
        %v4458 = vpop.f32.mrb[0].mxu0
        %v4459 = vadd.f32 0.0, %v4458
        %v4460 = vpop.f32.mrb[0].mxu0
        %4461 = vmatprep.mubr.bf16.mxu0 0
        %4462 = vmatmul.mubr.bf16.gmra.mrb[0].mxu0 %v4304
        %v4463 = vpop.f32.mrb[0].mxu0
        %v4464 = vadd.f32 0.0, %v4463
        %v4465 = vpop.f32.mrb[0].mxu0
        %v4466 = vpop.f32.mrb[0].mxu0
        %v4467 = vadd.f32 0.0, %v4466
        %v4468 = vpop.f32.mrb[0].mxu0
        %4469 = vdwg.mxu0
        %v4470 = vadd.f32 %v3664, %v4344
        %v4471 = vadd.f32 %v3665, %v4347
        %v4472 = vadd.f32 %v3666, %v4352
        %v4473 = vadd.f32 %v3667, %v4355
        %v4474 = vadd.f32 %v3668, %v4360
        %v4475 = vadd.f32 %v3669, %v4363
        %v4476 = vadd.f32 %v3670, %v4368
        %v4477 = vadd.f32 %v3671, %v4371
        %v4478 = vadd.f32 %v3672, %v4376
        %v4479 = vadd.f32 %v3673, %v4379
        %v4480 = vadd.f32 %v3674, %v4384
        %v4481 = vadd.f32 %v3675, %v4387
        %v4482 = vadd.f32 %v3676, %v4392
        %v4483 = vadd.f32 %v3677, %v4395
        %v4484 = vadd.f32 %v3678, %v4400
        %v4485 = vadd.f32 %v3679, %v4403
        %v4486 = vadd.f32 %v3680, %v4408
        %v4487 = vadd.f32 %v3681, %v4411
        %v4488 = vadd.f32 %v3682, %v4416
        %v4489 = vadd.f32 %v3683, %v4419
        %v4490 = vadd.f32 %v3684, %v4424
        %v4491 = vadd.f32 %v3685, %v4427
        %v4492 = vadd.f32 %v3686, %v4432
        %v4493 = vadd.f32 %v3687, %v4435
        %v4494 = vadd.f32 %v3688, %v4440
        %v4495 = vadd.f32 %v3689, %v4443
        %v4496 = vadd.f32 %v3690, %v4448
        %v4497 = vadd.f32 %v3691, %v4451
        %v4498 = vadd.f32 %v3692, %v4456
        %v4499 = vadd.f32 %v3693, %v4459
        %v4500 = vadd.f32 %v3694, %v4464
        %v4501 = vadd.f32 %v3695, %v4467
        %v4502 = vld [vmem:[%s1550] sm:$0xe]
        %v4503 = vld [vmem:[%s1550 + $0x8] sm:$0xe]
        %v4504 = vld [vmem:[%s1550 + $0x10] sm:$0xe]
        %v4505 = vld [vmem:[%s1550 + $0x18] sm:$0xe]
        %v4506 = vld [vmem:[%s1550 + $0x20] sm:$0xe]
        %v4507 = vld [vmem:[%s1550 + $0x28] sm:$0xe]
        %v4508 = vld [vmem:[%s1550 + $0x30] sm:$0xe]
        %v4509 = vld [vmem:[%s1550 + $0x38] sm:$0xe]
        %v4510 = vld [vmem:[%s1550 + $0x50] sm:$0xe]
        %v4511 = vld [vmem:[%s1550 + $0x58] sm:$0xe]
        %v4512 = vld [vmem:[%s1550 + $0x60] sm:$0xe]
        %v4513 = vld [vmem:[%s1550 + $0x68] sm:$0xe]
        %v4514 = vld [vmem:[%s1550 + $0x70] sm:$0xe]
        %v4515 = vld [vmem:[%s1550 + $0x78] sm:$0xe]
        %v4516 = vld [vmem:[%s1550 + $0x80] sm:$0xe]
        %v4517 = vld [vmem:[%s1550 + $0x88] sm:$0xe]
        %v4518 = vld [vmem:[%s1550 + $0xa0] sm:$0xe]
        %v4519 = vld [vmem:[%s1550 + $0xa8] sm:$0xe]
        %v4520 = vld [vmem:[%s1550 + $0xb0] sm:$0xe]
        %v4521 = vld [vmem:[%s1550 + $0xb8] sm:$0xe]
        %v4522 = vld [vmem:[%s1550 + $0xc0] sm:$0xe]
        %v4523 = vld [vmem:[%s1550 + $0xc8] sm:$0xe]
        %v4524 = vld [vmem:[%s1550 + $0xd0] sm:$0xe]
        %v4525 = vld [vmem:[%s1550 + $0xd8] sm:$0xe]
        %v4526 = vld [vmem:[%s1550 + $0xf0] sm:$0xe]
        %v4527 = vld [vmem:[%s1550 + $0xf8] sm:$0xe]
        %v4528 = vld [vmem:[%s1550 + $0x100] sm:$0xe]
        %v4529 = vld [vmem:[%s1550 + $0x108] sm:$0xe]
        %v4530 = vld [vmem:[%s1550 + $0x110] sm:$0xe]
        %v4531 = vld [vmem:[%s1550 + $0x118] sm:$0xe]
        %v4532 = vld [vmem:[%s1550 + $0x120] sm:$0xe]
        %v4533 = vld [vmem:[%s1550 + $0x128] sm:$0xe]
        %v4598 = vrot.slane %v4502, 5
        %v4599 = vrot.slane %v4598, 4
        %v4600 = vrot.slane %v3697, 5
        %v4601 = vsel %vm2915, %v4599, %v4600
        %v4602 = vrot.slane %v4503, 5
        %v4603 = vrot.slane %v4602, 4
        %v4604 = vrot.slane %v3699, 5
        %v4605 = vsel %vm2915, %v4603, %v4604
        %v4606 = vrot.slane %v4504, 5
        %v4607 = vrot.slane %v4606, 4
        %v4608 = vrot.slane %v3701, 5
        %v4609 = vsel %vm2915, %v4607, %v4608
        %v4610 = vrot.slane %v4505, 5
        %v4611 = vrot.slane %v4610, 4
        %v4612 = vrot.slane %v3703, 5
        %v4613 = vsel %vm2915, %v4611, %v4612
        %v4614 = vrot.slane %v4506, 5
        %v4615 = vrot.slane %v4614, 4
        %v4616 = vrot.slane %v3705, 5
        %v4617 = vsel %vm2915, %v4615, %v4616
        %v4618 = vrot.slane %v4507, 5
        %v4619 = vrot.slane %v4618, 4
        %v4620 = vrot.slane %v3707, 5
        %v4621 = vsel %vm2915, %v4619, %v4620
        %v4622 = vrot.slane %v4508, 5
        %v4623 = vrot.slane %v4622, 4
        %v4624 = vrot.slane %v3709, 5
        %v4625 = vsel %vm2915, %v4623, %v4624
        %v4626 = vrot.slane %v4509, 5
        %v4627 = vrot.slane %v4626, 4
        %v4628 = vrot.slane %v3711, 5
        %v4629 = vsel %vm2915, %v4627, %v4628
        %v4630 = vrot.slane %v4510, 5
        %v4631 = vrot.slane %v4630, 4
        %v4632 = vrot.slane %v3713, 5
        %v4633 = vsel %vm2915, %v4631, %v4632
        %v4634 = vrot.slane %v4511, 5
        %v4635 = vrot.slane %v4634, 4
        %v4636 = vrot.slane %v3715, 5
        %v4637 = vsel %vm2915, %v4635, %v4636
        %v4638 = vrot.slane %v4512, 5
        %v4639 = vrot.slane %v4638, 4
        %v4640 = vrot.slane %v3717, 5
        %v4641 = vsel %vm2915, %v4639, %v4640
        %v4642 = vrot.slane %v4513, 5
        %v4643 = vrot.slane %v4642, 4
        %v4644 = vrot.slane %v3719, 5
        %v4645 = vsel %vm2915, %v4643, %v4644
        %v4646 = vrot.slane %v4514, 5
        %v4647 = vrot.slane %v4646, 4
        %v4648 = vrot.slane %v3721, 5
        %v4649 = vsel %vm2915, %v4647, %v4648
        %v4650 = vrot.slane %v4515, 5
        %v4651 = vrot.slane %v4650, 4
        %v4652 = vrot.slane %v3723, 5
        %v4653 = vsel %vm2915, %v4651, %v4652
        %v4654 = vrot.slane %v4516, 5
        %v4655 = vrot.slane %v4654, 4
        %v4656 = vrot.slane %v3725, 5
        %v4657 = vsel %vm2915, %v4655, %v4656
        %v4658 = vrot.slane %v4517, 5
        %v4659 = vrot.slane %v4658, 4
        %v4660 = vrot.slane %v3727, 5
        %v4661 = vsel %vm2915, %v4659, %v4660
        %v4662 = vrot.slane %v4518, 5
        %v4663 = vrot.slane %v4662, 4
        %v4664 = vrot.slane %v3729, 5
        %v4665 = vsel %vm2915, %v4663, %v4664
        %v4666 = vrot.slane %v4519, 5
        %v4667 = vrot.slane %v4666, 4
        %v4668 = vrot.slane %v3731, 5
        %v4669 = vsel %vm2915, %v4667, %v4668
        %v4670 = vrot.slane %v4520, 5
        %v4671 = vrot.slane %v4670, 4
        %v4672 = vrot.slane %v3733, 5
        %v4673 = vsel %vm2915, %v4671, %v4672
        %v4674 = vrot.slane %v4521, 5
        %v4675 = vrot.slane %v4674, 4
        %v4676 = vrot.slane %v3735, 5
        %v4677 = vsel %vm2915, %v4675, %v4676
        %v4678 = vrot.slane %v4522, 5
        %v4679 = vrot.slane %v4678, 4
        %v4680 = vrot.slane %v3737, 5
        %v4681 = vsel %vm2915, %v4679, %v4680
        %v4682 = vrot.slane %v4523, 5
        %v4683 = vrot.slane %v4682, 4
        %v4684 = vrot.slane %v3739, 5
        %v4685 = vsel %vm2915, %v4683, %v4684
        %v4686 = vrot.slane %v4524, 5
        %v4687 = vrot.slane %v4686, 4
        %v4688 = vrot.slane %v3741, 5
        %v4689 = vsel %vm2915, %v4687, %v4688
        %v4690 = vrot.slane %v4525, 5
        %v4691 = vrot.slane %v4690, 4
        %v4692 = vrot.slane %v3743, 5
        %v4693 = vsel %vm2915, %v4691, %v4692
        %v4694 = vrot.slane %v4526, 5
        %v4695 = vrot.slane %v4694, 4
        %v4696 = vrot.slane %v3745, 5
        %v4697 = vsel %vm2915, %v4695, %v4696
        %v4698 = vrot.slane %v4527, 5
        %v4699 = vrot.slane %v4698, 4
        %v4700 = vrot.slane %v3747, 5
        %v4701 = vsel %vm2915, %v4699, %v4700
        %v4702 = vrot.slane %v4528, 5
        %v4703 = vrot.slane %v4702, 4
        %v4704 = vrot.slane %v3749, 5
        %v4705 = vsel %vm2915, %v4703, %v4704
        %v4706 = vrot.slane %v4529, 5
        %v4707 = vrot.slane %v4706, 4
        %v4708 = vrot.slane %v3751, 5
        %v4709 = vsel %vm2915, %v4707, %v4708
        %v4710 = vrot.slane %v4530, 5
        %v4711 = vrot.slane %v4710, 4
        %v4712 = vrot.slane %v3753, 5
        %v4713 = vsel %vm2915, %v4711, %v4712
        %v4714 = vrot.slane %v4531, 5
        %v4715 = vrot.slane %v4714, 4
        %v4716 = vrot.slane %v3755, 5
        %v4717 = vsel %vm2915, %v4715, %v4716
        %v4718 = vrot.slane %v4532, 5
        %v4719 = vrot.slane %v4718, 4
        %v4720 = vrot.slane %v3757, 5
        %v4721 = vsel %vm2915, %v4719, %v4720
        %v4722 = vrot.slane %v4533, 5
        %v4723 = vrot.slane %v4722, 4
        %v4724 = vrot.slane %v3759, 5
        %v4725 = vsel %vm2915, %v4723, %v4724
        %s4726 = scalar_lea.vmem %s4, 20
        %v4727 = vld [vmem:[%s4726] sm:$0xf]
        %v4728 = vunpack.c.l.b16 %v4601
        %v4729 = vunpack.c.l.b16 %v4605
        %v4730 = vunpack.c.l.b16 %v4609
        %v4731 = vunpack.c.l.b16 %v4613
        %v4732 = vunpack.c.l.b16 %v4617
        %v4733 = vunpack.c.l.b16 %v4621
        %v4734 = vunpack.c.l.b16 %v4625
        %v4735 = vunpack.c.l.b16 %v4629
        %v4736 = vunpack.c.l.b16 %v4633
        %v4737 = vunpack.c.l.b16 %v4637
        %v4738 = vunpack.c.l.b16 %v4641
        %v4739 = vunpack.c.l.b16 %v4645
        %v4740 = vunpack.c.l.b16 %v4649
        %v4741 = vunpack.c.l.b16 %v4653
        %v4742 = vunpack.c.l.b16 %v4657
        %v4743 = vunpack.c.l.b16 %v4661
        %v4744 = vunpack.c.l.b16 %v4665
        %v4745 = vunpack.c.l.b16 %v4669
        %v4746 = vunpack.c.l.b16 %v4673
        %v4747 = vunpack.c.l.b16 %v4677
        %v4748 = vunpack.c.l.b16 %v4681
        %v4749 = vunpack.c.l.b16 %v4685
        %v4750 = vunpack.c.l.b16 %v4689
        %v4751 = vunpack.c.l.b16 %v4693
        %v4752 = vunpack.c.l.b16 %v4697
        %v4753 = vunpack.c.l.b16 %v4701
        %v4754 = vunpack.c.l.b16 %v4705
        %v4755 = vunpack.c.l.b16 %v4709
        %v4756 = vunpack.c.l.b16 %v4713
        %v4757 = vunpack.c.l.b16 %v4717
        %v4758 = vunpack.c.l.b16 %v4721
        %v4759 = vunpack.c.l.b16 %v4725
        %v4760 = vpack.c.b16 %v4729, %v4728
        %v4761 = vpack.c.b16 %v4731, %v4730
        %v4762 = vpack.c.b16 %v4733, %v4732
        %v4763 = vpack.c.b16 %v4735, %v4734
        %v4764 = vpack.c.b16 %v4737, %v4736
        %v4765 = vpack.c.b16 %v4739, %v4738
        %v4766 = vpack.c.b16 %v4741, %v4740
        %v4767 = vpack.c.b16 %v4743, %v4742
        %v4768 = vpack.c.b16 %v4745, %v4744
        %v4769 = vpack.c.b16 %v4747, %v4746
        %v4770 = vpack.c.b16 %v4749, %v4748
        %v4771 = vpack.c.b16 %v4751, %v4750
        %v4772 = vpack.c.b16 %v4753, %v4752
        %v4773 = vpack.c.b16 %v4755, %v4754
        %v4774 = vpack.c.b16 %v4757, %v4756
        %v4775 = vpack.c.b16 %v4759, %v4758
        %v4777 = vsel %vm2311, %v4760, 0
        %v4780 = vsel %vm2311, %v4761, 0
        %v4783 = vsel %vm2311, %v4762, 0
        %v4786 = vsel %vm2311, %v4763, 0
        %v4789 = vsel %vm2311, %v4764, 0
        %v4792 = vsel %vm2311, %v4765, 0
        %v4795 = vsel %vm2311, %v4766, 0
        %v4798 = vsel %vm2311, %v4767, 0
        %v4801 = vsel %vm2311, %v4768, 0
        %v4804 = vsel %vm2311, %v4769, 0
        %v4807 = vsel %vm2311, %v4770, 0
        %v4810 = vsel %vm2311, %v4771, 0
        %v4813 = vsel %vm2311, %v4772, 0
        %v4816 = vsel %vm2311, %v4773, 0
        %v4819 = vsel %vm2311, %v4774, 0
        %v4822 = vsel %vm2311, %v4775, 0
        %v4825 = vsel %vm2360, %v4727, 0
        %4827 = vmatprep.subr.bf16.mxu0 0
        %4828 = vmatpush1.bf16.msra.mxu0 %v4825
        %4829 = vmatprep.subr.bf16.mxu0 0
        %4830 = vmatpush1.bf16.msra.mxu0 0
        %4831 = vmatprep.subr.bf16.mxu0 0
        %4832 = vmatpush1.bf16.msra.mxu0 0
        %4833 = vmatprep.subr.bf16.mxu0 0
        %4834 = vmatpush1.bf16.msra.mxu0 0
        %4835 = vmatprep.subr.bf16.mxu0 0
        %4836 = vmatpush1.bf16.msra.mxu0 0
        %4837 = vmatprep.subr.bf16.mxu0 0
        %4838 = vmatpush1.bf16.msra.mxu0 0
        %4839 = vmatprep.subr.bf16.mxu0 0
        %4840 = vmatpush1.bf16.msra.mxu0 0
        %4841 = vmatprep.subr.bf16.mxu0 0
        %4842 = vmatpush1.bf16.msra.mxu0 0
        %4843 = vmatprep.subr.bf16.mxu0 0
        %4844 = vmatpush1.bf16.msra.mxu0 0
        %4845 = vmatprep.subr.bf16.mxu0 0
        %4846 = vmatpush1.bf16.msra.mxu0 0
        %4847 = vmatprep.subr.bf16.mxu0 0
        %4848 = vmatpush1.bf16.msra.mxu0 0
        %4849 = vmatprep.subr.bf16.mxu0 0
        %4850 = vmatpush1.bf16.msra.mxu0 0
        %4851 = vmatprep.subr.bf16.mxu0 0
        %4852 = vmatpush1.bf16.msra.mxu0 0
        %4853 = vmatprep.subr.bf16.mxu0 0
        %4854 = vmatpush1.bf16.msra.mxu0 0
        %4855 = vmatprep.subr.bf16.mxu0 0
        %4856 = vmatpush1.bf16.msra.mxu0 0
        %4857 = vmatprep.subr.bf16.mxu0 0
        %4858 = vmatpush1.bf16.msra.mxu0 0
        %4859 = vmatprep.mubr.bf16.mxu0 0
        %4860 = vmatmul.mubr.bf16.gmra.mrb[0].mxu0 %v4777
        %v4861 = vpop.f32.mrb[0].mxu0
        %v4862 = vadd.f32 0.0, %v4861
        %v4863 = vpop.f32.mrb[0].mxu0
        %v4864 = vpop.f32.mrb[0].mxu0
        %v4865 = vadd.f32 0.0, %v4864
        %v4866 = vpop.f32.mrb[0].mxu0
        %4867 = vmatprep.mubr.bf16.mxu0 0
        %4868 = vmatmul.mubr.bf16.gmra.mrb[0].mxu0 %v4780
        %v4869 = vpop.f32.mrb[0].mxu0
        %v4870 = vadd.f32 0.0, %v4869
        %v4871 = vpop.f32.mrb[0].mxu0
        %v4872 = vpop.f32.mrb[0].mxu0
        %v4873 = vadd.f32 0.0, %v4872
        %v4874 = vpop.f32.mrb[0].mxu0
        %4875 = vmatprep.mubr.bf16.mxu0 0
        %4876 = vmatmul.mubr.bf16.gmra.mrb[0].mxu0 %v4783
        %v4877 = vpop.f32.mrb[0].mxu0
        %v4878 = vadd.f32 0.0, %v4877
        %v4879 = vpop.f32.mrb[0].mxu0
        %v4880 = vpop.f32.mrb[0].mxu0
        %v4881 = vadd.f32 0.0, %v4880
        %v4882 = vpop.f32.mrb[0].mxu0
        %4883 = vmatprep.mubr.bf16.mxu0 0
        %4884 = vmatmul.mubr.bf16.gmra.mrb[0].mxu0 %v4786
        %v4885 = vpop.f32.mrb[0].mxu0
        %v4886 = vadd.f32 0.0, %v4885
        %v4887 = vpop.f32.mrb[0].mxu0
        %v4888 = vpop.f32.mrb[0].mxu0
        %v4889 = vadd.f32 0.0, %v4888
        %v4890 = vpop.f32.mrb[0].mxu0
        %4891 = vmatprep.mubr.bf16.mxu0 0
        %4892 = vmatmul.mubr.bf16.gmra.mrb[0].mxu0 %v4789
        %v4893 = vpop.f32.mrb[0].mxu0
        %v4894 = vadd.f32 0.0, %v4893
        %v4895 = vpop.f32.mrb[0].mxu0
        %v4896 = vpop.f32.mrb[0].mxu0
        %v4897 = vadd.f32 0.0, %v4896
        %v4898 = vpop.f32.mrb[0].mxu0
        %4899 = vmatprep.mubr.bf16.mxu0 0
        %4900 = vmatmul.mubr.bf16.gmra.mrb[0].mxu0 %v4792
        %v4901 = vpop.f32.mrb[0].mxu0
        %v4902 = vadd.f32 0.0, %v4901
        %v4903 = vpop.f32.mrb[0].mxu0
        %v4904 = vpop.f32.mrb[0].mxu0
        %v4905 = vadd.f32 0.0, %v4904
        %v4906 = vpop.f32.mrb[0].mxu0
        %4907 = vmatprep.mubr.bf16.mxu0 0
        %4908 = vmatmul.mubr.bf16.gmra.mrb[0].mxu0 %v4795
        %v4909 = vpop.f32.mrb[0].mxu0
        %v4910 = vadd.f32 0.0, %v4909
        %v4911 = vpop.f32.mrb[0].mxu0
        %v4912 = vpop.f32.mrb[0].mxu0
        %v4913 = vadd.f32 0.0, %v4912
        %v4914 = vpop.f32.mrb[0].mxu0
        %4915 = vmatprep.mubr.bf16.mxu0 0
        %4916 = vmatmul.mubr.bf16.gmra.mrb[0].mxu0 %v4798
        %v4917 = vpop.f32.mrb[0].mxu0
        %v4918 = vadd.f32 0.0, %v4917
        %v4919 = vpop.f32.mrb[0].mxu0
        %v4920 = vpop.f32.mrb[0].mxu0
        %v4921 = vadd.f32 0.0, %v4920
        %v4922 = vpop.f32.mrb[0].mxu0
        %4923 = vmatprep.mubr.bf16.mxu0 0
        %4924 = vmatmul.mubr.bf16.gmra.mrb[0].mxu0 %v4801
        %v4925 = vpop.f32.mrb[0].mxu0
        %v4926 = vadd.f32 0.0, %v4925
        %v4927 = vpop.f32.mrb[0].mxu0
        %v4928 = vpop.f32.mrb[0].mxu0
        %v4929 = vadd.f32 0.0, %v4928
        %v4930 = vpop.f32.mrb[0].mxu0
        %4931 = vmatprep.mubr.bf16.mxu0 0
        %4932 = vmatmul.mubr.bf16.gmra.mrb[0].mxu0 %v4804
        %v4933 = vpop.f32.mrb[0].mxu0
        %v4934 = vadd.f32 0.0, %v4933
        %v4935 = vpop.f32.mrb[0].mxu0
        %v4936 = vpop.f32.mrb[0].mxu0
        %v4937 = vadd.f32 0.0, %v4936
        %v4938 = vpop.f32.mrb[0].mxu0
        %4939 = vmatprep.mubr.bf16.mxu0 0
        %4940 = vmatmul.mubr.bf16.gmra.mrb[0].mxu0 %v4807
        %v4941 = vpop.f32.mrb[0].mxu0
        %v4942 = vadd.f32 0.0, %v4941
        %v4943 = vpop.f32.mrb[0].mxu0
        %v4944 = vpop.f32.mrb[0].mxu0
        %v4945 = vadd.f32 0.0, %v4944
        %v4946 = vpop.f32.mrb[0].mxu0
        %4947 = vmatprep.mubr.bf16.mxu0 0
        %4948 = vmatmul.mubr.bf16.gmra.mrb[0].mxu0 %v4810
        %v4949 = vpop.f32.mrb[0].mxu0
        %v4950 = vadd.f32 0.0, %v4949
        %v4951 = vpop.f32.mrb[0].mxu0
        %v4952 = vpop.f32.mrb[0].mxu0
        %v4953 = vadd.f32 0.0, %v4952
        %v4954 = vpop.f32.mrb[0].mxu0
        %4955 = vmatprep.mubr.bf16.mxu0 0
        %4956 = vmatmul.mubr.bf16.gmra.mrb[0].mxu0 %v4813
        %v4957 = vpop.f32.mrb[0].mxu0
        %v4958 = vadd.f32 0.0, %v4957
        %v4959 = vpop.f32.mrb[0].mxu0
        %v4960 = vpop.f32.mrb[0].mxu0
        %v4961 = vadd.f32 0.0, %v4960
        %v4962 = vpop.f32.mrb[0].mxu0
        %4963 = vmatprep.mubr.bf16.mxu0 0
        %4964 = vmatmul.mubr.bf16.gmra.mrb[0].mxu0 %v4816
        %v4965 = vpop.f32.mrb[0].mxu0
        %v4966 = vadd.f32 0.0, %v4965
        %v4967 = vpop.f32.mrb[0].mxu0
        %v4968 = vpop.f32.mrb[0].mxu0
        %v4969 = vadd.f32 0.0, %v4968
        %v4970 = vpop.f32.mrb[0].mxu0
        %4971 = vmatprep.mubr.bf16.mxu0 0
        %4972 = vmatmul.mubr.bf16.gmra.mrb[0].mxu0 %v4819
        %v4973 = vpop.f32.mrb[0].mxu0
        %v4974 = vadd.f32 0.0, %v4973
        %v4975 = vpop.f32.mrb[0].mxu0
        %v4976 = vpop.f32.mrb[0].mxu0
        %v4977 = vadd.f32 0.0, %v4976
        %v4978 = vpop.f32.mrb[0].mxu0
        %4979 = vmatprep.mubr.bf16.mxu0 0
        %4980 = vmatmul.mubr.bf16.gmra.mrb[0].mxu0 %v4822
        %v4981 = vpop.f32.mrb[0].mxu0
        %v4982 = vadd.f32 0.0, %v4981
        %v4983 = vpop.f32.mrb[0].mxu0
        %v4984 = vpop.f32.mrb[0].mxu0
        %v4985 = vadd.f32 0.0, %v4984
        %v4986 = vpop.f32.mrb[0].mxu0
        %4987 = vdwg.mxu0
        %v4988 = vadd.f32 %v4470, %v4862
        %v4989 = vadd.f32 %v4471, %v4865
        %v4990 = vadd.f32 %v4472, %v4870
        %v4991 = vadd.f32 %v4473, %v4873
        %v4992 = vadd.f32 %v4474, %v4878
        %v4993 = vadd.f32 %v4475, %v4881
        %v4994 = vadd.f32 %v4476, %v4886
        %v4995 = vadd.f32 %v4477, %v4889
        %v4996 = vadd.f32 %v4478, %v4894
        %v4997 = vadd.f32 %v4479, %v4897
        %v4998 = vadd.f32 %v4480, %v4902
        %v4999 = vadd.f32 %v4481, %v4905
        %v5000 = vadd.f32 %v4482, %v4910
        %v5001 = vadd.f32 %v4483, %v4913
        %v5002 = vadd.f32 %v4484, %v4918
        %v5003 = vadd.f32 %v4485, %v4921
        %v5004 = vadd.f32 %v4486, %v4926
        %v5005 = vadd.f32 %v4487, %v4929
        %v5006 = vadd.f32 %v4488, %v4934
        %v5007 = vadd.f32 %v4489, %v4937
        %v5008 = vadd.f32 %v4490, %v4942
        %v5009 = vadd.f32 %v4491, %v4945
        %v5010 = vadd.f32 %v4492, %v4950
        %v5011 = vadd.f32 %v4493, %v4953
        %v5012 = vadd.f32 %v4494, %v4958
        %v5013 = vadd.f32 %v4495, %v4961
        %v5014 = vadd.f32 %v4496, %v4966
        %v5015 = vadd.f32 %v4497, %v4969
        %v5016 = vadd.f32 %v4498, %v4974
        %v5017 = vadd.f32 %v4499, %v4977
        %v5018 = vadd.f32 %v4500, %v4982
        %v5019 = vadd.f32 %v4501, %v4985
        %s5020 = scalar_lea.vmem [#allocation2], 16
        %v5021 = vld [vmem:[%s5020] sm:$0xf]
        %v5022 = vld [vmem:[%s5020 + $0x8] sm:$0xf]
        %v5023 = vld [vmem:[%s5020 + $0x10] sm:$0xf]
        %v5024 = vld [vmem:[%s5020 + $0x18] sm:$0xf]
        %v5025 = vld [vmem:[%s5020 + $0x20] sm:$0xf]
        %v5026 = vld [vmem:[%s5020 + $0x28] sm:$0xf]
        %v5027 = vld [vmem:[%s5020 + $0x30] sm:$0xf]
        %v5028 = vld [vmem:[%s5020 + $0x38] sm:$0xf]
        %v5029 = vld [vmem:[%s5020 + $0x50] sm:$0xf]
        %v5030 = vld [vmem:[%s5020 + $0x58] sm:$0xf]
        %v5031 = vld [vmem:[%s5020 + $0x60] sm:$0xf]
        %v5032 = vld [vmem:[%s5020 + $0x68] sm:$0xf]
        %v5033 = vld [vmem:[%s5020 + $0x70] sm:$0xf]
        %v5034 = vld [vmem:[%s5020 + $0x78] sm:$0xf]
        %v5035 = vld [vmem:[%s5020 + $0x80] sm:$0xf]
        %v5036 = vld [vmem:[%s5020 + $0x88] sm:$0xf]
        %v5037 = vld [vmem:[%s5020 + $0xa0] sm:$0xf]
        %v5038 = vld [vmem:[%s5020 + $0xa8] sm:$0xf]
        %v5039 = vld [vmem:[%s5020 + $0xb0] sm:$0xf]
        %v5040 = vld [vmem:[%s5020 + $0xb8] sm:$0xf]
        %v5041 = vld [vmem:[%s5020 + $0xc0] sm:$0xf]
        %v5042 = vld [vmem:[%s5020 + $0xc8] sm:$0xf]
        %v5043 = vld [vmem:[%s5020 + $0xd0] sm:$0xf]
        %v5044 = vld [vmem:[%s5020 + $0xd8] sm:$0xf]
        %v5045 = vld [vmem:[%s5020 + $0xf0] sm:$0xf]
        %v5046 = vld [vmem:[%s5020 + $0xf8] sm:$0xf]
        %v5047 = vld [vmem:[%s5020 + $0x100] sm:$0xf]
        %v5048 = vld [vmem:[%s5020 + $0x108] sm:$0xf]
        %v5049 = vld [vmem:[%s5020 + $0x110] sm:$0xf]
        %v5050 = vld [vmem:[%s5020 + $0x118] sm:$0xf]
        %v5051 = vld [vmem:[%s5020 + $0x120] sm:$0xf]
        %v5052 = vld [vmem:[%s5020 + $0x128] sm:$0xf]
        %s5053 = scalar_lea.vmem %s4, 24
        %v5054 = vld [vmem:[%s5053] sm:$0xf]
        %v5087 = vunpack.c.l.b16 %v5021
        %v5088 = vunpack.c.l.b16 %v5022
        %v5089 = vunpack.c.l.b16 %v5023
        %v5090 = vunpack.c.l.b16 %v5024
        %v5091 = vunpack.c.l.b16 %v5025
        %v5092 = vunpack.c.l.b16 %v5026
        %v5093 = vunpack.c.l.b16 %v5027
        %v5094 = vunpack.c.l.b16 %v5028
        %v5095 = vunpack.c.l.b16 %v5029
        %v5096 = vunpack.c.l.b16 %v5030
        %v5097 = vunpack.c.l.b16 %v5031
        %v5098 = vunpack.c.l.b16 %v5032
        %v5099 = vunpack.c.l.b16 %v5033
        %v5100 = vunpack.c.l.b16 %v5034
        %v5101 = vunpack.c.l.b16 %v5035
        %v5102 = vunpack.c.l.b16 %v5036
        %v5103 = vunpack.c.l.b16 %v5037
        %v5104 = vunpack.c.l.b16 %v5038
        %v5105 = vunpack.c.l.b16 %v5039
        %v5106 = vunpack.c.l.b16 %v5040
        %v5107 = vunpack.c.l.b16 %v5041
        %v5108 = vunpack.c.l.b16 %v5042
        %v5109 = vunpack.c.l.b16 %v5043
        %v5110 = vunpack.c.l.b16 %v5044
        %v5111 = vunpack.c.l.b16 %v5045
        %v5112 = vunpack.c.l.b16 %v5046
        %v5113 = vunpack.c.l.b16 %v5047
        %v5114 = vunpack.c.l.b16 %v5048
        %v5115 = vunpack.c.l.b16 %v5049
        %v5116 = vunpack.c.l.b16 %v5050
        %v5117 = vunpack.c.l.b16 %v5051
        %v5118 = vunpack.c.l.b16 %v5052
        %v5119 = vpack.c.b16 %v5088, %v5087
        %v5120 = vpack.c.b16 %v5090, %v5089
        %v5121 = vpack.c.b16 %v5092, %v5091
        %v5122 = vpack.c.b16 %v5094, %v5093
        %v5123 = vpack.c.b16 %v5096, %v5095
        %v5124 = vpack.c.b16 %v5098, %v5097
        %v5125 = vpack.c.b16 %v5100, %v5099
        %v5126 = vpack.c.b16 %v5102, %v5101
        %v5127 = vpack.c.b16 %v5104, %v5103
        %v5128 = vpack.c.b16 %v5106, %v5105
        %v5129 = vpack.c.b16 %v5108, %v5107
        %v5130 = vpack.c.b16 %v5110, %v5109
        %v5131 = vpack.c.b16 %v5112, %v5111
        %v5132 = vpack.c.b16 %v5114, %v5113
        %v5133 = vpack.c.b16 %v5116, %v5115
        %v5134 = vpack.c.b16 %v5118, %v5117
        %v5136 = vsel %vm2311, %v5119, 0
        %v5139 = vsel %vm2311, %v5120, 0
        %v5142 = vsel %vm2311, %v5121, 0
        %v5145 = vsel %vm2311, %v5122, 0
        %v5148 = vsel %vm2311, %v5123, 0
        %v5151 = vsel %vm2311, %v5124, 0
        %v5154 = vsel %vm2311, %v5125, 0
        %v5157 = vsel %vm2311, %v5126, 0
        %v5160 = vsel %vm2311, %v5127, 0
        %v5163 = vsel %vm2311, %v5128, 0
        %v5166 = vsel %vm2311, %v5129, 0
        %v5169 = vsel %vm2311, %v5130, 0
        %v5172 = vsel %vm2311, %v5131, 0
        %v5175 = vsel %vm2311, %v5132, 0
        %v5178 = vsel %vm2311, %v5133, 0
        %v5181 = vsel %vm2311, %v5134, 0
        %v5184 = vsel %vm2360, %v5054, 0
        %5186 = vmatprep.subr.bf16.mxu0 0
        %5187 = vmatpush1.bf16.msra.mxu0 %v5184
        %5188 = vmatprep.subr.bf16.mxu0 0
        %5189 = vmatpush1.bf16.msra.mxu0 0
        %5190 = vmatprep.subr.bf16.mxu0 0
        %5191 = vmatpush1.bf16.msra.mxu0 0
        %5192 = vmatprep.subr.bf16.mxu0 0
        %5193 = vmatpush1.bf16.msra.mxu0 0
        %5194 = vmatprep.subr.bf16.mxu0 0
        %5195 = vmatpush1.bf16.msra.mxu0 0
        %5196 = vmatprep.subr.bf16.mxu0 0
        %5197 = vmatpush1.bf16.msra.mxu0 0
        %5198 = vmatprep.subr.bf16.mxu0 0
        %5199 = vmatpush1.bf16.msra.mxu0 0
        %5200 = vmatprep.subr.bf16.mxu0 0
        %5201 = vmatpush1.bf16.msra.mxu0 0
        %5202 = vmatprep.subr.bf16.mxu0 0
        %5203 = vmatpush1.bf16.msra.mxu0 0
        %5204 = vmatprep.subr.bf16.mxu0 0
        %5205 = vmatpush1.bf16.msra.mxu0 0
        %5206 = vmatprep.subr.bf16.mxu0 0
        %5207 = vmatpush1.bf16.msra.mxu0 0
        %5208 = vmatprep.subr.bf16.mxu0 0
        %5209 = vmatpush1.bf16.msra.mxu0 0
        %5210 = vmatprep.subr.bf16.mxu0 0
        %5211 = vmatpush1.bf16.msra.mxu0 0
        %5212 = vmatprep.subr.bf16.mxu0 0
        %5213 = vmatpush1.bf16.msra.mxu0 0
        %5214 = vmatprep.subr.bf16.mxu0 0
        %5215 = vmatpush1.bf16.msra.mxu0 0
        %5216 = vmatprep.subr.bf16.mxu0 0
        %5217 = vmatpush1.bf16.msra.mxu0 0
        %5218 = vmatprep.mubr.bf16.mxu0 0
        %5219 = vmatmul.mubr.bf16.gmra.mrb[0].mxu0 %v5136
        %v5220 = vpop.f32.mrb[0].mxu0
        %v5221 = vadd.f32 0.0, %v5220
        %v5222 = vpop.f32.mrb[0].mxu0
        %v5223 = vpop.f32.mrb[0].mxu0
        %v5224 = vadd.f32 0.0, %v5223
        %v5225 = vpop.f32.mrb[0].mxu0
        %5226 = vmatprep.mubr.bf16.mxu0 0
        %5227 = vmatmul.mubr.bf16.gmra.mrb[0].mxu0 %v5139
        %v5228 = vpop.f32.mrb[0].mxu0
        %v5229 = vadd.f32 0.0, %v5228
        %v5230 = vpop.f32.mrb[0].mxu0
        %v5231 = vpop.f32.mrb[0].mxu0
        %v5232 = vadd.f32 0.0, %v5231
        %v5233 = vpop.f32.mrb[0].mxu0
        %5234 = vmatprep.mubr.bf16.mxu0 0
        %5235 = vmatmul.mubr.bf16.gmra.mrb[0].mxu0 %v5142
        %v5236 = vpop.f32.mrb[0].mxu0
        %v5237 = vadd.f32 0.0, %v5236
        %v5238 = vpop.f32.mrb[0].mxu0
        %v5239 = vpop.f32.mrb[0].mxu0
        %v5240 = vadd.f32 0.0, %v5239
        %v5241 = vpop.f32.mrb[0].mxu0
        %5242 = vmatprep.mubr.bf16.mxu0 0
        %5243 = vmatmul.mubr.bf16.gmra.mrb[0].mxu0 %v5145
        %v5244 = vpop.f32.mrb[0].mxu0
        %v5245 = vadd.f32 0.0, %v5244
        %v5246 = vpop.f32.mrb[0].mxu0
        %v5247 = vpop.f32.mrb[0].mxu0
        %v5248 = vadd.f32 0.0, %v5247
        %v5249 = vpop.f32.mrb[0].mxu0
        %5250 = vmatprep.mubr.bf16.mxu0 0
        %5251 = vmatmul.mubr.bf16.gmra.mrb[0].mxu0 %v5148
        %v5252 = vpop.f32.mrb[0].mxu0
        %v5253 = vadd.f32 0.0, %v5252
        %v5254 = vpop.f32.mrb[0].mxu0
        %v5255 = vpop.f32.mrb[0].mxu0
        %v5256 = vadd.f32 0.0, %v5255
        %v5257 = vpop.f32.mrb[0].mxu0
        %5258 = vmatprep.mubr.bf16.mxu0 0
        %5259 = vmatmul.mubr.bf16.gmra.mrb[0].mxu0 %v5151
        %v5260 = vpop.f32.mrb[0].mxu0
        %v5261 = vadd.f32 0.0, %v5260
        %v5262 = vpop.f32.mrb[0].mxu0
        %v5263 = vpop.f32.mrb[0].mxu0
        %v5264 = vadd.f32 0.0, %v5263
        %v5265 = vpop.f32.mrb[0].mxu0
        %5266 = vmatprep.mubr.bf16.mxu0 0
        %5267 = vmatmul.mubr.bf16.gmra.mrb[0].mxu0 %v5154
        %v5268 = vpop.f32.mrb[0].mxu0
        %v5269 = vadd.f32 0.0, %v5268
        %v5270 = vpop.f32.mrb[0].mxu0
        %v5271 = vpop.f32.mrb[0].mxu0
        %v5272 = vadd.f32 0.0, %v5271
        %v5273 = vpop.f32.mrb[0].mxu0
        %5274 = vmatprep.mubr.bf16.mxu0 0
        %5275 = vmatmul.mubr.bf16.gmra.mrb[0].mxu0 %v5157
        %v5276 = vpop.f32.mrb[0].mxu0
        %v5277 = vadd.f32 0.0, %v5276
        %v5278 = vpop.f32.mrb[0].mxu0
        %v5279 = vpop.f32.mrb[0].mxu0
        %v5280 = vadd.f32 0.0, %v5279
        %v5281 = vpop.f32.mrb[0].mxu0
        %5282 = vmatprep.mubr.bf16.mxu0 0
        %5283 = vmatmul.mubr.bf16.gmra.mrb[0].mxu0 %v5160
        %v5284 = vpop.f32.mrb[0].mxu0
        %v5285 = vadd.f32 0.0, %v5284
        %v5286 = vpop.f32.mrb[0].mxu0
        %v5287 = vpop.f32.mrb[0].mxu0
        %v5288 = vadd.f32 0.0, %v5287
        %v5289 = vpop.f32.mrb[0].mxu0
        %5290 = vmatprep.mubr.bf16.mxu0 0
        %5291 = vmatmul.mubr.bf16.gmra.mrb[0].mxu0 %v5163
        %v5292 = vpop.f32.mrb[0].mxu0
        %v5293 = vadd.f32 0.0, %v5292
        %v5294 = vpop.f32.mrb[0].mxu0
        %v5295 = vpop.f32.mrb[0].mxu0
        %v5296 = vadd.f32 0.0, %v5295
        %v5297 = vpop.f32.mrb[0].mxu0
        %5298 = vmatprep.mubr.bf16.mxu0 0
        %5299 = vmatmul.mubr.bf16.gmra.mrb[0].mxu0 %v5166
        %v5300 = vpop.f32.mrb[0].mxu0
        %v5301 = vadd.f32 0.0, %v5300
        %v5302 = vpop.f32.mrb[0].mxu0
        %v5303 = vpop.f32.mrb[0].mxu0
        %v5304 = vadd.f32 0.0, %v5303
        %v5305 = vpop.f32.mrb[0].mxu0
        %5306 = vmatprep.mubr.bf16.mxu0 0
        %5307 = vmatmul.mubr.bf16.gmra.mrb[0].mxu0 %v5169
        %v5308 = vpop.f32.mrb[0].mxu0
        %v5309 = vadd.f32 0.0, %v5308
        %v5310 = vpop.f32.mrb[0].mxu0
        %v5311 = vpop.f32.mrb[0].mxu0
        %v5312 = vadd.f32 0.0, %v5311
        %v5313 = vpop.f32.mrb[0].mxu0
        %5314 = vmatprep.mubr.bf16.mxu0 0
        %5315 = vmatmul.mubr.bf16.gmra.mrb[0].mxu0 %v5172
        %v5316 = vpop.f32.mrb[0].mxu0
        %v5317 = vadd.f32 0.0, %v5316
        %v5318 = vpop.f32.mrb[0].mxu0
        %v5319 = vpop.f32.mrb[0].mxu0
        %v5320 = vadd.f32 0.0, %v5319
        %v5321 = vpop.f32.mrb[0].mxu0
        %5322 = vmatprep.mubr.bf16.mxu0 0
        %5323 = vmatmul.mubr.bf16.gmra.mrb[0].mxu0 %v5175
        %v5324 = vpop.f32.mrb[0].mxu0
        %v5325 = vadd.f32 0.0, %v5324
        %v5326 = vpop.f32.mrb[0].mxu0
        %v5327 = vpop.f32.mrb[0].mxu0
        %v5328 = vadd.f32 0.0, %v5327
        %v5329 = vpop.f32.mrb[0].mxu0
        %5330 = vmatprep.mubr.bf16.mxu0 0
        %5331 = vmatmul.mubr.bf16.gmra.mrb[0].mxu0 %v5178
        %v5332 = vpop.f32.mrb[0].mxu0
        %v5333 = vadd.f32 0.0, %v5332
        %v5334 = vpop.f32.mrb[0].mxu0
        %v5335 = vpop.f32.mrb[0].mxu0
        %v5336 = vadd.f32 0.0, %v5335
        %v5337 = vpop.f32.mrb[0].mxu0
        %5338 = vmatprep.mubr.bf16.mxu0 0
        %5339 = vmatmul.mubr.bf16.gmra.mrb[0].mxu0 %v5181
        %v5340 = vpop.f32.mrb[0].mxu0
        %v5341 = vadd.f32 0.0, %v5340
        %v5342 = vpop.f32.mrb[0].mxu0
        %v5343 = vpop.f32.mrb[0].mxu0
        %v5344 = vadd.f32 0.0, %v5343
        %v5345 = vpop.f32.mrb[0].mxu0
        %5346 = vdwg.mxu0
        %v5347 = vadd.f32 %v4988, %v5221
        %v5348 = vadd.f32 %v4989, %v5224
        %v5349 = vadd.f32 %v4990, %v5229
        %v5350 = vadd.f32 %v4991, %v5232
        %v5351 = vadd.f32 %v4992, %v5237
        %v5352 = vadd.f32 %v4993, %v5240
        %v5353 = vadd.f32 %v4994, %v5245
        %v5354 = vadd.f32 %v4995, %v5248
        %v5355 = vadd.f32 %v4996, %v5253
        %v5356 = vadd.f32 %v4997, %v5256
        %v5357 = vadd.f32 %v4998, %v5261
        %v5358 = vadd.f32 %v4999, %v5264
        %v5359 = vadd.f32 %v5000, %v5269
        %v5360 = vadd.f32 %v5001, %v5272
        %v5361 = vadd.f32 %v5002, %v5277
        %v5362 = vadd.f32 %v5003, %v5280
        %v5363 = vadd.f32 %v5004, %v5285
        %v5364 = vadd.f32 %v5005, %v5288
        %v5365 = vadd.f32 %v5006, %v5293
        %v5366 = vadd.f32 %v5007, %v5296
        %v5367 = vadd.f32 %v5008, %v5301
        %v5368 = vadd.f32 %v5009, %v5304
        %v5369 = vadd.f32 %v5010, %v5309
        %v5370 = vadd.f32 %v5011, %v5312
        %v5371 = vadd.f32 %v5012, %v5317
        %v5372 = vadd.f32 %v5013, %v5320
        %v5373 = vadd.f32 %v5014, %v5325
        %v5374 = vadd.f32 %v5015, %v5328
        %v5375 = vadd.f32 %v5016, %v5333
        %v5376 = vadd.f32 %v5017, %v5336
        %v5377 = vadd.f32 %v5018, %v5341
        %v5378 = vadd.f32 %v5019, %v5344
        %v5379 = vld [vmem:[%s5020] sm:$0xf]
        %v5380 = vld [vmem:[%s5020 + $0x4] sm:$0x1]
        %v5381 = vld [vmem:[%s5020 + $0x8] sm:$0xf]
        %v5382 = vld [vmem:[%s5020 + $0xc] sm:$0x1]
        %v5383 = vld [vmem:[%s5020 + $0x10] sm:$0xf]
        %v5384 = vld [vmem:[%s5020 + $0x14] sm:$0x1]
        %v5385 = vld [vmem:[%s5020 + $0x18] sm:$0xf]
        %v5386 = vld [vmem:[%s5020 + $0x1c] sm:$0x1]
        %v5387 = vld [vmem:[%s5020 + $0x20] sm:$0xf]
        %v5388 = vld [vmem:[%s5020 + $0x24] sm:$0x1]
        %v5389 = vld [vmem:[%s5020 + $0x28] sm:$0xf]
        %v5390 = vld [vmem:[%s5020 + $0x2c] sm:$0x1]
        %v5391 = vld [vmem:[%s5020 + $0x30] sm:$0xf]
        %v5392 = vld [vmem:[%s5020 + $0x34] sm:$0x1]
        %v5393 = vld [vmem:[%s5020 + $0x38] sm:$0xf]
        %v5394 = vld [vmem:[%s5020 + $0x3c] sm:$0x1]
        %v5395 = vld [vmem:[%s5020 + $0x50] sm:$0xf]
        %v5396 = vld [vmem:[%s5020 + $0x54] sm:$0x1]
        %v5397 = vld [vmem:[%s5020 + $0x58] sm:$0xf]
        %v5398 = vld [vmem:[%s5020 + $0x5c] sm:$0x1]
        %v5399 = vld [vmem:[%s5020 + $0x60] sm:$0xf]
        %v5400 = vld [vmem:[%s5020 + $0x64] sm:$0x1]
        %v5401 = vld [vmem:[%s5020 + $0x68] sm:$0xf]
        %v5402 = vld [vmem:[%s5020 + $0x6c] sm:$0x1]
        %v5403 = vld [vmem:[%s5020 + $0x70] sm:$0xf]
        %v5404 = vld [vmem:[%s5020 + $0x74] sm:$0x1]
        %v5405 = vld [vmem:[%s5020 + $0x78] sm:$0xf]
        %v5406 = vld [vmem:[%s5020 + $0x7c] sm:$0x1]
        %v5407 = vld [vmem:[%s5020 + $0x80] sm:$0xf]
        %v5408 = vld [vmem:[%s5020 + $0x84] sm:$0x1]
        %v5409 = vld [vmem:[%s5020 + $0x88] sm:$0xf]
        %v5410 = vld [vmem:[%s5020 + $0x8c] sm:$0x1]
        %v5411 = vld [vmem:[%s5020 + $0xa0] sm:$0xf]
        %v5412 = vld [vmem:[%s5020 + $0xa4] sm:$0x1]
        %v5413 = vld [vmem:[%s5020 + $0xa8] sm:$0xf]
        %v5414 = vld [vmem:[%s5020 + $0xac] sm:$0x1]
        %v5415 = vld [vmem:[%s5020 + $0xb0] sm:$0xf]
        %v5416 = vld [vmem:[%s5020 + $0xb4] sm:$0x1]
        %v5417 = vld [vmem:[%s5020 + $0xb8] sm:$0xf]
        %v5418 = vld [vmem:[%s5020 + $0xbc] sm:$0x1]
        %v5419 = vld [vmem:[%s5020 + $0xc0] sm:$0xf]
        %v5420 = vld [vmem:[%s5020 + $0xc4] sm:$0x1]
        %v5421 = vld [vmem:[%s5020 + $0xc8] sm:$0xf]
        %v5422 = vld [vmem:[%s5020 + $0xcc] sm:$0x1]
        %v5423 = vld [vmem:[%s5020 + $0xd0] sm:$0xf]
        %v5424 = vld [vmem:[%s5020 + $0xd4] sm:$0x1]
        %v5425 = vld [vmem:[%s5020 + $0xd8] sm:$0xf]
        %v5426 = vld [vmem:[%s5020 + $0xdc] sm:$0x1]
        %v5427 = vld [vmem:[%s5020 + $0xf0] sm:$0xf]
        %v5428 = vld [vmem:[%s5020 + $0xf4] sm:$0x1]
        %v5429 = vld [vmem:[%s5020 + $0xf8] sm:$0xf]
        %v5430 = vld [vmem:[%s5020 + $0xfc] sm:$0x1]
        %v5431 = vld [vmem:[%s5020 + $0x100] sm:$0xf]
        %v5432 = vld [vmem:[%s5020 + $0x104] sm:$0x1]
        %v5433 = vld [vmem:[%s5020 + $0x108] sm:$0xf]
        %v5434 = vld [vmem:[%s5020 + $0x10c] sm:$0x1]
        %v5435 = vld [vmem:[%s5020 + $0x110] sm:$0xf]
        %v5436 = vld [vmem:[%s5020 + $0x114] sm:$0x1]
        %v5437 = vld [vmem:[%s5020 + $0x118] sm:$0xf]
        %v5438 = vld [vmem:[%s5020 + $0x11c] sm:$0x1]
        %v5439 = vld [vmem:[%s5020 + $0x120] sm:$0xf]
        %v5440 = vld [vmem:[%s5020 + $0x124] sm:$0x1]
        %v5441 = vld [vmem:[%s5020 + $0x128] sm:$0xf]
        %v5442 = vld [vmem:[%s5020 + $0x12c] sm:$0x1]
        %v5444 = vshrl.u32 %v5379, 16
        %v5446 = vrot.slane %v5444, 4
        %v5447 = vshll.u32 %v5379, 16
        %v5449 = vrot.slane %v5447, 5
        %v5450 = vor.u32 %v5446, %v5449
        %v5451 = vrot.slane %v5450, 4
        %v5453 = vshll.u32 %v5380, 16
        %v5455 = vrot.slane %v5453, 5
        %v5456 = vsel %vm1812, %v5451, %v5455
        %v5458 = vshrl.u32 %v5381, 16
        %v5460 = vrot.slane %v5458, 4
        %v5461 = vshll.u32 %v5381, 16
        %v5463 = vrot.slane %v5461, 5
        %v5464 = vor.u32 %v5460, %v5463
        %v5465 = vrot.slane %v5464, 4
        %v5467 = vshll.u32 %v5382, 16
        %v5469 = vrot.slane %v5467, 5
        %v5470 = vsel %vm1812, %v5465, %v5469
        %v5472 = vshrl.u32 %v5383, 16
        %v5474 = vrot.slane %v5472, 4
        %v5475 = vshll.u32 %v5383, 16
        %v5477 = vrot.slane %v5475, 5
        %v5478 = vor.u32 %v5474, %v5477
        %v5479 = vrot.slane %v5478, 4
        %v5481 = vshll.u32 %v5384, 16
        %v5483 = vrot.slane %v5481, 5
        %v5484 = vsel %vm1812, %v5479, %v5483
        %v5486 = vshrl.u32 %v5385, 16
        %v5488 = vrot.slane %v5486, 4
        %v5489 = vshll.u32 %v5385, 16
        %v5491 = vrot.slane %v5489, 5
        %v5492 = vor.u32 %v5488, %v5491
        %v5493 = vrot.slane %v5492, 4
        %v5495 = vshll.u32 %v5386, 16
        %v5497 = vrot.slane %v5495, 5
        %v5498 = vsel %vm1812, %v5493, %v5497
        %v5500 = vshrl.u32 %v5387, 16
        %v5502 = vrot.slane %v5500, 4
        %v5503 = vshll.u32 %v5387, 16
        %v5505 = vrot.slane %v5503, 5
        %v5506 = vor.u32 %v5502, %v5505
        %v5507 = vrot.slane %v5506, 4
        %v5509 = vshll.u32 %v5388, 16
        %v5511 = vrot.slane %v5509, 5
        %v5512 = vsel %vm1812, %v5507, %v5511
        %v5514 = vshrl.u32 %v5389, 16
        %v5516 = vrot.slane %v5514, 4
        %v5517 = vshll.u32 %v5389, 16
        %v5519 = vrot.slane %v5517, 5
        %v5520 = vor.u32 %v5516, %v5519
        %v5521 = vrot.slane %v5520, 4
        %v5523 = vshll.u32 %v5390, 16
        %v5525 = vrot.slane %v5523, 5
        %v5526 = vsel %vm1812, %v5521, %v5525
        %v5528 = vshrl.u32 %v5391, 16
        %v5530 = vrot.slane %v5528, 4
        %v5531 = vshll.u32 %v5391, 16
        %v5533 = vrot.slane %v5531, 5
        %v5534 = vor.u32 %v5530, %v5533
        %v5535 = vrot.slane %v5534, 4
        %v5537 = vshll.u32 %v5392, 16
        %v5539 = vrot.slane %v5537, 5
        %v5540 = vsel %vm1812, %v5535, %v5539
        %v5542 = vshrl.u32 %v5393, 16
        %v5544 = vrot.slane %v5542, 4
        %v5545 = vshll.u32 %v5393, 16
        %v5547 = vrot.slane %v5545, 5
        %v5548 = vor.u32 %v5544, %v5547
        %v5549 = vrot.slane %v5548, 4
        %v5551 = vshll.u32 %v5394, 16
        %v5553 = vrot.slane %v5551, 5
        %v5554 = vsel %vm1812, %v5549, %v5553
        %v5556 = vshrl.u32 %v5395, 16
        %v5558 = vrot.slane %v5556, 4
        %v5559 = vshll.u32 %v5395, 16
        %v5561 = vrot.slane %v5559, 5
        %v5562 = vor.u32 %v5558, %v5561
        %v5563 = vrot.slane %v5562, 4
        %v5565 = vshll.u32 %v5396, 16
        %v5567 = vrot.slane %v5565, 5
        %v5568 = vsel %vm1812, %v5563, %v5567
        %v5570 = vshrl.u32 %v5397, 16
        %v5572 = vrot.slane %v5570, 4
        %v5573 = vshll.u32 %v5397, 16
        %v5575 = vrot.slane %v5573, 5
        %v5576 = vor.u32 %v5572, %v5575
        %v5577 = vrot.slane %v5576, 4
        %v5579 = vshll.u32 %v5398, 16
        %v5581 = vrot.slane %v5579, 5
        %v5582 = vsel %vm1812, %v5577, %v5581
        %v5584 = vshrl.u32 %v5399, 16
        %v5586 = vrot.slane %v5584, 4
        %v5587 = vshll.u32 %v5399, 16
        %v5589 = vrot.slane %v5587, 5
        %v5590 = vor.u32 %v5586, %v5589
        %v5591 = vrot.slane %v5590, 4
        %v5593 = vshll.u32 %v5400, 16
        %v5595 = vrot.slane %v5593, 5
        %v5596 = vsel %vm1812, %v5591, %v5595
        %v5598 = vshrl.u32 %v5401, 16
        %v5600 = vrot.slane %v5598, 4
        %v5601 = vshll.u32 %v5401, 16
        %v5603 = vrot.slane %v5601, 5
        %v5604 = vor.u32 %v5600, %v5603
        %v5605 = vrot.slane %v5604, 4
        %v5607 = vshll.u32 %v5402, 16
        %v5609 = vrot.slane %v5607, 5
        %v5610 = vsel %vm1812, %v5605, %v5609
        %v5612 = vshrl.u32 %v5403, 16
        %v5614 = vrot.slane %v5612, 4
        %v5615 = vshll.u32 %v5403, 16
        %v5617 = vrot.slane %v5615, 5
        %v5618 = vor.u32 %v5614, %v5617
        %v5619 = vrot.slane %v5618, 4
        %v5621 = vshll.u32 %v5404, 16
        %v5623 = vrot.slane %v5621, 5
        %v5624 = vsel %vm1812, %v5619, %v5623
        %v5626 = vshrl.u32 %v5405, 16
        %v5628 = vrot.slane %v5626, 4
        %v5629 = vshll.u32 %v5405, 16
        %v5631 = vrot.slane %v5629, 5
        %v5632 = vor.u32 %v5628, %v5631
        %v5633 = vrot.slane %v5632, 4
        %v5635 = vshll.u32 %v5406, 16
        %v5637 = vrot.slane %v5635, 5
        %v5638 = vsel %vm1812, %v5633, %v5637
        %v5640 = vshrl.u32 %v5407, 16
        %v5642 = vrot.slane %v5640, 4
        %v5643 = vshll.u32 %v5407, 16
        %v5645 = vrot.slane %v5643, 5
        %v5646 = vor.u32 %v5642, %v5645
        %v5647 = vrot.slane %v5646, 4
        %v5649 = vshll.u32 %v5408, 16
        %v5651 = vrot.slane %v5649, 5
        %v5652 = vsel %vm1812, %v5647, %v5651
        %v5654 = vshrl.u32 %v5409, 16
        %v5656 = vrot.slane %v5654, 4
        %v5657 = vshll.u32 %v5409, 16
        %v5659 = vrot.slane %v5657, 5
        %v5660 = vor.u32 %v5656, %v5659
        %v5661 = vrot.slane %v5660, 4
        %v5663 = vshll.u32 %v5410, 16
        %v5665 = vrot.slane %v5663, 5
        %v5666 = vsel %vm1812, %v5661, %v5665
        %v5668 = vshrl.u32 %v5411, 16
        %v5670 = vrot.slane %v5668, 4
        %v5671 = vshll.u32 %v5411, 16
        %v5673 = vrot.slane %v5671, 5
        %v5674 = vor.u32 %v5670, %v5673
        %v5675 = vrot.slane %v5674, 4
        %v5677 = vshll.u32 %v5412, 16
        %v5679 = vrot.slane %v5677, 5
        %v5680 = vsel %vm1812, %v5675, %v5679
        %v5682 = vshrl.u32 %v5413, 16
        %v5684 = vrot.slane %v5682, 4
        %v5685 = vshll.u32 %v5413, 16
        %v5687 = vrot.slane %v5685, 5
        %v5688 = vor.u32 %v5684, %v5687
        %v5689 = vrot.slane %v5688, 4
        %v5691 = vshll.u32 %v5414, 16
        %v5693 = vrot.slane %v5691, 5
        %v5694 = vsel %vm1812, %v5689, %v5693
        %v5696 = vshrl.u32 %v5415, 16
        %v5698 = vrot.slane %v5696, 4
        %v5699 = vshll.u32 %v5415, 16
        %v5701 = vrot.slane %v5699, 5
        %v5702 = vor.u32 %v5698, %v5701
        %v5703 = vrot.slane %v5702, 4
        %v5705 = vshll.u32 %v5416, 16
        %v5707 = vrot.slane %v5705, 5
        %v5708 = vsel %vm1812, %v5703, %v5707
        %v5710 = vshrl.u32 %v5417, 16
        %v5712 = vrot.slane %v5710, 4
        %v5713 = vshll.u32 %v5417, 16
        %v5715 = vrot.slane %v5713, 5
        %v5716 = vor.u32 %v5712, %v5715
        %v5717 = vrot.slane %v5716, 4
        %v5719 = vshll.u32 %v5418, 16
        %v5721 = vrot.slane %v5719, 5
        %v5722 = vsel %vm1812, %v5717, %v5721
        %v5724 = vshrl.u32 %v5419, 16
        %v5726 = vrot.slane %v5724, 4
        %v5727 = vshll.u32 %v5419, 16
        %v5729 = vrot.slane %v5727, 5
        %v5730 = vor.u32 %v5726, %v5729
        %v5731 = vrot.slane %v5730, 4
        %v5733 = vshll.u32 %v5420, 16
        %v5735 = vrot.slane %v5733, 5
        %v5736 = vsel %vm1812, %v5731, %v5735
        %v5738 = vshrl.u32 %v5421, 16
        %v5740 = vrot.slane %v5738, 4
        %v5741 = vshll.u32 %v5421, 16
        %v5743 = vrot.slane %v5741, 5
        %v5744 = vor.u32 %v5740, %v5743
        %v5745 = vrot.slane %v5744, 4
        %v5747 = vshll.u32 %v5422, 16
        %v5749 = vrot.slane %v5747, 5
        %v5750 = vsel %vm1812, %v5745, %v5749
        %v5752 = vshrl.u32 %v5423, 16
        %v5754 = vrot.slane %v5752, 4
        %v5755 = vshll.u32 %v5423, 16
        %v5757 = vrot.slane %v5755, 5
        %v5758 = vor.u32 %v5754, %v5757
        %v5759 = vrot.slane %v5758, 4
        %v5761 = vshll.u32 %v5424, 16
        %v5763 = vrot.slane %v5761, 5
        %v5764 = vsel %vm1812, %v5759, %v5763
        %v5766 = vshrl.u32 %v5425, 16
        %v5768 = vrot.slane %v5766, 4
        %v5769 = vshll.u32 %v5425, 16
        %v5771 = vrot.slane %v5769, 5
        %v5772 = vor.u32 %v5768, %v5771
        %v5773 = vrot.slane %v5772, 4
        %v5775 = vshll.u32 %v5426, 16
        %v5777 = vrot.slane %v5775, 5
        %v5778 = vsel %vm1812, %v5773, %v5777
        %v5780 = vshrl.u32 %v5427, 16
        %v5782 = vrot.slane %v5780, 4
        %v5783 = vshll.u32 %v5427, 16
        %v5785 = vrot.slane %v5783, 5
        %v5786 = vor.u32 %v5782, %v5785
        %v5787 = vrot.slane %v5786, 4
        %v5789 = vshll.u32 %v5428, 16
        %v5791 = vrot.slane %v5789, 5
        %v5792 = vsel %vm1812, %v5787, %v5791
        %v5794 = vshrl.u32 %v5429, 16
        %v5796 = vrot.slane %v5794, 4
        %v5797 = vshll.u32 %v5429, 16
        %v5799 = vrot.slane %v5797, 5
        %v5800 = vor.u32 %v5796, %v5799
        %v5801 = vrot.slane %v5800, 4
        %v5803 = vshll.u32 %v5430, 16
        %v5805 = vrot.slane %v5803, 5
        %v5806 = vsel %vm1812, %v5801, %v5805
        %v5808 = vshrl.u32 %v5431, 16
        %v5810 = vrot.slane %v5808, 4
        %v5811 = vshll.u32 %v5431, 16
        %v5813 = vrot.slane %v5811, 5
        %v5814 = vor.u32 %v5810, %v5813
        %v5815 = vrot.slane %v5814, 4
        %v5817 = vshll.u32 %v5432, 16
        %v5819 = vrot.slane %v5817, 5
        %v5820 = vsel %vm1812, %v5815, %v5819
        %v5822 = vshrl.u32 %v5433, 16
        %v5824 = vrot.slane %v5822, 4
        %v5825 = vshll.u32 %v5433, 16
        %v5827 = vrot.slane %v5825, 5
        %v5828 = vor.u32 %v5824, %v5827
        %v5829 = vrot.slane %v5828, 4
        %v5831 = vshll.u32 %v5434, 16
        %v5833 = vrot.slane %v5831, 5
        %v5834 = vsel %vm1812, %v5829, %v5833
        %v5836 = vshrl.u32 %v5435, 16
        %v5838 = vrot.slane %v5836, 4
        %v5839 = vshll.u32 %v5435, 16
        %v5841 = vrot.slane %v5839, 5
        %v5842 = vor.u32 %v5838, %v5841
        %v5843 = vrot.slane %v5842, 4
        %v5845 = vshll.u32 %v5436, 16
        %v5847 = vrot.slane %v5845, 5
        %v5848 = vsel %vm1812, %v5843, %v5847
        %v5850 = vshrl.u32 %v5437, 16
        %v5852 = vrot.slane %v5850, 4
        %v5853 = vshll.u32 %v5437, 16
        %v5855 = vrot.slane %v5853, 5
        %v5856 = vor.u32 %v5852, %v5855
        %v5857 = vrot.slane %v5856, 4
        %v5859 = vshll.u32 %v5438, 16
        %v5861 = vrot.slane %v5859, 5
        %v5862 = vsel %vm1812, %v5857, %v5861
        %v5864 = vshrl.u32 %v5439, 16
        %v5866 = vrot.slane %v5864, 4
        %v5867 = vshll.u32 %v5439, 16
        %v5869 = vrot.slane %v5867, 5
        %v5870 = vor.u32 %v5866, %v5869
        %v5871 = vrot.slane %v5870, 4
        %v5873 = vshll.u32 %v5440, 16
        %v5875 = vrot.slane %v5873, 5
        %v5876 = vsel %vm1812, %v5871, %v5875
        %v5878 = vshrl.u32 %v5441, 16
        %v5880 = vrot.slane %v5878, 4
        %v5881 = vshll.u32 %v5441, 16
        %v5883 = vrot.slane %v5881, 5
        %v5884 = vor.u32 %v5880, %v5883
        %v5885 = vrot.slane %v5884, 4
        %v5887 = vshll.u32 %v5442, 16
        %v5889 = vrot.slane %v5887, 5
        %v5890 = vsel %vm1812, %v5885, %v5889
        %s5891 = scalar_lea.vmem %s4, 28
        %v5892 = vld [vmem:[%s5891] sm:$0xf]
        %v5893 = vunpack.c.l.b16 %v5456
        %v5894 = vunpack.c.l.b16 %v5470
        %v5895 = vunpack.c.l.b16 %v5484
        %v5896 = vunpack.c.l.b16 %v5498
        %v5897 = vunpack.c.l.b16 %v5512
        %v5898 = vunpack.c.l.b16 %v5526
        %v5899 = vunpack.c.l.b16 %v5540
        %v5900 = vunpack.c.l.b16 %v5554
        %v5901 = vunpack.c.l.b16 %v5568
        %v5902 = vunpack.c.l.b16 %v5582
        %v5903 = vunpack.c.l.b16 %v5596
        %v5904 = vunpack.c.l.b16 %v5610
        %v5905 = vunpack.c.l.b16 %v5624
        %v5906 = vunpack.c.l.b16 %v5638
        %v5907 = vunpack.c.l.b16 %v5652
        %v5908 = vunpack.c.l.b16 %v5666
        %v5909 = vunpack.c.l.b16 %v5680
        %v5910 = vunpack.c.l.b16 %v5694
        %v5911 = vunpack.c.l.b16 %v5708
        %v5912 = vunpack.c.l.b16 %v5722
        %v5913 = vunpack.c.l.b16 %v5736
        %v5914 = vunpack.c.l.b16 %v5750
        %v5915 = vunpack.c.l.b16 %v5764
        %v5916 = vunpack.c.l.b16 %v5778
        %v5917 = vunpack.c.l.b16 %v5792
        %v5918 = vunpack.c.l.b16 %v5806
        %v5919 = vunpack.c.l.b16 %v5820
        %v5920 = vunpack.c.l.b16 %v5834
        %v5921 = vunpack.c.l.b16 %v5848
        %v5922 = vunpack.c.l.b16 %v5862
        %v5923 = vunpack.c.l.b16 %v5876
        %v5924 = vunpack.c.l.b16 %v5890
        %v5925 = vpack.c.b16 %v5894, %v5893
        %v5926 = vpack.c.b16 %v5896, %v5895
        %v5927 = vpack.c.b16 %v5898, %v5897
        %v5928 = vpack.c.b16 %v5900, %v5899
        %v5929 = vpack.c.b16 %v5902, %v5901
        %v5930 = vpack.c.b16 %v5904, %v5903
        %v5931 = vpack.c.b16 %v5906, %v5905
        %v5932 = vpack.c.b16 %v5908, %v5907
        %v5933 = vpack.c.b16 %v5910, %v5909
        %v5934 = vpack.c.b16 %v5912, %v5911
        %v5935 = vpack.c.b16 %v5914, %v5913
        %v5936 = vpack.c.b16 %v5916, %v5915
        %v5937 = vpack.c.b16 %v5918, %v5917
        %v5938 = vpack.c.b16 %v5920, %v5919
        %v5939 = vpack.c.b16 %v5922, %v5921
        %v5940 = vpack.c.b16 %v5924, %v5923
        %v5942 = vsel %vm2311, %v5925, 0
        %v5945 = vsel %vm2311, %v5926, 0
        %v5948 = vsel %vm2311, %v5927, 0
        %v5951 = vsel %vm2311, %v5928, 0
        %v5954 = vsel %vm2311, %v5929, 0
        %v5957 = vsel %vm2311, %v5930, 0
        %v5960 = vsel %vm2311, %v5931, 0
        %v5963 = vsel %vm2311, %v5932, 0
        %v5966 = vsel %vm2311, %v5933, 0
        %v5969 = vsel %vm2311, %v5934, 0
        %v5972 = vsel %vm2311, %v5935, 0
        %v5975 = vsel %vm2311, %v5936, 0
        %v5978 = vsel %vm2311, %v5937, 0
        %v5981 = vsel %vm2311, %v5938, 0
        %v5984 = vsel %vm2311, %v5939, 0
        %v5987 = vsel %vm2311, %v5940, 0
        %v5990 = vsel %vm2360, %v5892, 0
        %5992 = vmatprep.subr.bf16.mxu0 0
        %5993 = vmatpush1.bf16.msra.mxu0 %v5990
        %5994 = vmatprep.subr.bf16.mxu0 0
        %5995 = vmatpush1.bf16.msra.mxu0 0
        %5996 = vmatprep.subr.bf16.mxu0 0
        %5997 = vmatpush1.bf16.msra.mxu0 0
        %5998 = vmatprep.subr.bf16.mxu0 0
        %5999 = vmatpush1.bf16.msra.mxu0 0
        %6000 = vmatprep.subr.bf16.mxu0 0
        %6001 = vmatpush1.bf16.msra.mxu0 0
        %6002 = vmatprep.subr.bf16.mxu0 0
        %6003 = vmatpush1.bf16.msra.mxu0 0
        %6004 = vmatprep.subr.bf16.mxu0 0
        %6005 = vmatpush1.bf16.msra.mxu0 0
        %6006 = vmatprep.subr.bf16.mxu0 0
        %6007 = vmatpush1.bf16.msra.mxu0 0
        %6008 = vmatprep.subr.bf16.mxu0 0
        %6009 = vmatpush1.bf16.msra.mxu0 0
        %6010 = vmatprep.subr.bf16.mxu0 0
        %6011 = vmatpush1.bf16.msra.mxu0 0
        %6012 = vmatprep.subr.bf16.mxu0 0
        %6013 = vmatpush1.bf16.msra.mxu0 0
        %6014 = vmatprep.subr.bf16.mxu0 0
        %6015 = vmatpush1.bf16.msra.mxu0 0
        %6016 = vmatprep.subr.bf16.mxu0 0
        %6017 = vmatpush1.bf16.msra.mxu0 0
        %6018 = vmatprep.subr.bf16.mxu0 0
        %6019 = vmatpush1.bf16.msra.mxu0 0
        %6020 = vmatprep.subr.bf16.mxu0 0
        %6021 = vmatpush1.bf16.msra.mxu0 0
        %6022 = vmatprep.subr.bf16.mxu0 0
        %6023 = vmatpush1.bf16.msra.mxu0 0
        %6024 = vmatprep.mubr.bf16.mxu0 0
        %6025 = vmatmul.mubr.bf16.gmra.mrb[0].mxu0 %v5942
        %v6026 = vpop.f32.mrb[0].mxu0
        %v6027 = vadd.f32 0.0, %v6026
        %v6028 = vpop.f32.mrb[0].mxu0
        %v6029 = vpop.f32.mrb[0].mxu0
        %v6030 = vadd.f32 0.0, %v6029
        %v6031 = vpop.f32.mrb[0].mxu0
        %6032 = vmatprep.mubr.bf16.mxu0 0
        %6033 = vmatmul.mubr.bf16.gmra.mrb[0].mxu0 %v5945
        %v6034 = vpop.f32.mrb[0].mxu0
        %v6035 = vadd.f32 0.0, %v6034
        %v6036 = vpop.f32.mrb[0].mxu0
        %v6037 = vpop.f32.mrb[0].mxu0
        %v6038 = vadd.f32 0.0, %v6037
        %v6039 = vpop.f32.mrb[0].mxu0
        %6040 = vmatprep.mubr.bf16.mxu0 0
        %6041 = vmatmul.mubr.bf16.gmra.mrb[0].mxu0 %v5948
        %v6042 = vpop.f32.mrb[0].mxu0
        %v6043 = vadd.f32 0.0, %v6042
        %v6044 = vpop.f32.mrb[0].mxu0
        %v6045 = vpop.f32.mrb[0].mxu0
        %v6046 = vadd.f32 0.0, %v6045
        %v6047 = vpop.f32.mrb[0].mxu0
        %6048 = vmatprep.mubr.bf16.mxu0 0
        %6049 = vmatmul.mubr.bf16.gmra.mrb[0].mxu0 %v5951
        %v6050 = vpop.f32.mrb[0].mxu0
        %v6051 = vadd.f32 0.0, %v6050
        %v6052 = vpop.f32.mrb[0].mxu0
        %v6053 = vpop.f32.mrb[0].mxu0
        %v6054 = vadd.f32 0.0, %v6053
        %v6055 = vpop.f32.mrb[0].mxu0
        %6056 = vmatprep.mubr.bf16.mxu0 0
        %6057 = vmatmul.mubr.bf16.gmra.mrb[0].mxu0 %v5954
        %v6058 = vpop.f32.mrb[0].mxu0
        %v6059 = vadd.f32 0.0, %v6058
        %v6060 = vpop.f32.mrb[0].mxu0
        %v6061 = vpop.f32.mrb[0].mxu0
        %v6062 = vadd.f32 0.0, %v6061
        %v6063 = vpop.f32.mrb[0].mxu0
        %6064 = vmatprep.mubr.bf16.mxu0 0
        %6065 = vmatmul.mubr.bf16.gmra.mrb[0].mxu0 %v5957
        %v6066 = vpop.f32.mrb[0].mxu0
        %v6067 = vadd.f32 0.0, %v6066
        %v6068 = vpop.f32.mrb[0].mxu0
        %v6069 = vpop.f32.mrb[0].mxu0
        %v6070 = vadd.f32 0.0, %v6069
        %v6071 = vpop.f32.mrb[0].mxu0
        %6072 = vmatprep.mubr.bf16.mxu0 0
        %6073 = vmatmul.mubr.bf16.gmra.mrb[0].mxu0 %v5960
        %v6074 = vpop.f32.mrb[0].mxu0
        %v6075 = vadd.f32 0.0, %v6074
        %v6076 = vpop.f32.mrb[0].mxu0
        %v6077 = vpop.f32.mrb[0].mxu0
        %v6078 = vadd.f32 0.0, %v6077
        %v6079 = vpop.f32.mrb[0].mxu0
        %6080 = vmatprep.mubr.bf16.mxu0 0
        %6081 = vmatmul.mubr.bf16.gmra.mrb[0].mxu0 %v5963
        %v6082 = vpop.f32.mrb[0].mxu0
        %v6083 = vadd.f32 0.0, %v6082
        %v6084 = vpop.f32.mrb[0].mxu0
        %v6085 = vpop.f32.mrb[0].mxu0
        %v6086 = vadd.f32 0.0, %v6085
        %v6087 = vpop.f32.mrb[0].mxu0
        %6088 = vmatprep.mubr.bf16.mxu0 0
        %6089 = vmatmul.mubr.bf16.gmra.mrb[0].mxu0 %v5966
        %v6090 = vpop.f32.mrb[0].mxu0
        %v6091 = vadd.f32 0.0, %v6090
        %v6092 = vpop.f32.mrb[0].mxu0
        %v6093 = vpop.f32.mrb[0].mxu0
        %v6094 = vadd.f32 0.0, %v6093
        %v6095 = vpop.f32.mrb[0].mxu0
        %6096 = vmatprep.mubr.bf16.mxu0 0
        %6097 = vmatmul.mubr.bf16.gmra.mrb[0].mxu0 %v5969
        %v6098 = vpop.f32.mrb[0].mxu0
        %v6099 = vadd.f32 0.0, %v6098
        %v6100 = vpop.f32.mrb[0].mxu0
        %v6101 = vpop.f32.mrb[0].mxu0
        %v6102 = vadd.f32 0.0, %v6101
        %v6103 = vpop.f32.mrb[0].mxu0
        %6104 = vmatprep.mubr.bf16.mxu0 0
        %6105 = vmatmul.mubr.bf16.gmra.mrb[0].mxu0 %v5972
        %v6106 = vpop.f32.mrb[0].mxu0
        %v6107 = vadd.f32 0.0, %v6106
        %v6108 = vpop.f32.mrb[0].mxu0
        %v6109 = vpop.f32.mrb[0].mxu0
        %v6110 = vadd.f32 0.0, %v6109
        %v6111 = vpop.f32.mrb[0].mxu0
        %6112 = vmatprep.mubr.bf16.mxu0 0
        %6113 = vmatmul.mubr.bf16.gmra.mrb[0].mxu0 %v5975
        %v6114 = vpop.f32.mrb[0].mxu0
        %v6115 = vadd.f32 0.0, %v6114
        %v6116 = vpop.f32.mrb[0].mxu0
        %v6117 = vpop.f32.mrb[0].mxu0
        %v6118 = vadd.f32 0.0, %v6117
        %v6119 = vpop.f32.mrb[0].mxu0
        %6120 = vmatprep.mubr.bf16.mxu0 0
        %6121 = vmatmul.mubr.bf16.gmra.mrb[0].mxu0 %v5978
        %v6122 = vpop.f32.mrb[0].mxu0
        %v6123 = vadd.f32 0.0, %v6122
        %v6124 = vpop.f32.mrb[0].mxu0
        %v6125 = vpop.f32.mrb[0].mxu0
        %v6126 = vadd.f32 0.0, %v6125
        %v6127 = vpop.f32.mrb[0].mxu0
        %6128 = vmatprep.mubr.bf16.mxu0 0
        %6129 = vmatmul.mubr.bf16.gmra.mrb[0].mxu0 %v5981
        %v6130 = vpop.f32.mrb[0].mxu0
        %v6131 = vadd.f32 0.0, %v6130
        %v6132 = vpop.f32.mrb[0].mxu0
        %v6133 = vpop.f32.mrb[0].mxu0
        %v6134 = vadd.f32 0.0, %v6133
        %v6135 = vpop.f32.mrb[0].mxu0
        %6136 = vmatprep.mubr.bf16.mxu0 0
        %6137 = vmatmul.mubr.bf16.gmra.mrb[0].mxu0 %v5984
        %v6138 = vpop.f32.mrb[0].mxu0
        %v6139 = vadd.f32 0.0, %v6138
        %v6140 = vpop.f32.mrb[0].mxu0
        %v6141 = vpop.f32.mrb[0].mxu0
        %v6142 = vadd.f32 0.0, %v6141
        %v6143 = vpop.f32.mrb[0].mxu0
        %6144 = vmatprep.mubr.bf16.mxu0 0
        %6145 = vmatmul.mubr.bf16.gmra.mrb[0].mxu0 %v5987
        %v6146 = vpop.f32.mrb[0].mxu0
        %v6147 = vadd.f32 0.0, %v6146
        %v6148 = vpop.f32.mrb[0].mxu0
        %v6149 = vpop.f32.mrb[0].mxu0
        %v6150 = vadd.f32 0.0, %v6149
        %v6151 = vpop.f32.mrb[0].mxu0
        %6152 = vdwg.mxu0
        %v6153 = vadd.f32 %v5347, %v6027
        %v6154 = vadd.f32 %v5348, %v6030
        %v6155 = vadd.f32 %v5349, %v6035
        %v6156 = vadd.f32 %v5350, %v6038
        %v6157 = vadd.f32 %v5351, %v6043
        %v6158 = vadd.f32 %v5352, %v6046
        %v6159 = vadd.f32 %v5353, %v6051
        %v6160 = vadd.f32 %v5354, %v6054
        %v6161 = vadd.f32 %v5355, %v6059
        %v6162 = vadd.f32 %v5356, %v6062
        %v6163 = vadd.f32 %v5357, %v6067
        %v6164 = vadd.f32 %v5358, %v6070
        %v6165 = vadd.f32 %v5359, %v6075
        %v6166 = vadd.f32 %v5360, %v6078
        %v6167 = vadd.f32 %v5361, %v6083
        %v6168 = vadd.f32 %v5362, %v6086
        %v6169 = vadd.f32 %v5363, %v6091
        %v6170 = vadd.f32 %v5364, %v6094
        %v6171 = vadd.f32 %v5365, %v6099
        %v6172 = vadd.f32 %v5366, %v6102
        %v6173 = vadd.f32 %v5367, %v6107
        %v6174 = vadd.f32 %v5368, %v6110
        %v6175 = vadd.f32 %v5369, %v6115
        %v6176 = vadd.f32 %v5370, %v6118
        %v6177 = vadd.f32 %v5371, %v6123
        %v6178 = vadd.f32 %v5372, %v6126
        %v6179 = vadd.f32 %v5373, %v6131
        %v6180 = vadd.f32 %v5374, %v6134
        %v6181 = vadd.f32 %v5375, %v6139
        %v6182 = vadd.f32 %v5376, %v6142
        %v6183 = vadd.f32 %v5377, %v6147
        %v6184 = vadd.f32 %v5378, %v6150
        %v6185 = vld [vmem:[%s5020] sm:$0xe]
        %v6186 = vld [vmem:[%s5020 + $0x8] sm:$0xe]
        %v6187 = vld [vmem:[%s5020 + $0x10] sm:$0xe]
        %v6188 = vld [vmem:[%s5020 + $0x18] sm:$0xe]
        %v6189 = vld [vmem:[%s5020 + $0x20] sm:$0xe]
        %v6190 = vld [vmem:[%s5020 + $0x28] sm:$0xe]
        %v6191 = vld [vmem:[%s5020 + $0x30] sm:$0xe]
        %v6192 = vld [vmem:[%s5020 + $0x38] sm:$0xe]
        %v6193 = vld [vmem:[%s5020 + $0x50] sm:$0xe]
        %v6194 = vld [vmem:[%s5020 + $0x58] sm:$0xe]
        %v6195 = vld [vmem:[%s5020 + $0x60] sm:$0xe]
        %v6196 = vld [vmem:[%s5020 + $0x68] sm:$0xe]
        %v6197 = vld [vmem:[%s5020 + $0x70] sm:$0xe]
        %v6198 = vld [vmem:[%s5020 + $0x78] sm:$0xe]
        %v6199 = vld [vmem:[%s5020 + $0x80] sm:$0xe]
        %v6200 = vld [vmem:[%s5020 + $0x88] sm:$0xe]
        %v6201 = vld [vmem:[%s5020 + $0xa0] sm:$0xe]
        %v6202 = vld [vmem:[%s5020 + $0xa8] sm:$0xe]
        %v6203 = vld [vmem:[%s5020 + $0xb0] sm:$0xe]
        %v6204 = vld [vmem:[%s5020 + $0xb8] sm:$0xe]
        %v6205 = vld [vmem:[%s5020 + $0xc0] sm:$0xe]
        %v6206 = vld [vmem:[%s5020 + $0xc8] sm:$0xe]
        %v6207 = vld [vmem:[%s5020 + $0xd0] sm:$0xe]
        %v6208 = vld [vmem:[%s5020 + $0xd8] sm:$0xe]
        %v6209 = vld [vmem:[%s5020 + $0xf0] sm:$0xe]
        %v6210 = vld [vmem:[%s5020 + $0xf8] sm:$0xe]
        %v6211 = vld [vmem:[%s5020 + $0x100] sm:$0xe]
        %v6212 = vld [vmem:[%s5020 + $0x108] sm:$0xe]
        %v6213 = vld [vmem:[%s5020 + $0x110] sm:$0xe]
        %v6214 = vld [vmem:[%s5020 + $0x118] sm:$0xe]
        %v6215 = vld [vmem:[%s5020 + $0x120] sm:$0xe]
        %v6216 = vld [vmem:[%s5020 + $0x128] sm:$0xe]
        %v6281 = vrot.slane %v6185, 5
        %v6282 = vrot.slane %v6281, 4
        %v6283 = vrot.slane %v5380, 5
        %v6284 = vsel %vm2915, %v6282, %v6283
        %v6285 = vrot.slane %v6186, 5
        %v6286 = vrot.slane %v6285, 4
        %v6287 = vrot.slane %v5382, 5
        %v6288 = vsel %vm2915, %v6286, %v6287
        %v6289 = vrot.slane %v6187, 5
        %v6290 = vrot.slane %v6289, 4
        %v6291 = vrot.slane %v5384, 5
        %v6292 = vsel %vm2915, %v6290, %v6291
        %v6293 = vrot.slane %v6188, 5
        %v6294 = vrot.slane %v6293, 4
        %v6295 = vrot.slane %v5386, 5
        %v6296 = vsel %vm2915, %v6294, %v6295
        %v6297 = vrot.slane %v6189, 5
        %v6298 = vrot.slane %v6297, 4
        %v6299 = vrot.slane %v5388, 5
        %v6300 = vsel %vm2915, %v6298, %v6299
        %v6301 = vrot.slane %v6190, 5
        %v6302 = vrot.slane %v6301, 4
        %v6303 = vrot.slane %v5390, 5
        %v6304 = vsel %vm2915, %v6302, %v6303
        %v6305 = vrot.slane %v6191, 5
        %v6306 = vrot.slane %v6305, 4
        %v6307 = vrot.slane %v5392, 5
        %v6308 = vsel %vm2915, %v6306, %v6307
        %v6309 = vrot.slane %v6192, 5
        %v6310 = vrot.slane %v6309, 4
        %v6311 = vrot.slane %v5394, 5
        %v6312 = vsel %vm2915, %v6310, %v6311
        %v6313 = vrot.slane %v6193, 5
        %v6314 = vrot.slane %v6313, 4
        %v6315 = vrot.slane %v5396, 5
        %v6316 = vsel %vm2915, %v6314, %v6315
        %v6317 = vrot.slane %v6194, 5
        %v6318 = vrot.slane %v6317, 4
        %v6319 = vrot.slane %v5398, 5
        %v6320 = vsel %vm2915, %v6318, %v6319
        %v6321 = vrot.slane %v6195, 5
        %v6322 = vrot.slane %v6321, 4
        %v6323 = vrot.slane %v5400, 5
        %v6324 = vsel %vm2915, %v6322, %v6323
        %v6325 = vrot.slane %v6196, 5
        %v6326 = vrot.slane %v6325, 4
        %v6327 = vrot.slane %v5402, 5
        %v6328 = vsel %vm2915, %v6326, %v6327
        %v6329 = vrot.slane %v6197, 5
        %v6330 = vrot.slane %v6329, 4
        %v6331 = vrot.slane %v5404, 5
        %v6332 = vsel %vm2915, %v6330, %v6331
        %v6333 = vrot.slane %v6198, 5
        %v6334 = vrot.slane %v6333, 4
        %v6335 = vrot.slane %v5406, 5
        %v6336 = vsel %vm2915, %v6334, %v6335
        %v6337 = vrot.slane %v6199, 5
        %v6338 = vrot.slane %v6337, 4
        %v6339 = vrot.slane %v5408, 5
        %v6340 = vsel %vm2915, %v6338, %v6339
        %v6341 = vrot.slane %v6200, 5
        %v6342 = vrot.slane %v6341, 4
        %v6343 = vrot.slane %v5410, 5
        %v6344 = vsel %vm2915, %v6342, %v6343
        %v6345 = vrot.slane %v6201, 5
        %v6346 = vrot.slane %v6345, 4
        %v6347 = vrot.slane %v5412, 5
        %v6348 = vsel %vm2915, %v6346, %v6347
        %v6349 = vrot.slane %v6202, 5
        %v6350 = vrot.slane %v6349, 4
        %v6351 = vrot.slane %v5414, 5
        %v6352 = vsel %vm2915, %v6350, %v6351
        %v6353 = vrot.slane %v6203, 5
        %v6354 = vrot.slane %v6353, 4
        %v6355 = vrot.slane %v5416, 5
        %v6356 = vsel %vm2915, %v6354, %v6355
        %v6357 = vrot.slane %v6204, 5
        %v6358 = vrot.slane %v6357, 4
        %v6359 = vrot.slane %v5418, 5
        %v6360 = vsel %vm2915, %v6358, %v6359
        %v6361 = vrot.slane %v6205, 5
        %v6362 = vrot.slane %v6361, 4
        %v6363 = vrot.slane %v5420, 5
        %v6364 = vsel %vm2915, %v6362, %v6363
        %v6365 = vrot.slane %v6206, 5
        %v6366 = vrot.slane %v6365, 4
        %v6367 = vrot.slane %v5422, 5
        %v6368 = vsel %vm2915, %v6366, %v6367
        %v6369 = vrot.slane %v6207, 5
        %v6370 = vrot.slane %v6369, 4
        %v6371 = vrot.slane %v5424, 5
        %v6372 = vsel %vm2915, %v6370, %v6371
        %v6373 = vrot.slane %v6208, 5
        %v6374 = vrot.slane %v6373, 4
        %v6375 = vrot.slane %v5426, 5
        %v6376 = vsel %vm2915, %v6374, %v6375
        %v6377 = vrot.slane %v6209, 5
        %v6378 = vrot.slane %v6377, 4
        %v6379 = vrot.slane %v5428, 5
        %v6380 = vsel %vm2915, %v6378, %v6379
        %v6381 = vrot.slane %v6210, 5
        %v6382 = vrot.slane %v6381, 4
        %v6383 = vrot.slane %v5430, 5
        %v6384 = vsel %vm2915, %v6382, %v6383
        %v6385 = vrot.slane %v6211, 5
        %v6386 = vrot.slane %v6385, 4
        %v6387 = vrot.slane %v5432, 5
        %v6388 = vsel %vm2915, %v6386, %v6387
        %v6389 = vrot.slane %v6212, 5
        %v6390 = vrot.slane %v6389, 4
        %v6391 = vrot.slane %v5434, 5
        %v6392 = vsel %vm2915, %v6390, %v6391
        %v6393 = vrot.slane %v6213, 5
        %v6394 = vrot.slane %v6393, 4
        %v6395 = vrot.slane %v5436, 5
        %v6396 = vsel %vm2915, %v6394, %v6395
        %v6397 = vrot.slane %v6214, 5
        %v6398 = vrot.slane %v6397, 4
        %v6399 = vrot.slane %v5438, 5
        %v6400 = vsel %vm2915, %v6398, %v6399
        %v6401 = vrot.slane %v6215, 5
        %v6402 = vrot.slane %v6401, 4
        %v6403 = vrot.slane %v5440, 5
        %v6404 = vsel %vm2915, %v6402, %v6403
        %v6405 = vrot.slane %v6216, 5
        %v6406 = vrot.slane %v6405, 4
        %v6407 = vrot.slane %v5442, 5
        %v6408 = vsel %vm2915, %v6406, %v6407
        %s6409 = scalar_lea.vmem %s4, 32
        %v6410 = vld [vmem:[%s6409] sm:$0xf]
        %v6411 = vunpack.c.l.b16 %v6284
        %v6412 = vunpack.c.l.b16 %v6288
        %v6413 = vunpack.c.l.b16 %v6292
        %v6414 = vunpack.c.l.b16 %v6296
        %v6415 = vunpack.c.l.b16 %v6300
        %v6416 = vunpack.c.l.b16 %v6304
        %v6417 = vunpack.c.l.b16 %v6308
        %v6418 = vunpack.c.l.b16 %v6312
        %v6419 = vunpack.c.l.b16 %v6316
        %v6420 = vunpack.c.l.b16 %v6320
        %v6421 = vunpack.c.l.b16 %v6324
        %v6422 = vunpack.c.l.b16 %v6328
        %v6423 = vunpack.c.l.b16 %v6332
        %v6424 = vunpack.c.l.b16 %v6336
        %v6425 = vunpack.c.l.b16 %v6340
        %v6426 = vunpack.c.l.b16 %v6344
        %v6427 = vunpack.c.l.b16 %v6348
        %v6428 = vunpack.c.l.b16 %v6352
        %v6429 = vunpack.c.l.b16 %v6356
        %v6430 = vunpack.c.l.b16 %v6360
        %v6431 = vunpack.c.l.b16 %v6364
        %v6432 = vunpack.c.l.b16 %v6368
        %v6433 = vunpack.c.l.b16 %v6372
        %v6434 = vunpack.c.l.b16 %v6376
        %v6435 = vunpack.c.l.b16 %v6380
        %v6436 = vunpack.c.l.b16 %v6384
        %v6437 = vunpack.c.l.b16 %v6388
        %v6438 = vunpack.c.l.b16 %v6392
        %v6439 = vunpack.c.l.b16 %v6396
        %v6440 = vunpack.c.l.b16 %v6400
        %v6441 = vunpack.c.l.b16 %v6404
        %v6442 = vunpack.c.l.b16 %v6408
        %v6443 = vpack.c.b16 %v6412, %v6411
        %v6444 = vpack.c.b16 %v6414, %v6413
        %v6445 = vpack.c.b16 %v6416, %v6415
        %v6446 = vpack.c.b16 %v6418, %v6417
        %v6447 = vpack.c.b16 %v6420, %v6419
        %v6448 = vpack.c.b16 %v6422, %v6421
        %v6449 = vpack.c.b16 %v6424, %v6423
        %v6450 = vpack.c.b16 %v6426, %v6425
        %v6451 = vpack.c.b16 %v6428, %v6427
        %v6452 = vpack.c.b16 %v6430, %v6429
        %v6453 = vpack.c.b16 %v6432, %v6431
        %v6454 = vpack.c.b16 %v6434, %v6433
        %v6455 = vpack.c.b16 %v6436, %v6435
        %v6456 = vpack.c.b16 %v6438, %v6437
        %v6457 = vpack.c.b16 %v6440, %v6439
        %v6458 = vpack.c.b16 %v6442, %v6441
        %v6460 = vsel %vm2311, %v6443, 0
        %v6463 = vsel %vm2311, %v6444, 0
        %v6466 = vsel %vm2311, %v6445, 0
        %v6469 = vsel %vm2311, %v6446, 0
        %v6472 = vsel %vm2311, %v6447, 0
        %v6475 = vsel %vm2311, %v6448, 0
        %v6478 = vsel %vm2311, %v6449, 0
        %v6481 = vsel %vm2311, %v6450, 0
        %v6484 = vsel %vm2311, %v6451, 0
        %v6487 = vsel %vm2311, %v6452, 0
        %v6490 = vsel %vm2311, %v6453, 0
        %v6493 = vsel %vm2311, %v6454, 0
        %v6496 = vsel %vm2311, %v6455, 0
        %v6499 = vsel %vm2311, %v6456, 0
        %v6502 = vsel %vm2311, %v6457, 0
        %v6505 = vsel %vm2311, %v6458, 0
        %v6508 = vsel %vm2360, %v6410, 0
        %6510 = vmatprep.subr.bf16.mxu0 0
        %6511 = vmatpush1.bf16.msra.mxu0 %v6508
        %6512 = vmatprep.subr.bf16.mxu0 0
        %6513 = vmatpush1.bf16.msra.mxu0 0
        %6514 = vmatprep.subr.bf16.mxu0 0
        %6515 = vmatpush1.bf16.msra.mxu0 0
        %6516 = vmatprep.subr.bf16.mxu0 0
        %6517 = vmatpush1.bf16.msra.mxu0 0
        %6518 = vmatprep.subr.bf16.mxu0 0
        %6519 = vmatpush1.bf16.msra.mxu0 0
        %6520 = vmatprep.subr.bf16.mxu0 0
        %6521 = vmatpush1.bf16.msra.mxu0 0
        %6522 = vmatprep.subr.bf16.mxu0 0
        %6523 = vmatpush1.bf16.msra.mxu0 0
        %6524 = vmatprep.subr.bf16.mxu0 0
        %6525 = vmatpush1.bf16.msra.mxu0 0
        %6526 = vmatprep.subr.bf16.mxu0 0
        %6527 = vmatpush1.bf16.msra.mxu0 0
        %6528 = vmatprep.subr.bf16.mxu0 0
        %6529 = vmatpush1.bf16.msra.mxu0 0
        %6530 = vmatprep.subr.bf16.mxu0 0
        %6531 = vmatpush1.bf16.msra.mxu0 0
        %6532 = vmatprep.subr.bf16.mxu0 0
        %6533 = vmatpush1.bf16.msra.mxu0 0
        %6534 = vmatprep.subr.bf16.mxu0 0
        %6535 = vmatpush1.bf16.msra.mxu0 0
        %6536 = vmatprep.subr.bf16.mxu0 0
        %6537 = vmatpush1.bf16.msra.mxu0 0
        %6538 = vmatprep.subr.bf16.mxu0 0
        %6539 = vmatpush1.bf16.msra.mxu0 0
        %6540 = vmatprep.subr.bf16.mxu0 0
        %6541 = vmatpush1.bf16.msra.mxu0 0
        %6542 = vmatprep.mubr.bf16.mxu0 0
        %6543 = vmatmul.mubr.bf16.gmra.mrb[0].mxu0 %v6460
        %v6544 = vpop.f32.mrb[0].mxu0
        %v6545 = vadd.f32 0.0, %v6544
        %v6546 = vpop.f32.mrb[0].mxu0
        %v6547 = vpop.f32.mrb[0].mxu0
        %v6548 = vadd.f32 0.0, %v6547
        %v6549 = vpop.f32.mrb[0].mxu0
        %6550 = vmatprep.mubr.bf16.mxu0 0
        %6551 = vmatmul.mubr.bf16.gmra.mrb[0].mxu0 %v6463
        %v6552 = vpop.f32.mrb[0].mxu0
        %v6553 = vadd.f32 0.0, %v6552
        %v6554 = vpop.f32.mrb[0].mxu0
        %v6555 = vpop.f32.mrb[0].mxu0
        %v6556 = vadd.f32 0.0, %v6555
        %v6557 = vpop.f32.mrb[0].mxu0
        %6558 = vmatprep.mubr.bf16.mxu0 0
        %6559 = vmatmul.mubr.bf16.gmra.mrb[0].mxu0 %v6466
        %v6560 = vpop.f32.mrb[0].mxu0
        %v6561 = vadd.f32 0.0, %v6560
        %v6562 = vpop.f32.mrb[0].mxu0
        %v6563 = vpop.f32.mrb[0].mxu0
        %v6564 = vadd.f32 0.0, %v6563
        %v6565 = vpop.f32.mrb[0].mxu0
        %6566 = vmatprep.mubr.bf16.mxu0 0
        %6567 = vmatmul.mubr.bf16.gmra.mrb[0].mxu0 %v6469
        %v6568 = vpop.f32.mrb[0].mxu0
        %v6569 = vadd.f32 0.0, %v6568
        %v6570 = vpop.f32.mrb[0].mxu0
        %v6571 = vpop.f32.mrb[0].mxu0
        %v6572 = vadd.f32 0.0, %v6571
        %v6573 = vpop.f32.mrb[0].mxu0
        %6574 = vmatprep.mubr.bf16.mxu0 0
        %6575 = vmatmul.mubr.bf16.gmra.mrb[0].mxu0 %v6472
        %v6576 = vpop.f32.mrb[0].mxu0
        %v6577 = vadd.f32 0.0, %v6576
        %v6578 = vpop.f32.mrb[0].mxu0
        %v6579 = vpop.f32.mrb[0].mxu0
        %v6580 = vadd.f32 0.0, %v6579
        %v6581 = vpop.f32.mrb[0].mxu0
        %6582 = vmatprep.mubr.bf16.mxu0 0
        %6583 = vmatmul.mubr.bf16.gmra.mrb[0].mxu0 %v6475
        %v6584 = vpop.f32.mrb[0].mxu0
        %v6585 = vadd.f32 0.0, %v6584
        %v6586 = vpop.f32.mrb[0].mxu0
        %v6587 = vpop.f32.mrb[0].mxu0
        %v6588 = vadd.f32 0.0, %v6587
        %v6589 = vpop.f32.mrb[0].mxu0
        %6590 = vmatprep.mubr.bf16.mxu0 0
        %6591 = vmatmul.mubr.bf16.gmra.mrb[0].mxu0 %v6478
        %v6592 = vpop.f32.mrb[0].mxu0
        %v6593 = vadd.f32 0.0, %v6592
        %v6594 = vpop.f32.mrb[0].mxu0
        %v6595 = vpop.f32.mrb[0].mxu0
        %v6596 = vadd.f32 0.0, %v6595
        %v6597 = vpop.f32.mrb[0].mxu0
        %6598 = vmatprep.mubr.bf16.mxu0 0
        %6599 = vmatmul.mubr.bf16.gmra.mrb[0].mxu0 %v6481
        %v6600 = vpop.f32.mrb[0].mxu0
        %v6601 = vadd.f32 0.0, %v6600
        %v6602 = vpop.f32.mrb[0].mxu0
        %v6603 = vpop.f32.mrb[0].mxu0
        %v6604 = vadd.f32 0.0, %v6603
        %v6605 = vpop.f32.mrb[0].mxu0
        %6606 = vmatprep.mubr.bf16.mxu0 0
        %6607 = vmatmul.mubr.bf16.gmra.mrb[0].mxu0 %v6484
        %v6608 = vpop.f32.mrb[0].mxu0
        %v6609 = vadd.f32 0.0, %v6608
        %v6610 = vpop.f32.mrb[0].mxu0
        %v6611 = vpop.f32.mrb[0].mxu0
        %v6612 = vadd.f32 0.0, %v6611
        %v6613 = vpop.f32.mrb[0].mxu0
        %6614 = vmatprep.mubr.bf16.mxu0 0
        %6615 = vmatmul.mubr.bf16.gmra.mrb[0].mxu0 %v6487
        %v6616 = vpop.f32.mrb[0].mxu0
        %v6617 = vadd.f32 0.0, %v6616
        %v6618 = vpop.f32.mrb[0].mxu0
        %v6619 = vpop.f32.mrb[0].mxu0
        %v6620 = vadd.f32 0.0, %v6619
        %v6621 = vpop.f32.mrb[0].mxu0
        %6622 = vmatprep.mubr.bf16.mxu0 0
        %6623 = vmatmul.mubr.bf16.gmra.mrb[0].mxu0 %v6490
        %v6624 = vpop.f32.mrb[0].mxu0
        %v6625 = vadd.f32 0.0, %v6624
        %v6626 = vpop.f32.mrb[0].mxu0
        %v6627 = vpop.f32.mrb[0].mxu0
        %v6628 = vadd.f32 0.0, %v6627
        %v6629 = vpop.f32.mrb[0].mxu0
        %6630 = vmatprep.mubr.bf16.mxu0 0
        %6631 = vmatmul.mubr.bf16.gmra.mrb[0].mxu0 %v6493
        %v6632 = vpop.f32.mrb[0].mxu0
        %v6633 = vadd.f32 0.0, %v6632
        %v6634 = vpop.f32.mrb[0].mxu0
        %v6635 = vpop.f32.mrb[0].mxu0
        %v6636 = vadd.f32 0.0, %v6635
        %v6637 = vpop.f32.mrb[0].mxu0
        %6638 = vmatprep.mubr.bf16.mxu0 0
        %6639 = vmatmul.mubr.bf16.gmra.mrb[0].mxu0 %v6496
        %v6640 = vpop.f32.mrb[0].mxu0
        %v6641 = vadd.f32 0.0, %v6640
        %v6642 = vpop.f32.mrb[0].mxu0
        %v6643 = vpop.f32.mrb[0].mxu0
        %v6644 = vadd.f32 0.0, %v6643
        %v6645 = vpop.f32.mrb[0].mxu0
        %6646 = vmatprep.mubr.bf16.mxu0 0
        %6647 = vmatmul.mubr.bf16.gmra.mrb[0].mxu0 %v6499
        %v6648 = vpop.f32.mrb[0].mxu0
        %v6649 = vadd.f32 0.0, %v6648
        %v6650 = vpop.f32.mrb[0].mxu0
        %v6651 = vpop.f32.mrb[0].mxu0
        %v6652 = vadd.f32 0.0, %v6651
        %v6653 = vpop.f32.mrb[0].mxu0
        %6654 = vmatprep.mubr.bf16.mxu0 0
        %6655 = vmatmul.mubr.bf16.gmra.mrb[0].mxu0 %v6502
        %v6656 = vpop.f32.mrb[0].mxu0
        %v6657 = vadd.f32 0.0, %v6656
        %v6658 = vpop.f32.mrb[0].mxu0
        %v6659 = vpop.f32.mrb[0].mxu0
        %v6660 = vadd.f32 0.0, %v6659
        %v6661 = vpop.f32.mrb[0].mxu0
        %6662 = vmatprep.mubr.bf16.mxu0 0
        %6663 = vmatmul.mubr.bf16.gmra.mrb[0].mxu0 %v6505
        %v6664 = vpop.f32.mrb[0].mxu0
        %v6665 = vadd.f32 0.0, %v6664
        %v6666 = vpop.f32.mrb[0].mxu0
        %v6667 = vpop.f32.mrb[0].mxu0
        %v6668 = vadd.f32 0.0, %v6667
        %v6669 = vpop.f32.mrb[0].mxu0
        %6670 = vdwg.mxu0
        %v6671 = vadd.f32 %v6153, %v6545
        %v6672 = vadd.f32 %v6154, %v6548
        %v6673 = vadd.f32 %v6155, %v6553
        %v6674 = vadd.f32 %v6156, %v6556
        %v6675 = vadd.f32 %v6157, %v6561
        %v6676 = vadd.f32 %v6158, %v6564
        %v6677 = vadd.f32 %v6159, %v6569
        %v6678 = vadd.f32 %v6160, %v6572
        %v6679 = vadd.f32 %v6161, %v6577
        %v6680 = vadd.f32 %v6162, %v6580
        %v6681 = vadd.f32 %v6163, %v6585
        %v6682 = vadd.f32 %v6164, %v6588
        %v6683 = vadd.f32 %v6165, %v6593
        %v6684 = vadd.f32 %v6166, %v6596
        %v6685 = vadd.f32 %v6167, %v6601
        %v6686 = vadd.f32 %v6168, %v6604
        %v6687 = vadd.f32 %v6169, %v6609
        %v6688 = vadd.f32 %v6170, %v6612
        %v6689 = vadd.f32 %v6171, %v6617
        %v6690 = vadd.f32 %v6172, %v6620
        %v6691 = vadd.f32 %v6173, %v6625
        %v6692 = vadd.f32 %v6174, %v6628
        %v6693 = vadd.f32 %v6175, %v6633
        %v6694 = vadd.f32 %v6176, %v6636
        %v6695 = vadd.f32 %v6177, %v6641
        %v6696 = vadd.f32 %v6178, %v6644
        %v6697 = vadd.f32 %v6179, %v6649
        %v6698 = vadd.f32 %v6180, %v6652
        %v6699 = vadd.f32 %v6181, %v6657
        %v6700 = vadd.f32 %v6182, %v6660
        %v6701 = vadd.f32 %v6183, %v6665
        %v6702 = vadd.f32 %v6184, %v6668
        %v6703 = vld [vmem:[%s5] sm:$0x1]
        %v6705 = vlaneseq
        %v6706 = vshrl.u32 %v6705, 7
        %v6707 = vsub.s32 0, %v6706
        %v6708 = vrot.slane %v6703, %v6707
        %v6710 = vmul.f32 %v6671, %v6708
        %v6711 = vmul.f32 %v6672, %v6708
        %v6712 = vmul.f32 %v6673, %v6708
        %v6713 = vmul.f32 %v6674, %v6708
        %v6714 = vmul.f32 %v6675, %v6708
        %v6715 = vmul.f32 %v6676, %v6708
        %v6716 = vmul.f32 %v6677, %v6708
        %v6717 = vmul.f32 %v6678, %v6708
        %v6718 = vmul.f32 %v6679, %v6708
        %v6719 = vmul.f32 %v6680, %v6708
        %v6720 = vmul.f32 %v6681, %v6708
        %v6721 = vmul.f32 %v6682, %v6708
        %v6722 = vmul.f32 %v6683, %v6708
        %v6723 = vmul.f32 %v6684, %v6708
        %v6724 = vmul.f32 %v6685, %v6708
        %v6725 = vmul.f32 %v6686, %v6708
        %v6726 = vmul.f32 %v6687, %v6708
        %v6727 = vmul.f32 %v6688, %v6708
        %v6728 = vmul.f32 %v6689, %v6708
        %v6729 = vmul.f32 %v6690, %v6708
        %v6730 = vmul.f32 %v6691, %v6708
        %v6731 = vmul.f32 %v6692, %v6708
        %v6732 = vmul.f32 %v6693, %v6708
        %v6733 = vmul.f32 %v6694, %v6708
        %v6734 = vmul.f32 %v6695, %v6708
        %v6735 = vmul.f32 %v6696, %v6708
        %v6736 = vmul.f32 %v6697, %v6708
        %v6737 = vmul.f32 %v6698, %v6708
        %v6738 = vmul.f32 %v6699, %v6708
        %v6739 = vmul.f32 %v6700, %v6708
        %v6740 = vmul.f32 %v6701, %v6708
        %v6741 = vmul.f32 %v6702, %v6708
        %v6742 = vld [vmem:[%s6] sm:$0x1]
        %v6744 = vlaneseq
        %v6745 = vshrl.u32 %v6744, 7
        %v6746 = vsub.s32 0, %v6745
        %v6747 = vrot.slane %v6742, %v6746
        %v6749 = vadd.f32 %v6710, %v6747
        %v6750 = vadd.f32 %v6711, %v6747
        %v6751 = vadd.f32 %v6712, %v6747
        %v6752 = vadd.f32 %v6713, %v6747
        %v6753 = vadd.f32 %v6714, %v6747
        %v6754 = vadd.f32 %v6715, %v6747
        %v6755 = vadd.f32 %v6716, %v6747
        %v6756 = vadd.f32 %v6717, %v6747
        %v6757 = vadd.f32 %v6718, %v6747
        %v6758 = vadd.f32 %v6719, %v6747
        %v6759 = vadd.f32 %v6720, %v6747
        %v6760 = vadd.f32 %v6721, %v6747
        %v6761 = vadd.f32 %v6722, %v6747
        %v6762 = vadd.f32 %v6723, %v6747
        %v6763 = vadd.f32 %v6724, %v6747
        %v6764 = vadd.f32 %v6725, %v6747
        %v6765 = vadd.f32 %v6726, %v6747
        %v6766 = vadd.f32 %v6727, %v6747
        %v6767 = vadd.f32 %v6728, %v6747
        %v6768 = vadd.f32 %v6729, %v6747
        %v6769 = vadd.f32 %v6730, %v6747
        %v6770 = vadd.f32 %v6731, %v6747
        %v6771 = vadd.f32 %v6732, %v6747
        %v6772 = vadd.f32 %v6733, %v6747
        %v6773 = vadd.f32 %v6734, %v6747
        %v6774 = vadd.f32 %v6735, %v6747
        %v6775 = vadd.f32 %v6736, %v6747
        %v6776 = vadd.f32 %v6737, %v6747
        %v6777 = vadd.f32 %v6738, %v6747
        %v6778 = vadd.f32 %v6739, %v6747
        %v6779 = vadd.f32 %v6740, %v6747
        %v6780 = vadd.f32 %v6741, %v6747
        %v6781 = vmax.f32 %v6749, 0.0
        %v6782 = vmax.f32 %v6750, 0.0
        %v6783 = vmax.f32 %v6751, 0.0
        %v6784 = vmax.f32 %v6752, 0.0
        %v6785 = vmax.f32 %v6753, 0.0
        %v6786 = vmax.f32 %v6754, 0.0
        %v6787 = vmax.f32 %v6755, 0.0
        %v6788 = vmax.f32 %v6756, 0.0
        %v6789 = vmax.f32 %v6757, 0.0
        %v6790 = vmax.f32 %v6758, 0.0
        %v6791 = vmax.f32 %v6759, 0.0
        %v6792 = vmax.f32 %v6760, 0.0
        %v6793 = vmax.f32 %v6761, 0.0
        %v6794 = vmax.f32 %v6762, 0.0
        %v6795 = vmax.f32 %v6763, 0.0
        %v6796 = vmax.f32 %v6764, 0.0
        %v6797 = vmax.f32 %v6765, 0.0
        %v6798 = vmax.f32 %v6766, 0.0
        %v6799 = vmax.f32 %v6767, 0.0
        %v6800 = vmax.f32 %v6768, 0.0
        %v6801 = vmax.f32 %v6769, 0.0
        %v6802 = vmax.f32 %v6770, 0.0
        %v6803 = vmax.f32 %v6771, 0.0
        %v6804 = vmax.f32 %v6772, 0.0
        %v6805 = vmax.f32 %v6773, 0.0
        %v6806 = vmax.f32 %v6774, 0.0
        %v6807 = vmax.f32 %v6775, 0.0
        %v6808 = vmax.f32 %v6776, 0.0
        %v6809 = vmax.f32 %v6777, 0.0
        %v6810 = vmax.f32 %v6778, 0.0
        %v6811 = vmax.f32 %v6779, 0.0
        %v6812 = vmax.f32 %v6780, 0.0
        %v6813 = vpack.c.bf16 %v6782, %v6781
        %v6814 = vpack.c.bf16 %v6784, %v6783
        %v6815 = vpack.c.bf16 %v6786, %v6785
        %v6816 = vpack.c.bf16 %v6788, %v6787
        %v6817 = vpack.c.bf16 %v6790, %v6789
        %v6818 = vpack.c.bf16 %v6792, %v6791
        %v6819 = vpack.c.bf16 %v6794, %v6793
        %v6820 = vpack.c.bf16 %v6796, %v6795
        %v6821 = vpack.c.bf16 %v6798, %v6797
        %v6822 = vpack.c.bf16 %v6800, %v6799
        %v6823 = vpack.c.bf16 %v6802, %v6801
        %v6824 = vpack.c.bf16 %v6804, %v6803
        %v6825 = vpack.c.bf16 %v6806, %v6805
        %v6826 = vpack.c.bf16 %v6808, %v6807
        %v6827 = vpack.c.bf16 %v6810, %v6809
        %v6828 = vpack.c.bf16 %v6812, %v6811
        %v6829 = vld [vmem:[%s7] sm:$0xf]
        %v6831 = vsel %vm2311, %v6813, 0
        %v6834 = vsel %vm2311, %v6814, 0
        %v6837 = vsel %vm2311, %v6815, 0
        %v6840 = vsel %vm2311, %v6816, 0
        %v6843 = vsel %vm2311, %v6817, 0
        %v6846 = vsel %vm2311, %v6818, 0
        %v6849 = vsel %vm2311, %v6819, 0
        %v6852 = vsel %vm2311, %v6820, 0
        %v6855 = vsel %vm2311, %v6821, 0
        %v6858 = vsel %vm2311, %v6822, 0
        %v6861 = vsel %vm2311, %v6823, 0
        %v6864 = vsel %vm2311, %v6824, 0
        %v6867 = vsel %vm2311, %v6825, 0
        %v6870 = vsel %vm2311, %v6826, 0
        %v6873 = vsel %vm2311, %v6827, 0
        %v6876 = vsel %vm2311, %v6828, 0
        %v6879 = vsel %vm2360, %v6829, 0
        %6881 = vmatprep.subr.bf16.mxu0 0
        %6882 = vmatpush1.bf16.msra.mxu0 %v6879
        %6883 = vmatprep.subr.bf16.mxu0 0
        %6884 = vmatpush1.bf16.msra.mxu0 0
        %6885 = vmatprep.subr.bf16.mxu0 0
        %6886 = vmatpush1.bf16.msra.mxu0 0
        %6887 = vmatprep.subr.bf16.mxu0 0
        %6888 = vmatpush1.bf16.msra.mxu0 0
        %6889 = vmatprep.subr.bf16.mxu0 0
        %6890 = vmatpush1.bf16.msra.mxu0 0
        %6891 = vmatprep.subr.bf16.mxu0 0
        %6892 = vmatpush1.bf16.msra.mxu0 0
        %6893 = vmatprep.subr.bf16.mxu0 0
        %6894 = vmatpush1.bf16.msra.mxu0 0
        %6895 = vmatprep.subr.bf16.mxu0 0
        %6896 = vmatpush1.bf16.msra.mxu0 0
        %6897 = vmatprep.subr.bf16.mxu0 0
        %6898 = vmatpush1.bf16.msra.mxu0 0
        %6899 = vmatprep.subr.bf16.mxu0 0
        %6900 = vmatpush1.bf16.msra.mxu0 0
        %6901 = vmatprep.subr.bf16.mxu0 0
        %6902 = vmatpush1.bf16.msra.mxu0 0
        %6903 = vmatprep.subr.bf16.mxu0 0
        %6904 = vmatpush1.bf16.msra.mxu0 0
        %6905 = vmatprep.subr.bf16.mxu0 0
        %6906 = vmatpush1.bf16.msra.mxu0 0
        %6907 = vmatprep.subr.bf16.mxu0 0
        %6908 = vmatpush1.bf16.msra.mxu0 0
        %6909 = vmatprep.subr.bf16.mxu0 0
        %6910 = vmatpush1.bf16.msra.mxu0 0
        %6911 = vmatprep.subr.bf16.mxu0 0
        %6912 = vmatpush1.bf16.msra.mxu0 0
        %6913 = vmatprep.mubr.bf16.mxu0 0
        %6914 = vmatmul.mubr.bf16.gmra.mrb[0].mxu0 %v6831
        %v6915 = vpop.f32.mrb[0].mxu0
        %v6916 = vadd.f32 0.0, %v6915
        %v6917 = vpop.f32.mrb[0].mxu0
        %v6918 = vpop.f32.mrb[0].mxu0
        %v6919 = vadd.f32 0.0, %v6918
        %v6920 = vpop.f32.mrb[0].mxu0
        %6921 = vmatprep.mubr.bf16.mxu0 0
        %6922 = vmatmul.mubr.bf16.gmra.mrb[0].mxu0 %v6834
        %v6923 = vpop.f32.mrb[0].mxu0
        %v6924 = vadd.f32 0.0, %v6923
        %v6925 = vpop.f32.mrb[0].mxu0
        %v6926 = vpop.f32.mrb[0].mxu0
        %v6927 = vadd.f32 0.0, %v6926
        %v6928 = vpop.f32.mrb[0].mxu0
        %6929 = vmatprep.mubr.bf16.mxu0 0
        %6930 = vmatmul.mubr.bf16.gmra.mrb[0].mxu0 %v6837
        %v6931 = vpop.f32.mrb[0].mxu0
        %v6932 = vadd.f32 0.0, %v6931
        %v6933 = vpop.f32.mrb[0].mxu0
        %v6934 = vpop.f32.mrb[0].mxu0
        %v6935 = vadd.f32 0.0, %v6934
        %v6936 = vpop.f32.mrb[0].mxu0
        %6937 = vmatprep.mubr.bf16.mxu0 0
        %6938 = vmatmul.mubr.bf16.gmra.mrb[0].mxu0 %v6840
        %v6939 = vpop.f32.mrb[0].mxu0
        %v6940 = vadd.f32 0.0, %v6939
        %v6941 = vpop.f32.mrb[0].mxu0
        %v6942 = vpop.f32.mrb[0].mxu0
        %v6943 = vadd.f32 0.0, %v6942
        %v6944 = vpop.f32.mrb[0].mxu0
        %6945 = vmatprep.mubr.bf16.mxu0 0
        %6946 = vmatmul.mubr.bf16.gmra.mrb[0].mxu0 %v6843
        %v6947 = vpop.f32.mrb[0].mxu0
        %v6948 = vadd.f32 0.0, %v6947
        %v6949 = vpop.f32.mrb[0].mxu0
        %v6950 = vpop.f32.mrb[0].mxu0
        %v6951 = vadd.f32 0.0, %v6950
        %v6952 = vpop.f32.mrb[0].mxu0
        %6953 = vmatprep.mubr.bf16.mxu0 0
        %6954 = vmatmul.mubr.bf16.gmra.mrb[0].mxu0 %v6846
        %v6955 = vpop.f32.mrb[0].mxu0
        %v6956 = vadd.f32 0.0, %v6955
        %v6957 = vpop.f32.mrb[0].mxu0
        %v6958 = vpop.f32.mrb[0].mxu0
        %v6959 = vadd.f32 0.0, %v6958
        %v6960 = vpop.f32.mrb[0].mxu0
        %6961 = vmatprep.mubr.bf16.mxu0 0
        %6962 = vmatmul.mubr.bf16.gmra.mrb[0].mxu0 %v6849
        %v6963 = vpop.f32.mrb[0].mxu0
        %v6964 = vadd.f32 0.0, %v6963
        %v6965 = vpop.f32.mrb[0].mxu0
        %v6966 = vpop.f32.mrb[0].mxu0
        %v6967 = vadd.f32 0.0, %v6966
        %v6968 = vpop.f32.mrb[0].mxu0
        %6969 = vmatprep.mubr.bf16.mxu0 0
        %6970 = vmatmul.mubr.bf16.gmra.mrb[0].mxu0 %v6852
        %v6971 = vpop.f32.mrb[0].mxu0
        %v6972 = vadd.f32 0.0, %v6971
        %v6973 = vpop.f32.mrb[0].mxu0
        %v6974 = vpop.f32.mrb[0].mxu0
        %v6975 = vadd.f32 0.0, %v6974
        %v6976 = vpop.f32.mrb[0].mxu0
        %6977 = vmatprep.mubr.bf16.mxu0 0
        %6978 = vmatmul.mubr.bf16.gmra.mrb[0].mxu0 %v6855
        %v6979 = vpop.f32.mrb[0].mxu0
        %v6980 = vadd.f32 0.0, %v6979
        %v6981 = vpop.f32.mrb[0].mxu0
        %v6982 = vpop.f32.mrb[0].mxu0
        %v6983 = vadd.f32 0.0, %v6982
        %v6984 = vpop.f32.mrb[0].mxu0
        %6985 = vmatprep.mubr.bf16.mxu0 0
        %6986 = vmatmul.mubr.bf16.gmra.mrb[0].mxu0 %v6858
        %v6987 = vpop.f32.mrb[0].mxu0
        %v6988 = vadd.f32 0.0, %v6987
        %v6989 = vpop.f32.mrb[0].mxu0
        %v6990 = vpop.f32.mrb[0].mxu0
        %v6991 = vadd.f32 0.0, %v6990
        %v6992 = vpop.f32.mrb[0].mxu0
        %6993 = vmatprep.mubr.bf16.mxu0 0
        %6994 = vmatmul.mubr.bf16.gmra.mrb[0].mxu0 %v6861
        %v6995 = vpop.f32.mrb[0].mxu0
        %v6996 = vadd.f32 0.0, %v6995
        %v6997 = vpop.f32.mrb[0].mxu0
        %v6998 = vpop.f32.mrb[0].mxu0
        %v6999 = vadd.f32 0.0, %v6998
        %v7000 = vpop.f32.mrb[0].mxu0
        %7001 = vmatprep.mubr.bf16.mxu0 0
        %7002 = vmatmul.mubr.bf16.gmra.mrb[0].mxu0 %v6864
        %v7003 = vpop.f32.mrb[0].mxu0
        %v7004 = vadd.f32 0.0, %v7003
        %v7005 = vpop.f32.mrb[0].mxu0
        %v7006 = vpop.f32.mrb[0].mxu0
        %v7007 = vadd.f32 0.0, %v7006
        %v7008 = vpop.f32.mrb[0].mxu0
        %7009 = vmatprep.mubr.bf16.mxu0 0
        %7010 = vmatmul.mubr.bf16.gmra.mrb[0].mxu0 %v6867
        %v7011 = vpop.f32.mrb[0].mxu0
        %v7012 = vadd.f32 0.0, %v7011
        %v7013 = vpop.f32.mrb[0].mxu0
        %v7014 = vpop.f32.mrb[0].mxu0
        %v7015 = vadd.f32 0.0, %v7014
        %v7016 = vpop.f32.mrb[0].mxu0
        %7017 = vmatprep.mubr.bf16.mxu0 0
        %7018 = vmatmul.mubr.bf16.gmra.mrb[0].mxu0 %v6870
        %v7019 = vpop.f32.mrb[0].mxu0
        %v7020 = vadd.f32 0.0, %v7019
        %v7021 = vpop.f32.mrb[0].mxu0
        %v7022 = vpop.f32.mrb[0].mxu0
        %v7023 = vadd.f32 0.0, %v7022
        %v7024 = vpop.f32.mrb[0].mxu0
        %7025 = vmatprep.mubr.bf16.mxu0 0
        %7026 = vmatmul.mubr.bf16.gmra.mrb[0].mxu0 %v6873
        %v7027 = vpop.f32.mrb[0].mxu0
        %v7028 = vadd.f32 0.0, %v7027
        %v7029 = vpop.f32.mrb[0].mxu0
        %v7030 = vpop.f32.mrb[0].mxu0
        %v7031 = vadd.f32 0.0, %v7030
        %v7032 = vpop.f32.mrb[0].mxu0
        %7033 = vmatprep.mubr.bf16.mxu0 0
        %7034 = vmatmul.mubr.bf16.gmra.mrb[0].mxu0 %v6876
        %v7035 = vpop.f32.mrb[0].mxu0
        %v7036 = vadd.f32 0.0, %v7035
        %v7037 = vpop.f32.mrb[0].mxu0
        %v7038 = vpop.f32.mrb[0].mxu0
        %v7039 = vadd.f32 0.0, %v7038
        %v7040 = vpop.f32.mrb[0].mxu0
        %7041 = vdwg.mxu0
        %v7042 = vld [vmem:[%s8] sm:$0x1]
        %v7044 = vlaneseq
        %v7045 = vshrl.u32 %v7044, 7
        %v7046 = vsub.s32 0, %v7045
        %v7047 = vrot.slane %v7042, %v7046
        %v7049 = vmul.f32 %v6916, %v7047
        %v7050 = vmul.f32 %v6919, %v7047
        %v7051 = vmul.f32 %v6924, %v7047
        %v7052 = vmul.f32 %v6927, %v7047
        %v7053 = vmul.f32 %v6932, %v7047
        %v7054 = vmul.f32 %v6935, %v7047
        %v7055 = vmul.f32 %v6940, %v7047
        %v7056 = vmul.f32 %v6943, %v7047
        %v7057 = vmul.f32 %v6948, %v7047
        %v7058 = vmul.f32 %v6951, %v7047
        %v7059 = vmul.f32 %v6956, %v7047
        %v7060 = vmul.f32 %v6959, %v7047
        %v7061 = vmul.f32 %v6964, %v7047
        %v7062 = vmul.f32 %v6967, %v7047
        %v7063 = vmul.f32 %v6972, %v7047
        %v7064 = vmul.f32 %v6975, %v7047
        %v7065 = vmul.f32 %v6980, %v7047
        %v7066 = vmul.f32 %v6983, %v7047
        %v7067 = vmul.f32 %v6988, %v7047
        %v7068 = vmul.f32 %v6991, %v7047
        %v7069 = vmul.f32 %v6996, %v7047
        %v7070 = vmul.f32 %v6999, %v7047
        %v7071 = vmul.f32 %v7004, %v7047
        %v7072 = vmul.f32 %v7007, %v7047
        %v7073 = vmul.f32 %v7012, %v7047
        %v7074 = vmul.f32 %v7015, %v7047
        %v7075 = vmul.f32 %v7020, %v7047
        %v7076 = vmul.f32 %v7023, %v7047
        %v7077 = vmul.f32 %v7028, %v7047
        %v7078 = vmul.f32 %v7031, %v7047
        %v7079 = vmul.f32 %v7036, %v7047
        %v7080 = vmul.f32 %v7039, %v7047
        %v7081 = vld [vmem:[%s9] sm:$0x1]
        %v7083 = vlaneseq
        %v7084 = vshrl.u32 %v7083, 7
        %v7085 = vsub.s32 0, %v7084
        %v7086 = vrot.slane %v7081, %v7085
        %v7088 = vadd.f32 %v7049, %v7086
        %v7089 = vadd.f32 %v7050, %v7086
        %v7090 = vadd.f32 %v7051, %v7086
        %v7091 = vadd.f32 %v7052, %v7086
        %v7092 = vadd.f32 %v7053, %v7086
        %v7093 = vadd.f32 %v7054, %v7086
        %v7094 = vadd.f32 %v7055, %v7086
        %v7095 = vadd.f32 %v7056, %v7086
        %v7096 = vadd.f32 %v7057, %v7086
        %v7097 = vadd.f32 %v7058, %v7086
        %v7098 = vadd.f32 %v7059, %v7086
        %v7099 = vadd.f32 %v7060, %v7086
        %v7100 = vadd.f32 %v7061, %v7086
        %v7101 = vadd.f32 %v7062, %v7086
        %v7102 = vadd.f32 %v7063, %v7086
        %v7103 = vadd.f32 %v7064, %v7086
        %v7104 = vadd.f32 %v7065, %v7086
        %v7105 = vadd.f32 %v7066, %v7086
        %v7106 = vadd.f32 %v7067, %v7086
        %v7107 = vadd.f32 %v7068, %v7086
        %v7108 = vadd.f32 %v7069, %v7086
        %v7109 = vadd.f32 %v7070, %v7086
        %v7110 = vadd.f32 %v7071, %v7086
        %v7111 = vadd.f32 %v7072, %v7086
        %v7112 = vadd.f32 %v7073, %v7086
        %v7113 = vadd.f32 %v7074, %v7086
        %v7114 = vadd.f32 %v7075, %v7086
        %v7115 = vadd.f32 %v7076, %v7086
        %v7116 = vadd.f32 %v7077, %v7086
        %v7117 = vadd.f32 %v7078, %v7086
        %v7118 = vadd.f32 %v7079, %v7086
        %v7119 = vadd.f32 %v7080, %v7086
        %v7120 = vadd.f32 %v7088, %v390
        %v7121 = vadd.f32 %v7089, %v391
        %v7122 = vadd.f32 %v7090, %v392
        %v7123 = vadd.f32 %v7091, %v393
        %v7124 = vadd.f32 %v7092, %v394
        %v7125 = vadd.f32 %v7093, %v395
        %v7126 = vadd.f32 %v7094, %v396
        %v7127 = vadd.f32 %v7095, %v397
        %v7128 = vadd.f32 %v7096, %v398
        %v7129 = vadd.f32 %v7097, %v399
        %v7130 = vadd.f32 %v7098, %v400
        %v7131 = vadd.f32 %v7099, %v401
        %v7132 = vadd.f32 %v7100, %v402
        %v7133 = vadd.f32 %v7101, %v403
        %v7134 = vadd.f32 %v7102, %v404
        %v7135 = vadd.f32 %v7103, %v405
        %v7136 = vadd.f32 %v7104, %v406
        %v7137 = vadd.f32 %v7105, %v407
        %v7138 = vadd.f32 %v7106, %v408
        %v7139 = vadd.f32 %v7107, %v409
        %v7140 = vadd.f32 %v7108, %v410
        %v7141 = vadd.f32 %v7109, %v411
        %v7142 = vadd.f32 %v7110, %v412
        %v7143 = vadd.f32 %v7111, %v413
        %v7144 = vadd.f32 %v7112, %v414
        %v7145 = vadd.f32 %v7113, %v415
        %v7146 = vadd.f32 %v7114, %v416
        %v7147 = vadd.f32 %v7115, %v417
        %v7148 = vadd.f32 %v7116, %v418
        %v7149 = vadd.f32 %v7117, %v419
        %v7150 = vadd.f32 %v7118, %v420
        %v7151 = vadd.f32 %v7119, %v421
        %v7152 = vmax.f32 %v7120, 0.0
        %v7153 = vmax.f32 %v7121, 0.0
        %v7154 = vmax.f32 %v7122, 0.0
        %v7155 = vmax.f32 %v7123, 0.0
        %v7156 = vmax.f32 %v7124, 0.0
        %v7157 = vmax.f32 %v7125, 0.0
        %v7158 = vmax.f32 %v7126, 0.0
        %v7159 = vmax.f32 %v7127, 0.0
        %v7160 = vmax.f32 %v7128, 0.0
        %v7161 = vmax.f32 %v7129, 0.0
        %v7162 = vmax.f32 %v7130, 0.0
        %v7163 = vmax.f32 %v7131, 0.0
        %v7164 = vmax.f32 %v7132, 0.0
        %v7165 = vmax.f32 %v7133, 0.0
        %v7166 = vmax.f32 %v7134, 0.0
        %v7167 = vmax.f32 %v7135, 0.0
        %v7168 = vmax.f32 %v7136, 0.0
        %v7169 = vmax.f32 %v7137, 0.0
        %v7170 = vmax.f32 %v7138, 0.0
        %v7171 = vmax.f32 %v7139, 0.0
        %v7172 = vmax.f32 %v7140, 0.0
        %v7173 = vmax.f32 %v7141, 0.0
        %v7174 = vmax.f32 %v7142, 0.0
        %v7175 = vmax.f32 %v7143, 0.0
        %v7176 = vmax.f32 %v7144, 0.0
        %v7177 = vmax.f32 %v7145, 0.0
        %v7178 = vmax.f32 %v7146, 0.0
        %v7179 = vmax.f32 %v7147, 0.0
        %v7180 = vmax.f32 %v7148, 0.0
        %v7181 = vmax.f32 %v7149, 0.0
        %v7182 = vmax.f32 %v7150, 0.0
        %v7183 = vmax.f32 %v7151, 0.0
        %7184 = vxpose.xlu0.b32.start [1/16] %v7152, 128
        %7185 = vxpose.xlu0.b32.cont [2/16] %v7153, 128
        %7186 = vxpose.xlu0.b32.cont [3/16] %v7154, 128
        %7187 = vxpose.xlu0.b32.cont [4/16] %v7155, 128
        %7188 = vxpose.xlu0.b32.cont [5/16] %v7156, 128
        %7189 = vxpose.xlu0.b32.cont [6/16] %v7157, 128
        %7190 = vxpose.xlu0.b32.cont [7/16] %v7158, 128
        %7191 = vxpose.xlu0.b32.cont [8/16] %v7159, 128
        %7192 = vxpose.xlu0.b32.cont [9/16] %v7160, 128
        %7193 = vxpose.xlu0.b32.cont [10/16] %v7161, 128
        %7194 = vxpose.xlu0.b32.cont [11/16] %v7162, 128
        %7195 = vxpose.xlu0.b32.cont [12/16] %v7163, 128
        %7196 = vxpose.xlu0.b32.cont [13/16] %v7164, 128
        %7197 = vxpose.xlu0.b32.cont [14/16] %v7165, 128
        %7198 = vxpose.xlu0.b32.cont [15/16] %v7166, 128
        %7199 = vxpose.xlu0.b32.end [16/16] %v7167, 128
        %v7200 = vpop.trf.xlu0
        %v7201 = vpop.trf.xlu0
        %v7202 = vpop.trf.xlu0
        %v7203 = vpop.trf.xlu0
        %v7204 = vpop.trf.xlu0
        %v7205 = vpop.trf.xlu0
        %v7206 = vpop.trf.xlu0
        %v7207 = vpop.trf.xlu0
        %v7208 = vpop.trf.xlu0
        %v7209 = vpop.trf.xlu0
        %v7210 = vpop.trf.xlu0
        %v7211 = vpop.trf.xlu0
        %v7212 = vpop.trf.xlu0
        %v7213 = vpop.trf.xlu0
        %v7214 = vpop.trf.xlu0
        %v7215 = vpop.trf.xlu0
        %7216 = vxpose.xlu0.b32.start [1/16] %v7168, 128
        %7217 = vxpose.xlu0.b32.cont [2/16] %v7169, 128
        %7218 = vxpose.xlu0.b32.cont [3/16] %v7170, 128
        %7219 = vxpose.xlu0.b32.cont [4/16] %v7171, 128
        %7220 = vxpose.xlu0.b32.cont [5/16] %v7172, 128
        %7221 = vxpose.xlu0.b32.cont [6/16] %v7173, 128
        %7222 = vxpose.xlu0.b32.cont [7/16] %v7174, 128
        %7223 = vxpose.xlu0.b32.cont [8/16] %v7175, 128
        %7224 = vxpose.xlu0.b32.cont [9/16] %v7176, 128
        %7225 = vxpose.xlu0.b32.cont [10/16] %v7177, 128
        %7226 = vxpose.xlu0.b32.cont [11/16] %v7178, 128
        %7227 = vxpose.xlu0.b32.cont [12/16] %v7179, 128
        %7228 = vxpose.xlu0.b32.cont [13/16] %v7180, 128
        %7229 = vxpose.xlu0.b32.cont [14/16] %v7181, 128
        %7230 = vxpose.xlu0.b32.cont [15/16] %v7182, 128
        %7231 = vxpose.xlu0.b32.end [16/16] %v7183, 128
        %v7232 = vpop.trf.xlu0
        %v7233 = vpop.trf.xlu0
        %v7234 = vpop.trf.xlu0
        %v7235 = vpop.trf.xlu0
        %v7236 = vpop.trf.xlu0
        %v7237 = vpop.trf.xlu0
        %v7238 = vpop.trf.xlu0
        %v7239 = vpop.trf.xlu0
        %v7240 = vpop.trf.xlu0
        %v7241 = vpop.trf.xlu0
        %v7242 = vpop.trf.xlu0
        %v7243 = vpop.trf.xlu0
        %v7244 = vpop.trf.xlu0
        %v7245 = vpop.trf.xlu0
        %v7246 = vpop.trf.xlu0
        %v7247 = vpop.trf.xlu0
        %7248 = vst [vmem:[%s349] sm:$0xff] %v7200
        %7249 = vst [vmem:[%s349 + $0x8] sm:$0xff] %v7232
        %7250 = vst [vmem:[%s349 + $0x10] sm:$0xff] %v7201
        %7251 = vst [vmem:[%s349 + $0x18] sm:$0xff] %v7233
        %7252 = vst [vmem:[%s349 + $0x20] sm:$0xff] %v7202
        %7253 = vst [vmem:[%s349 + $0x28] sm:$0xff] %v7234
        %7254 = vst [vmem:[%s349 + $0x30] sm:$0xff] %v7203
        %7255 = vst [vmem:[%s349 + $0x38] sm:$0xff] %v7235
        %s7256 = sand.u32 %s244, 1
        %s7257 = sand.u32 %s244, 1
        %s7258 = smul.addr %s7257, 64
        %s7259 = scalar_lea.vmem [#allocation3], %s7258
        // Predicated region
        $region61: #{bottleneck_forward.1} parent=59 // pred_check
          %p7260 = pneg %p254
        $region62: #{bottleneck_forward.1} parent=59 // pred_check_branch
          %7262 = sbr.rel (%p7260) target = $region64
        $region63: #{bottleneck_forward.1} parent=59 // pred_region
          %s7263 = smul.u32 2, %s21
          %s7264 = smul.addr %s7263, 8
          %s7265 = scalar_lea.vmem %s10, %s7264
          // Predicated region
          $region65: #{bottleneck_forward.1} parent=63 // pred_check
            _
          $region66: #{bottleneck_forward.1} parent=63 // pred_check_branch
            %7267 = sbr.rel (0) target = $region68
          $region67: #{bottleneck_forward.1} parent=63 // pred_region
            // Predicated region
            $region69: #{bottleneck_forward.1} parent=67 // pred_check
              _
            $region70: #{bottleneck_forward.1} parent=67 // pred_check_branch
              %7269 = sbr.rel (0) target = $region72
            $region71: #{bottleneck_forward.1} parent=67 // pred_region
              loop: start=0, step=1, limit=1
              $region73: #{bottleneck_forward.1} parent=71 // loop_pre_header
                _
              $region74: #{bottleneck_forward.1} parent=71 // loop_header
                %s7271 = sphi 0, %s7275
                %p7272 = scmp.ge.s32.totalorder %s7271, 1
                %s7276 = sphi %s7259, %s7259
                %s7277 = sphi %s7265, %s7265
              $region75: #{bottleneck_forward.1} parent=71 // loop_header_branch
                %7274 = sbr.rel (%p7272) target = $region79
              $region76: #{bottleneck_forward.1} parent=71 // loop_body
                %v7278 = vld [vmem:[%s7276] sm:$0xff]
                %7279 = vst [vmem:[%s7277] sm:$0xff] %v7278
                %v7280 = vld [vmem:[%s7276 + $0x8] sm:$0xff]
                %7281 = vst [vmem:[%s7277 + $0x8] sm:$0xff] %v7280
                %v7282 = vld [vmem:[%s7276 + $0x10] sm:$0xff]
                %7283 = vst [vmem:[%s7277 + $0x20] sm:$0xff] %v7282
                %v7284 = vld [vmem:[%s7276 + $0x18] sm:$0xff]
                %7285 = vst [vmem:[%s7277 + $0x28] sm:$0xff] %v7284
                %v7286 = vld [vmem:[%s7276 + $0x20] sm:$0xff]
                %7287 = vst [vmem:[%s7277 + $0x40] sm:$0xff] %v7286
                %v7288 = vld [vmem:[%s7276 + $0x28] sm:$0xff]
                %7289 = vst [vmem:[%s7277 + $0x48] sm:$0xff] %v7288
                %v7290 = vld [vmem:[%s7276 + $0x30] sm:$0xff]
                %7291 = vst [vmem:[%s7277 + $0x60] sm:$0xff] %v7290
                %v7292 = vld [vmem:[%s7276 + $0x38] sm:$0xff]
                %7293 = vst [vmem:[%s7277 + $0x68] sm:$0xff] %v7292
              $region77: #{bottleneck_forward.1} parent=71 // loop_footer
                %s7275 = sadd.s32 1, %s7271
              $region78: #{bottleneck_forward.1} parent=71 // loop_footer_branch
                %7270 = sbr.rel target = $region74
              $region79: #{bottleneck_forward.1} parent=71 // loop_exit
                _
            $region72: #{bottleneck_forward.1} parent=67 // pred_fallthru
              _
            // Predicated region
            $region80: #{bottleneck_forward.1} parent=67 // pred_check
              _
            $region81: #{bottleneck_forward.1} parent=67 // pred_check_branch
              %7295 = sbr.rel target = $region83
            $region82: #{bottleneck_forward.1} parent=67 // pred_region
              _
            $region83: #{bottleneck_forward.1} parent=67 // pred_fallthru
              _
          $region68: #{bottleneck_forward.1} parent=63 // pred_fallthru
            _
          %7296 = vnop
        $region64: #{bottleneck_forward.1} parent=59 // pred_fallthru
          _
      $region60: #{bottleneck_forward.1} parent=5 // pred_fallthru
        _
      %p7297 = scmp.le.s32.totalorder 2, %s16
      // Predicated region
      $region84: #{bottleneck_forward.1} parent=5 // pred_check
        %p7298 = pneg %p7297
      $region85: #{bottleneck_forward.1} parent=5 // pred_check_branch
        %7300 = sbr.rel (%p7298) target = $region87
      $region86: #{bottleneck_forward.1} parent=5 // pred_region
        %s7301 = ssub.s32 %s16, 2
        // Predicated region
        $region88: #{bottleneck_forward.1} parent=86 // pred_check
          %p7302 = pneg %p260
        $region89: #{bottleneck_forward.1} parent=86 // pred_check_branch
          %7304 = sbr.rel (%p7302) target = $region91
        $region90: #{bottleneck_forward.1} parent=86 // pred_region
          %s7305 = sand.u32 %s245, 1
          %s7306 = sand.u32 %s245, 1
          %s7307 = smul.addr %s7306, 64
          %s7308 = scalar_lea.vmem [#allocation3], %s7307
        $region91: #{bottleneck_forward.1} parent=86 // pred_fallthru
          _
      $region87: #{bottleneck_forward.1} parent=5 // pred_fallthru
        _
    $region6: #{bottleneck_forward.1} parent=1 // loop_footer
      %s20 = sadd.s32 1, %s16
    $region7: #{bottleneck_forward.1} parent=1 // loop_footer_branch
      %15 = sbr.rel target = $region3
    $region8: #{bottleneck_forward.1} parent=1 // loop_exit
      _

</llo_original>
